<compile_context>
chip_gen: v5e
topology: v5e:2x2
jax: 0.10.0
libtpu: 0.0.40
codegen_flags: <defaults>
</compile_context>

<pallas_src>
import jax
import jax.numpy as jnp
from jax.experimental import pallas as pl
from jax.experimental.pallas import tpu as pltpu

CPAD = 128          # lane-dense channel padding for all conv stages
H1P, H2P, OUTP = 256, 128, 128   # padded classifier widths (200, 100, 10)
EPS = 1e-5


def _fold_bn(gamma, beta, mean, var, eps=EPS):
    scale = gamma / jnp.sqrt(var + eps)
    shift = beta - mean * scale
    return scale, shift


# ----------------------------------------------------------------------------
# Fused kernel builder
# ----------------------------------------------------------------------------
def _make_fused_kernel(conv_arch, h0, w0):
    # Spatial size at the start of each VGG block (each block ends in a pool).
    stage_hw = []
    h, w = h0, w0
    for _ in conv_arch:
        assert h % 2 == 0 and w % 2 == 0, "maxpool requires even spatial dims"
        stage_hw.append((h, w))
        h //= 2
        w //= 2
    hf, wf = h, w
    assert hf == 4 and wf == 4, "classifier expects a 4x4 final feature map"

    # One zero-halo scratch buffer per block stage (kept resident in VMEM).
    scratch_shapes = [pltpu.VMEM((sh + 2, sw + 2, CPAD), jnp.float32)
                      for (sh, sw) in stage_hw]

    def kernel(x_ref, wc_ref, sc_ref, tc_ref,
               w1_ref, b1_ref, s1_ref, t1_ref,
               w2_ref, b2_ref, s2_ref, t2_ref,
               w3_ref, b3_ref, o_ref, *pads):
        # Zero the halo'd scratch buffers (the 1-pixel halo must be zero).
        for p in pads:
            p[...] = jnp.zeros(p.shape, p.dtype)

        cur = x_ref[0]                                  # (h0, w0, 128) f32
        li = 0
        for bi, (num_convs, _) in enumerate(conv_arch):
            sh, sw = stage_hw[bi]
            pad = pads[bi]
            for _ in range(num_convs):
                # Conv(3x3, pad=1) + folded BN + ReLU, as 9 K=128 MXU matmuls.
                pad[1:sh + 1, 1:sw + 1, :] = cur        # interior; halo stays 0
                acc = jnp.zeros((sh * sw, CPAD), jnp.float32)
                for kh in range(3):
                    for kw in range(3):
                        patch = pad[kh:kh + sh, kw:kw + sw, :]
                        patch = patch.reshape(sh * sw, CPAD).astype(jnp.bfloat16)
                        acc = acc + jnp.dot(
                            patch, wc_ref[li * 9 + kh * 3 + kw],
                            preferred_element_type=jnp.float32)
                y = acc * sc_ref[li:li + 1, :] + tc_ref[li:li + 1, :]
                y = jnp.maximum(y, 0.0)                 # f32 epilogue
                cur = y.reshape(sh, sw, CPAD)
                li += 1

            # MaxPool2d(2, 2): rows reduced in registers, columns via a
            # sublane-strided VMEM read from the (no longer needed) scratch.
            ho, wo = sh // 2, sw // 2
            r = cur.reshape(ho, 2, sw, CPAD)
            z = jnp.maximum(r[:, 0, :, :], r[:, 1, :, :])       # (ho, sw, 128)
            pad[0:ho, 0:sw, :] = z
            a = pad[0:ho, pl.ds(0, wo, stride=2), :]
            b = pad[0:ho, pl.ds(1, wo, stride=2), :]
            cur = jnp.maximum(a, b)                             # (ho, wo, 128)

        # ---- classifier: Flatten -> FC -> ReLU -> (Dropout) -> BN -> FC ->
        #                  ReLU -> BN -> FC (all dims padded lane-dense) ----
        hid = jnp.zeros((1, H1P), jnp.float32)
        s = 0
        for ih in range(hf):
            for iw in range(wf):
                row = cur[ih, iw:iw + 1, :].astype(jnp.bfloat16)  # (1, 128)
                hid = hid + jnp.dot(row, w1_ref[s],
                                    preferred_element_type=jnp.float32)
                s += 1
        hid = jnp.maximum(hid + b1_ref[...], 0.0)
        # Dropout(0.3): identity in eval mode.
        hid = hid * s1_ref[...] + t1_ref[...]                    # BatchNorm1d(200)
        hid = jnp.dot(hid.astype(jnp.bfloat16), w2_ref[...],
                      preferred_element_type=jnp.float32)
        hid = jnp.maximum(hid + b2_ref[...], 0.0)
        hid = hid * s2_ref[...] + t2_ref[...]                    # BatchNorm1d(100)
        logits = jnp.dot(hid.astype(jnp.bfloat16), w3_ref[...],
                         preferred_element_type=jnp.float32) + b3_ref[...]
        o_ref[0] = logits

    return kernel, scratch_shapes


# ----------------------------------------------------------------------------
# Parameter generation (PyTorch layouts) and packing to kernel operands
# ----------------------------------------------------------------------------
def init_torch_params(key, conv_arch, in_channels=3, n_classes=10):
    keys = iter(jax.random.split(key, 64))

    def nrm(shape, s=0.1):
        return s * jax.random.normal(next(keys), shape, jnp.float32)

    def bn_stats(dim):
        return (1.0 + nrm((dim,)), nrm((dim,)), nrm((dim,)),
                0.5 + jnp.abs(jax.random.normal(next(keys), (dim,), jnp.float32)))

    conv = []
    cin = in_channels
    for num_convs, cout in conv_arch:
        for _ in range(num_convs):
            w = nrm((cout, cin, 3, 3))                  # PyTorch (Cout,Cin,3,3)
            b = nrm((cout,))
            conv.append((w, b) + bn_stats(cout))
            cin = cout

    feat = conv_arch[-1][1] * 4 * 4
    w1, b1 = nrm((200, feat)), nrm((200,))
    bn1 = bn_stats(200)
    w2, b2 = nrm((100, 200)), nrm((100,))
    bn2 = bn_stats(100)
    w3, b3 = nrm((n_classes, 100)), nrm((n_classes,))
    return {"conv": conv, "fc": (w1, b1, bn1, w2, b2, bn2, w3, b3)}


def prepare_params(tp, conv_arch, hw_final=4, n_classes=10):
    """Pack PyTorch-layout params into lane-dense, bias-folded kernel operands."""
    wc, sc, tc = [], [], []
    for (w, b, gamma, beta, mean, var) in tp["conv"]:
        cout, cin = int(w.shape[0]), int(w.shape[1])
        assert cout <= CPAD and cin <= CPAD
        taps = jnp.transpose(w, (2, 3, 1, 0)).reshape(9, cin, cout)
        wc.append(jnp.zeros((9, CPAD, CPAD), jnp.float32)
                  .at[:, :cin, :cout].set(taps))
        scale, shift = _fold_bn(gamma, beta, mean, var)
        shift = shift + b * scale                       # fold conv bias into BN
        sc.append(jnp.zeros((CPAD,), jnp.float32).at[:cout].set(scale))
        tc.append(jnp.zeros((CPAD,), jnp.float32).at[:cout].set(shift))

    packed = {
        "wc": jnp.concatenate(wc, axis=0).astype(jnp.bfloat16),  # (9L,128,128)
        "sc": jnp.stack(sc, axis=0),                             # (L,128)
        "tc": jnp.stack(tc, axis=0),                             # (L,128)
    }

    (w1, b1, bn1, w2, b2, bn2, w3, b3) = tp["fc"]
    c_last = conv_arch[-1][1]
    s_tot = hw_final * hw_final
    h1, h2 = int(w1.shape[0]), int(w2.shape[0])

    # Reorder W1 rows so the in-kernel HWC flatten matches PyTorch's CHW order.
    w1k = w1.T.reshape(c_last, hw_final, hw_final, h1)           # (c,h,w,200)
    w1k = jnp.transpose(w1k, (1, 2, 0, 3)).reshape(s_tot, c_last, h1)
    packed["w1"] = (jnp.zeros((s_tot, CPAD, H1P), jnp.float32)
                    .at[:, :c_last, :h1].set(w1k).astype(jnp.bfloat16))
    packed["b1"] = jnp.zeros((1, H1P), jnp.float32).at[0, :h1].set(b1)
    s1, t1 = _fold_bn(*bn1)
    packed["s1"] = jnp.zeros((1, H1P), jnp.float32).at[0, :h1].set(s1)
    packed["t1"] = jnp.zeros((1, H1P), jnp.float32).at[0, :h1].set(t1)

    packed["w2"] = (jnp.zeros((H1P, H2P), jnp.float32)
                    .at[:h1, :h2].set(w2.T).astype(jnp.bfloat16))
    packed["b2"] = jnp.zeros((1, H2P), jnp.float32).at[0, :h2].set(b2)
    s2, t2 = _fold_bn(*bn2)
    packed["s2"] = jnp.zeros((1, H2P), jnp.float32).at[0, :h2].set(s2)
    packed["t2"] = jnp.zeros((1, H2P), jnp.float32).at[0, :h2].set(t2)

    packed["w3"] = (jnp.zeros((H2P, OUTP), jnp.float32)
                    .at[:h2, :n_classes].set(w3.T).astype(jnp.bfloat16))
    packed["b3"] = jnp.zeros((1, OUTP), jnp.float32).at[0, :n_classes].set(b3)
    return packed


# ----------------------------------------------------------------------------
# Forward wrapper: one fused pallas_call over a batch-parallel grid
# ----------------------------------------------------------------------------
def vggnet_forward(x_nchw, packed, conv_arch, n_classes=10):
    n, cin, h0, w0 = x_nchw.shape
    kernel, scratch_shapes = _make_fused_kernel(conv_arch, h0, w0)

    # One-time tiny glue: NCHW -> NHWC and zero-pad channels to 128 lanes.
    x = jnp.transpose(x_nchw, (0, 2, 3, 1)).astype(jnp.float32)
    x = jnp.pad(x, ((0, 0), (0, 0), (0, 0), (0, CPAD - cin)))

    def _full(a):
        nd = a.ndim
        return pl.BlockSpec(a.shape, lambda i, _nd=nd: (0,) * _nd)

    in_specs = [pl.BlockSpec((1, h0, w0, CPAD), lambda i: (i, 0, 0, 0))]
    operands = [x]
    for name in ("wc", "sc", "tc", "w1", "b1", "s1", "t1",
                 "w2", "b2", "s2", "t2", "w3", "b3"):
        a = packed[name]
        in_specs.append(_full(a))
        operands.append(a)

    out = pl.pallas_call(
        kernel,
        out_shape=jax.ShapeDtypeStruct((n, 1, OUTP), jnp.float32),
        grid=(n,),
        in_specs=in_specs,
        out_specs=pl.BlockSpec((1, 1, OUTP), lambda i: (i, 0, 0)),
        scratch_shapes=scratch_shapes,
        compiler_params=pltpu.CompilerParams(
            dimension_semantics=("parallel",)),
    )(*operands)
    return out[:, 0, :n_classes]


if __name__ == "__main__":
    key = jax.random.PRNGKey(0)
    k_x, k_p = jax.random.split(key)

    conv_arch = ((1, 8), (2, 16))          # two VGG blocks: 16 -> 8 -> 4 spatial
    N, Cin, Hin, Win = 2, 3, 16, 16        # final features: 16 * 4 * 4 = 256

    x = jax.random.normal(k_x, (N, Cin, Hin, Win), jnp.float32)
    torch_like = init_torch_params(k_p, conv_arch, in_channels=Cin, n_classes=10)
    packed = prepare_params(torch_like, conv_arch, hw_final=4, n_classes=10)

    out = vggnet_forward(x, packed, conv_arch, n_classes=10)
    out = jax.block_until_ready(out)
    assert out.shape == (N, 10) and out.dtype == jnp.float32
    assert bool(jnp.all(jnp.isfinite(out)))
    print("KERNEL_OK")
</pallas_src>

<mosaic_0001>
module attributes {stable_mosaic.version = 11 : i64} {
  func.func @kernel(%arg0: i32, %arg1: memref<1x16x16x128xf32, #tpu.memory_space<vmem>>, %arg2: memref<27x128x128xbf16, #tpu.memory_space<vmem>>, %arg3: memref<3x128xf32, #tpu.memory_space<vmem>>, %arg4: memref<3x128xf32, #tpu.memory_space<vmem>>, %arg5: memref<16x128x256xbf16, #tpu.memory_space<vmem>>, %arg6: memref<1x256xf32, #tpu.memory_space<vmem>>, %arg7: memref<1x256xf32, #tpu.memory_space<vmem>>, %arg8: memref<1x256xf32, #tpu.memory_space<vmem>>, %arg9: memref<256x128xbf16, #tpu.memory_space<vmem>>, %arg10: memref<1x128xf32, #tpu.memory_space<vmem>>, %arg11: memref<1x128xf32, #tpu.memory_space<vmem>>, %arg12: memref<1x128xf32, #tpu.memory_space<vmem>>, %arg13: memref<128x128xbf16, #tpu.memory_space<vmem>>, %arg14: memref<1x128xf32, #tpu.memory_space<vmem>>, %arg15: memref<1x1x128xf32, #tpu.memory_space<vmem>>, %arg16: memref<18x18x128xf32, #tpu.memory_space<vmem>>, %arg17: memref<10x10x128xf32, #tpu.memory_space<vmem>>) attributes {dimension_semantics = [#tpu.dimension_semantics<parallel>], iteration_bounds = array<i64: 2>, scalar_prefetch = 0 : i64, scratch_operands = 2 : i64, tpu.core_type = #tpu.core_type<tc>, window_params = [{transform_indices = @transform_0, window_bounds = array<i64: 1, 16, 16, 128>}, {pipeline_mode = #tpu.pipeline_mode<synchronous>, transform_indices = @transform_1, window_bounds = array<i64: 27, 128, 128>}, {pipeline_mode = #tpu.pipeline_mode<synchronous>, transform_indices = @transform_2, window_bounds = array<i64: 3, 128>}, {pipeline_mode = #tpu.pipeline_mode<synchronous>, transform_indices = @transform_3, window_bounds = array<i64: 3, 128>}, {pipeline_mode = #tpu.pipeline_mode<synchronous>, transform_indices = @transform_4, window_bounds = array<i64: 16, 128, 256>}, {pipeline_mode = #tpu.pipeline_mode<synchronous>, transform_indices = @transform_5, window_bounds = array<i64: 1, 256>}, {pipeline_mode = #tpu.pipeline_mode<synchronous>, transform_indices = @transform_6, window_bounds = array<i64: 1, 256>}, {pipeline_mode = #tpu.pipeline_mode<synchronous>, transform_indices = @transform_7, window_bounds = array<i64: 1, 256>}, {pipeline_mode = #tpu.pipeline_mode<synchronous>, transform_indices = @transform_8, window_bounds = array<i64: 256, 128>}, {pipeline_mode = #tpu.pipeline_mode<synchronous>, transform_indices = @transform_9, window_bounds = array<i64: 1, 128>}, {pipeline_mode = #tpu.pipeline_mode<synchronous>, transform_indices = @transform_10, window_bounds = array<i64: 1, 128>}, {pipeline_mode = #tpu.pipeline_mode<synchronous>, transform_indices = @transform_11, window_bounds = array<i64: 1, 128>}, {pipeline_mode = #tpu.pipeline_mode<synchronous>, transform_indices = @transform_12, window_bounds = array<i64: 128, 128>}, {pipeline_mode = #tpu.pipeline_mode<synchronous>, transform_indices = @transform_13, window_bounds = array<i64: 1, 128>}, {transform_indices = @transform_14, window_bounds = array<i64: 1, 1, 128>}]} {
    %cst = arith.constant 0.000000e+00 : f32
    %0 = vector.broadcast %cst : f32 to vector<18x18x128xf32>
    %c0 = arith.constant 0 : index
    %c0_0 = arith.constant 0 : index
    %c0_1 = arith.constant 0 : index
    %1 = vector.load %arg16[%c0, %c0_0, %c0_1] : memref<18x18x128xf32, #tpu.memory_space<vmem>>, vector<18x18x128xf32>
    tpu.vector_store %arg16[%c0, %c0_0, %c0_1], %0 {strides = array<i32>} : memref<18x18x128xf32, #tpu.memory_space<vmem>>, vector<18x18x128xf32>,
    %cst_2 = arith.constant 0.000000e+00 : f32
    %2 = vector.broadcast %cst_2 : f32 to vector<10x10x128xf32>
    %c0_3 = arith.constant 0 : index
    %c0_4 = arith.constant 0 : index
    %c0_5 = arith.constant 0 : index
    %3 = vector.load %arg17[%c0_3, %c0_4, %c0_5] : memref<10x10x128xf32, #tpu.memory_space<vmem>>, vector<10x10x128xf32>
    tpu.vector_store %arg17[%c0_3, %c0_4, %c0_5], %2 {strides = array<i32>} : memref<10x10x128xf32, #tpu.memory_space<vmem>>, vector<10x10x128xf32>,
    %c0_6 = arith.constant 0 : index
    %c0_7 = arith.constant 0 : index
    %c0_8 = arith.constant 0 : index
    %c0_9 = arith.constant 0 : index
    %4 = vector.load %arg1[%c0_6, %c0_7, %c0_8, %c0_9] : memref<1x16x16x128xf32, #tpu.memory_space<vmem>>, vector<1x16x16x128xf32>
    %5 = vector.shape_cast %4 : vector<1x16x16x128xf32> to vector<16x16x128xf32>
    %c1 = arith.constant 1 : index
    %c1_10 = arith.constant 1 : index
    %c0_11 = arith.constant 0 : index
    %6 = vector.load %arg16[%c1, %c1_10, %c0_11] : memref<18x18x128xf32, #tpu.memory_space<vmem>>, vector<16x16x128xf32>
    tpu.vector_store %arg16[%c1, %c1_10, %c0_11], %5 {strides = array<i32>} : memref<18x18x128xf32, #tpu.memory_space<vmem>>, vector<16x16x128xf32>,
    %cst_12 = arith.constant 0.000000e+00 : f32
    %7 = vector.broadcast %cst_12 : f32 to vector<256x128xf32>
    %c0_13 = arith.constant 0 : index
    %c0_14 = arith.constant 0 : index
    %c0_15 = arith.constant 0 : index
    %8 = vector.load %arg16[%c0_13, %c0_14, %c0_15] : memref<18x18x128xf32, #tpu.memory_space<vmem>>, vector<16x16x128xf32>
    %9 = vector.shape_cast %8 : vector<16x16x128xf32> to vector<256x128xf32>
    %10 = arith.truncf %9 : vector<256x128xf32> to vector<256x128xbf16>
    %c0_16 = arith.constant 0 : index
    %c0_17 = arith.constant 0 : index
    %c0_18 = arith.constant 0 : index
    %11 = vector.load %arg2[%c0_16, %c0_17, %c0_18] : memref<27x128x128xbf16, #tpu.memory_space<vmem>>, vector<1x128x128xbf16>
    %12 = vector.shape_cast %11 : vector<1x128x128xbf16> to vector<128x128xbf16>
    %cst_19 = arith.constant dense<0.000000e+00> : vector<256x128xf32>
    %13 = tpu.matmul %10, %12, %cst_19 {dimension_numbers = #tpu.dot_dimension_numbers<[1], [0], [0], [1], [0, 0, 1, 1], [], []>} : vector<256x128xbf16>, vector<128x128xbf16>, vector<256x128xf32> -> vector<256x128xf32>
    %14 = arith.addf %7, %13 : vector<256x128xf32>
    %c0_20 = arith.constant 0 : index
    %c1_21 = arith.constant 1 : index
    %c0_22 = arith.constant 0 : index
    %15 = vector.load %arg16[%c0_20, %c1_21, %c0_22] : memref<18x18x128xf32, #tpu.memory_space<vmem>>, vector<16x16x128xf32>
    %16 = vector.shape_cast %15 : vector<16x16x128xf32> to vector<256x128xf32>
    %17 = arith.truncf %16 : vector<256x128xf32> to vector<256x128xbf16>
    %c1_23 = arith.constant 1 : index
    %c0_24 = arith.constant 0 : index
    %c0_25 = arith.constant 0 : index
    %18 = vector.load %arg2[%c1_23, %c0_24, %c0_25] : memref<27x128x128xbf16, #tpu.memory_space<vmem>>, vector<1x128x128xbf16>
    %19 = vector.shape_cast %18 : vector<1x128x128xbf16> to vector<128x128xbf16>
    %cst_26 = arith.constant dense<0.000000e+00> : vector<256x128xf32>
    %20 = tpu.matmul %17, %19, %cst_26 {dimension_numbers = #tpu.dot_dimension_numbers<[1], [0], [0], [1], [0, 0, 1, 1], [], []>} : vector<256x128xbf16>, vector<128x128xbf16>, vector<256x128xf32> -> vector<256x128xf32>
    %21 = arith.addf %14, %20 : vector<256x128xf32>
    %c0_27 = arith.constant 0 : index
    %c2 = arith.constant 2 : index
    %c0_28 = arith.constant 0 : index
    %22 = vector.load %arg16[%c0_27, %c2, %c0_28] : memref<18x18x128xf32, #tpu.memory_space<vmem>>, vector<16x16x128xf32>
    %23 = vector.shape_cast %22 : vector<16x16x128xf32> to vector<256x128xf32>
    %24 = arith.truncf %23 : vector<256x128xf32> to vector<256x128xbf16>
    %c2_29 = arith.constant 2 : index
    %c0_30 = arith.constant 0 : index
    %c0_31 = arith.constant 0 : index
    %25 = vector.load %arg2[%c2_29, %c0_30, %c0_31] : memref<27x128x128xbf16, #tpu.memory_space<vmem>>, vector<1x128x128xbf16>
    %26 = vector.shape_cast %25 : vector<1x128x128xbf16> to vector<128x128xbf16>
    %cst_32 = arith.constant dense<0.000000e+00> : vector<256x128xf32>
    %27 = tpu.matmul %24, %26, %cst_32 {dimension_numbers = #tpu.dot_dimension_numbers<[1], [0], [0], [1], [0, 0, 1, 1], [], []>} : vector<256x128xbf16>, vector<128x128xbf16>, vector<256x128xf32> -> vector<256x128xf32>
    %28 = arith.addf %21, %27 : vector<256x128xf32>
    %c1_33 = arith.constant 1 : index
    %c0_34 = arith.constant 0 : index
    %c0_35 = arith.constant 0 : index
    %29 = vector.load %arg16[%c1_33, %c0_34, %c0_35] : memref<18x18x128xf32, #tpu.memory_space<vmem>>, vector<16x16x128xf32>
    %30 = vector.shape_cast %29 : vector<16x16x128xf32> to vector<256x128xf32>
    %31 = arith.truncf %30 : vector<256x128xf32> to vector<256x128xbf16>
    %c3 = arith.constant 3 : index
    %c0_36 = arith.constant 0 : index
    %c0_37 = arith.constant 0 : index
    %32 = vector.load %arg2[%c3, %c0_36, %c0_37] : memref<27x128x128xbf16, #tpu.memory_space<vmem>>, vector<1x128x128xbf16>
    %33 = vector.shape_cast %32 : vector<1x128x128xbf16> to vector<128x128xbf16>
    %cst_38 = arith.constant dense<0.000000e+00> : vector<256x128xf32>
    %34 = tpu.matmul %31, %33, %cst_38 {dimension_numbers = #tpu.dot_dimension_numbers<[1], [0], [0], [1], [0, 0, 1, 1], [], []>} : vector<256x128xbf16>, vector<128x128xbf16>, vector<256x128xf32> -> vector<256x128xf32>
    %35 = arith.addf %28, %34 : vector<256x128xf32>
    %c1_39 = arith.constant 1 : index
    %c1_40 = arith.constant 1 : index
    %c0_41 = arith.constant 0 : index
    %36 = vector.load %arg16[%c1_39, %c1_40, %c0_41] : memref<18x18x128xf32, #tpu.memory_space<vmem>>, vector<16x16x128xf32>
    %37 = vector.shape_cast %36 : vector<16x16x128xf32> to vector<256x128xf32>
    %38 = arith.truncf %37 : vector<256x128xf32> to vector<256x128xbf16>
    %c4 = arith.constant 4 : index
    %c0_42 = arith.constant 0 : index
    %c0_43 = arith.constant 0 : index
    %39 = vector.load %arg2[%c4, %c0_42, %c0_43] : memref<27x128x128xbf16, #tpu.memory_space<vmem>>, vector<1x128x128xbf16>
    %40 = vector.shape_cast %39 : vector<1x128x128xbf16> to vector<128x128xbf16>
    %cst_44 = arith.constant dense<0.000000e+00> : vector<256x128xf32>
    %41 = tpu.matmul %38, %40, %cst_44 {dimension_numbers = #tpu.dot_dimension_numbers<[1], [0], [0], [1], [0, 0, 1, 1], [], []>} : vector<256x128xbf16>, vector<128x128xbf16>, vector<256x128xf32> -> vector<256x128xf32>
    %42 = arith.addf %35, %41 : vector<256x128xf32>
    %c1_45 = arith.constant 1 : index
    %c2_46 = arith.constant 2 : index
    %c0_47 = arith.constant 0 : index
    %43 = vector.load %arg16[%c1_45, %c2_46, %c0_47] : memref<18x18x128xf32, #tpu.memory_space<vmem>>, vector<16x16x128xf32>
    %44 = vector.shape_cast %43 : vector<16x16x128xf32> to vector<256x128xf32>
    %45 = arith.truncf %44 : vector<256x128xf32> to vector<256x128xbf16>
    %c5 = arith.constant 5 : index
    %c0_48 = arith.constant 0 : index
    %c0_49 = arith.constant 0 : index
    %46 = vector.load %arg2[%c5, %c0_48, %c0_49] : memref<27x128x128xbf16, #tpu.memory_space<vmem>>, vector<1x128x128xbf16>
    %47 = vector.shape_cast %46 : vector<1x128x128xbf16> to vector<128x128xbf16>
    %cst_50 = arith.constant dense<0.000000e+00> : vector<256x128xf32>
    %48 = tpu.matmul %45, %47, %cst_50 {dimension_numbers = #tpu.dot_dimension_numbers<[1], [0], [0], [1], [0, 0, 1, 1], [], []>} : vector<256x128xbf16>, vector<128x128xbf16>, vector<256x128xf32> -> vector<256x128xf32>
    %49 = arith.addf %42, %48 : vector<256x128xf32>
    %c2_51 = arith.constant 2 : index
    %c0_52 = arith.constant 0 : index
    %c0_53 = arith.constant 0 : index
    %50 = vector.load %arg16[%c2_51, %c0_52, %c0_53] : memref<18x18x128xf32, #tpu.memory_space<vmem>>, vector<16x16x128xf32>
    %51 = vector.shape_cast %50 : vector<16x16x128xf32> to vector<256x128xf32>
    %52 = arith.truncf %51 : vector<256x128xf32> to vector<256x128xbf16>
    %c6 = arith.constant 6 : index
    %c0_54 = arith.constant 0 : index
    %c0_55 = arith.constant 0 : index
    %53 = vector.load %arg2[%c6, %c0_54, %c0_55] : memref<27x128x128xbf16, #tpu.memory_space<vmem>>, vector<1x128x128xbf16>
    %54 = vector.shape_cast %53 : vector<1x128x128xbf16> to vector<128x128xbf16>
    %cst_56 = arith.constant dense<0.000000e+00> : vector<256x128xf32>
    %55 = tpu.matmul %52, %54, %cst_56 {dimension_numbers = #tpu.dot_dimension_numbers<[1], [0], [0], [1], [0, 0, 1, 1], [], []>} : vector<256x128xbf16>, vector<128x128xbf16>, vector<256x128xf32> -> vector<256x128xf32>
    %56 = arith.addf %49, %55 : vector<256x128xf32>
    %c2_57 = arith.constant 2 : index
    %c1_58 = arith.constant 1 : index
    %c0_59 = arith.constant 0 : index
    %57 = vector.load %arg16[%c2_57, %c1_58, %c0_59] : memref<18x18x128xf32, #tpu.memory_space<vmem>>, vector<16x16x128xf32>
    %58 = vector.shape_cast %57 : vector<16x16x128xf32> to vector<256x128xf32>
    %59 = arith.truncf %58 : vector<256x128xf32> to vector<256x128xbf16>
    %c7 = arith.constant 7 : index
    %c0_60 = arith.constant 0 : index
    %c0_61 = arith.constant 0 : index
    %60 = vector.load %arg2[%c7, %c0_60, %c0_61] : memref<27x128x128xbf16, #tpu.memory_space<vmem>>, vector<1x128x128xbf16>
    %61 = vector.shape_cast %60 : vector<1x128x128xbf16> to vector<128x128xbf16>
    %cst_62 = arith.constant dense<0.000000e+00> : vector<256x128xf32>
    %62 = tpu.matmul %59, %61, %cst_62 {dimension_numbers = #tpu.dot_dimension_numbers<[1], [0], [0], [1], [0, 0, 1, 1], [], []>} : vector<256x128xbf16>, vector<128x128xbf16>, vector<256x128xf32> -> vector<256x128xf32>
    %63 = arith.addf %56, %62 : vector<256x128xf32>
    %c2_63 = arith.constant 2 : index
    %c2_64 = arith.constant 2 : index
    %c0_65 = arith.constant 0 : index
    %64 = vector.load %arg16[%c2_63, %c2_64, %c0_65] : memref<18x18x128xf32, #tpu.memory_space<vmem>>, vector<16x16x128xf32>
    %65 = vector.shape_cast %64 : vector<16x16x128xf32> to vector<256x128xf32>
    %66 = arith.truncf %65 : vector<256x128xf32> to vector<256x128xbf16>
    %c8 = arith.constant 8 : index
    %c0_66 = arith.constant 0 : index
    %c0_67 = arith.constant 0 : index
    %67 = vector.load %arg2[%c8, %c0_66, %c0_67] : memref<27x128x128xbf16, #tpu.memory_space<vmem>>, vector<1x128x128xbf16>
    %68 = vector.shape_cast %67 : vector<1x128x128xbf16> to vector<128x128xbf16>
    %cst_68 = arith.constant dense<0.000000e+00> : vector<256x128xf32>
    %69 = tpu.matmul %66, %68, %cst_68 {dimension_numbers = #tpu.dot_dimension_numbers<[1], [0], [0], [1], [0, 0, 1, 1], [], []>} : vector<256x128xbf16>, vector<128x128xbf16>, vector<256x128xf32> -> vector<256x128xf32>
    %70 = arith.addf %63, %69 : vector<256x128xf32>
    %c0_69 = arith.constant 0 : index
    %c0_70 = arith.constant 0 : index
    %71 = vector.load %arg3[%c0_69, %c0_70] : memref<3x128xf32, #tpu.memory_space<vmem>>, vector<1x128xf32>
    %72 = vector.broadcast %71 : vector<1x128xf32> to vector<256x128xf32>
    %73 = arith.mulf %70, %72 : vector<256x128xf32>
    %c0_71 = arith.constant 0 : index
    %c0_72 = arith.constant 0 : index
    %74 = vector.load %arg4[%c0_71, %c0_72] : memref<3x128xf32, #tpu.memory_space<vmem>>, vector<1x128xf32>
    %75 = vector.broadcast %74 : vector<1x128xf32> to vector<256x128xf32>
    %76 = arith.addf %73, %75 : vector<256x128xf32>
    %cst_73 = arith.constant 0.000000e+00 : f32
    %77 = vector.broadcast %cst_73 : f32 to vector<256x128xf32>
    %78 = arith.maximumf %76, %77 : vector<256x128xf32>
    %79 = vector.shape_cast %78 : vector<256x128xf32> to vector<16x16x128xf32>
    %80 = vector.shape_cast %79 : vector<16x16x128xf32> to vector<8x2x16x128xf32>
    %81 = vector.extract_strided_slice %80 {offsets = [0, 0, 0, 0], sizes = [8, 1, 16, 128], strides = [1, 1, 1, 1]} : vector<8x2x16x128xf32> to vector<8x1x16x128xf32>
    %82 = vector.shape_cast %81 : vector<8x1x16x128xf32> to vector<8x16x128xf32>
    %83 = vector.extract_strided_slice %80 {offsets = [0, 1, 0, 0], sizes = [8, 1, 16, 128], strides = [1, 1, 1, 1]} : vector<8x2x16x128xf32> to vector<8x1x16x128xf32>
    %84 = vector.shape_cast %83 : vector<8x1x16x128xf32> to vector<8x16x128xf32>
    %85 = arith.maximumf %82, %84 : vector<8x16x128xf32>
    %c0_74 = arith.constant 0 : index
    %c0_75 = arith.constant 0 : index
    %c0_76 = arith.constant 0 : index
    %86 = vector.load %arg16[%c0_74, %c0_75, %c0_76] : memref<18x18x128xf32, #tpu.memory_space<vmem>>, vector<8x16x128xf32>
    tpu.vector_store %arg16[%c0_74, %c0_75, %c0_76], %85 {strides = array<i32>} : memref<18x18x128xf32, #tpu.memory_space<vmem>>, vector<8x16x128xf32>,
    %c0_77 = arith.constant 0 : index
    %c0_78 = arith.constant 0 : index
    %c0_79 = arith.constant 0 : index
    %87 = tpu.strided_load %arg16[%c0_77, %c0_78, %c0_79] {strides = array<i32: 1, 2, 1>} : memref<18x18x128xf32, #tpu.memory_space<vmem>>, vector<8x8x128xf32>
    %c0_80 = arith.constant 0 : index
    %c1_81 = arith.constant 1 : index
    %c0_82 = arith.constant 0 : index
    %88 = tpu.strided_load %arg16[%c0_80, %c1_81, %c0_82] {strides = array<i32: 1, 2, 1>} : memref<18x18x128xf32, #tpu.memory_space<vmem>>, vector<8x8x128xf32>
    %89 = arith.maximumf %87, %88 : vector<8x8x128xf32>
    %c1_83 = arith.constant 1 : index
    %c1_84 = arith.constant 1 : index
    %c0_85 = arith.constant 0 : index
    %90 = vector.load %arg17[%c1_83, %c1_84, %c0_85] : memref<10x10x128xf32, #tpu.memory_space<vmem>>, vector<8x8x128xf32>
    tpu.vector_store %arg17[%c1_83, %c1_84, %c0_85], %89 {strides = array<i32>} : memref<10x10x128xf32, #tpu.memory_space<vmem>>, vector<8x8x128xf32>,
    %cst_86 = arith.constant 0.000000e+00 : f32
    %91 = vector.broadcast %cst_86 : f32 to vector<64x128xf32>
    %c0_87 = arith.constant 0 : index
    %c0_88 = arith.constant 0 : index
    %c0_89 = arith.constant 0 : index
    %92 = vector.load %arg17[%c0_87, %c0_88, %c0_89] : memref<10x10x128xf32, #tpu.memory_space<vmem>>, vector<8x8x128xf32>
    %93 = vector.shape_cast %92 : vector<8x8x128xf32> to vector<64x128xf32>
    %94 = arith.truncf %93 : vector<64x128xf32> to vector<64x128xbf16>
    %c9 = arith.constant 9 : index
    %c0_90 = arith.constant 0 : index
    %c0_91 = arith.constant 0 : index
    %95 = vector.load %arg2[%c9, %c0_90, %c0_91] : memref<27x128x128xbf16, #tpu.memory_space<vmem>>, vector<1x128x128xbf16>
    %96 = vector.shape_cast %95 : vector<1x128x128xbf16> to vector<128x128xbf16>
    %cst_92 = arith.constant dense<0.000000e+00> : vector<64x128xf32>
    %97 = tpu.matmul %94, %96, %cst_92 {dimension_numbers = #tpu.dot_dimension_numbers<[1], [0], [0], [1], [0, 0, 1, 1], [], []>} : vector<64x128xbf16>, vector<128x128xbf16>, vector<64x128xf32> -> vector<64x128xf32>
    %98 = arith.addf %91, %97 : vector<64x128xf32>
    %c0_93 = arith.constant 0 : index
    %c1_94 = arith.constant 1 : index
    %c0_95 = arith.constant 0 : index
    %99 = vector.load %arg17[%c0_93, %c1_94, %c0_95] : memref<10x10x128xf32, #tpu.memory_space<vmem>>, vector<8x8x128xf32>
    %100 = vector.shape_cast %99 : vector<8x8x128xf32> to vector<64x128xf32>
    %101 = arith.truncf %100 : vector<64x128xf32> to vector<64x128xbf16>
    %c10 = arith.constant 10 : index
    %c0_96 = arith.constant 0 : index
    %c0_97 = arith.constant 0 : index
    %102 = vector.load %arg2[%c10, %c0_96, %c0_97] : memref<27x128x128xbf16, #tpu.memory_space<vmem>>, vector<1x128x128xbf16>
    %103 = vector.shape_cast %102 : vector<1x128x128xbf16> to vector<128x128xbf16>
    %cst_98 = arith.constant dense<0.000000e+00> : vector<64x128xf32>
    %104 = tpu.matmul %101, %103, %cst_98 {dimension_numbers = #tpu.dot_dimension_numbers<[1], [0], [0], [1], [0, 0, 1, 1], [], []>} : vector<64x128xbf16>, vector<128x128xbf16>, vector<64x128xf32> -> vector<64x128xf32>
    %105 = arith.addf %98, %104 : vector<64x128xf32>
    %c0_99 = arith.constant 0 : index
    %c2_100 = arith.constant 2 : index
    %c0_101 = arith.constant 0 : index
    %106 = vector.load %arg17[%c0_99, %c2_100, %c0_101] : memref<10x10x128xf32, #tpu.memory_space<vmem>>, vector<8x8x128xf32>
    %107 = vector.shape_cast %106 : vector<8x8x128xf32> to vector<64x128xf32>
    %108 = arith.truncf %107 : vector<64x128xf32> to vector<64x128xbf16>
    %c11 = arith.constant 11 : index
    %c0_102 = arith.constant 0 : index
    %c0_103 = arith.constant 0 : index
    %109 = vector.load %arg2[%c11, %c0_102, %c0_103] : memref<27x128x128xbf16, #tpu.memory_space<vmem>>, vector<1x128x128xbf16>
    %110 = vector.shape_cast %109 : vector<1x128x128xbf16> to vector<128x128xbf16>
    %cst_104 = arith.constant dense<0.000000e+00> : vector<64x128xf32>
    %111 = tpu.matmul %108, %110, %cst_104 {dimension_numbers = #tpu.dot_dimension_numbers<[1], [0], [0], [1], [0, 0, 1, 1], [], []>} : vector<64x128xbf16>, vector<128x128xbf16>, vector<64x128xf32> -> vector<64x128xf32>
    %112 = arith.addf %105, %111 : vector<64x128xf32>
    %c1_105 = arith.constant 1 : index
    %c0_106 = arith.constant 0 : index
    %c0_107 = arith.constant 0 : index
    %113 = vector.load %arg17[%c1_105, %c0_106, %c0_107] : memref<10x10x128xf32, #tpu.memory_space<vmem>>, vector<8x8x128xf32>
    %114 = vector.shape_cast %113 : vector<8x8x128xf32> to vector<64x128xf32>
    %115 = arith.truncf %114 : vector<64x128xf32> to vector<64x128xbf16>
    %c12 = arith.constant 12 : index
    %c0_108 = arith.constant 0 : index
    %c0_109 = arith.constant 0 : index
    %116 = vector.load %arg2[%c12, %c0_108, %c0_109] : memref<27x128x128xbf16, #tpu.memory_space<vmem>>, vector<1x128x128xbf16>
    %117 = vector.shape_cast %116 : vector<1x128x128xbf16> to vector<128x128xbf16>
    %cst_110 = arith.constant dense<0.000000e+00> : vector<64x128xf32>
    %118 = tpu.matmul %115, %117, %cst_110 {dimension_numbers = #tpu.dot_dimension_numbers<[1], [0], [0], [1], [0, 0, 1, 1], [], []>} : vector<64x128xbf16>, vector<128x128xbf16>, vector<64x128xf32> -> vector<64x128xf32>
    %119 = arith.addf %112, %118 : vector<64x128xf32>
    %c1_111 = arith.constant 1 : index
    %c1_112 = arith.constant 1 : index
    %c0_113 = arith.constant 0 : index
    %120 = vector.load %arg17[%c1_111, %c1_112, %c0_113] : memref<10x10x128xf32, #tpu.memory_space<vmem>>, vector<8x8x128xf32>
    %121 = vector.shape_cast %120 : vector<8x8x128xf32> to vector<64x128xf32>
    %122 = arith.truncf %121 : vector<64x128xf32> to vector<64x128xbf16>
    %c13 = arith.constant 13 : index
    %c0_114 = arith.constant 0 : index
    %c0_115 = arith.constant 0 : index
    %123 = vector.load %arg2[%c13, %c0_114, %c0_115] : memref<27x128x128xbf16, #tpu.memory_space<vmem>>, vector<1x128x128xbf16>
    %124 = vector.shape_cast %123 : vector<1x128x128xbf16> to vector<128x128xbf16>
    %cst_116 = arith.constant dense<0.000000e+00> : vector<64x128xf32>
    %125 = tpu.matmul %122, %124, %cst_116 {dimension_numbers = #tpu.dot_dimension_numbers<[1], [0], [0], [1], [0, 0, 1, 1], [], []>} : vector<64x128xbf16>, vector<128x128xbf16>, vector<64x128xf32> -> vector<64x128xf32>
    %126 = arith.addf %119, %125 : vector<64x128xf32>
    %c1_117 = arith.constant 1 : index
    %c2_118 = arith.constant 2 : index
    %c0_119 = arith.constant 0 : index
    %127 = vector.load %arg17[%c1_117, %c2_118, %c0_119] : memref<10x10x128xf32, #tpu.memory_space<vmem>>, vector<8x8x128xf32>
    %128 = vector.shape_cast %127 : vector<8x8x128xf32> to vector<64x128xf32>
    %129 = arith.truncf %128 : vector<64x128xf32> to vector<64x128xbf16>
    %c14 = arith.constant 14 : index
    %c0_120 = arith.constant 0 : index
    %c0_121 = arith.constant 0 : index
    %130 = vector.load %arg2[%c14, %c0_120, %c0_121] : memref<27x128x128xbf16, #tpu.memory_space<vmem>>, vector<1x128x128xbf16>
    %131 = vector.shape_cast %130 : vector<1x128x128xbf16> to vector<128x128xbf16>
    %cst_122 = arith.constant dense<0.000000e+00> : vector<64x128xf32>
    %132 = tpu.matmul %129, %131, %cst_122 {dimension_numbers = #tpu.dot_dimension_numbers<[1], [0], [0], [1], [0, 0, 1, 1], [], []>} : vector<64x128xbf16>, vector<128x128xbf16>, vector<64x128xf32> -> vector<64x128xf32>
    %133 = arith.addf %126, %132 : vector<64x128xf32>
    %c2_123 = arith.constant 2 : index
    %c0_124 = arith.constant 0 : index
    %c0_125 = arith.constant 0 : index
    %134 = vector.load %arg17[%c2_123, %c0_124, %c0_125] : memref<10x10x128xf32, #tpu.memory_space<vmem>>, vector<8x8x128xf32>
    %135 = vector.shape_cast %134 : vector<8x8x128xf32> to vector<64x128xf32>
    %136 = arith.truncf %135 : vector<64x128xf32> to vector<64x128xbf16>
    %c15 = arith.constant 15 : index
    %c0_126 = arith.constant 0 : index
    %c0_127 = arith.constant 0 : index
    %137 = vector.load %arg2[%c15, %c0_126, %c0_127] : memref<27x128x128xbf16, #tpu.memory_space<vmem>>, vector<1x128x128xbf16>
    %138 = vector.shape_cast %137 : vector<1x128x128xbf16> to vector<128x128xbf16>
    %cst_128 = arith.constant dense<0.000000e+00> : vector<64x128xf32>
    %139 = tpu.matmul %136, %138, %cst_128 {dimension_numbers = #tpu.dot_dimension_numbers<[1], [0], [0], [1], [0, 0, 1, 1], [], []>} : vector<64x128xbf16>, vector<128x128xbf16>, vector<64x128xf32> -> vector<64x128xf32>
    %140 = arith.addf %133, %139 : vector<64x128xf32>
    %c2_129 = arith.constant 2 : index
    %c1_130 = arith.constant 1 : index
    %c0_131 = arith.constant 0 : index
    %141 = vector.load %arg17[%c2_129, %c1_130, %c0_131] : memref<10x10x128xf32, #tpu.memory_space<vmem>>, vector<8x8x128xf32>
    %142 = vector.shape_cast %141 : vector<8x8x128xf32> to vector<64x128xf32>
    %143 = arith.truncf %142 : vector<64x128xf32> to vector<64x128xbf16>
    %c16 = arith.constant 16 : index
    %c0_132 = arith.constant 0 : index
    %c0_133 = arith.constant 0 : index
    %144 = vector.load %arg2[%c16, %c0_132, %c0_133] : memref<27x128x128xbf16, #tpu.memory_space<vmem>>, vector<1x128x128xbf16>
    %145 = vector.shape_cast %144 : vector<1x128x128xbf16> to vector<128x128xbf16>
    %cst_134 = arith.constant dense<0.000000e+00> : vector<64x128xf32>
    %146 = tpu.matmul %143, %145, %cst_134 {dimension_numbers = #tpu.dot_dimension_numbers<[1], [0], [0], [1], [0, 0, 1, 1], [], []>} : vector<64x128xbf16>, vector<128x128xbf16>, vector<64x128xf32> -> vector<64x128xf32>
    %147 = arith.addf %140, %146 : vector<64x128xf32>
    %c2_135 = arith.constant 2 : index
    %c2_136 = arith.constant 2 : index
    %c0_137 = arith.constant 0 : index
    %148 = vector.load %arg17[%c2_135, %c2_136, %c0_137] : memref<10x10x128xf32, #tpu.memory_space<vmem>>, vector<8x8x128xf32>
    %149 = vector.shape_cast %148 : vector<8x8x128xf32> to vector<64x128xf32>
    %150 = arith.truncf %149 : vector<64x128xf32> to vector<64x128xbf16>
    %c17 = arith.constant 17 : index
    %c0_138 = arith.constant 0 : index
    %c0_139 = arith.constant 0 : index
    %151 = vector.load %arg2[%c17, %c0_138, %c0_139] : memref<27x128x128xbf16, #tpu.memory_space<vmem>>, vector<1x128x128xbf16>
    %152 = vector.shape_cast %151 : vector<1x128x128xbf16> to vector<128x128xbf16>
    %cst_140 = arith.constant dense<0.000000e+00> : vector<64x128xf32>
    %153 = tpu.matmul %150, %152, %cst_140 {dimension_numbers = #tpu.dot_dimension_numbers<[1], [0], [0], [1], [0, 0, 1, 1], [], []>} : vector<64x128xbf16>, vector<128x128xbf16>, vector<64x128xf32> -> vector<64x128xf32>
    %154 = arith.addf %147, %153 : vector<64x128xf32>
    %c1_141 = arith.constant 1 : index
    %c0_142 = arith.constant 0 : index
    %155 = vector.load %arg3[%c1_141, %c0_142] : memref<3x128xf32, #tpu.memory_space<vmem>>, vector<1x128xf32>
    %156 = vector.broadcast %155 : vector<1x128xf32> to vector<64x128xf32>
    %157 = arith.mulf %154, %156 : vector<64x128xf32>
    %c1_143 = arith.constant 1 : index
    %c0_144 = arith.constant 0 : index
    %158 = vector.load %arg4[%c1_143, %c0_144] : memref<3x128xf32, #tpu.memory_space<vmem>>, vector<1x128xf32>
    %159 = vector.broadcast %158 : vector<1x128xf32> to vector<64x128xf32>
    %160 = arith.addf %157, %159 : vector<64x128xf32>
    %cst_145 = arith.constant 0.000000e+00 : f32
    %161 = vector.broadcast %cst_145 : f32 to vector<64x128xf32>
    %162 = arith.maximumf %160, %161 : vector<64x128xf32>
    %163 = vector.shape_cast %162 : vector<64x128xf32> to vector<8x8x128xf32>
    %c1_146 = arith.constant 1 : index
    %c1_147 = arith.constant 1 : index
    %c0_148 = arith.constant 0 : index
    %164 = vector.load %arg17[%c1_146, %c1_147, %c0_148] : memref<10x10x128xf32, #tpu.memory_space<vmem>>, vector<8x8x128xf32>
    tpu.vector_store %arg17[%c1_146, %c1_147, %c0_148], %163 {strides = array<i32>} : memref<10x10x128xf32, #tpu.memory_space<vmem>>, vector<8x8x128xf32>,
    %cst_149 = arith.constant 0.000000e+00 : f32
    %165 = vector.broadcast %cst_149 : f32 to vector<64x128xf32>
    %c0_150 = arith.constant 0 : index
    %c0_151 = arith.constant 0 : index
    %c0_152 = arith.constant 0 : index
    %166 = vector.load %arg17[%c0_150, %c0_151, %c0_152] : memref<10x10x128xf32, #tpu.memory_space<vmem>>, vector<8x8x128xf32>
    %167 = vector.shape_cast %166 : vector<8x8x128xf32> to vector<64x128xf32>
    %168 = arith.truncf %167 : vector<64x128xf32> to vector<64x128xbf16>
    %c18 = arith.constant 18 : index
    %c0_153 = arith.constant 0 : index
    %c0_154 = arith.constant 0 : index
    %169 = vector.load %arg2[%c18, %c0_153, %c0_154] : memref<27x128x128xbf16, #tpu.memory_space<vmem>>, vector<1x128x128xbf16>
    %170 = vector.shape_cast %169 : vector<1x128x128xbf16> to vector<128x128xbf16>
    %cst_155 = arith.constant dense<0.000000e+00> : vector<64x128xf32>
    %171 = tpu.matmul %168, %170, %cst_155 {dimension_numbers = #tpu.dot_dimension_numbers<[1], [0], [0], [1], [0, 0, 1, 1], [], []>} : vector<64x128xbf16>, vector<128x128xbf16>, vector<64x128xf32> -> vector<64x128xf32>
    %172 = arith.addf %165, %171 : vector<64x128xf32>
    %c0_156 = arith.constant 0 : index
    %c1_157 = arith.constant 1 : index
    %c0_158 = arith.constant 0 : index
    %173 = vector.load %arg17[%c0_156, %c1_157, %c0_158] : memref<10x10x128xf32, #tpu.memory_space<vmem>>, vector<8x8x128xf32>
    %174 = vector.shape_cast %173 : vector<8x8x128xf32> to vector<64x128xf32>
    %175 = arith.truncf %174 : vector<64x128xf32> to vector<64x128xbf16>
    %c19 = arith.constant 19 : index
    %c0_159 = arith.constant 0 : index
    %c0_160 = arith.constant 0 : index
    %176 = vector.load %arg2[%c19, %c0_159, %c0_160] : memref<27x128x128xbf16, #tpu.memory_space<vmem>>, vector<1x128x128xbf16>
    %177 = vector.shape_cast %176 : vector<1x128x128xbf16> to vector<128x128xbf16>
    %cst_161 = arith.constant dense<0.000000e+00> : vector<64x128xf32>
    %178 = tpu.matmul %175, %177, %cst_161 {dimension_numbers = #tpu.dot_dimension_numbers<[1], [0], [0], [1], [0, 0, 1, 1], [], []>} : vector<64x128xbf16>, vector<128x128xbf16>, vector<64x128xf32> -> vector<64x128xf32>
    %179 = arith.addf %172, %178 : vector<64x128xf32>
    %c0_162 = arith.constant 0 : index
    %c2_163 = arith.constant 2 : index
    %c0_164 = arith.constant 0 : index
    %180 = vector.load %arg17[%c0_162, %c2_163, %c0_164] : memref<10x10x128xf32, #tpu.memory_space<vmem>>, vector<8x8x128xf32>
    %181 = vector.shape_cast %180 : vector<8x8x128xf32> to vector<64x128xf32>
    %182 = arith.truncf %181 : vector<64x128xf32> to vector<64x128xbf16>
    %c20 = arith.constant 20 : index
    %c0_165 = arith.constant 0 : index
    %c0_166 = arith.constant 0 : index
    %183 = vector.load %arg2[%c20, %c0_165, %c0_166] : memref<27x128x128xbf16, #tpu.memory_space<vmem>>, vector<1x128x128xbf16>
    %184 = vector.shape_cast %183 : vector<1x128x128xbf16> to vector<128x128xbf16>
    %cst_167 = arith.constant dense<0.000000e+00> : vector<64x128xf32>
    %185 = tpu.matmul %182, %184, %cst_167 {dimension_numbers = #tpu.dot_dimension_numbers<[1], [0], [0], [1], [0, 0, 1, 1], [], []>} : vector<64x128xbf16>, vector<128x128xbf16>, vector<64x128xf32> -> vector<64x128xf32>
    %186 = arith.addf %179, %185 : vector<64x128xf32>
    %c1_168 = arith.constant 1 : index
    %c0_169 = arith.constant 0 : index
    %c0_170 = arith.constant 0 : index
    %187 = vector.load %arg17[%c1_168, %c0_169, %c0_170] : memref<10x10x128xf32, #tpu.memory_space<vmem>>, vector<8x8x128xf32>
    %188 = vector.shape_cast %187 : vector<8x8x128xf32> to vector<64x128xf32>
    %189 = arith.truncf %188 : vector<64x128xf32> to vector<64x128xbf16>
    %c21 = arith.constant 21 : index
    %c0_171 = arith.constant 0 : index
    %c0_172 = arith.constant 0 : index
    %190 = vector.load %arg2[%c21, %c0_171, %c0_172] : memref<27x128x128xbf16, #tpu.memory_space<vmem>>, vector<1x128x128xbf16>
    %191 = vector.shape_cast %190 : vector<1x128x128xbf16> to vector<128x128xbf16>
    %cst_173 = arith.constant dense<0.000000e+00> : vector<64x128xf32>
    %192 = tpu.matmul %189, %191, %cst_173 {dimension_numbers = #tpu.dot_dimension_numbers<[1], [0], [0], [1], [0, 0, 1, 1], [], []>} : vector<64x128xbf16>, vector<128x128xbf16>, vector<64x128xf32> -> vector<64x128xf32>
    %193 = arith.addf %186, %192 : vector<64x128xf32>
    %c1_174 = arith.constant 1 : index
    %c1_175 = arith.constant 1 : index
    %c0_176 = arith.constant 0 : index
    %194 = vector.load %arg17[%c1_174, %c1_175, %c0_176] : memref<10x10x128xf32, #tpu.memory_space<vmem>>, vector<8x8x128xf32>
    %195 = vector.shape_cast %194 : vector<8x8x128xf32> to vector<64x128xf32>
    %196 = arith.truncf %195 : vector<64x128xf32> to vector<64x128xbf16>
    %c22 = arith.constant 22 : index
    %c0_177 = arith.constant 0 : index
    %c0_178 = arith.constant 0 : index
    %197 = vector.load %arg2[%c22, %c0_177, %c0_178] : memref<27x128x128xbf16, #tpu.memory_space<vmem>>, vector<1x128x128xbf16>
    %198 = vector.shape_cast %197 : vector<1x128x128xbf16> to vector<128x128xbf16>
    %cst_179 = arith.constant dense<0.000000e+00> : vector<64x128xf32>
    %199 = tpu.matmul %196, %198, %cst_179 {dimension_numbers = #tpu.dot_dimension_numbers<[1], [0], [0], [1], [0, 0, 1, 1], [], []>} : vector<64x128xbf16>, vector<128x128xbf16>, vector<64x128xf32> -> vector<64x128xf32>
    %200 = arith.addf %193, %199 : vector<64x128xf32>
    %c1_180 = arith.constant 1 : index
    %c2_181 = arith.constant 2 : index
    %c0_182 = arith.constant 0 : index
    %201 = vector.load %arg17[%c1_180, %c2_181, %c0_182] : memref<10x10x128xf32, #tpu.memory_space<vmem>>, vector<8x8x128xf32>
    %202 = vector.shape_cast %201 : vector<8x8x128xf32> to vector<64x128xf32>
    %203 = arith.truncf %202 : vector<64x128xf32> to vector<64x128xbf16>
    %c23 = arith.constant 23 : index
    %c0_183 = arith.constant 0 : index
    %c0_184 = arith.constant 0 : index
    %204 = vector.load %arg2[%c23, %c0_183, %c0_184] : memref<27x128x128xbf16, #tpu.memory_space<vmem>>, vector<1x128x128xbf16>
    %205 = vector.shape_cast %204 : vector<1x128x128xbf16> to vector<128x128xbf16>
    %cst_185 = arith.constant dense<0.000000e+00> : vector<64x128xf32>
    %206 = tpu.matmul %203, %205, %cst_185 {dimension_numbers = #tpu.dot_dimension_numbers<[1], [0], [0], [1], [0, 0, 1, 1], [], []>} : vector<64x128xbf16>, vector<128x128xbf16>, vector<64x128xf32> -> vector<64x128xf32>
    %207 = arith.addf %200, %206 : vector<64x128xf32>
    %c2_186 = arith.constant 2 : index
    %c0_187 = arith.constant 0 : index
    %c0_188 = arith.constant 0 : index
    %208 = vector.load %arg17[%c2_186, %c0_187, %c0_188] : memref<10x10x128xf32, #tpu.memory_space<vmem>>, vector<8x8x128xf32>
    %209 = vector.shape_cast %208 : vector<8x8x128xf32> to vector<64x128xf32>
    %210 = arith.truncf %209 : vector<64x128xf32> to vector<64x128xbf16>
    %c24 = arith.constant 24 : index
    %c0_189 = arith.constant 0 : index
    %c0_190 = arith.constant 0 : index
    %211 = vector.load %arg2[%c24, %c0_189, %c0_190] : memref<27x128x128xbf16, #tpu.memory_space<vmem>>, vector<1x128x128xbf16>
    %212 = vector.shape_cast %211 : vector<1x128x128xbf16> to vector<128x128xbf16>
    %cst_191 = arith.constant dense<0.000000e+00> : vector<64x128xf32>
    %213 = tpu.matmul %210, %212, %cst_191 {dimension_numbers = #tpu.dot_dimension_numbers<[1], [0], [0], [1], [0, 0, 1, 1], [], []>} : vector<64x128xbf16>, vector<128x128xbf16>, vector<64x128xf32> -> vector<64x128xf32>
    %214 = arith.addf %207, %213 : vector<64x128xf32>
    %c2_192 = arith.constant 2 : index
    %c1_193 = arith.constant 1 : index
    %c0_194 = arith.constant 0 : index
    %215 = vector.load %arg17[%c2_192, %c1_193, %c0_194] : memref<10x10x128xf32, #tpu.memory_space<vmem>>, vector<8x8x128xf32>
    %216 = vector.shape_cast %215 : vector<8x8x128xf32> to vector<64x128xf32>
    %217 = arith.truncf %216 : vector<64x128xf32> to vector<64x128xbf16>
    %c25 = arith.constant 25 : index
    %c0_195 = arith.constant 0 : index
    %c0_196 = arith.constant 0 : index
    %218 = vector.load %arg2[%c25, %c0_195, %c0_196] : memref<27x128x128xbf16, #tpu.memory_space<vmem>>, vector<1x128x128xbf16>
    %219 = vector.shape_cast %218 : vector<1x128x128xbf16> to vector<128x128xbf16>
    %cst_197 = arith.constant dense<0.000000e+00> : vector<64x128xf32>
    %220 = tpu.matmul %217, %219, %cst_197 {dimension_numbers = #tpu.dot_dimension_numbers<[1], [0], [0], [1], [0, 0, 1, 1], [], []>} : vector<64x128xbf16>, vector<128x128xbf16>, vector<64x128xf32> -> vector<64x128xf32>
    %221 = arith.addf %214, %220 : vector<64x128xf32>
    %c2_198 = arith.constant 2 : index
    %c2_199 = arith.constant 2 : index
    %c0_200 = arith.constant 0 : index
    %222 = vector.load %arg17[%c2_198, %c2_199, %c0_200] : memref<10x10x128xf32, #tpu.memory_space<vmem>>, vector<8x8x128xf32>
    %223 = vector.shape_cast %222 : vector<8x8x128xf32> to vector<64x128xf32>
    %224 = arith.truncf %223 : vector<64x128xf32> to vector<64x128xbf16>
    %c26 = arith.constant 26 : index
    %c0_201 = arith.constant 0 : index
    %c0_202 = arith.constant 0 : index
    %225 = vector.load %arg2[%c26, %c0_201, %c0_202] : memref<27x128x128xbf16, #tpu.memory_space<vmem>>, vector<1x128x128xbf16>
    %226 = vector.shape_cast %225 : vector<1x128x128xbf16> to vector<128x128xbf16>
    %cst_203 = arith.constant dense<0.000000e+00> : vector<64x128xf32>
    %227 = tpu.matmul %224, %226, %cst_203 {dimension_numbers = #tpu.dot_dimension_numbers<[1], [0], [0], [1], [0, 0, 1, 1], [], []>} : vector<64x128xbf16>, vector<128x128xbf16>, vector<64x128xf32> -> vector<64x128xf32>
    %228 = arith.addf %221, %227 : vector<64x128xf32>
    %c2_204 = arith.constant 2 : index
    %c0_205 = arith.constant 0 : index
    %229 = vector.load %arg3[%c2_204, %c0_205] : memref<3x128xf32, #tpu.memory_space<vmem>>, vector<1x128xf32>
    %230 = vector.broadcast %229 : vector<1x128xf32> to vector<64x128xf32>
    %231 = arith.mulf %228, %230 : vector<64x128xf32>
    %c2_206 = arith.constant 2 : index
    %c0_207 = arith.constant 0 : index
    %232 = vector.load %arg4[%c2_206, %c0_207] : memref<3x128xf32, #tpu.memory_space<vmem>>, vector<1x128xf32>
    %233 = vector.broadcast %232 : vector<1x128xf32> to vector<64x128xf32>
    %234 = arith.addf %231, %233 : vector<64x128xf32>
    %cst_208 = arith.constant 0.000000e+00 : f32
    %235 = vector.broadcast %cst_208 : f32 to vector<64x128xf32>
    %236 = arith.maximumf %234, %235 : vector<64x128xf32>
    %237 = vector.shape_cast %236 : vector<64x128xf32> to vector<8x8x128xf32>
    %238 = vector.shape_cast %237 : vector<8x8x128xf32> to vector<4x2x8x128xf32>
    %239 = vector.extract_strided_slice %238 {offsets = [0, 0, 0, 0], sizes = [4, 1, 8, 128], strides = [1, 1, 1, 1]} : vector<4x2x8x128xf32> to vector<4x1x8x128xf32>
    %240 = vector.shape_cast %239 : vector<4x1x8x128xf32> to vector<4x8x128xf32>
    %241 = vector.extract_strided_slice %238 {offsets = [0, 1, 0, 0], sizes = [4, 1, 8, 128], strides = [1, 1, 1, 1]} : vector<4x2x8x128xf32> to vector<4x1x8x128xf32>
    %242 = vector.shape_cast %241 : vector<4x1x8x128xf32> to vector<4x8x128xf32>
    %243 = arith.maximumf %240, %242 : vector<4x8x128xf32>
    %c0_209 = arith.constant 0 : index
    %c0_210 = arith.constant 0 : index
    %c0_211 = arith.constant 0 : index
    %244 = vector.load %arg17[%c0_209, %c0_210, %c0_211] : memref<10x10x128xf32, #tpu.memory_space<vmem>>, vector<4x8x128xf32>
    tpu.vector_store %arg17[%c0_209, %c0_210, %c0_211], %243 {strides = array<i32>} : memref<10x10x128xf32, #tpu.memory_space<vmem>>, vector<4x8x128xf32>,
    %c0_212 = arith.constant 0 : index
    %c0_213 = arith.constant 0 : index
    %c0_214 = arith.constant 0 : index
    %245 = tpu.strided_load %arg17[%c0_212, %c0_213, %c0_214] {strides = array<i32: 1, 2, 1>} : memref<10x10x128xf32, #tpu.memory_space<vmem>>, vector<4x4x128xf32>
    %c0_215 = arith.constant 0 : index
    %c1_216 = arith.constant 1 : index
    %c0_217 = arith.constant 0 : index
    %246 = tpu.strided_load %arg17[%c0_215, %c1_216, %c0_217] {strides = array<i32: 1, 2, 1>} : memref<10x10x128xf32, #tpu.memory_space<vmem>>, vector<4x4x128xf32>
    %247 = arith.maximumf %245, %246 : vector<4x4x128xf32>
    %cst_218 = arith.constant 0.000000e+00 : f32
    %248 = vector.broadcast %cst_218 : f32 to vector<1x256xf32>
    %249 = vector.extract_strided_slice %247 {offsets = [0, 0, 0], sizes = [1, 1, 128], strides = [1, 1, 1]} : vector<4x4x128xf32> to vector<1x1x128xf32>
    %250 = vector.shape_cast %249 : vector<1x1x128xf32> to vector<1x128xf32>
    %251 = arith.truncf %250 : vector<1x128xf32> to vector<1x128xbf16>
    %c0_219 = arith.constant 0 : index
    %c0_220 = arith.constant 0 : index
    %c0_221 = arith.constant 0 : index
    %252 = vector.load %arg5[%c0_219, %c0_220, %c0_221] : memref<16x128x256xbf16, #tpu.memory_space<vmem>>, vector<1x128x256xbf16>
    %253 = vector.shape_cast %252 : vector<1x128x256xbf16> to vector<128x256xbf16>
    %cst_222 = arith.constant dense<0.000000e+00> : vector<1x256xf32>
    %254 = tpu.matmul %251, %253, %cst_222 {dimension_numbers = #tpu.dot_dimension_numbers<[1], [0], [0], [1], [0, 0, 1, 1], [], []>} : vector<1x128xbf16>, vector<128x256xbf16>, vector<1x256xf32> -> vector<1x256xf32>
    %255 = arith.addf %248, %254 : vector<1x256xf32>
    %256 = vector.extract_strided_slice %247 {offsets = [0, 1, 0], sizes = [1, 1, 128], strides = [1, 1, 1]} : vector<4x4x128xf32> to vector<1x1x128xf32>
    %257 = vector.shape_cast %256 : vector<1x1x128xf32> to vector<1x128xf32>
    %258 = arith.truncf %257 : vector<1x128xf32> to vector<1x128xbf16>
    %c1_223 = arith.constant 1 : index
    %c0_224 = arith.constant 0 : index
    %c0_225 = arith.constant 0 : index
    %259 = vector.load %arg5[%c1_223, %c0_224, %c0_225] : memref<16x128x256xbf16, #tpu.memory_space<vmem>>, vector<1x128x256xbf16>
    %260 = vector.shape_cast %259 : vector<1x128x256xbf16> to vector<128x256xbf16>
    %cst_226 = arith.constant dense<0.000000e+00> : vector<1x256xf32>
    %261 = tpu.matmul %258, %260, %cst_226 {dimension_numbers = #tpu.dot_dimension_numbers<[1], [0], [0], [1], [0, 0, 1, 1], [], []>} : vector<1x128xbf16>, vector<128x256xbf16>, vector<1x256xf32> -> vector<1x256xf32>
    %262 = arith.addf %255, %261 : vector<1x256xf32>
    %263 = vector.extract_strided_slice %247 {offsets = [0, 2, 0], sizes = [1, 1, 128], strides = [1, 1, 1]} : vector<4x4x128xf32> to vector<1x1x128xf32>
    %264 = vector.shape_cast %263 : vector<1x1x128xf32> to vector<1x128xf32>
    %265 = arith.truncf %264 : vector<1x128xf32> to vector<1x128xbf16>
    %c2_227 = arith.constant 2 : index
    %c0_228 = arith.constant 0 : index
    %c0_229 = arith.constant 0 : index
    %266 = vector.load %arg5[%c2_227, %c0_228, %c0_229] : memref<16x128x256xbf16, #tpu.memory_space<vmem>>, vector<1x128x256xbf16>
    %267 = vector.shape_cast %266 : vector<1x128x256xbf16> to vector<128x256xbf16>
    %cst_230 = arith.constant dense<0.000000e+00> : vector<1x256xf32>
    %268 = tpu.matmul %265, %267, %cst_230 {dimension_numbers = #tpu.dot_dimension_numbers<[1], [0], [0], [1], [0, 0, 1, 1], [], []>} : vector<1x128xbf16>, vector<128x256xbf16>, vector<1x256xf32> -> vector<1x256xf32>
    %269 = arith.addf %262, %268 : vector<1x256xf32>
    %270 = vector.extract_strided_slice %247 {offsets = [0, 3, 0], sizes = [1, 1, 128], strides = [1, 1, 1]} : vector<4x4x128xf32> to vector<1x1x128xf32>
    %271 = vector.shape_cast %270 : vector<1x1x128xf32> to vector<1x128xf32>
    %272 = arith.truncf %271 : vector<1x128xf32> to vector<1x128xbf16>
    %c3_231 = arith.constant 3 : index
    %c0_232 = arith.constant 0 : index
    %c0_233 = arith.constant 0 : index
    %273 = vector.load %arg5[%c3_231, %c0_232, %c0_233] : memref<16x128x256xbf16, #tpu.memory_space<vmem>>, vector<1x128x256xbf16>
    %274 = vector.shape_cast %273 : vector<1x128x256xbf16> to vector<128x256xbf16>
    %cst_234 = arith.constant dense<0.000000e+00> : vector<1x256xf32>
    %275 = tpu.matmul %272, %274, %cst_234 {dimension_numbers = #tpu.dot_dimension_numbers<[1], [0], [0], [1], [0, 0, 1, 1], [], []>} : vector<1x128xbf16>, vector<128x256xbf16>, vector<1x256xf32> -> vector<1x256xf32>
    %276 = arith.addf %269, %275 : vector<1x256xf32>
    %277 = vector.extract_strided_slice %247 {offsets = [1, 0, 0], sizes = [1, 1, 128], strides = [1, 1, 1]} : vector<4x4x128xf32> to vector<1x1x128xf32>
    %278 = vector.shape_cast %277 : vector<1x1x128xf32> to vector<1x128xf32>
    %279 = arith.truncf %278 : vector<1x128xf32> to vector<1x128xbf16>
    %c4_235 = arith.constant 4 : index
    %c0_236 = arith.constant 0 : index
    %c0_237 = arith.constant 0 : index
    %280 = vector.load %arg5[%c4_235, %c0_236, %c0_237] : memref<16x128x256xbf16, #tpu.memory_space<vmem>>, vector<1x128x256xbf16>
    %281 = vector.shape_cast %280 : vector<1x128x256xbf16> to vector<128x256xbf16>
    %cst_238 = arith.constant dense<0.000000e+00> : vector<1x256xf32>
    %282 = tpu.matmul %279, %281, %cst_238 {dimension_numbers = #tpu.dot_dimension_numbers<[1], [0], [0], [1], [0, 0, 1, 1], [], []>} : vector<1x128xbf16>, vector<128x256xbf16>, vector<1x256xf32> -> vector<1x256xf32>
    %283 = arith.addf %276, %282 : vector<1x256xf32>
    %284 = vector.extract_strided_slice %247 {offsets = [1, 1, 0], sizes = [1, 1, 128], strides = [1, 1, 1]} : vector<4x4x128xf32> to vector<1x1x128xf32>
    %285 = vector.shape_cast %284 : vector<1x1x128xf32> to vector<1x128xf32>
    %286 = arith.truncf %285 : vector<1x128xf32> to vector<1x128xbf16>
    %c5_239 = arith.constant 5 : index
    %c0_240 = arith.constant 0 : index
    %c0_241 = arith.constant 0 : index
    %287 = vector.load %arg5[%c5_239, %c0_240, %c0_241] : memref<16x128x256xbf16, #tpu.memory_space<vmem>>, vector<1x128x256xbf16>
    %288 = vector.shape_cast %287 : vector<1x128x256xbf16> to vector<128x256xbf16>
    %cst_242 = arith.constant dense<0.000000e+00> : vector<1x256xf32>
    %289 = tpu.matmul %286, %288, %cst_242 {dimension_numbers = #tpu.dot_dimension_numbers<[1], [0], [0], [1], [0, 0, 1, 1], [], []>} : vector<1x128xbf16>, vector<128x256xbf16>, vector<1x256xf32> -> vector<1x256xf32>
    %290 = arith.addf %283, %289 : vector<1x256xf32>
    %291 = vector.extract_strided_slice %247 {offsets = [1, 2, 0], sizes = [1, 1, 128], strides = [1, 1, 1]} : vector<4x4x128xf32> to vector<1x1x128xf32>
    %292 = vector.shape_cast %291 : vector<1x1x128xf32> to vector<1x128xf32>
    %293 = arith.truncf %292 : vector<1x128xf32> to vector<1x128xbf16>
    %c6_243 = arith.constant 6 : index
    %c0_244 = arith.constant 0 : index
    %c0_245 = arith.constant 0 : index
    %294 = vector.load %arg5[%c6_243, %c0_244, %c0_245] : memref<16x128x256xbf16, #tpu.memory_space<vmem>>, vector<1x128x256xbf16>
    %295 = vector.shape_cast %294 : vector<1x128x256xbf16> to vector<128x256xbf16>
    %cst_246 = arith.constant dense<0.000000e+00> : vector<1x256xf32>
    %296 = tpu.matmul %293, %295, %cst_246 {dimension_numbers = #tpu.dot_dimension_numbers<[1], [0], [0], [1], [0, 0, 1, 1], [], []>} : vector<1x128xbf16>, vector<128x256xbf16>, vector<1x256xf32> -> vector<1x256xf32>
    %297 = arith.addf %290, %296 : vector<1x256xf32>
    %298 = vector.extract_strided_slice %247 {offsets = [1, 3, 0], sizes = [1, 1, 128], strides = [1, 1, 1]} : vector<4x4x128xf32> to vector<1x1x128xf32>
    %299 = vector.shape_cast %298 : vector<1x1x128xf32> to vector<1x128xf32>
    %300 = arith.truncf %299 : vector<1x128xf32> to vector<1x128xbf16>
    %c7_247 = arith.constant 7 : index
    %c0_248 = arith.constant 0 : index
    %c0_249 = arith.constant 0 : index
    %301 = vector.load %arg5[%c7_247, %c0_248, %c0_249] : memref<16x128x256xbf16, #tpu.memory_space<vmem>>, vector<1x128x256xbf16>
    %302 = vector.shape_cast %301 : vector<1x128x256xbf16> to vector<128x256xbf16>
    %cst_250 = arith.constant dense<0.000000e+00> : vector<1x256xf32>
    %303 = tpu.matmul %300, %302, %cst_250 {dimension_numbers = #tpu.dot_dimension_numbers<[1], [0], [0], [1], [0, 0, 1, 1], [], []>} : vector<1x128xbf16>, vector<128x256xbf16>, vector<1x256xf32> -> vector<1x256xf32>
    %304 = arith.addf %297, %303 : vector<1x256xf32>
    %305 = vector.extract_strided_slice %247 {offsets = [2, 0, 0], sizes = [1, 1, 128], strides = [1, 1, 1]} : vector<4x4x128xf32> to vector<1x1x128xf32>
    %306 = vector.shape_cast %305 : vector<1x1x128xf32> to vector<1x128xf32>
    %307 = arith.truncf %306 : vector<1x128xf32> to vector<1x128xbf16>
    %c8_251 = arith.constant 8 : index
    %c0_252 = arith.constant 0 : index
    %c0_253 = arith.constant 0 : index
    %308 = vector.load %arg5[%c8_251, %c0_252, %c0_253] : memref<16x128x256xbf16, #tpu.memory_space<vmem>>, vector<1x128x256xbf16>
    %309 = vector.shape_cast %308 : vector<1x128x256xbf16> to vector<128x256xbf16>
    %cst_254 = arith.constant dense<0.000000e+00> : vector<1x256xf32>
    %310 = tpu.matmul %307, %309, %cst_254 {dimension_numbers = #tpu.dot_dimension_numbers<[1], [0], [0], [1], [0, 0, 1, 1], [], []>} : vector<1x128xbf16>, vector<128x256xbf16>, vector<1x256xf32> -> vector<1x256xf32>
    %311 = arith.addf %304, %310 : vector<1x256xf32>
    %312 = vector.extract_strided_slice %247 {offsets = [2, 1, 0], sizes = [1, 1, 128], strides = [1, 1, 1]} : vector<4x4x128xf32> to vector<1x1x128xf32>
    %313 = vector.shape_cast %312 : vector<1x1x128xf32> to vector<1x128xf32>
    %314 = arith.truncf %313 : vector<1x128xf32> to vector<1x128xbf16>
    %c9_255 = arith.constant 9 : index
    %c0_256 = arith.constant 0 : index
    %c0_257 = arith.constant 0 : index
    %315 = vector.load %arg5[%c9_255, %c0_256, %c0_257] : memref<16x128x256xbf16, #tpu.memory_space<vmem>>, vector<1x128x256xbf16>
    %316 = vector.shape_cast %315 : vector<1x128x256xbf16> to vector<128x256xbf16>
    %cst_258 = arith.constant dense<0.000000e+00> : vector<1x256xf32>
    %317 = tpu.matmul %314, %316, %cst_258 {dimension_numbers = #tpu.dot_dimension_numbers<[1], [0], [0], [1], [0, 0, 1, 1], [], []>} : vector<1x128xbf16>, vector<128x256xbf16>, vector<1x256xf32> -> vector<1x256xf32>
    %318 = arith.addf %311, %317 : vector<1x256xf32>
    %319 = vector.extract_strided_slice %247 {offsets = [2, 2, 0], sizes = [1, 1, 128], strides = [1, 1, 1]} : vector<4x4x128xf32> to vector<1x1x128xf32>
    %320 = vector.shape_cast %319 : vector<1x1x128xf32> to vector<1x128xf32>
    %321 = arith.truncf %320 : vector<1x128xf32> to vector<1x128xbf16>
    %c10_259 = arith.constant 10 : index
    %c0_260 = arith.constant 0 : index
    %c0_261 = arith.constant 0 : index
    %322 = vector.load %arg5[%c10_259, %c0_260, %c0_261] : memref<16x128x256xbf16, #tpu.memory_space<vmem>>, vector<1x128x256xbf16>
    %323 = vector.shape_cast %322 : vector<1x128x256xbf16> to vector<128x256xbf16>
    %cst_262 = arith.constant dense<0.000000e+00> : vector<1x256xf32>
    %324 = tpu.matmul %321, %323, %cst_262 {dimension_numbers = #tpu.dot_dimension_numbers<[1], [0], [0], [1], [0, 0, 1, 1], [], []>} : vector<1x128xbf16>, vector<128x256xbf16>, vector<1x256xf32> -> vector<1x256xf32>
    %325 = arith.addf %318, %324 : vector<1x256xf32>
    %326 = vector.extract_strided_slice %247 {offsets = [2, 3, 0], sizes = [1, 1, 128], strides = [1, 1, 1]} : vector<4x4x128xf32> to vector<1x1x128xf32>
    %327 = vector.shape_cast %326 : vector<1x1x128xf32> to vector<1x128xf32>
    %328 = arith.truncf %327 : vector<1x128xf32> to vector<1x128xbf16>
    %c11_263 = arith.constant 11 : index
    %c0_264 = arith.constant 0 : index
    %c0_265 = arith.constant 0 : index
    %329 = vector.load %arg5[%c11_263, %c0_264, %c0_265] : memref<16x128x256xbf16, #tpu.memory_space<vmem>>, vector<1x128x256xbf16>
    %330 = vector.shape_cast %329 : vector<1x128x256xbf16> to vector<128x256xbf16>
    %cst_266 = arith.constant dense<0.000000e+00> : vector<1x256xf32>
    %331 = tpu.matmul %328, %330, %cst_266 {dimension_numbers = #tpu.dot_dimension_numbers<[1], [0], [0], [1], [0, 0, 1, 1], [], []>} : vector<1x128xbf16>, vector<128x256xbf16>, vector<1x256xf32> -> vector<1x256xf32>
    %332 = arith.addf %325, %331 : vector<1x256xf32>
    %333 = vector.extract_strided_slice %247 {offsets = [3, 0, 0], sizes = [1, 1, 128], strides = [1, 1, 1]} : vector<4x4x128xf32> to vector<1x1x128xf32>
    %334 = vector.shape_cast %333 : vector<1x1x128xf32> to vector<1x128xf32>
    %335 = arith.truncf %334 : vector<1x128xf32> to vector<1x128xbf16>
    %c12_267 = arith.constant 12 : index
    %c0_268 = arith.constant 0 : index
    %c0_269 = arith.constant 0 : index
    %336 = vector.load %arg5[%c12_267, %c0_268, %c0_269] : memref<16x128x256xbf16, #tpu.memory_space<vmem>>, vector<1x128x256xbf16>
    %337 = vector.shape_cast %336 : vector<1x128x256xbf16> to vector<128x256xbf16>
    %cst_270 = arith.constant dense<0.000000e+00> : vector<1x256xf32>
    %338 = tpu.matmul %335, %337, %cst_270 {dimension_numbers = #tpu.dot_dimension_numbers<[1], [0], [0], [1], [0, 0, 1, 1], [], []>} : vector<1x128xbf16>, vector<128x256xbf16>, vector<1x256xf32> -> vector<1x256xf32>
    %339 = arith.addf %332, %338 : vector<1x256xf32>
    %340 = vector.extract_strided_slice %247 {offsets = [3, 1, 0], sizes = [1, 1, 128], strides = [1, 1, 1]} : vector<4x4x128xf32> to vector<1x1x128xf32>
    %341 = vector.shape_cast %340 : vector<1x1x128xf32> to vector<1x128xf32>
    %342 = arith.truncf %341 : vector<1x128xf32> to vector<1x128xbf16>
    %c13_271 = arith.constant 13 : index
    %c0_272 = arith.constant 0 : index
    %c0_273 = arith.constant 0 : index
    %343 = vector.load %arg5[%c13_271, %c0_272, %c0_273] : memref<16x128x256xbf16, #tpu.memory_space<vmem>>, vector<1x128x256xbf16>
    %344 = vector.shape_cast %343 : vector<1x128x256xbf16> to vector<128x256xbf16>
    %cst_274 = arith.constant dense<0.000000e+00> : vector<1x256xf32>
    %345 = tpu.matmul %342, %344, %cst_274 {dimension_numbers = #tpu.dot_dimension_numbers<[1], [0], [0], [1], [0, 0, 1, 1], [], []>} : vector<1x128xbf16>, vector<128x256xbf16>, vector<1x256xf32> -> vector<1x256xf32>
    %346 = arith.addf %339, %345 : vector<1x256xf32>
    %347 = vector.extract_strided_slice %247 {offsets = [3, 2, 0], sizes = [1, 1, 128], strides = [1, 1, 1]} : vector<4x4x128xf32> to vector<1x1x128xf32>
    %348 = vector.shape_cast %347 : vector<1x1x128xf32> to vector<1x128xf32>
    %349 = arith.truncf %348 : vector<1x128xf32> to vector<1x128xbf16>
    %c14_275 = arith.constant 14 : index
    %c0_276 = arith.constant 0 : index
    %c0_277 = arith.constant 0 : index
    %350 = vector.load %arg5[%c14_275, %c0_276, %c0_277] : memref<16x128x256xbf16, #tpu.memory_space<vmem>>, vector<1x128x256xbf16>
    %351 = vector.shape_cast %350 : vector<1x128x256xbf16> to vector<128x256xbf16>
    %cst_278 = arith.constant dense<0.000000e+00> : vector<1x256xf32>
    %352 = tpu.matmul %349, %351, %cst_278 {dimension_numbers = #tpu.dot_dimension_numbers<[1], [0], [0], [1], [0, 0, 1, 1], [], []>} : vector<1x128xbf16>, vector<128x256xbf16>, vector<1x256xf32> -> vector<1x256xf32>
    %353 = arith.addf %346, %352 : vector<1x256xf32>
    %354 = vector.extract_strided_slice %247 {offsets = [3, 3, 0], sizes = [1, 1, 128], strides = [1, 1, 1]} : vector<4x4x128xf32> to vector<1x1x128xf32>
    %355 = vector.shape_cast %354 : vector<1x1x128xf32> to vector<1x128xf32>
    %356 = arith.truncf %355 : vector<1x128xf32> to vector<1x128xbf16>
    %c15_279 = arith.constant 15 : index
    %c0_280 = arith.constant 0 : index
    %c0_281 = arith.constant 0 : index
    %357 = vector.load %arg5[%c15_279, %c0_280, %c0_281] : memref<16x128x256xbf16, #tpu.memory_space<vmem>>, vector<1x128x256xbf16>
    %358 = vector.shape_cast %357 : vector<1x128x256xbf16> to vector<128x256xbf16>
    %cst_282 = arith.constant dense<0.000000e+00> : vector<1x256xf32>
    %359 = tpu.matmul %356, %358, %cst_282 {dimension_numbers = #tpu.dot_dimension_numbers<[1], [0], [0], [1], [0, 0, 1, 1], [], []>} : vector<1x128xbf16>, vector<128x256xbf16>, vector<1x256xf32> -> vector<1x256xf32>
    %360 = arith.addf %353, %359 : vector<1x256xf32>
    %c0_283 = arith.constant 0 : index
    %c0_284 = arith.constant 0 : index
    %361 = vector.load %arg6[%c0_283, %c0_284] : memref<1x256xf32, #tpu.memory_space<vmem>>, vector<1x256xf32>
    %362 = arith.addf %360, %361 : vector<1x256xf32>
    %cst_285 = arith.constant 0.000000e+00 : f32
    %363 = vector.broadcast %cst_285 : f32 to vector<1x256xf32>
    %364 = arith.maximumf %362, %363 : vector<1x256xf32>
    %c0_286 = arith.constant 0 : index
    %c0_287 = arith.constant 0 : index
    %365 = vector.load %arg7[%c0_286, %c0_287] : memref<1x256xf32, #tpu.memory_space<vmem>>, vector<1x256xf32>
    %366 = arith.mulf %364, %365 : vector<1x256xf32>
    %c0_288 = arith.constant 0 : index
    %c0_289 = arith.constant 0 : index
    %367 = vector.load %arg8[%c0_288, %c0_289] : memref<1x256xf32, #tpu.memory_space<vmem>>, vector<1x256xf32>
    %368 = arith.addf %366, %367 : vector<1x256xf32>
    %369 = arith.truncf %368 : vector<1x256xf32> to vector<1x256xbf16>
    %c0_290 = arith.constant 0 : index
    %c0_291 = arith.constant 0 : index
    %370 = vector.load %arg9[%c0_290, %c0_291] : memref<256x128xbf16, #tpu.memory_space<vmem>>, vector<256x128xbf16>
    %cst_292 = arith.constant dense<0.000000e+00> : vector<1x128xf32>
    %371 = tpu.matmul %369, %370, %cst_292 {dimension_numbers = #tpu.dot_dimension_numbers<[1], [0], [0], [1], [0, 0, 1, 1], [], []>} : vector<1x256xbf16>, vector<256x128xbf16>, vector<1x128xf32> -> vector<1x128xf32>
    %c0_293 = arith.constant 0 : index
    %c0_294 = arith.constant 0 : index
    %372 = vector.load %arg10[%c0_293, %c0_294] : memref<1x128xf32, #tpu.memory_space<vmem>>, vector<1x128xf32>
    %373 = arith.addf %371, %372 : vector<1x128xf32>
    %cst_295 = arith.constant 0.000000e+00 : f32
    %374 = vector.broadcast %cst_295 : f32 to vector<1x128xf32>
    %375 = arith.maximumf %373, %374 : vector<1x128xf32>
    %c0_296 = arith.constant 0 : index
    %c0_297 = arith.constant 0 : index
    %376 = vector.load %arg11[%c0_296, %c0_297] : memref<1x128xf32, #tpu.memory_space<vmem>>, vector<1x128xf32>
    %377 = arith.mulf %375, %376 : vector<1x128xf32>
    %c0_298 = arith.constant 0 : index
    %c0_299 = arith.constant 0 : index
    %378 = vector.load %arg12[%c0_298, %c0_299] : memref<1x128xf32, #tpu.memory_space<vmem>>, vector<1x128xf32>
    %379 = arith.addf %377, %378 : vector<1x128xf32>
    %380 = arith.truncf %379 : vector<1x128xf32> to vector<1x128xbf16>
    %c0_300 = arith.constant 0 : index
    %c0_301 = arith.constant 0 : index
    %381 = vector.load %arg13[%c0_300, %c0_301] : memref<128x128xbf16, #tpu.memory_space<vmem>>, vector<128x128xbf16>
    %cst_302 = arith.constant dense<0.000000e+00> : vector<1x128xf32>
    %382 = tpu.matmul %380, %381, %cst_302 {dimension_numbers = #tpu.dot_dimension_numbers<[1], [0], [0], [1], [0, 0, 1, 1], [], []>} : vector<1x128xbf16>, vector<128x128xbf16>, vector<1x128xf32> -> vector<1x128xf32>
    %c0_303 = arith.constant 0 : index
    %c0_304 = arith.constant 0 : index
    %383 = vector.load %arg14[%c0_303, %c0_304] : memref<1x128xf32, #tpu.memory_space<vmem>>, vector<1x128xf32>
    %384 = arith.addf %382, %383 : vector<1x128xf32>
    %c0_305 = arith.constant 0 : index
    %c0_306 = arith.constant 0 : index
    %c0_307 = arith.constant 0 : index
    %385 = vector.load %arg15[%c0_305, %c0_306, %c0_307] : memref<1x1x128xf32, #tpu.memory_space<vmem>>, vector<1x1x128xf32>
    %386 = vector.shape_cast %385 : vector<1x1x128xf32> to vector<1x128xf32>
    %387 = vector.shape_cast %384 : vector<1x128xf32> to vector<1x1x128xf32>
    tpu.vector_store %arg15[%c0_305, %c0_306, %c0_307], %387 {strides = array<i32>} : memref<1x1x128xf32, #tpu.memory_space<vmem>>, vector<1x1x128xf32>,
    return
  }
  func.func @transform_0(%arg0: i32) -> (i32, i32, i32, i32) {
    %c0_i32 = arith.constant 0 : i32
    %c0_i32_0 = arith.constant 0 : i32
    %c0_i32_1 = arith.constant 0 : i32
    %c0_i32_2 = arith.constant 0 : i32
    return %arg0, %c0_i32, %c0_i32_0, %c0_i32_1 : i32, i32, i32, i32
  }
  func.func @transform_1(%arg0: i32) -> (i32, i32, i32) {
    %c0_i32 = arith.constant 0 : i32
    %c0_i32_0 = arith.constant 0 : i32
    %c0_i32_1 = arith.constant 0 : i32
    %c0_i32_2 = arith.constant 0 : i32
    return %c0_i32, %c0_i32_0, %c0_i32_1 : i32, i32, i32
  }
  func.func @transform_2(%arg0: i32) -> (i32, i32) {
    %c0_i32 = arith.constant 0 : i32
    %c0_i32_0 = arith.constant 0 : i32
    %c0_i32_1 = arith.constant 0 : i32
    return %c0_i32, %c0_i32_0 : i32, i32
  }
  func.func @transform_3(%arg0: i32) -> (i32, i32) {
    %c0_i32 = arith.constant 0 : i32
    %c0_i32_0 = arith.constant 0 : i32
    %c0_i32_1 = arith.constant 0 : i32
    return %c0_i32, %c0_i32_0 : i32, i32
  }
  func.func @transform_4(%arg0: i32) -> (i32, i32, i32) {
    %c0_i32 = arith.constant 0 : i32
    %c0_i32_0 = arith.constant 0 : i32
    %c0_i32_1 = arith.constant 0 : i32
    %c0_i32_2 = arith.constant 0 : i32
    return %c0_i32, %c0_i32_0, %c0_i32_1 : i32, i32, i32
  }
  func.func @transform_5(%arg0: i32) -> (i32, i32) {
    %c0_i32 = arith.constant 0 : i32
    %c0_i32_0 = arith.constant 0 : i32
    %c0_i32_1 = arith.constant 0 : i32
    return %c0_i32, %c0_i32_0 : i32, i32
  }
  func.func @transform_6(%arg0: i32) -> (i32, i32) {
    %c0_i32 = arith.constant 0 : i32
    %c0_i32_0 = arith.constant 0 : i32
    %c0_i32_1 = arith.constant 0 : i32
    return %c0_i32, %c0_i32_0 : i32, i32
  }
  func.func @transform_7(%arg0: i32) -> (i32, i32) {
    %c0_i32 = arith.constant 0 : i32
    %c0_i32_0 = arith.constant 0 : i32
    %c0_i32_1 = arith.constant 0 : i32
    return %c0_i32, %c0_i32_0 : i32, i32
  }
  func.func @transform_8(%arg0: i32) -> (i32, i32) {
    %c0_i32 = arith.constant 0 : i32
    %c0_i32_0 = arith.constant 0 : i32
    %c0_i32_1 = arith.constant 0 : i32
    return %c0_i32, %c0_i32_0 : i32, i32
  }
  func.func @transform_9(%arg0: i32) -> (i32, i32) {
    %c0_i32 = arith.constant 0 : i32
    %c0_i32_0 = arith.constant 0 : i32
    %c0_i32_1 = arith.constant 0 : i32
    return %c0_i32, %c0_i32_0 : i32, i32
  }
  func.func @transform_10(%arg0: i32) -> (i32, i32) {
    %c0_i32 = arith.constant 0 : i32
    %c0_i32_0 = arith.constant 0 : i32
    %c0_i32_1 = arith.constant 0 : i32
    return %c0_i32, %c0_i32_0 : i32, i32
  }
  func.func @transform_11(%arg0: i32) -> (i32, i32) {
    %c0_i32 = arith.constant 0 : i32
    %c0_i32_0 = arith.constant 0 : i32
    %c0_i32_1 = arith.constant 0 : i32
    return %c0_i32, %c0_i32_0 : i32, i32
  }
  func.func @transform_12(%arg0: i32) -> (i32, i32) {
    %c0_i32 = arith.constant 0 : i32
    %c0_i32_0 = arith.constant 0 : i32
    %c0_i32_1 = arith.constant 0 : i32
    return %c0_i32, %c0_i32_0 : i32, i32
  }
  func.func @transform_13(%arg0: i32) -> (i32, i32) {
    %c0_i32 = arith.constant 0 : i32
    %c0_i32_0 = arith.constant 0 : i32
    %c0_i32_1 = arith.constant 0 : i32
    return %c0_i32, %c0_i32_0 : i32, i32
  }
  func.func @transform_14(%arg0: i32) -> (i32, i32, i32) {
    %c0_i32 = arith.constant 0 : i32
    %c0_i32_0 = arith.constant 0 : i32
    %c0_i32_1 = arith.constant 0 : i32
    return %arg0, %c0_i32, %c0_i32_0 : i32, i32, i32
  }
}

</mosaic_0001>

<llo_original>
// kernel: tpu_custom_call.1
$region0: #{tpu_custom_call.1}
  #allocation0 [shape = 'u32[]', space=smem, size = 0x4, offset = 0x4, fixed_abs, tag = 'smem constant byte address 0x4 - core index']
  #allocation1 [shape = 'u32[72,128]{1,0:T(1,128)}', space=vmem, size = 0x9000, scoped, tag = 'internal scratch']
  #allocation2 [shape = 'f32[18,18,128]{2,1,0:T(8,128)}', space=vmem, size = 0x36000, scoped, tag = 'scratch operand']
  #allocation3 [shape = 'f32[10,10,128]{2,1,0:T(8,128)}', space=vmem, size = 0x14000, scoped, tag = 'scratch operand']
  %s0 = inlined_call_operand.hbm [shape: f32[2,16,16,128], index: 0, kind: input, shape index: {}]
  %s1 = inlined_call_operand.hbm [shape: bf16[27,128,128], index: 1, kind: input, shape index: {}]
  %s2 = inlined_call_operand.hbm [shape: f32[3,128], index: 2, kind: input, shape index: {}]
  %s3 = inlined_call_operand.hbm [shape: f32[3,128], index: 3, kind: input, shape index: {}]
  %s4 = inlined_call_operand.hbm [shape: bf16[16,128,256], index: 4, kind: input, shape index: {}]
  %s5 = inlined_call_operand.vmem [shape: f32[1,256], index: 5, kind: input, shape index: {}]
  %s6 = inlined_call_operand.vmem [shape: f32[1,256], index: 6, kind: input, shape index: {}]
  %s7 = inlined_call_operand.vmem [shape: f32[1,256], index: 7, kind: input, shape index: {}]
  %s8 = inlined_call_operand.hbm [shape: bf16[256,128], index: 8, kind: input, shape index: {}]
  %s9 = inlined_call_operand.vmem [shape: f32[1,128], index: 9, kind: input, shape index: {}]
  %s10 = inlined_call_operand.vmem [shape: f32[1,128], index: 10, kind: input, shape index: {}]
  %s11 = inlined_call_operand.vmem [shape: f32[1,128], index: 11, kind: input, shape index: {}]
  %s12 = inlined_call_operand.hbm [shape: bf16[128,128], index: 12, kind: input, shape index: {}]
  %s13 = inlined_call_operand.vmem [shape: f32[1,128], index: 13, kind: input, shape index: {}]
  %s14 = inlined_call_operand.hbm [shape: f32[2,1,128], index: 14, kind: output, shape index: {}]
  %s15 = sld [smem:[#allocation0]]
  $region117: #{tpu_custom_call.1} parent=0
    _
  %s17 = ssub.s32 1, %s15
  %s18 = scalar_select 0, %s17, %s15
  $region1: #{tpu_custom_call.1} parent=0
    #allocation4 [shape = 'u8[262144]{0}', space=vmem, size = 0x40000, scoped, tag = 'input window, operand 0']
    #allocation5 [shape = 's32[2]{0}', space=sflag, size = 0x8, scoped, tag = 'scoped memory for tpu_custom_call.1']
    #allocation6 [shape = 's32[2]{0}', space=sflag, size = 0x8, scoped, tag = 'scoped memory for tpu_custom_call.1']
    #allocation7 [shape = 'u8[884736]{0}', space=vmem, size = 0xd8000, scoped, tag = 'input window, operand 1, single buffered']
    #allocation8 [shape = 's32[1]{0}', space=sflag, size = 0x4, scoped, tag = 'scoped memory for tpu_custom_call.1']
    #allocation9 [shape = 'u8[2048]{0}', space=vmem, size = 0x800, scoped, tag = 'input window, operand 2, single buffered']
    #allocation10 [shape = 'u8[2048]{0}', space=vmem, size = 0x800, scoped, tag = 'input window, operand 3, single buffered']
    #allocation11 [shape = 's32[1]{0}', space=sflag, size = 0x4, scoped, tag = 'scoped memory for tpu_custom_call.1']
    #allocation12 [shape = 'u8[1048576]{0}', space=vmem, size = 0x100000, scoped, tag = 'input window, operand 4, single buffered']
    #allocation13 [shape = 'u8[65536]{0}', space=vmem, size = 0x10000, scoped, tag = 'input window, operand 8, single buffered']
    #allocation14 [shape = 's32[1]{0}', space=sflag, size = 0x4, scoped, tag = 'scoped memory for tpu_custom_call.1']
    #allocation15 [shape = 'u8[32768]{0}', space=vmem, size = 0x8000, scoped, tag = 'input window, operand 12, single buffered']
    #allocation16 [shape = 'u8[1024]{0}', space=vmem, size = 0x400, scoped, tag = 'output window, operand 0']
    %19 = vsyncpa [#allocation5], 0
    %s20 = scalar_lea.sflag [#allocation5], 1
    %21 = vsyncpa %s20, 0
    %22 = vsyncpa [#allocation8], 0
    %23 = vsyncpa [#allocation11], 0
    %24 = vsyncpa [#allocation14], 0
    %25 = vsyncpa [#allocation6], 0
    %s26 = scalar_lea.sflag [#allocation6], 1
    %27 = vsyncpa %s26, 0
    loop: start=0, step=1, limit=4
    $region2: #{tpu_custom_call.1} parent=1 // loop_pre_header
      _
    $region3: #{tpu_custom_call.1} parent=1 // loop_header
      %s29 = sphi 0, %s33
      %p30 = scmp.ge.s32.totalorder %s29, 4
      %s39 = sphi 0, %s41
      %s42 = sphi 0, %s39
      %s43 = sphi 0, %s42
      %s59 = sphi 0, %s43
      %s63 = sphi 0, %s63
      %s65 = sphi 0, %s63
      %s66 = sphi 0, %s65
      %s80 = sphi 0, %s66
      %s84 = sphi 0, %s84
      %s86 = sphi 0, %s84
      %s87 = sphi 0, %s86
      %s101 = sphi 0, %s87
      %s105 = sphi 0, %s105
      %s107 = sphi 0, %s105
      %s108 = sphi 0, %s107
      %s122 = sphi 0, %s108
      %s126 = sphi 0, %s126
      %s128 = sphi 0, %s126
      %s129 = sphi 0, %s128
      %s143 = sphi 0, %s129
      %s147 = sphi 0, %s147
      %s149 = sphi 0, %s147
      %s150 = sphi 0, %s149
      %s164 = sphi 0, %s150
      %s168 = sphi 0, %s168
      %s170 = sphi 0, %s168
      %s171 = sphi 0, %s170
      %s185 = sphi 0, %s171
      %s189 = sphi 0, %s189
      %s191 = sphi 0, %s189
      %s192 = sphi 0, %s191
      %s206 = sphi 0, %s192
      %s210 = sphi 0, %s210
      %s212 = sphi 0, %s210
      %s213 = sphi 0, %s212
      %s227 = sphi 0, %s213
      %s231 = sphi 0, %s231
      %s233 = sphi 0, %s231
      %s234 = sphi 0, %s233
      %s248 = sphi 0, %s234
      %s252 = sphi 0, %s252
      %s254 = sphi 0, %s252
      %s255 = sphi 0, %s254
      %s269 = sphi 0, %s255
      %s273 = sphi 0, %s273
      %s275 = sphi 0, %s273
      %s276 = sphi 0, %s275
      %s290 = sphi 0, %s276
      %s294 = sphi 0, %s294
      %s296 = sphi 0, %s294
      %s297 = sphi 0, %s296
      %s311 = sphi 0, %s297
      %s315 = sphi 0, %s315
      %s317 = sphi 0, %s315
      %s318 = sphi 0, %s317
      %s332 = sphi 0, %s318
      %s338 = sphi 0, %s340
      %s341 = sphi 0, %s338
      %s342 = sphi 0, %s341
      %s358 = sphi 0, %s342
    $region4: #{tpu_custom_call.1} parent=1 // loop_header_branch
      %32 = sbr.rel (%p30) target = $region8
    $region5: #{tpu_custom_call.1} parent=1 // loop_body
      %s34 = ssub.s32 %s29, 1
      %s35 = ssub.s32 %s29, 2
      %s36 = sadd.s32 %s29, 1
      %s37 = ssub.s32 %s29, %s36
      %p38 = scmp.eq.s32.totalorder %s37, 0
      %s40 = sadd.s32 %s39, 1
      %s41 = scalar_select %p38, %s39, %s40
      %p44 = pneg %p38
      %p45 = scmp.eq.s32.totalorder %s29, 1
      %p46 = por %p44, %p45
      %p47 = scmp.ne.s32.totalorder %s39, %s42
      %p48 = scmp.eq.s32.totalorder %s29, 0
      %p49 = por %p47, %p48
      %p50 = scmp.ne.s32.totalorder %s39, %s42
      %p51 = scmp.eq.s32.totalorder %s34, 1
      %p52 = por %p50, %p51
      %p53 = scmp.ne.s32.totalorder %s42, %s43
      %p54 = scmp.eq.s32.totalorder %s34, 0
      %p55 = por %p53, %p54
      %p56 = scmp.ne.s32.totalorder %s42, %s43
      %p57 = scmp.eq.s32.totalorder %s35, 1
      %p58 = por %p56, %p57
      %p60 = scmp.ne.s32.totalorder %s43, %s59
      %p61 = scmp.eq.s32.totalorder %s35, 0
      %p62 = por %p60, %p61
      %s64 = sadd.s32 %s63, 1
      %p67 = scmp.eq.s32.totalorder %s29, 1
      %p68 = scmp.ne.s32.totalorder %s63, %s65
      %p69 = scmp.eq.s32.totalorder %s29, 0
      %p70 = por %p68, %p69
      %p71 = scmp.ne.s32.totalorder %s63, %s65
      %p72 = scmp.eq.s32.totalorder %s34, 1
      %p73 = por %p71, %p72
      %p74 = scmp.ne.s32.totalorder %s65, %s66
      %p75 = scmp.eq.s32.totalorder %s34, 0
      %p76 = por %p74, %p75
      %p77 = scmp.ne.s32.totalorder %s65, %s66
      %p78 = scmp.eq.s32.totalorder %s35, 1
      %p79 = por %p77, %p78
      %p81 = scmp.ne.s32.totalorder %s66, %s80
      %p82 = scmp.eq.s32.totalorder %s35, 0
      %p83 = por %p81, %p82
      %s85 = sadd.s32 %s84, 1
      %p88 = scmp.eq.s32.totalorder %s29, 1
      %p89 = scmp.ne.s32.totalorder %s84, %s86
      %p90 = scmp.eq.s32.totalorder %s29, 0
      %p91 = por %p89, %p90
      %p92 = scmp.ne.s32.totalorder %s84, %s86
      %p93 = scmp.eq.s32.totalorder %s34, 1
      %p94 = por %p92, %p93
      %p95 = scmp.ne.s32.totalorder %s86, %s87
      %p96 = scmp.eq.s32.totalorder %s34, 0
      %p97 = por %p95, %p96
      %p98 = scmp.ne.s32.totalorder %s86, %s87
      %p99 = scmp.eq.s32.totalorder %s35, 1
      %p100 = por %p98, %p99
      %p102 = scmp.ne.s32.totalorder %s87, %s101
      %p103 = scmp.eq.s32.totalorder %s35, 0
      %p104 = por %p102, %p103
      %s106 = sadd.s32 %s105, 1
      %p109 = scmp.eq.s32.totalorder %s29, 1
      %p110 = scmp.ne.s32.totalorder %s105, %s107
      %p111 = scmp.eq.s32.totalorder %s29, 0
      %p112 = por %p110, %p111
      %p113 = scmp.ne.s32.totalorder %s105, %s107
      %p114 = scmp.eq.s32.totalorder %s34, 1
      %p115 = por %p113, %p114
      %p116 = scmp.ne.s32.totalorder %s107, %s108
      %p117 = scmp.eq.s32.totalorder %s34, 0
      %p118 = por %p116, %p117
      %p119 = scmp.ne.s32.totalorder %s107, %s108
      %p120 = scmp.eq.s32.totalorder %s35, 1
      %p121 = por %p119, %p120
      %p123 = scmp.ne.s32.totalorder %s108, %s122
      %p124 = scmp.eq.s32.totalorder %s35, 0
      %p125 = por %p123, %p124
      %s127 = sadd.s32 %s126, 1
      %p130 = scmp.eq.s32.totalorder %s29, 1
      %p131 = scmp.ne.s32.totalorder %s126, %s128
      %p132 = scmp.eq.s32.totalorder %s29, 0
      %p133 = por %p131, %p132
      %p134 = scmp.ne.s32.totalorder %s126, %s128
      %p135 = scmp.eq.s32.totalorder %s34, 1
      %p136 = por %p134, %p135
      %p137 = scmp.ne.s32.totalorder %s128, %s129
      %p138 = scmp.eq.s32.totalorder %s34, 0
      %p139 = por %p137, %p138
      %p140 = scmp.ne.s32.totalorder %s128, %s129
      %p141 = scmp.eq.s32.totalorder %s35, 1
      %p142 = por %p140, %p141
      %p144 = scmp.ne.s32.totalorder %s129, %s143
      %p145 = scmp.eq.s32.totalorder %s35, 0
      %p146 = por %p144, %p145
      %s148 = sadd.s32 %s147, 1
      %p151 = scmp.eq.s32.totalorder %s29, 1
      %p152 = scmp.ne.s32.totalorder %s147, %s149
      %p153 = scmp.eq.s32.totalorder %s29, 0
      %p154 = por %p152, %p153
      %p155 = scmp.ne.s32.totalorder %s147, %s149
      %p156 = scmp.eq.s32.totalorder %s34, 1
      %p157 = por %p155, %p156
      %p158 = scmp.ne.s32.totalorder %s149, %s150
      %p159 = scmp.eq.s32.totalorder %s34, 0
      %p160 = por %p158, %p159
      %p161 = scmp.ne.s32.totalorder %s149, %s150
      %p162 = scmp.eq.s32.totalorder %s35, 1
      %p163 = por %p161, %p162
      %p165 = scmp.ne.s32.totalorder %s150, %s164
      %p166 = scmp.eq.s32.totalorder %s35, 0
      %p167 = por %p165, %p166
      %s169 = sadd.s32 %s168, 1
      %p172 = scmp.eq.s32.totalorder %s29, 1
      %p173 = scmp.ne.s32.totalorder %s168, %s170
      %p174 = scmp.eq.s32.totalorder %s29, 0
      %p175 = por %p173, %p174
      %p176 = scmp.ne.s32.totalorder %s168, %s170
      %p177 = scmp.eq.s32.totalorder %s34, 1
      %p178 = por %p176, %p177
      %p179 = scmp.ne.s32.totalorder %s170, %s171
      %p180 = scmp.eq.s32.totalorder %s34, 0
      %p181 = por %p179, %p180
      %p182 = scmp.ne.s32.totalorder %s170, %s171
      %p183 = scmp.eq.s32.totalorder %s35, 1
      %p184 = por %p182, %p183
      %p186 = scmp.ne.s32.totalorder %s171, %s185
      %p187 = scmp.eq.s32.totalorder %s35, 0
      %p188 = por %p186, %p187
      %s190 = sadd.s32 %s189, 1
      %p193 = scmp.eq.s32.totalorder %s29, 1
      %p194 = scmp.ne.s32.totalorder %s189, %s191
      %p195 = scmp.eq.s32.totalorder %s29, 0
      %p196 = por %p194, %p195
      %p197 = scmp.ne.s32.totalorder %s189, %s191
      %p198 = scmp.eq.s32.totalorder %s34, 1
      %p199 = por %p197, %p198
      %p200 = scmp.ne.s32.totalorder %s191, %s192
      %p201 = scmp.eq.s32.totalorder %s34, 0
      %p202 = por %p200, %p201
      %p203 = scmp.ne.s32.totalorder %s191, %s192
      %p204 = scmp.eq.s32.totalorder %s35, 1
      %p205 = por %p203, %p204
      %p207 = scmp.ne.s32.totalorder %s192, %s206
      %p208 = scmp.eq.s32.totalorder %s35, 0
      %p209 = por %p207, %p208
      %s211 = sadd.s32 %s210, 1
      %p214 = scmp.eq.s32.totalorder %s29, 1
      %p215 = scmp.ne.s32.totalorder %s210, %s212
      %p216 = scmp.eq.s32.totalorder %s29, 0
      %p217 = por %p215, %p216
      %p218 = scmp.ne.s32.totalorder %s210, %s212
      %p219 = scmp.eq.s32.totalorder %s34, 1
      %p220 = por %p218, %p219
      %p221 = scmp.ne.s32.totalorder %s212, %s213
      %p222 = scmp.eq.s32.totalorder %s34, 0
      %p223 = por %p221, %p222
      %p224 = scmp.ne.s32.totalorder %s212, %s213
      %p225 = scmp.eq.s32.totalorder %s35, 1
      %p226 = por %p224, %p225
      %p228 = scmp.ne.s32.totalorder %s213, %s227
      %p229 = scmp.eq.s32.totalorder %s35, 0
      %p230 = por %p228, %p229
      %s232 = sadd.s32 %s231, 1
      %p235 = scmp.eq.s32.totalorder %s29, 1
      %p236 = scmp.ne.s32.totalorder %s231, %s233
      %p237 = scmp.eq.s32.totalorder %s29, 0
      %p238 = por %p236, %p237
      %p239 = scmp.ne.s32.totalorder %s231, %s233
      %p240 = scmp.eq.s32.totalorder %s34, 1
      %p241 = por %p239, %p240
      %p242 = scmp.ne.s32.totalorder %s233, %s234
      %p243 = scmp.eq.s32.totalorder %s34, 0
      %p244 = por %p242, %p243
      %p245 = scmp.ne.s32.totalorder %s233, %s234
      %p246 = scmp.eq.s32.totalorder %s35, 1
      %p247 = por %p245, %p246
      %p249 = scmp.ne.s32.totalorder %s234, %s248
      %p250 = scmp.eq.s32.totalorder %s35, 0
      %p251 = por %p249, %p250
      %s253 = sadd.s32 %s252, 1
      %p256 = scmp.eq.s32.totalorder %s29, 1
      %p257 = scmp.ne.s32.totalorder %s252, %s254
      %p258 = scmp.eq.s32.totalorder %s29, 0
      %p259 = por %p257, %p258
      %p260 = scmp.ne.s32.totalorder %s252, %s254
      %p261 = scmp.eq.s32.totalorder %s34, 1
      %p262 = por %p260, %p261
      %p263 = scmp.ne.s32.totalorder %s254, %s255
      %p264 = scmp.eq.s32.totalorder %s34, 0
      %p265 = por %p263, %p264
      %p266 = scmp.ne.s32.totalorder %s254, %s255
      %p267 = scmp.eq.s32.totalorder %s35, 1
      %p268 = por %p266, %p267
      %p270 = scmp.ne.s32.totalorder %s255, %s269
      %p271 = scmp.eq.s32.totalorder %s35, 0
      %p272 = por %p270, %p271
      %s274 = sadd.s32 %s273, 1
      %p277 = scmp.eq.s32.totalorder %s29, 1
      %p278 = scmp.ne.s32.totalorder %s273, %s275
      %p279 = scmp.eq.s32.totalorder %s29, 0
      %p280 = por %p278, %p279
      %p281 = scmp.ne.s32.totalorder %s273, %s275
      %p282 = scmp.eq.s32.totalorder %s34, 1
      %p283 = por %p281, %p282
      %p284 = scmp.ne.s32.totalorder %s275, %s276
      %p285 = scmp.eq.s32.totalorder %s34, 0
      %p286 = por %p284, %p285
      %p287 = scmp.ne.s32.totalorder %s275, %s276
      %p288 = scmp.eq.s32.totalorder %s35, 1
      %p289 = por %p287, %p288
      %p291 = scmp.ne.s32.totalorder %s276, %s290
      %p292 = scmp.eq.s32.totalorder %s35, 0
      %p293 = por %p291, %p292
      %s295 = sadd.s32 %s294, 1
      %p298 = scmp.eq.s32.totalorder %s29, 1
      %p299 = scmp.ne.s32.totalorder %s294, %s296
      %p300 = scmp.eq.s32.totalorder %s29, 0
      %p301 = por %p299, %p300
      %p302 = scmp.ne.s32.totalorder %s294, %s296
      %p303 = scmp.eq.s32.totalorder %s34, 1
      %p304 = por %p302, %p303
      %p305 = scmp.ne.s32.totalorder %s296, %s297
      %p306 = scmp.eq.s32.totalorder %s34, 0
      %p307 = por %p305, %p306
      %p308 = scmp.ne.s32.totalorder %s296, %s297
      %p309 = scmp.eq.s32.totalorder %s35, 1
      %p310 = por %p308, %p309
      %p312 = scmp.ne.s32.totalorder %s297, %s311
      %p313 = scmp.eq.s32.totalorder %s35, 0
      %p314 = por %p312, %p313
      %s316 = sadd.s32 %s315, 1
      %p319 = scmp.eq.s32.totalorder %s29, 1
      %p320 = scmp.ne.s32.totalorder %s315, %s317
      %p321 = scmp.eq.s32.totalorder %s29, 0
      %p322 = por %p320, %p321
      %p323 = scmp.ne.s32.totalorder %s315, %s317
      %p324 = scmp.eq.s32.totalorder %s34, 1
      %p325 = por %p323, %p324
      %p326 = scmp.ne.s32.totalorder %s317, %s318
      %p327 = scmp.eq.s32.totalorder %s34, 0
      %p328 = por %p326, %p327
      %p329 = scmp.ne.s32.totalorder %s317, %s318
      %p330 = scmp.eq.s32.totalorder %s35, 1
      %p331 = por %p329, %p330
      %p333 = scmp.ne.s32.totalorder %s318, %s332
      %p334 = scmp.eq.s32.totalorder %s35, 0
      %p335 = por %p333, %p334
      %s336 = ssub.s32 %s29, %s36
      %p337 = scmp.eq.s32.totalorder %s336, 0
      %s339 = sadd.s32 %s338, 1
      %s340 = scalar_select %p337, %s338, %s339
      %p343 = pneg %p337
      %p344 = scmp.eq.s32.totalorder %s29, 1
      %p345 = por %p343, %p344
      %p346 = scmp.ne.s32.totalorder %s338, %s341
      %p347 = scmp.eq.s32.totalorder %s29, 0
      %p348 = por %p346, %p347
      %p349 = scmp.ne.s32.totalorder %s338, %s341
      %p350 = scmp.eq.s32.totalorder %s34, 1
      %p351 = por %p349, %p350
      %p352 = scmp.ne.s32.totalorder %s341, %s342
      %p353 = scmp.eq.s32.totalorder %s34, 0
      %p354 = por %p352, %p353
      %p355 = scmp.ne.s32.totalorder %s341, %s342
      %p356 = scmp.eq.s32.totalorder %s35, 1
      %p357 = por %p355, %p356
      %p359 = scmp.ne.s32.totalorder %s342, %s358
      %p360 = scmp.eq.s32.totalorder %s35, 0
      %p361 = por %p359, %p360
      %p362 = scmp.le.s32.totalorder 1, %s29
      %p363 = scmp.lt.s32.totalorder %s29, 3
      %p364 = pnand %p362, %p363
      %p365 = pneg %p364
      // Predicated region
      $region9: #{tpu_custom_call.1} parent=5 // pred_check
        _
      $region10: #{tpu_custom_call.1} parent=5 // pred_check_branch
        %367 = sbr.rel (%p364) target = $region12
      $region11: #{tpu_custom_call.1} parent=5 // pred_region
        %s368 = ssub.s32 %s29, 1
        // Predicated region
        $region13: #{tpu_custom_call.1} parent=11 // pred_check
          %p369 = pneg %p76
        $region14: #{tpu_custom_call.1} parent=11 // pred_check_branch
          %371 = sbr.rel (%p369) target = $region16
        $region15: #{tpu_custom_call.1} parent=11 // pred_region
          %373 = vsyncadd [#allocation8], 0
          %s374 = sshll.u32 %s1, 4
          %s375 = int_to_ptr.hbm [resolvable:$true] %s374
          %s376 = sshll.u32 [#allocation7], 4
          %s377 = int_to_ptr.vmem [resolvable:$true] %s376
          %382 = dma.hbm_to_vmem [thread:$0]  %s375, 27648, %s377, [#allocation8], 64, 64, 4
        $region16: #{tpu_custom_call.1} parent=11 // pred_fallthru
          _
        // Predicated region
        $region17: #{tpu_custom_call.1} parent=11 // pred_check
          %p383 = pneg %p97
        $region18: #{tpu_custom_call.1} parent=11 // pred_check_branch
          %385 = sbr.rel (%p383) target = $region20
        $region19: #{tpu_custom_call.1} parent=11 // pred_region
          %387 = vsyncadd [#allocation8], 0
          %s389 = sshll.u32 %s2, 4
          %s390 = int_to_ptr.hbm [resolvable:$true] %s389
          %s391 = sshll.u32 [#allocation9], 4
          %s392 = int_to_ptr.vmem [resolvable:$true] %s391
          %394 = dma.hbm_to_vmem [thread:$0]  %s390, 64, %s392, [#allocation8]
        $region20: #{tpu_custom_call.1} parent=11 // pred_fallthru
          _
        // Predicated region
        $region21: #{tpu_custom_call.1} parent=11 // pred_check
          %p395 = pneg %p118
        $region22: #{tpu_custom_call.1} parent=11 // pred_check_branch
          %397 = sbr.rel (%p395) target = $region24
        $region23: #{tpu_custom_call.1} parent=11 // pred_region
          %399 = vsyncadd [#allocation11], 0
          %s401 = sshll.u32 %s3, 4
          %s402 = int_to_ptr.hbm [resolvable:$true] %s401
          %s403 = sshll.u32 [#allocation10], 4
          %s404 = int_to_ptr.vmem [resolvable:$true] %s403
          %406 = dma.hbm_to_vmem [thread:$0]  %s402, 64, %s404, [#allocation11]
        $region24: #{tpu_custom_call.1} parent=11 // pred_fallthru
          _
        // Predicated region
        $region25: #{tpu_custom_call.1} parent=11 // pred_check
          %p407 = pneg %p139
        $region26: #{tpu_custom_call.1} parent=11 // pred_check_branch
          %409 = sbr.rel (%p407) target = $region28
        $region27: #{tpu_custom_call.1} parent=11 // pred_region
          %411 = vsyncadd [#allocation11], 0
          %s412 = sshll.u32 %s4, 4
          %s413 = int_to_ptr.hbm [resolvable:$true] %s412
          %s414 = sshll.u32 [#allocation12], 4
          %s415 = int_to_ptr.vmem [resolvable:$true] %s414
          %420 = dma.hbm_to_vmem [thread:$0]  %s413, 32768, %s415, [#allocation11], 128, 128, 8
        $region28: #{tpu_custom_call.1} parent=11 // pred_fallthru
          _
        // Predicated region
        $region29: #{tpu_custom_call.1} parent=11 // pred_check
          %p421 = pneg %p160
        $region30: #{tpu_custom_call.1} parent=11 // pred_check_branch
          %423 = sbr.rel (%p421) target = $region32
        $region31: #{tpu_custom_call.1} parent=11 // pred_region
          _
        $region32: #{tpu_custom_call.1} parent=11 // pred_fallthru
          _
        // Predicated region
        $region33: #{tpu_custom_call.1} parent=11 // pred_check
          %p424 = pneg %p181
        $region34: #{tpu_custom_call.1} parent=11 // pred_check_branch
          %426 = sbr.rel (%p424) target = $region36
        $region35: #{tpu_custom_call.1} parent=11 // pred_region
          _
        $region36: #{tpu_custom_call.1} parent=11 // pred_fallthru
          _
        // Predicated region
        $region37: #{tpu_custom_call.1} parent=11 // pred_check
          %p427 = pneg %p202
        $region38: #{tpu_custom_call.1} parent=11 // pred_check_branch
          %429 = sbr.rel (%p427) target = $region40
        $region39: #{tpu_custom_call.1} parent=11 // pred_region
          _
        $region40: #{tpu_custom_call.1} parent=11 // pred_fallthru
          _
        // Predicated region
        $region41: #{tpu_custom_call.1} parent=11 // pred_check
          %p430 = pneg %p223
        $region42: #{tpu_custom_call.1} parent=11 // pred_check_branch
          %432 = sbr.rel (%p430) target = $region44
        $region43: #{tpu_custom_call.1} parent=11 // pred_region
          %434 = vsyncadd [#allocation14], 0
          %s435 = sshll.u32 %s8, 4
          %s436 = int_to_ptr.hbm [resolvable:$true] %s435
          %s437 = sshll.u32 [#allocation13], 4
          %s438 = int_to_ptr.vmem [resolvable:$true] %s437
          %443 = dma.hbm_to_vmem [thread:$0]  %s436, 2048, %s438, [#allocation14], 64, 64, 4
        $region44: #{tpu_custom_call.1} parent=11 // pred_fallthru
          _
        // Predicated region
        $region45: #{tpu_custom_call.1} parent=11 // pred_check
          %p444 = pneg %p244
        $region46: #{tpu_custom_call.1} parent=11 // pred_check_branch
          %446 = sbr.rel (%p444) target = $region48
        $region47: #{tpu_custom_call.1} parent=11 // pred_region
          _
        $region48: #{tpu_custom_call.1} parent=11 // pred_fallthru
          _
        // Predicated region
        $region49: #{tpu_custom_call.1} parent=11 // pred_check
          %p447 = pneg %p265
        $region50: #{tpu_custom_call.1} parent=11 // pred_check_branch
          %449 = sbr.rel (%p447) target = $region52
        $region51: #{tpu_custom_call.1} parent=11 // pred_region
          _
        $region52: #{tpu_custom_call.1} parent=11 // pred_fallthru
          _
        // Predicated region
        $region53: #{tpu_custom_call.1} parent=11 // pred_check
          %p450 = pneg %p286
        $region54: #{tpu_custom_call.1} parent=11 // pred_check_branch
          %452 = sbr.rel (%p450) target = $region56
        $region55: #{tpu_custom_call.1} parent=11 // pred_region
          _
        $region56: #{tpu_custom_call.1} parent=11 // pred_fallthru
          _
        // Predicated region
        $region57: #{tpu_custom_call.1} parent=11 // pred_check
          %p453 = pneg %p307
        $region58: #{tpu_custom_call.1} parent=11 // pred_check_branch
          %455 = sbr.rel (%p453) target = $region60
        $region59: #{tpu_custom_call.1} parent=11 // pred_region
          %457 = vsyncadd [#allocation14], 0
          %s458 = sshll.u32 %s12, 4
          %s459 = int_to_ptr.hbm [resolvable:$true] %s458
          %s460 = sshll.u32 [#allocation15], 4
          %s461 = int_to_ptr.vmem [resolvable:$true] %s460
          %466 = dma.hbm_to_vmem [thread:$0]  %s459, 1024, %s461, [#allocation14], 64, 64, 4
        $region60: #{tpu_custom_call.1} parent=11 // pred_fallthru
          _
        // Predicated region
        $region61: #{tpu_custom_call.1} parent=11 // pred_check
          %p467 = pneg %p328
        $region62: #{tpu_custom_call.1} parent=11 // pred_check_branch
          %469 = sbr.rel (%p467) target = $region64
        $region63: #{tpu_custom_call.1} parent=11 // pred_region
          _
        $region64: #{tpu_custom_call.1} parent=11 // pred_fallthru
          _
      $region12: #{tpu_custom_call.1} parent=5 // pred_fallthru
        _
      %p470 = scmp.lt.s32.totalorder %s29, 2
      // Predicated region
      $region65: #{tpu_custom_call.1} parent=5 // pred_check
        %p471 = pneg %p470
      $region66: #{tpu_custom_call.1} parent=5 // pred_check_branch
        %473 = sbr.rel (%p471) target = $region68
      $region67: #{tpu_custom_call.1} parent=5 // pred_region
        // Predicated region
        $region69: #{tpu_custom_call.1} parent=67 // pred_check
          %p474 = pneg %p49
        $region70: #{tpu_custom_call.1} parent=67 // pred_check_branch
          %476 = sbr.rel (%p474) target = $region72
        $region71: #{tpu_custom_call.1} parent=67 // pred_region
          %s477 = sand.u32 %s39, 1
          %s478 = scalar_lea.sflag [#allocation5], %s477
          %s479 = sand.u32 %s39, 1
          %s480 = smul.addr %s479, 256
          %s481 = scalar_lea.vmem [#allocation4], %s480
          %483 = vsyncadd %s478, 0
          %s484 = smul.addr %s29, 32
          %s485 = smul.addr %s484, 8
          %s486 = scalar_lea.hbm %s0, %s485
          %s487 = sshll.u32 %s486, 4
          %s488 = int_to_ptr.hbm [resolvable:$true] %s487
          %s489 = sshll.u32 %s481, 4
          %s490 = int_to_ptr.vmem [resolvable:$true] %s489
          %495 = dma.hbm_to_vmem [thread:$0]  %s488, 4096, %s490, %s478, 128, 128, 8
        $region72: #{tpu_custom_call.1} parent=67 // pred_fallthru
          _
      $region68: #{tpu_custom_call.1} parent=5 // pred_fallthru
        _
      %p496 = scmp.le.s32.totalorder 1, %s29
      %p497 = scmp.lt.s32.totalorder %s29, 3
      %p498 = pnand %p496, %p497
      %p499 = pneg %p498
      // Predicated region
      $region73: #{tpu_custom_call.1} parent=5 // pred_check
        _
      $region74: #{tpu_custom_call.1} parent=5 // pred_check_branch
        %501 = sbr.rel (%p498) target = $region76
      $region75: #{tpu_custom_call.1} parent=5 // pred_region
        %s502 = ssub.s32 %s29, 1
        %s503 = sand.u32 %s42, 1
        %s504 = scalar_lea.sflag [#allocation5], %s503
        %s505 = sand.u32 %s42, 1
        %s506 = smul.addr %s505, 256
        %s507 = scalar_lea.vmem [#allocation4], %s506
        // Predicated region
        $region77: #{tpu_custom_call.1} parent=75 // pred_check
          %p508 = pneg %p55
        $region78: #{tpu_custom_call.1} parent=75 // pred_check_branch
          %510 = sbr.rel (%p508) target = $region80
        $region79: #{tpu_custom_call.1} parent=75 // pred_region
          %512 = dma.done %s504, 4096
        $region80: #{tpu_custom_call.1} parent=75 // pred_fallthru
          _
        // Predicated region
        $region81: #{tpu_custom_call.1} parent=75 // pred_check
          %p513 = pneg %p76
        $region82: #{tpu_custom_call.1} parent=75 // pred_check_branch
          %515 = sbr.rel (%p513) target = $region84
        $region83: #{tpu_custom_call.1} parent=75 // pred_region
          %517 = dma.done [#allocation8], 27648
        $region84: #{tpu_custom_call.1} parent=75 // pred_fallthru
          _
        // Predicated region
        $region85: #{tpu_custom_call.1} parent=75 // pred_check
          %p518 = pneg %p97
        $region86: #{tpu_custom_call.1} parent=75 // pred_check_branch
          %520 = sbr.rel (%p518) target = $region88
        $region87: #{tpu_custom_call.1} parent=75 // pred_region
          %522 = dma.done [#allocation8], 64
        $region88: #{tpu_custom_call.1} parent=75 // pred_fallthru
          _
        // Predicated region
        $region89: #{tpu_custom_call.1} parent=75 // pred_check
          %p523 = pneg %p118
        $region90: #{tpu_custom_call.1} parent=75 // pred_check_branch
          %525 = sbr.rel (%p523) target = $region92
        $region91: #{tpu_custom_call.1} parent=75 // pred_region
          %527 = dma.done [#allocation11], 64
        $region92: #{tpu_custom_call.1} parent=75 // pred_fallthru
          _
        // Predicated region
        $region93: #{tpu_custom_call.1} parent=75 // pred_check
          %p528 = pneg %p139
        $region94: #{tpu_custom_call.1} parent=75 // pred_check_branch
          %530 = sbr.rel (%p528) target = $region96
        $region95: #{tpu_custom_call.1} parent=75 // pred_region
          %532 = dma.done [#allocation11], 32768
        $region96: #{tpu_custom_call.1} parent=75 // pred_fallthru
          _
        // Predicated region
        $region97: #{tpu_custom_call.1} parent=75 // pred_check
          %p533 = pneg %p223
        $region98: #{tpu_custom_call.1} parent=75 // pred_check_branch
          %535 = sbr.rel (%p533) target = $region100
        $region99: #{tpu_custom_call.1} parent=75 // pred_region
          %537 = dma.done [#allocation14], 2048
        $region100: #{tpu_custom_call.1} parent=75 // pred_fallthru
          _
        // Predicated region
        $region101: #{tpu_custom_call.1} parent=75 // pred_check
          %p538 = pneg %p307
        $region102: #{tpu_custom_call.1} parent=75 // pred_check_branch
          %540 = sbr.rel (%p538) target = $region104
        $region103: #{tpu_custom_call.1} parent=75 // pred_region
          %542 = dma.done [#allocation14], 1024
        $region104: #{tpu_custom_call.1} parent=75 // pred_fallthru
          _
        %s543 = sand.u32 %s42, 1
        %s544 = scalar_lea.sflag [#allocation5], %s543
        %s545 = sand.u32 %s42, 1
        %s546 = smul.addr %s545, 256
        %s547 = scalar_lea.vmem [#allocation4], %s546
        %p548 = pneg %p55
        %p549 = pneg %p52
        %p550 = pneg %p76
        %p551 = pneg %p73
        %p552 = pneg %p97
        %p553 = pneg %p94
        %p554 = pneg %p118
        %p555 = pneg %p115
        %p556 = pneg %p139
        %p557 = pneg %p136
        %p558 = pneg %p160
        %p559 = pneg %p157
        %p560 = pneg %p181
        %p561 = pneg %p178
        %p562 = pneg %p202
        %p563 = pneg %p199
        %p564 = pneg %p223
        %p565 = pneg %p220
        %p566 = pneg %p244
        %p567 = pneg %p241
        %p568 = pneg %p265
        %p569 = pneg %p262
        %p570 = pneg %p286
        %p571 = pneg %p283
        %p572 = pneg %p307
        %p573 = pneg %p304
        %p574 = pneg %p328
        %p575 = pneg %p325
        %p576 = pneg %p354
        %p577 = pneg %p351
        %s578 = sand.u32 %s341, 1
        %s579 = scalar_lea.sflag [#allocation6], %s578
        %s580 = sand.u32 %s341, 1
        %s581 = scalar_lea.vmem [#allocation16], %s580
        %582 = vst [vmem:[#allocation2] sm:$0xff] 0.0
        %583 = vst [vmem:[#allocation2 + $0x8] sm:$0xff] 0.0
        %584 = vst [vmem:[#allocation2 + $0x10] sm:$0x3] 0.0
        %585 = vst [vmem:[#allocation2 + $0x18] sm:$0xff] 0.0
        %586 = vst [vmem:[#allocation2 + $0x20] sm:$0xff] 0.0
        %587 = vst [vmem:[#allocation2 + $0x28] sm:$0x3] 0.0
        %588 = vst [vmem:[#allocation2 + $0x30] sm:$0xff] 0.0
        %589 = vst [vmem:[#allocation2 + $0x38] sm:$0xff] 0.0
        %590 = vst [vmem:[#allocation2 + $0x40] sm:$0x3] 0.0
        %591 = vst [vmem:[#allocation2 + $0x48] sm:$0xff] 0.0
        %592 = vst [vmem:[#allocation2 + $0x50] sm:$0xff] 0.0
        %593 = vst [vmem:[#allocation2 + $0x58] sm:$0x3] 0.0
        %594 = vst [vmem:[#allocation2 + $0x60] sm:$0xff] 0.0
        %595 = vst [vmem:[#allocation2 + $0x68] sm:$0xff] 0.0
        %596 = vst [vmem:[#allocation2 + $0x70] sm:$0x3] 0.0
        %597 = vst [vmem:[#allocation2 + $0x78] sm:$0xff] 0.0
        %598 = vst [vmem:[#allocation2 + $0x80] sm:$0xff] 0.0
        %599 = vst [vmem:[#allocation2 + $0x88] sm:$0x3] 0.0
        %600 = vst [vmem:[#allocation2 + $0x90] sm:$0xff] 0.0
        %601 = vst [vmem:[#allocation2 + $0x98] sm:$0xff] 0.0
        %602 = vst [vmem:[#allocation2 + $0xa0] sm:$0x3] 0.0
        %603 = vst [vmem:[#allocation2 + $0xa8] sm:$0xff] 0.0
        %604 = vst [vmem:[#allocation2 + $0xb0] sm:$0xff] 0.0
        %605 = vst [vmem:[#allocation2 + $0xb8] sm:$0x3] 0.0
        %606 = vst [vmem:[#allocation2 + $0xc0] sm:$0xff] 0.0
        %607 = vst [vmem:[#allocation2 + $0xc8] sm:$0xff] 0.0
        %608 = vst [vmem:[#allocation2 + $0xd0] sm:$0x3] 0.0
        %609 = vst [vmem:[#allocation2 + $0xd8] sm:$0xff] 0.0
        %610 = vst [vmem:[#allocation2 + $0xe0] sm:$0xff] 0.0
        %611 = vst [vmem:[#allocation2 + $0xe8] sm:$0x3] 0.0
        %612 = vst [vmem:[#allocation2 + $0xf0] sm:$0xff] 0.0
        %613 = vst [vmem:[#allocation2 + $0xf8] sm:$0xff] 0.0
        %614 = vst [vmem:[#allocation2 + $0x100] sm:$0x3] 0.0
        %615 = vst [vmem:[#allocation2 + $0x108] sm:$0xff] 0.0
        %616 = vst [vmem:[#allocation2 + $0x110] sm:$0xff] 0.0
        %617 = vst [vmem:[#allocation2 + $0x118] sm:$0x3] 0.0
        %618 = vst [vmem:[#allocation2 + $0x120] sm:$0xff] 0.0
        %619 = vst [vmem:[#allocation2 + $0x128] sm:$0xff] 0.0
        %620 = vst [vmem:[#allocation2 + $0x130] sm:$0x3] 0.0
        %621 = vst [vmem:[#allocation2 + $0x138] sm:$0xff] 0.0
        %622 = vst [vmem:[#allocation2 + $0x140] sm:$0xff] 0.0
        %623 = vst [vmem:[#allocation2 + $0x148] sm:$0x3] 0.0
        %624 = vst [vmem:[#allocation2 + $0x150] sm:$0xff] 0.0
        %625 = vst [vmem:[#allocation2 + $0x158] sm:$0xff] 0.0
        %626 = vst [vmem:[#allocation2 + $0x160] sm:$0x3] 0.0
        %627 = vst [vmem:[#allocation2 + $0x168] sm:$0xff] 0.0
        %628 = vst [vmem:[#allocation2 + $0x170] sm:$0xff] 0.0
        %629 = vst [vmem:[#allocation2 + $0x178] sm:$0x3] 0.0
        %630 = vst [vmem:[#allocation2 + $0x180] sm:$0xff] 0.0
        %631 = vst [vmem:[#allocation2 + $0x188] sm:$0xff] 0.0
        %632 = vst [vmem:[#allocation2 + $0x190] sm:$0x3] 0.0
        %633 = vst [vmem:[#allocation2 + $0x198] sm:$0xff] 0.0
        %634 = vst [vmem:[#allocation2 + $0x1a0] sm:$0xff] 0.0
        %635 = vst [vmem:[#allocation2 + $0x1a8] sm:$0x3] 0.0
        %636 = vst [vmem:[#allocation3] sm:$0xff] 0.0
        %637 = vst [vmem:[#allocation3 + $0x8] sm:$0x3] 0.0
        %638 = vst [vmem:[#allocation3 + $0x10] sm:$0xff] 0.0
        %639 = vst [vmem:[#allocation3 + $0x18] sm:$0x3] 0.0
        %640 = vst [vmem:[#allocation3 + $0x20] sm:$0xff] 0.0
        %641 = vst [vmem:[#allocation3 + $0x28] sm:$0x3] 0.0
        %642 = vst [vmem:[#allocation3 + $0x30] sm:$0xff] 0.0
        %643 = vst [vmem:[#allocation3 + $0x38] sm:$0x3] 0.0
        %644 = vst [vmem:[#allocation3 + $0x40] sm:$0xff] 0.0
        %645 = vst [vmem:[#allocation3 + $0x48] sm:$0x3] 0.0
        %646 = vst [vmem:[#allocation3 + $0x50] sm:$0xff] 0.0
        %647 = vst [vmem:[#allocation3 + $0x58] sm:$0x3] 0.0
        %648 = vst [vmem:[#allocation3 + $0x60] sm:$0xff] 0.0
        %649 = vst [vmem:[#allocation3 + $0x68] sm:$0x3] 0.0
        %650 = vst [vmem:[#allocation3 + $0x70] sm:$0xff] 0.0
        %651 = vst [vmem:[#allocation3 + $0x78] sm:$0x3] 0.0
        %652 = vst [vmem:[#allocation3 + $0x80] sm:$0xff] 0.0
        %653 = vst [vmem:[#allocation3 + $0x88] sm:$0x3] 0.0
        %654 = vst [vmem:[#allocation3 + $0x90] sm:$0xff] 0.0
        %655 = vst [vmem:[#allocation3 + $0x98] sm:$0x3] 0.0
        %v656 = vld [vmem:[%s507] sm:$0xff]
        %v657 = vld [vmem:[%s507 + $0x8] sm:$0xff]
        %v658 = vld [vmem:[%s507 + $0x10] sm:$0xff]
        %v659 = vld [vmem:[%s507 + $0x18] sm:$0xff]
        %v660 = vld [vmem:[%s507 + $0x20] sm:$0xff]
        %v661 = vld [vmem:[%s507 + $0x28] sm:$0xff]
        %v662 = vld [vmem:[%s507 + $0x30] sm:$0xff]
        %v663 = vld [vmem:[%s507 + $0x38] sm:$0xff]
        %v664 = vld [vmem:[%s507 + $0x40] sm:$0xff]
        %v665 = vld [vmem:[%s507 + $0x48] sm:$0xff]
        %v666 = vld [vmem:[%s507 + $0x50] sm:$0xff]
        %v667 = vld [vmem:[%s507 + $0x58] sm:$0xff]
        %v668 = vld [vmem:[%s507 + $0x60] sm:$0xff]
        %v669 = vld [vmem:[%s507 + $0x68] sm:$0xff]
        %v670 = vld [vmem:[%s507 + $0x70] sm:$0xff]
        %v671 = vld [vmem:[%s507 + $0x78] sm:$0xff]
        %v672 = vld [vmem:[%s507 + $0x80] sm:$0xff]
        %v673 = vld [vmem:[%s507 + $0x88] sm:$0xff]
        %v674 = vld [vmem:[%s507 + $0x90] sm:$0xff]
        %v675 = vld [vmem:[%s507 + $0x98] sm:$0xff]
        %v676 = vld [vmem:[%s507 + $0xa0] sm:$0xff]
        %v677 = vld [vmem:[%s507 + $0xa8] sm:$0xff]
        %v678 = vld [vmem:[%s507 + $0xb0] sm:$0xff]
        %v679 = vld [vmem:[%s507 + $0xb8] sm:$0xff]
        %v680 = vld [vmem:[%s507 + $0xc0] sm:$0xff]
        %v681 = vld [vmem:[%s507 + $0xc8] sm:$0xff]
        %v682 = vld [vmem:[%s507 + $0xd0] sm:$0xff]
        %v683 = vld [vmem:[%s507 + $0xd8] sm:$0xff]
        %v684 = vld [vmem:[%s507 + $0xe0] sm:$0xff]
        %v685 = vld [vmem:[%s507 + $0xe8] sm:$0xff]
        %v686 = vld [vmem:[%s507 + $0xf0] sm:$0xff]
        %v687 = vld [vmem:[%s507 + $0xf8] sm:$0xff]
        %s688 = scalar_lea.vmem [#allocation2], 24
        %689 = vst [vmem:[%s688 + $0x1] sm:$0xff] %v656
        %690 = vst [vmem:[%s688 + $0x9] sm:$0xff] %v657
        %691 = vst [vmem:[%s688 + $0x19] sm:$0xff] %v658
        %692 = vst [vmem:[%s688 + $0x21] sm:$0xff] %v659
        %693 = vst [vmem:[%s688 + $0x31] sm:$0xff] %v660
        %694 = vst [vmem:[%s688 + $0x39] sm:$0xff] %v661
        %695 = vst [vmem:[%s688 + $0x49] sm:$0xff] %v662
        %696 = vst [vmem:[%s688 + $0x51] sm:$0xff] %v663
        %697 = vst [vmem:[%s688 + $0x61] sm:$0xff] %v664
        %698 = vst [vmem:[%s688 + $0x69] sm:$0xff] %v665
        %699 = vst [vmem:[%s688 + $0x79] sm:$0xff] %v666
        %700 = vst [vmem:[%s688 + $0x81] sm:$0xff] %v667
        %701 = vst [vmem:[%s688 + $0x91] sm:$0xff] %v668
        %702 = vst [vmem:[%s688 + $0x99] sm:$0xff] %v669
        %703 = vst [vmem:[%s688 + $0xa9] sm:$0xff] %v670
        %704 = vst [vmem:[%s688 + $0xb1] sm:$0xff] %v671
        %705 = vst [vmem:[%s688 + $0xc1] sm:$0xff] %v672
        %706 = vst [vmem:[%s688 + $0xc9] sm:$0xff] %v673
        %707 = vst [vmem:[%s688 + $0xd9] sm:$0xff] %v674
        %708 = vst [vmem:[%s688 + $0xe1] sm:$0xff] %v675
        %709 = vst [vmem:[%s688 + $0xf1] sm:$0xff] %v676
        %710 = vst [vmem:[%s688 + $0xf9] sm:$0xff] %v677
        %711 = vst [vmem:[%s688 + $0x109] sm:$0xff] %v678
        %712 = vst [vmem:[%s688 + $0x111] sm:$0xff] %v679
        %713 = vst [vmem:[%s688 + $0x121] sm:$0xff] %v680
        %714 = vst [vmem:[%s688 + $0x129] sm:$0xff] %v681
        %715 = vst [vmem:[%s688 + $0x139] sm:$0xff] %v682
        %716 = vst [vmem:[%s688 + $0x141] sm:$0xff] %v683
        %717 = vst [vmem:[%s688 + $0x151] sm:$0xff] %v684
        %718 = vst [vmem:[%s688 + $0x159] sm:$0xff] %v685
        %719 = vst [vmem:[%s688 + $0x169] sm:$0xff] %v686
        %720 = vst [vmem:[%s688 + $0x171] sm:$0xff] %v687
        %v721 = vld [vmem:[#allocation2] sm:$0xff]
        %v722 = vld [vmem:[#allocation2 + $0x8] sm:$0xff]
        %v723 = vld [vmem:[#allocation2 + $0x18] sm:$0xff]
        %v724 = vld [vmem:[#allocation2 + $0x20] sm:$0xff]
        %v725 = vld [vmem:[#allocation2 + $0x30] sm:$0xff]
        %v726 = vld [vmem:[#allocation2 + $0x38] sm:$0xff]
        %v727 = vld [vmem:[#allocation2 + $0x48] sm:$0xff]
        %v728 = vld [vmem:[#allocation2 + $0x50] sm:$0xff]
        %v729 = vld [vmem:[#allocation2 + $0x60] sm:$0xff]
        %v730 = vld [vmem:[#allocation2 + $0x68] sm:$0xff]
        %v731 = vld [vmem:[#allocation2 + $0x78] sm:$0xff]
        %v732 = vld [vmem:[#allocation2 + $0x80] sm:$0xff]
        %v733 = vld [vmem:[#allocation2 + $0x90] sm:$0xff]
        %v734 = vld [vmem:[#allocation2 + $0x98] sm:$0xff]
        %v735 = vld [vmem:[#allocation2 + $0xa8] sm:$0xff]
        %v736 = vld [vmem:[#allocation2 + $0xb0] sm:$0xff]
        %v737 = vld [vmem:[#allocation2 + $0xc0] sm:$0xff]
        %v738 = vld [vmem:[#allocation2 + $0xc8] sm:$0xff]
        %v739 = vld [vmem:[#allocation2 + $0xd8] sm:$0xff]
        %v740 = vld [vmem:[#allocation2 + $0xe0] sm:$0xff]
        %v741 = vld [vmem:[#allocation2 + $0xf0] sm:$0xff]
        %v742 = vld [vmem:[#allocation2 + $0xf8] sm:$0xff]
        %v743 = vld [vmem:[#allocation2 + $0x108] sm:$0xff]
        %v744 = vld [vmem:[#allocation2 + $0x110] sm:$0xff]
        %v745 = vld [vmem:[#allocation2 + $0x120] sm:$0xff]
        %v746 = vld [vmem:[#allocation2 + $0x128] sm:$0xff]
        %v747 = vld [vmem:[#allocation2 + $0x138] sm:$0xff]
        %v748 = vld [vmem:[#allocation2 + $0x140] sm:$0xff]
        %v749 = vld [vmem:[#allocation2 + $0x150] sm:$0xff]
        %v750 = vld [vmem:[#allocation2 + $0x158] sm:$0xff]
        %v751 = vld [vmem:[#allocation2 + $0x168] sm:$0xff]
        %v752 = vld [vmem:[#allocation2 + $0x170] sm:$0xff]
        %v753 = vpack.c.bf16 %v722, %v721
        %v754 = vpack.c.bf16 %v724, %v723
        %v755 = vpack.c.bf16 %v726, %v725
        %v756 = vpack.c.bf16 %v728, %v727
        %v757 = vpack.c.bf16 %v730, %v729
        %v758 = vpack.c.bf16 %v732, %v731
        %v759 = vpack.c.bf16 %v734, %v733
        %v760 = vpack.c.bf16 %v736, %v735
        %v761 = vpack.c.bf16 %v738, %v737
        %v762 = vpack.c.bf16 %v740, %v739
        %v763 = vpack.c.bf16 %v742, %v741
        %v764 = vpack.c.bf16 %v744, %v743
        %v765 = vpack.c.bf16 %v746, %v745
        %v766 = vpack.c.bf16 %v748, %v747
        %v767 = vpack.c.bf16 %v750, %v749
        %v768 = vpack.c.bf16 %v752, %v751
        %v769 = vld [vmem:[#allocation7] sm:$0xf]
        %v770 = vld [vmem:[#allocation7 + $0x4] sm:$0xf]
        %v771 = vld [vmem:[#allocation7 + $0x8] sm:$0xf]
        %v772 = vld [vmem:[#allocation7 + $0xc] sm:$0xf]
        %v773 = vld [vmem:[#allocation7 + $0x10] sm:$0xf]
        %v774 = vld [vmem:[#allocation7 + $0x14] sm:$0xf]
        %v775 = vld [vmem:[#allocation7 + $0x18] sm:$0xf]
        %v776 = vld [vmem:[#allocation7 + $0x1c] sm:$0xf]
        %v777 = vld [vmem:[#allocation7 + $0x20] sm:$0xf]
        %v778 = vld [vmem:[#allocation7 + $0x24] sm:$0xf]
        %v779 = vld [vmem:[#allocation7 + $0x28] sm:$0xf]
        %v780 = vld [vmem:[#allocation7 + $0x2c] sm:$0xf]
        %v781 = vld [vmem:[#allocation7 + $0x30] sm:$0xf]
        %v782 = vld [vmem:[#allocation7 + $0x34] sm:$0xf]
        %v783 = vld [vmem:[#allocation7 + $0x38] sm:$0xf]
        %v784 = vld [vmem:[#allocation7 + $0x3c] sm:$0xf]
        %v785 = vld [vmem:[#allocation2 + $0x1] sm:$0xff]
        %v786 = vld [vmem:[#allocation2 + $0x9] sm:$0xff]
        %v787 = vld [vmem:[#allocation2 + $0x19] sm:$0xff]
        %v788 = vld [vmem:[#allocation2 + $0x21] sm:$0xff]
        %v789 = vld [vmem:[#allocation2 + $0x31] sm:$0xff]
        %v790 = vld [vmem:[#allocation2 + $0x39] sm:$0xff]
        %v791 = vld [vmem:[#allocation2 + $0x49] sm:$0xff]
        %v792 = vld [vmem:[#allocation2 + $0x51] sm:$0xff]
        %v793 = vld [vmem:[#allocation2 + $0x61] sm:$0xff]
        %v794 = vld [vmem:[#allocation2 + $0x69] sm:$0xff]
        %v795 = vld [vmem:[#allocation2 + $0x79] sm:$0xff]
        %v796 = vld [vmem:[#allocation2 + $0x81] sm:$0xff]
        %v797 = vld [vmem:[#allocation2 + $0x91] sm:$0xff]
        %v798 = vld [vmem:[#allocation2 + $0x99] sm:$0xff]
        %v799 = vld [vmem:[#allocation2 + $0xa9] sm:$0xff]
        %v800 = vld [vmem:[#allocation2 + $0xb1] sm:$0xff]
        %v801 = vld [vmem:[#allocation2 + $0xc1] sm:$0xff]
        %v802 = vld [vmem:[#allocation2 + $0xc9] sm:$0xff]
        %v803 = vld [vmem:[#allocation2 + $0xd9] sm:$0xff]
        %v804 = vld [vmem:[#allocation2 + $0xe1] sm:$0xff]
        %v805 = vld [vmem:[#allocation2 + $0xf1] sm:$0xff]
        %v806 = vld [vmem:[#allocation2 + $0xf9] sm:$0xff]
        %v807 = vld [vmem:[#allocation2 + $0x109] sm:$0xff]
        %v808 = vld [vmem:[#allocation2 + $0x111] sm:$0xff]
        %v809 = vld [vmem:[#allocation2 + $0x121] sm:$0xff]
        %v810 = vld [vmem:[#allocation2 + $0x129] sm:$0xff]
        %v811 = vld [vmem:[#allocation2 + $0x139] sm:$0xff]
        %v812 = vld [vmem:[#allocation2 + $0x141] sm:$0xff]
        %v813 = vld [vmem:[#allocation2 + $0x151] sm:$0xff]
        %v814 = vld [vmem:[#allocation2 + $0x159] sm:$0xff]
        %v815 = vld [vmem:[#allocation2 + $0x169] sm:$0xff]
        %v816 = vld [vmem:[#allocation2 + $0x171] sm:$0xff]
        %v817 = vpack.c.bf16 %v786, %v785
        %v818 = vpack.c.bf16 %v788, %v787
        %v819 = vpack.c.bf16 %v790, %v789
        %v820 = vpack.c.bf16 %v792, %v791
        %v821 = vpack.c.bf16 %v794, %v793
        %v822 = vpack.c.bf16 %v796, %v795
        %v823 = vpack.c.bf16 %v798, %v797
        %v824 = vpack.c.bf16 %v800, %v799
        %v825 = vpack.c.bf16 %v802, %v801
        %v826 = vpack.c.bf16 %v804, %v803
        %v827 = vpack.c.bf16 %v806, %v805
        %v828 = vpack.c.bf16 %v808, %v807
        %v829 = vpack.c.bf16 %v810, %v809
        %v830 = vpack.c.bf16 %v812, %v811
        %v831 = vpack.c.bf16 %v814, %v813
        %v832 = vpack.c.bf16 %v816, %v815
        %s833 = scalar_lea.vmem [#allocation7], 64
        %v834 = vld [vmem:[%s833] sm:$0xf]
        %v835 = vld [vmem:[%s833 + $0x4] sm:$0xf]
        %v836 = vld [vmem:[%s833 + $0x8] sm:$0xf]
        %v837 = vld [vmem:[%s833 + $0xc] sm:$0xf]
        %v838 = vld [vmem:[%s833 + $0x10] sm:$0xf]
        %v839 = vld [vmem:[%s833 + $0x14] sm:$0xf]
        %v840 = vld [vmem:[%s833 + $0x18] sm:$0xf]
        %v841 = vld [vmem:[%s833 + $0x1c] sm:$0xf]
        %v842 = vld [vmem:[%s833 + $0x20] sm:$0xf]
        %v843 = vld [vmem:[%s833 + $0x24] sm:$0xf]
        %v844 = vld [vmem:[%s833 + $0x28] sm:$0xf]
        %v845 = vld [vmem:[%s833 + $0x2c] sm:$0xf]
        %v846 = vld [vmem:[%s833 + $0x30] sm:$0xf]
        %v847 = vld [vmem:[%s833 + $0x34] sm:$0xf]
        %v848 = vld [vmem:[%s833 + $0x38] sm:$0xf]
        %v849 = vld [vmem:[%s833 + $0x3c] sm:$0xf]
        %v866 = vunpack.c.l.b16 %v834
        %v867 = vunpack.c.l.b16 %v835
        %v868 = vunpack.c.l.b16 %v836
        %v869 = vunpack.c.l.b16 %v837
        %v870 = vunpack.c.l.b16 %v838
        %v871 = vunpack.c.l.b16 %v839
        %v872 = vunpack.c.l.b16 %v840
        %v873 = vunpack.c.l.b16 %v841
        %v874 = vunpack.c.l.b16 %v842
        %v875 = vunpack.c.l.b16 %v843
        %v876 = vunpack.c.l.b16 %v844
        %v877 = vunpack.c.l.b16 %v845
        %v878 = vunpack.c.l.b16 %v846
        %v879 = vunpack.c.l.b16 %v847
        %v880 = vunpack.c.l.b16 %v848
        %v881 = vunpack.c.l.b16 %v849
        %v882 = vpack.c.b16 %v867, %v866
        %v883 = vpack.c.b16 %v869, %v868
        %v884 = vpack.c.b16 %v871, %v870
        %v885 = vpack.c.b16 %v873, %v872
        %v886 = vpack.c.b16 %v875, %v874
        %v887 = vpack.c.b16 %v877, %v876
        %v888 = vpack.c.b16 %v879, %v878
        %v889 = vpack.c.b16 %v881, %v880
        %898 = vmatpush.bf16.msra.mxu0 %v889
        %899 = vmatpush.bf16.msra.mxu0 %v888
        %900 = vmatpush.bf16.msra.mxu0 %v887
        %901 = vmatpush.bf16.msra.mxu0 %v886
        %902 = vmatpush.bf16.msra.mxu0 %v885
        %903 = vmatpush.bf16.msra.mxu0 %v884
        %904 = vmatpush.bf16.msra.mxu0 %v883
        %905 = vmatpush.bf16.msra.mxu0 %v882
        %906 = vmatmul.bf16.gmra.mxu0 %v817
        %v907 = vpop.f32.mrf.mxu0
        %v908 = vadd.f32 0.0, %v907
        %v909 = vpop.f32.mrf.mxu0
        %v910 = vadd.f32 0.0, %v909
        %911 = vmatmul.bf16.gmra.mxu0 %v818
        %v912 = vpop.f32.mrf.mxu0
        %v913 = vadd.f32 0.0, %v912
        %v914 = vpop.f32.mrf.mxu0
        %v915 = vadd.f32 0.0, %v914
        %916 = vmatmul.bf16.gmra.mxu0 %v819
        %v917 = vpop.f32.mrf.mxu0
        %v918 = vadd.f32 0.0, %v917
        %v919 = vpop.f32.mrf.mxu0
        %v920 = vadd.f32 0.0, %v919
        %921 = vmatmul.bf16.gmra.mxu0 %v820
        %v922 = vpop.f32.mrf.mxu0
        %v923 = vadd.f32 0.0, %v922
        %v924 = vpop.f32.mrf.mxu0
        %v925 = vadd.f32 0.0, %v924
        %926 = vmatmul.bf16.gmra.mxu0 %v821
        %v927 = vpop.f32.mrf.mxu0
        %v928 = vadd.f32 0.0, %v927
        %v929 = vpop.f32.mrf.mxu0
        %v930 = vadd.f32 0.0, %v929
        %931 = vmatmul.bf16.gmra.mxu0 %v822
        %v932 = vpop.f32.mrf.mxu0
        %v933 = vadd.f32 0.0, %v932
        %v934 = vpop.f32.mrf.mxu0
        %v935 = vadd.f32 0.0, %v934
        %936 = vmatmul.bf16.gmra.mxu0 %v823
        %v937 = vpop.f32.mrf.mxu0
        %v938 = vadd.f32 0.0, %v937
        %v939 = vpop.f32.mrf.mxu0
        %v940 = vadd.f32 0.0, %v939
        %941 = vmatmul.bf16.gmra.mxu0 %v824
        %v942 = vpop.f32.mrf.mxu0
        %v943 = vadd.f32 0.0, %v942
        %v944 = vpop.f32.mrf.mxu0
        %v945 = vadd.f32 0.0, %v944
        %946 = vmatmul.bf16.gmra.mxu0 %v825
        %v947 = vpop.f32.mrf.mxu0
        %v948 = vadd.f32 0.0, %v947
        %v949 = vpop.f32.mrf.mxu0
        %v950 = vadd.f32 0.0, %v949
        %951 = vmatmul.bf16.gmra.mxu0 %v826
        %v952 = vpop.f32.mrf.mxu0
        %v953 = vadd.f32 0.0, %v952
        %v954 = vpop.f32.mrf.mxu0
        %v955 = vadd.f32 0.0, %v954
        %956 = vmatmul.bf16.gmra.mxu0 %v827
        %v957 = vpop.f32.mrf.mxu0
        %v958 = vadd.f32 0.0, %v957
        %v959 = vpop.f32.mrf.mxu0
        %v960 = vadd.f32 0.0, %v959
        %961 = vmatmul.bf16.gmra.mxu0 %v828
        %v962 = vpop.f32.mrf.mxu0
        %v963 = vadd.f32 0.0, %v962
        %v964 = vpop.f32.mrf.mxu0
        %v965 = vadd.f32 0.0, %v964
        %966 = vmatmul.bf16.gmra.mxu0 %v829
        %v967 = vpop.f32.mrf.mxu0
        %v968 = vadd.f32 0.0, %v967
        %v969 = vpop.f32.mrf.mxu0
        %v970 = vadd.f32 0.0, %v969
        %971 = vmatmul.bf16.gmra.mxu0 %v830
        %v972 = vpop.f32.mrf.mxu0
        %v973 = vadd.f32 0.0, %v972
        %v974 = vpop.f32.mrf.mxu0
        %v975 = vadd.f32 0.0, %v974
        %976 = vmatmul.bf16.gmra.mxu0 %v831
        %v977 = vpop.f32.mrf.mxu0
        %v978 = vadd.f32 0.0, %v977
        %v979 = vpop.f32.mrf.mxu0
        %v980 = vadd.f32 0.0, %v979
        %981 = vmatmul.bf16.gmra.mxu0 %v832
        %v982 = vpop.f32.mrf.mxu0
        %v983 = vadd.f32 0.0, %v982
        %v984 = vpop.f32.mrf.mxu0
        %v985 = vadd.f32 0.0, %v984
        %986 = vdwg.mxu0
        %v1003 = vunpack.c.l.b16 %v769
        %v1004 = vunpack.c.l.b16 %v770
        %v1005 = vunpack.c.l.b16 %v771
        %v1006 = vunpack.c.l.b16 %v772
        %v1007 = vunpack.c.l.b16 %v773
        %v1008 = vunpack.c.l.b16 %v774
        %v1009 = vunpack.c.l.b16 %v775
        %v1010 = vunpack.c.l.b16 %v776
        %v1011 = vunpack.c.l.b16 %v777
        %v1012 = vunpack.c.l.b16 %v778
        %v1013 = vunpack.c.l.b16 %v779
        %v1014 = vunpack.c.l.b16 %v780
        %v1015 = vunpack.c.l.b16 %v781
        %v1016 = vunpack.c.l.b16 %v782
        %v1017 = vunpack.c.l.b16 %v783
        %v1018 = vunpack.c.l.b16 %v784
        %v1019 = vpack.c.b16 %v1004, %v1003
        %v1020 = vpack.c.b16 %v1006, %v1005
        %v1021 = vpack.c.b16 %v1008, %v1007
        %v1022 = vpack.c.b16 %v1010, %v1009
        %v1023 = vpack.c.b16 %v1012, %v1011
        %v1024 = vpack.c.b16 %v1014, %v1013
        %v1025 = vpack.c.b16 %v1016, %v1015
        %v1026 = vpack.c.b16 %v1018, %v1017
        %1035 = vmatpush.bf16.msra.mxu0 %v1026
        %1036 = vmatpush.bf16.msra.mxu0 %v1025
        %1037 = vmatpush.bf16.msra.mxu0 %v1024
        %1038 = vmatpush.bf16.msra.mxu0 %v1023
        %1039 = vmatpush.bf16.msra.mxu0 %v1022
        %1040 = vmatpush.bf16.msra.mxu0 %v1021
        %1041 = vmatpush.bf16.msra.mxu0 %v1020
        %1042 = vmatpush.bf16.msra.mxu0 %v1019
        %1043 = vmatmul.bf16.gmra.mxu0 %v753
        %v1044 = vpop.f32.mrf.mxu0
        %v1045 = vadd.f32 %v908, %v1044
        %v1046 = vpop.f32.mrf.mxu0
        %v1047 = vadd.f32 %v910, %v1046
        %1048 = vmatmul.bf16.gmra.mxu0 %v754
        %v1049 = vpop.f32.mrf.mxu0
        %v1050 = vadd.f32 %v913, %v1049
        %v1051 = vpop.f32.mrf.mxu0
        %v1052 = vadd.f32 %v915, %v1051
        %1053 = vmatmul.bf16.gmra.mxu0 %v755
        %v1054 = vpop.f32.mrf.mxu0
        %v1055 = vadd.f32 %v918, %v1054
        %v1056 = vpop.f32.mrf.mxu0
        %v1057 = vadd.f32 %v920, %v1056
        %1058 = vmatmul.bf16.gmra.mxu0 %v756
        %v1059 = vpop.f32.mrf.mxu0
        %v1060 = vadd.f32 %v923, %v1059
        %v1061 = vpop.f32.mrf.mxu0
        %v1062 = vadd.f32 %v925, %v1061
        %1063 = vmatmul.bf16.gmra.mxu0 %v757
        %v1064 = vpop.f32.mrf.mxu0
        %v1065 = vadd.f32 %v928, %v1064
        %v1066 = vpop.f32.mrf.mxu0
        %v1067 = vadd.f32 %v930, %v1066
        %1068 = vmatmul.bf16.gmra.mxu0 %v758
        %v1069 = vpop.f32.mrf.mxu0
        %v1070 = vadd.f32 %v933, %v1069
        %v1071 = vpop.f32.mrf.mxu0
        %v1072 = vadd.f32 %v935, %v1071
        %1073 = vmatmul.bf16.gmra.mxu0 %v759
        %v1074 = vpop.f32.mrf.mxu0
        %v1075 = vadd.f32 %v938, %v1074
        %v1076 = vpop.f32.mrf.mxu0
        %v1077 = vadd.f32 %v940, %v1076
        %1078 = vmatmul.bf16.gmra.mxu0 %v760
        %v1079 = vpop.f32.mrf.mxu0
        %v1080 = vadd.f32 %v943, %v1079
        %v1081 = vpop.f32.mrf.mxu0
        %v1082 = vadd.f32 %v945, %v1081
        %1083 = vmatmul.bf16.gmra.mxu0 %v761
        %v1084 = vpop.f32.mrf.mxu0
        %v1085 = vadd.f32 %v948, %v1084
        %v1086 = vpop.f32.mrf.mxu0
        %v1087 = vadd.f32 %v950, %v1086
        %1088 = vmatmul.bf16.gmra.mxu0 %v762
        %v1089 = vpop.f32.mrf.mxu0
        %v1090 = vadd.f32 %v953, %v1089
        %v1091 = vpop.f32.mrf.mxu0
        %v1092 = vadd.f32 %v955, %v1091
        %1093 = vmatmul.bf16.gmra.mxu0 %v763
        %v1094 = vpop.f32.mrf.mxu0
        %v1095 = vadd.f32 %v958, %v1094
        %v1096 = vpop.f32.mrf.mxu0
        %v1097 = vadd.f32 %v960, %v1096
        %1098 = vmatmul.bf16.gmra.mxu0 %v764
        %v1099 = vpop.f32.mrf.mxu0
        %v1100 = vadd.f32 %v963, %v1099
        %v1101 = vpop.f32.mrf.mxu0
        %v1102 = vadd.f32 %v965, %v1101
        %1103 = vmatmul.bf16.gmra.mxu0 %v765
        %v1104 = vpop.f32.mrf.mxu0
        %v1105 = vadd.f32 %v968, %v1104
        %v1106 = vpop.f32.mrf.mxu0
        %v1107 = vadd.f32 %v970, %v1106
        %1108 = vmatmul.bf16.gmra.mxu0 %v766
        %v1109 = vpop.f32.mrf.mxu0
        %v1110 = vadd.f32 %v973, %v1109
        %v1111 = vpop.f32.mrf.mxu0
        %v1112 = vadd.f32 %v975, %v1111
        %1113 = vmatmul.bf16.gmra.mxu0 %v767
        %v1114 = vpop.f32.mrf.mxu0
        %v1115 = vadd.f32 %v978, %v1114
        %v1116 = vpop.f32.mrf.mxu0
        %v1117 = vadd.f32 %v980, %v1116
        %1118 = vmatmul.bf16.gmra.mxu0 %v768
        %v1119 = vpop.f32.mrf.mxu0
        %v1120 = vadd.f32 %v983, %v1119
        %v1121 = vpop.f32.mrf.mxu0
        %v1122 = vadd.f32 %v985, %v1121
        %1123 = vdwg.mxu0
        %v1124 = vld [vmem:[#allocation2 + $0x2] sm:$0xff]
        %v1125 = vld [vmem:[#allocation2 + $0xa] sm:$0xff]
        %v1126 = vld [vmem:[#allocation2 + $0x1a] sm:$0xff]
        %v1127 = vld [vmem:[#allocation2 + $0x22] sm:$0xff]
        %v1128 = vld [vmem:[#allocation2 + $0x32] sm:$0xff]
        %v1129 = vld [vmem:[#allocation2 + $0x3a] sm:$0xff]
        %v1130 = vld [vmem:[#allocation2 + $0x4a] sm:$0xff]
        %v1131 = vld [vmem:[#allocation2 + $0x52] sm:$0xff]
        %v1132 = vld [vmem:[#allocation2 + $0x62] sm:$0xff]
        %v1133 = vld [vmem:[#allocation2 + $0x6a] sm:$0xff]
        %v1134 = vld [vmem:[#allocation2 + $0x7a] sm:$0xff]
        %v1135 = vld [vmem:[#allocation2 + $0x82] sm:$0xff]
        %v1136 = vld [vmem:[#allocation2 + $0x92] sm:$0xff]
        %v1137 = vld [vmem:[#allocation2 + $0x9a] sm:$0xff]
        %v1138 = vld [vmem:[#allocation2 + $0xaa] sm:$0xff]
        %v1139 = vld [vmem:[#allocation2 + $0xb2] sm:$0xff]
        %v1140 = vld [vmem:[#allocation2 + $0xc2] sm:$0xff]
        %v1141 = vld [vmem:[#allocation2 + $0xca] sm:$0xff]
        %v1142 = vld [vmem:[#allocation2 + $0xda] sm:$0xff]
        %v1143 = vld [vmem:[#allocation2 + $0xe2] sm:$0xff]
        %v1144 = vld [vmem:[#allocation2 + $0xf2] sm:$0xff]
        %v1145 = vld [vmem:[#allocation2 + $0xfa] sm:$0xff]
        %v1146 = vld [vmem:[#allocation2 + $0x10a] sm:$0xff]
        %v1147 = vld [vmem:[#allocation2 + $0x112] sm:$0xff]
        %v1148 = vld [vmem:[#allocation2 + $0x122] sm:$0xff]
        %v1149 = vld [vmem:[#allocation2 + $0x12a] sm:$0xff]
        %v1150 = vld [vmem:[#allocation2 + $0x13a] sm:$0xff]
        %v1151 = vld [vmem:[#allocation2 + $0x142] sm:$0xff]
        %v1152 = vld [vmem:[#allocation2 + $0x152] sm:$0xff]
        %v1153 = vld [vmem:[#allocation2 + $0x15a] sm:$0xff]
        %v1154 = vld [vmem:[#allocation2 + $0x16a] sm:$0xff]
        %v1155 = vld [vmem:[#allocation2 + $0x172] sm:$0xff]
        %v1156 = vpack.c.bf16 %v1125, %v1124
        %v1157 = vpack.c.bf16 %v1127, %v1126
        %v1158 = vpack.c.bf16 %v1129, %v1128
        %v1159 = vpack.c.bf16 %v1131, %v1130
        %v1160 = vpack.c.bf16 %v1133, %v1132
        %v1161 = vpack.c.bf16 %v1135, %v1134
        %v1162 = vpack.c.bf16 %v1137, %v1136
        %v1163 = vpack.c.bf16 %v1139, %v1138
        %v1164 = vpack.c.bf16 %v1141, %v1140
        %v1165 = vpack.c.bf16 %v1143, %v1142
        %v1166 = vpack.c.bf16 %v1145, %v1144
        %v1167 = vpack.c.bf16 %v1147, %v1146
        %v1168 = vpack.c.bf16 %v1149, %v1148
        %v1169 = vpack.c.bf16 %v1151, %v1150
        %v1170 = vpack.c.bf16 %v1153, %v1152
        %v1171 = vpack.c.bf16 %v1155, %v1154
        %s1172 = scalar_lea.vmem [#allocation7], 128
        %v1173 = vld [vmem:[%s1172] sm:$0xf]
        %v1174 = vld [vmem:[%s1172 + $0x4] sm:$0xf]
        %v1175 = vld [vmem:[%s1172 + $0x8] sm:$0xf]
        %v1176 = vld [vmem:[%s1172 + $0xc] sm:$0xf]
        %v1177 = vld [vmem:[%s1172 + $0x10] sm:$0xf]
        %v1178 = vld [vmem:[%s1172 + $0x14] sm:$0xf]
        %v1179 = vld [vmem:[%s1172 + $0x18] sm:$0xf]
        %v1180 = vld [vmem:[%s1172 + $0x1c] sm:$0xf]
        %v1181 = vld [vmem:[%s1172 + $0x20] sm:$0xf]
        %v1182 = vld [vmem:[%s1172 + $0x24] sm:$0xf]
        %v1183 = vld [vmem:[%s1172 + $0x28] sm:$0xf]
        %v1184 = vld [vmem:[%s1172 + $0x2c] sm:$0xf]
        %v1185 = vld [vmem:[%s1172 + $0x30] sm:$0xf]
        %v1186 = vld [vmem:[%s1172 + $0x34] sm:$0xf]
        %v1187 = vld [vmem:[%s1172 + $0x38] sm:$0xf]
        %v1188 = vld [vmem:[%s1172 + $0x3c] sm:$0xf]
        %v1205 = vunpack.c.l.b16 %v1173
        %v1206 = vunpack.c.l.b16 %v1174
        %v1207 = vunpack.c.l.b16 %v1175
        %v1208 = vunpack.c.l.b16 %v1176
        %v1209 = vunpack.c.l.b16 %v1177
        %v1210 = vunpack.c.l.b16 %v1178
        %v1211 = vunpack.c.l.b16 %v1179
        %v1212 = vunpack.c.l.b16 %v1180
        %v1213 = vunpack.c.l.b16 %v1181
        %v1214 = vunpack.c.l.b16 %v1182
        %v1215 = vunpack.c.l.b16 %v1183
        %v1216 = vunpack.c.l.b16 %v1184
        %v1217 = vunpack.c.l.b16 %v1185
        %v1218 = vunpack.c.l.b16 %v1186
        %v1219 = vunpack.c.l.b16 %v1187
        %v1220 = vunpack.c.l.b16 %v1188
        %v1221 = vpack.c.b16 %v1206, %v1205
        %v1222 = vpack.c.b16 %v1208, %v1207
        %v1223 = vpack.c.b16 %v1210, %v1209
        %v1224 = vpack.c.b16 %v1212, %v1211
        %v1225 = vpack.c.b16 %v1214, %v1213
        %v1226 = vpack.c.b16 %v1216, %v1215
        %v1227 = vpack.c.b16 %v1218, %v1217
        %v1228 = vpack.c.b16 %v1220, %v1219
        %1237 = vmatpush.bf16.msra.mxu0 %v1228
        %1238 = vmatpush.bf16.msra.mxu0 %v1227
        %1239 = vmatpush.bf16.msra.mxu0 %v1226
        %1240 = vmatpush.bf16.msra.mxu0 %v1225
        %1241 = vmatpush.bf16.msra.mxu0 %v1224
        %1242 = vmatpush.bf16.msra.mxu0 %v1223
        %1243 = vmatpush.bf16.msra.mxu0 %v1222
        %1244 = vmatpush.bf16.msra.mxu0 %v1221
        %1245 = vmatmul.bf16.gmra.mxu0 %v1156
        %v1246 = vpop.f32.mrf.mxu0
        %v1247 = vadd.f32 0.0, %v1246
        %v1248 = vpop.f32.mrf.mxu0
        %v1249 = vadd.f32 0.0, %v1248
        %1250 = vmatmul.bf16.gmra.mxu0 %v1157
        %v1251 = vpop.f32.mrf.mxu0
        %v1252 = vadd.f32 0.0, %v1251
        %v1253 = vpop.f32.mrf.mxu0
        %v1254 = vadd.f32 0.0, %v1253
        %1255 = vmatmul.bf16.gmra.mxu0 %v1158
        %v1256 = vpop.f32.mrf.mxu0
        %v1257 = vadd.f32 0.0, %v1256
        %v1258 = vpop.f32.mrf.mxu0
        %v1259 = vadd.f32 0.0, %v1258
        %1260 = vmatmul.bf16.gmra.mxu0 %v1159
        %v1261 = vpop.f32.mrf.mxu0
        %v1262 = vadd.f32 0.0, %v1261
        %v1263 = vpop.f32.mrf.mxu0
        %v1264 = vadd.f32 0.0, %v1263
        %1265 = vmatmul.bf16.gmra.mxu0 %v1160
        %v1266 = vpop.f32.mrf.mxu0
        %v1267 = vadd.f32 0.0, %v1266
        %v1268 = vpop.f32.mrf.mxu0
        %v1269 = vadd.f32 0.0, %v1268
        %1270 = vmatmul.bf16.gmra.mxu0 %v1161
        %v1271 = vpop.f32.mrf.mxu0
        %v1272 = vadd.f32 0.0, %v1271
        %v1273 = vpop.f32.mrf.mxu0
        %v1274 = vadd.f32 0.0, %v1273
        %1275 = vmatmul.bf16.gmra.mxu0 %v1162
        %v1276 = vpop.f32.mrf.mxu0
        %v1277 = vadd.f32 0.0, %v1276
        %v1278 = vpop.f32.mrf.mxu0
        %v1279 = vadd.f32 0.0, %v1278
        %1280 = vmatmul.bf16.gmra.mxu0 %v1163
        %v1281 = vpop.f32.mrf.mxu0
        %v1282 = vadd.f32 0.0, %v1281
        %v1283 = vpop.f32.mrf.mxu0
        %v1284 = vadd.f32 0.0, %v1283
        %1285 = vmatmul.bf16.gmra.mxu0 %v1164
        %v1286 = vpop.f32.mrf.mxu0
        %v1287 = vadd.f32 0.0, %v1286
        %v1288 = vpop.f32.mrf.mxu0
        %v1289 = vadd.f32 0.0, %v1288
        %1290 = vmatmul.bf16.gmra.mxu0 %v1165
        %v1291 = vpop.f32.mrf.mxu0
        %v1292 = vadd.f32 0.0, %v1291
        %v1293 = vpop.f32.mrf.mxu0
        %v1294 = vadd.f32 0.0, %v1293
        %1295 = vmatmul.bf16.gmra.mxu0 %v1166
        %v1296 = vpop.f32.mrf.mxu0
        %v1297 = vadd.f32 0.0, %v1296
        %v1298 = vpop.f32.mrf.mxu0
        %v1299 = vadd.f32 0.0, %v1298
        %1300 = vmatmul.bf16.gmra.mxu0 %v1167
        %v1301 = vpop.f32.mrf.mxu0
        %v1302 = vadd.f32 0.0, %v1301
        %v1303 = vpop.f32.mrf.mxu0
        %v1304 = vadd.f32 0.0, %v1303
        %1305 = vmatmul.bf16.gmra.mxu0 %v1168
        %v1306 = vpop.f32.mrf.mxu0
        %v1307 = vadd.f32 0.0, %v1306
        %v1308 = vpop.f32.mrf.mxu0
        %v1309 = vadd.f32 0.0, %v1308
        %1310 = vmatmul.bf16.gmra.mxu0 %v1169
        %v1311 = vpop.f32.mrf.mxu0
        %v1312 = vadd.f32 0.0, %v1311
        %v1313 = vpop.f32.mrf.mxu0
        %v1314 = vadd.f32 0.0, %v1313
        %1315 = vmatmul.bf16.gmra.mxu0 %v1170
        %v1316 = vpop.f32.mrf.mxu0
        %v1317 = vadd.f32 0.0, %v1316
        %v1318 = vpop.f32.mrf.mxu0
        %v1319 = vadd.f32 0.0, %v1318
        %1320 = vmatmul.bf16.gmra.mxu0 %v1171
        %v1321 = vpop.f32.mrf.mxu0
        %v1322 = vadd.f32 0.0, %v1321
        %v1323 = vpop.f32.mrf.mxu0
        %v1324 = vadd.f32 0.0, %v1323
        %1325 = vdwg.mxu0
        %v1326 = vadd.f32 %v1045, %v1247
        %v1327 = vadd.f32 %v1047, %v1249
        %v1328 = vadd.f32 %v1050, %v1252
        %v1329 = vadd.f32 %v1052, %v1254
        %v1330 = vadd.f32 %v1055, %v1257
        %v1331 = vadd.f32 %v1057, %v1259
        %v1332 = vadd.f32 %v1060, %v1262
        %v1333 = vadd.f32 %v1062, %v1264
        %v1334 = vadd.f32 %v1065, %v1267
        %v1335 = vadd.f32 %v1067, %v1269
        %v1336 = vadd.f32 %v1070, %v1272
        %v1337 = vadd.f32 %v1072, %v1274
        %v1338 = vadd.f32 %v1075, %v1277
        %v1339 = vadd.f32 %v1077, %v1279
        %v1340 = vadd.f32 %v1080, %v1282
        %v1341 = vadd.f32 %v1082, %v1284
        %v1342 = vadd.f32 %v1085, %v1287
        %v1343 = vadd.f32 %v1087, %v1289
        %v1344 = vadd.f32 %v1090, %v1292
        %v1345 = vadd.f32 %v1092, %v1294
        %v1346 = vadd.f32 %v1095, %v1297
        %v1347 = vadd.f32 %v1097, %v1299
        %v1348 = vadd.f32 %v1100, %v1302
        %v1349 = vadd.f32 %v1102, %v1304
        %v1350 = vadd.f32 %v1105, %v1307
        %v1351 = vadd.f32 %v1107, %v1309
        %v1352 = vadd.f32 %v1110, %v1312
        %v1353 = vadd.f32 %v1112, %v1314
        %v1354 = vadd.f32 %v1115, %v1317
        %v1355 = vadd.f32 %v1117, %v1319
        %v1356 = vadd.f32 %v1120, %v1322
        %v1357 = vadd.f32 %v1122, %v1324
        %v1358 = vld [vmem:[%s688] sm:$0xff]
        %v1359 = vld [vmem:[%s688 + $0x8] sm:$0xff]
        %v1360 = vld [vmem:[%s688 + $0x18] sm:$0xff]
        %v1361 = vld [vmem:[%s688 + $0x20] sm:$0xff]
        %v1362 = vld [vmem:[%s688 + $0x30] sm:$0xff]
        %v1363 = vld [vmem:[%s688 + $0x38] sm:$0xff]
        %v1364 = vld [vmem:[%s688 + $0x48] sm:$0xff]
        %v1365 = vld [vmem:[%s688 + $0x50] sm:$0xff]
        %v1366 = vld [vmem:[%s688 + $0x60] sm:$0xff]
        %v1367 = vld [vmem:[%s688 + $0x68] sm:$0xff]
        %v1368 = vld [vmem:[%s688 + $0x78] sm:$0xff]
        %v1369 = vld [vmem:[%s688 + $0x80] sm:$0xff]
        %v1370 = vld [vmem:[%s688 + $0x90] sm:$0xff]
        %v1371 = vld [vmem:[%s688 + $0x98] sm:$0xff]
        %v1372 = vld [vmem:[%s688 + $0xa8] sm:$0xff]
        %v1373 = vld [vmem:[%s688 + $0xb0] sm:$0xff]
        %v1374 = vld [vmem:[%s688 + $0xc0] sm:$0xff]
        %v1375 = vld [vmem:[%s688 + $0xc8] sm:$0xff]
        %v1376 = vld [vmem:[%s688 + $0xd8] sm:$0xff]
        %v1377 = vld [vmem:[%s688 + $0xe0] sm:$0xff]
        %v1378 = vld [vmem:[%s688 + $0xf0] sm:$0xff]
        %v1379 = vld [vmem:[%s688 + $0xf8] sm:$0xff]
        %v1380 = vld [vmem:[%s688 + $0x108] sm:$0xff]
        %v1381 = vld [vmem:[%s688 + $0x110] sm:$0xff]
        %v1382 = vld [vmem:[%s688 + $0x120] sm:$0xff]
        %v1383 = vld [vmem:[%s688 + $0x128] sm:$0xff]
        %v1384 = vld [vmem:[%s688 + $0x138] sm:$0xff]
        %v1385 = vld [vmem:[%s688 + $0x140] sm:$0xff]
        %v1386 = vld [vmem:[%s688 + $0x150] sm:$0xff]
        %v1387 = vld [vmem:[%s688 + $0x158] sm:$0xff]
        %v1388 = vld [vmem:[%s688 + $0x168] sm:$0xff]
        %v1389 = vld [vmem:[%s688 + $0x170] sm:$0xff]
        %v1390 = vpack.c.bf16 %v1359, %v1358
        %v1391 = vpack.c.bf16 %v1361, %v1360
        %v1392 = vpack.c.bf16 %v1363, %v1362
        %v1393 = vpack.c.bf16 %v1365, %v1364
        %v1394 = vpack.c.bf16 %v1367, %v1366
        %v1395 = vpack.c.bf16 %v1369, %v1368
        %v1396 = vpack.c.bf16 %v1371, %v1370
        %v1397 = vpack.c.bf16 %v1373, %v1372
        %v1398 = vpack.c.bf16 %v1375, %v1374
        %v1399 = vpack.c.bf16 %v1377, %v1376
        %v1400 = vpack.c.bf16 %v1379, %v1378
        %v1401 = vpack.c.bf16 %v1381, %v1380
        %v1402 = vpack.c.bf16 %v1383, %v1382
        %v1403 = vpack.c.bf16 %v1385, %v1384
        %v1404 = vpack.c.bf16 %v1387, %v1386
        %v1405 = vpack.c.bf16 %v1389, %v1388
        %s1406 = scalar_lea.vmem [#allocation7], 192
        %v1407 = vld [vmem:[%s1406] sm:$0xf]
        %v1408 = vld [vmem:[%s1406 + $0x4] sm:$0xf]
        %v1409 = vld [vmem:[%s1406 + $0x8] sm:$0xf]
        %v1410 = vld [vmem:[%s1406 + $0xc] sm:$0xf]
        %v1411 = vld [vmem:[%s1406 + $0x10] sm:$0xf]
        %v1412 = vld [vmem:[%s1406 + $0x14] sm:$0xf]
        %v1413 = vld [vmem:[%s1406 + $0x18] sm:$0xf]
        %v1414 = vld [vmem:[%s1406 + $0x1c] sm:$0xf]
        %v1415 = vld [vmem:[%s1406 + $0x20] sm:$0xf]
        %v1416 = vld [vmem:[%s1406 + $0x24] sm:$0xf]
        %v1417 = vld [vmem:[%s1406 + $0x28] sm:$0xf]
        %v1418 = vld [vmem:[%s1406 + $0x2c] sm:$0xf]
        %v1419 = vld [vmem:[%s1406 + $0x30] sm:$0xf]
        %v1420 = vld [vmem:[%s1406 + $0x34] sm:$0xf]
        %v1421 = vld [vmem:[%s1406 + $0x38] sm:$0xf]
        %v1422 = vld [vmem:[%s1406 + $0x3c] sm:$0xf]
        %v1439 = vunpack.c.l.b16 %v1407
        %v1440 = vunpack.c.l.b16 %v1408
        %v1441 = vunpack.c.l.b16 %v1409
        %v1442 = vunpack.c.l.b16 %v1410
        %v1443 = vunpack.c.l.b16 %v1411
        %v1444 = vunpack.c.l.b16 %v1412
        %v1445 = vunpack.c.l.b16 %v1413
        %v1446 = vunpack.c.l.b16 %v1414
        %v1447 = vunpack.c.l.b16 %v1415
        %v1448 = vunpack.c.l.b16 %v1416
        %v1449 = vunpack.c.l.b16 %v1417
        %v1450 = vunpack.c.l.b16 %v1418
        %v1451 = vunpack.c.l.b16 %v1419
        %v1452 = vunpack.c.l.b16 %v1420
        %v1453 = vunpack.c.l.b16 %v1421
        %v1454 = vunpack.c.l.b16 %v1422
        %v1455 = vpack.c.b16 %v1440, %v1439
        %v1456 = vpack.c.b16 %v1442, %v1441
        %v1457 = vpack.c.b16 %v1444, %v1443
        %v1458 = vpack.c.b16 %v1446, %v1445
        %v1459 = vpack.c.b16 %v1448, %v1447
        %v1460 = vpack.c.b16 %v1450, %v1449
        %v1461 = vpack.c.b16 %v1452, %v1451
        %v1462 = vpack.c.b16 %v1454, %v1453
        %1471 = vmatpush.bf16.msra.mxu0 %v1462
        %1472 = vmatpush.bf16.msra.mxu0 %v1461
        %1473 = vmatpush.bf16.msra.mxu0 %v1460
        %1474 = vmatpush.bf16.msra.mxu0 %v1459
        %1475 = vmatpush.bf16.msra.mxu0 %v1458
        %1476 = vmatpush.bf16.msra.mxu0 %v1457
        %1477 = vmatpush.bf16.msra.mxu0 %v1456
        %1478 = vmatpush.bf16.msra.mxu0 %v1455
        %1479 = vmatmul.bf16.gmra.mxu0 %v1390
        %v1480 = vpop.f32.mrf.mxu0
        %v1481 = vadd.f32 0.0, %v1480
        %v1482 = vpop.f32.mrf.mxu0
        %v1483 = vadd.f32 0.0, %v1482
        %1484 = vmatmul.bf16.gmra.mxu0 %v1391
        %v1485 = vpop.f32.mrf.mxu0
        %v1486 = vadd.f32 0.0, %v1485
        %v1487 = vpop.f32.mrf.mxu0
        %v1488 = vadd.f32 0.0, %v1487
        %1489 = vmatmul.bf16.gmra.mxu0 %v1392
        %v1490 = vpop.f32.mrf.mxu0
        %v1491 = vadd.f32 0.0, %v1490
        %v1492 = vpop.f32.mrf.mxu0
        %v1493 = vadd.f32 0.0, %v1492
        %1494 = vmatmul.bf16.gmra.mxu0 %v1393
        %v1495 = vpop.f32.mrf.mxu0
        %v1496 = vadd.f32 0.0, %v1495
        %v1497 = vpop.f32.mrf.mxu0
        %v1498 = vadd.f32 0.0, %v1497
        %1499 = vmatmul.bf16.gmra.mxu0 %v1394
        %v1500 = vpop.f32.mrf.mxu0
        %v1501 = vadd.f32 0.0, %v1500
        %v1502 = vpop.f32.mrf.mxu0
        %v1503 = vadd.f32 0.0, %v1502
        %1504 = vmatmul.bf16.gmra.mxu0 %v1395
        %v1505 = vpop.f32.mrf.mxu0
        %v1506 = vadd.f32 0.0, %v1505
        %v1507 = vpop.f32.mrf.mxu0
        %v1508 = vadd.f32 0.0, %v1507
        %1509 = vmatmul.bf16.gmra.mxu0 %v1396
        %v1510 = vpop.f32.mrf.mxu0
        %v1511 = vadd.f32 0.0, %v1510
        %v1512 = vpop.f32.mrf.mxu0
        %v1513 = vadd.f32 0.0, %v1512
        %1514 = vmatmul.bf16.gmra.mxu0 %v1397
        %v1515 = vpop.f32.mrf.mxu0
        %v1516 = vadd.f32 0.0, %v1515
        %v1517 = vpop.f32.mrf.mxu0
        %v1518 = vadd.f32 0.0, %v1517
        %1519 = vmatmul.bf16.gmra.mxu0 %v1398
        %v1520 = vpop.f32.mrf.mxu0
        %v1521 = vadd.f32 0.0, %v1520
        %v1522 = vpop.f32.mrf.mxu0
        %v1523 = vadd.f32 0.0, %v1522
        %1524 = vmatmul.bf16.gmra.mxu0 %v1399
        %v1525 = vpop.f32.mrf.mxu0
        %v1526 = vadd.f32 0.0, %v1525
        %v1527 = vpop.f32.mrf.mxu0
        %v1528 = vadd.f32 0.0, %v1527
        %1529 = vmatmul.bf16.gmra.mxu0 %v1400
        %v1530 = vpop.f32.mrf.mxu0
        %v1531 = vadd.f32 0.0, %v1530
        %v1532 = vpop.f32.mrf.mxu0
        %v1533 = vadd.f32 0.0, %v1532
        %1534 = vmatmul.bf16.gmra.mxu0 %v1401
        %v1535 = vpop.f32.mrf.mxu0
        %v1536 = vadd.f32 0.0, %v1535
        %v1537 = vpop.f32.mrf.mxu0
        %v1538 = vadd.f32 0.0, %v1537
        %1539 = vmatmul.bf16.gmra.mxu0 %v1402
        %v1540 = vpop.f32.mrf.mxu0
        %v1541 = vadd.f32 0.0, %v1540
        %v1542 = vpop.f32.mrf.mxu0
        %v1543 = vadd.f32 0.0, %v1542
        %1544 = vmatmul.bf16.gmra.mxu0 %v1403
        %v1545 = vpop.f32.mrf.mxu0
        %v1546 = vadd.f32 0.0, %v1545
        %v1547 = vpop.f32.mrf.mxu0
        %v1548 = vadd.f32 0.0, %v1547
        %1549 = vmatmul.bf16.gmra.mxu0 %v1404
        %v1550 = vpop.f32.mrf.mxu0
        %v1551 = vadd.f32 0.0, %v1550
        %v1552 = vpop.f32.mrf.mxu0
        %v1553 = vadd.f32 0.0, %v1552
        %1554 = vmatmul.bf16.gmra.mxu0 %v1405
        %v1555 = vpop.f32.mrf.mxu0
        %v1556 = vadd.f32 0.0, %v1555
        %v1557 = vpop.f32.mrf.mxu0
        %v1558 = vadd.f32 0.0, %v1557
        %1559 = vdwg.mxu0
        %v1560 = vadd.f32 %v1326, %v1481
        %v1561 = vadd.f32 %v1327, %v1483
        %v1562 = vadd.f32 %v1328, %v1486
        %v1563 = vadd.f32 %v1329, %v1488
        %v1564 = vadd.f32 %v1330, %v1491
        %v1565 = vadd.f32 %v1331, %v1493
        %v1566 = vadd.f32 %v1332, %v1496
        %v1567 = vadd.f32 %v1333, %v1498
        %v1568 = vadd.f32 %v1334, %v1501
        %v1569 = vadd.f32 %v1335, %v1503
        %v1570 = vadd.f32 %v1336, %v1506
        %v1571 = vadd.f32 %v1337, %v1508
        %v1572 = vadd.f32 %v1338, %v1511
        %v1573 = vadd.f32 %v1339, %v1513
        %v1574 = vadd.f32 %v1340, %v1516
        %v1575 = vadd.f32 %v1341, %v1518
        %v1576 = vadd.f32 %v1342, %v1521
        %v1577 = vadd.f32 %v1343, %v1523
        %v1578 = vadd.f32 %v1344, %v1526
        %v1579 = vadd.f32 %v1345, %v1528
        %v1580 = vadd.f32 %v1346, %v1531
        %v1581 = vadd.f32 %v1347, %v1533
        %v1582 = vadd.f32 %v1348, %v1536
        %v1583 = vadd.f32 %v1349, %v1538
        %v1584 = vadd.f32 %v1350, %v1541
        %v1585 = vadd.f32 %v1351, %v1543
        %v1586 = vadd.f32 %v1352, %v1546
        %v1587 = vadd.f32 %v1353, %v1548
        %v1588 = vadd.f32 %v1354, %v1551
        %v1589 = vadd.f32 %v1355, %v1553
        %v1590 = vadd.f32 %v1356, %v1556
        %v1591 = vadd.f32 %v1357, %v1558
        %v1592 = vld [vmem:[%s688 + $0x1] sm:$0xff]
        %v1593 = vld [vmem:[%s688 + $0x9] sm:$0xff]
        %v1594 = vld [vmem:[%s688 + $0x19] sm:$0xff]
        %v1595 = vld [vmem:[%s688 + $0x21] sm:$0xff]
        %v1596 = vld [vmem:[%s688 + $0x31] sm:$0xff]
        %v1597 = vld [vmem:[%s688 + $0x39] sm:$0xff]
        %v1598 = vld [vmem:[%s688 + $0x49] sm:$0xff]
        %v1599 = vld [vmem:[%s688 + $0x51] sm:$0xff]
        %v1600 = vld [vmem:[%s688 + $0x61] sm:$0xff]
        %v1601 = vld [vmem:[%s688 + $0x69] sm:$0xff]
        %v1602 = vld [vmem:[%s688 + $0x79] sm:$0xff]
        %v1603 = vld [vmem:[%s688 + $0x81] sm:$0xff]
        %v1604 = vld [vmem:[%s688 + $0x91] sm:$0xff]
        %v1605 = vld [vmem:[%s688 + $0x99] sm:$0xff]
        %v1606 = vld [vmem:[%s688 + $0xa9] sm:$0xff]
        %v1607 = vld [vmem:[%s688 + $0xb1] sm:$0xff]
        %v1608 = vld [vmem:[%s688 + $0xc1] sm:$0xff]
        %v1609 = vld [vmem:[%s688 + $0xc9] sm:$0xff]
        %v1610 = vld [vmem:[%s688 + $0xd9] sm:$0xff]
        %v1611 = vld [vmem:[%s688 + $0xe1] sm:$0xff]
        %v1612 = vld [vmem:[%s688 + $0xf1] sm:$0xff]
        %v1613 = vld [vmem:[%s688 + $0xf9] sm:$0xff]
        %v1614 = vld [vmem:[%s688 + $0x109] sm:$0xff]
        %v1615 = vld [vmem:[%s688 + $0x111] sm:$0xff]
        %v1616 = vld [vmem:[%s688 + $0x121] sm:$0xff]
        %v1617 = vld [vmem:[%s688 + $0x129] sm:$0xff]
        %v1618 = vld [vmem:[%s688 + $0x139] sm:$0xff]
        %v1619 = vld [vmem:[%s688 + $0x141] sm:$0xff]
        %v1620 = vld [vmem:[%s688 + $0x151] sm:$0xff]
        %v1621 = vld [vmem:[%s688 + $0x159] sm:$0xff]
        %v1622 = vld [vmem:[%s688 + $0x169] sm:$0xff]
        %v1623 = vld [vmem:[%s688 + $0x171] sm:$0xff]
        %v1624 = vpack.c.bf16 %v1593, %v1592
        %v1625 = vpack.c.bf16 %v1595, %v1594
        %v1626 = vpack.c.bf16 %v1597, %v1596
        %v1627 = vpack.c.bf16 %v1599, %v1598
        %v1628 = vpack.c.bf16 %v1601, %v1600
        %v1629 = vpack.c.bf16 %v1603, %v1602
        %v1630 = vpack.c.bf16 %v1605, %v1604
        %v1631 = vpack.c.bf16 %v1607, %v1606
        %v1632 = vpack.c.bf16 %v1609, %v1608
        %v1633 = vpack.c.bf16 %v1611, %v1610
        %v1634 = vpack.c.bf16 %v1613, %v1612
        %v1635 = vpack.c.bf16 %v1615, %v1614
        %v1636 = vpack.c.bf16 %v1617, %v1616
        %v1637 = vpack.c.bf16 %v1619, %v1618
        %v1638 = vpack.c.bf16 %v1621, %v1620
        %v1639 = vpack.c.bf16 %v1623, %v1622
        %s1640 = scalar_lea.vmem [#allocation7], 256
        %v1641 = vld [vmem:[%s1640] sm:$0xf]
        %v1642 = vld [vmem:[%s1640 + $0x4] sm:$0xf]
        %v1643 = vld [vmem:[%s1640 + $0x8] sm:$0xf]
        %v1644 = vld [vmem:[%s1640 + $0xc] sm:$0xf]
        %v1645 = vld [vmem:[%s1640 + $0x10] sm:$0xf]
        %v1646 = vld [vmem:[%s1640 + $0x14] sm:$0xf]
        %v1647 = vld [vmem:[%s1640 + $0x18] sm:$0xf]
        %v1648 = vld [vmem:[%s1640 + $0x1c] sm:$0xf]
        %v1649 = vld [vmem:[%s1640 + $0x20] sm:$0xf]
        %v1650 = vld [vmem:[%s1640 + $0x24] sm:$0xf]
        %v1651 = vld [vmem:[%s1640 + $0x28] sm:$0xf]
        %v1652 = vld [vmem:[%s1640 + $0x2c] sm:$0xf]
        %v1653 = vld [vmem:[%s1640 + $0x30] sm:$0xf]
        %v1654 = vld [vmem:[%s1640 + $0x34] sm:$0xf]
        %v1655 = vld [vmem:[%s1640 + $0x38] sm:$0xf]
        %v1656 = vld [vmem:[%s1640 + $0x3c] sm:$0xf]
        %v1673 = vunpack.c.l.b16 %v1641
        %v1674 = vunpack.c.l.b16 %v1642
        %v1675 = vunpack.c.l.b16 %v1643
        %v1676 = vunpack.c.l.b16 %v1644
        %v1677 = vunpack.c.l.b16 %v1645
        %v1678 = vunpack.c.l.b16 %v1646
        %v1679 = vunpack.c.l.b16 %v1647
        %v1680 = vunpack.c.l.b16 %v1648
        %v1681 = vunpack.c.l.b16 %v1649
        %v1682 = vunpack.c.l.b16 %v1650
        %v1683 = vunpack.c.l.b16 %v1651
        %v1684 = vunpack.c.l.b16 %v1652
        %v1685 = vunpack.c.l.b16 %v1653
        %v1686 = vunpack.c.l.b16 %v1654
        %v1687 = vunpack.c.l.b16 %v1655
        %v1688 = vunpack.c.l.b16 %v1656
        %v1689 = vpack.c.b16 %v1674, %v1673
        %v1690 = vpack.c.b16 %v1676, %v1675
        %v1691 = vpack.c.b16 %v1678, %v1677
        %v1692 = vpack.c.b16 %v1680, %v1679
        %v1693 = vpack.c.b16 %v1682, %v1681
        %v1694 = vpack.c.b16 %v1684, %v1683
        %v1695 = vpack.c.b16 %v1686, %v1685
        %v1696 = vpack.c.b16 %v1688, %v1687
        %1705 = vmatpush.bf16.msra.mxu0 %v1696
        %1706 = vmatpush.bf16.msra.mxu0 %v1695
        %1707 = vmatpush.bf16.msra.mxu0 %v1694
        %1708 = vmatpush.bf16.msra.mxu0 %v1693
        %1709 = vmatpush.bf16.msra.mxu0 %v1692
        %1710 = vmatpush.bf16.msra.mxu0 %v1691
        %1711 = vmatpush.bf16.msra.mxu0 %v1690
        %1712 = vmatpush.bf16.msra.mxu0 %v1689
        %1713 = vmatmul.bf16.gmra.mxu0 %v1624
        %v1714 = vpop.f32.mrf.mxu0
        %v1715 = vadd.f32 0.0, %v1714
        %v1716 = vpop.f32.mrf.mxu0
        %v1717 = vadd.f32 0.0, %v1716
        %1718 = vmatmul.bf16.gmra.mxu0 %v1625
        %v1719 = vpop.f32.mrf.mxu0
        %v1720 = vadd.f32 0.0, %v1719
        %v1721 = vpop.f32.mrf.mxu0
        %v1722 = vadd.f32 0.0, %v1721
        %1723 = vmatmul.bf16.gmra.mxu0 %v1626
        %v1724 = vpop.f32.mrf.mxu0
        %v1725 = vadd.f32 0.0, %v1724
        %v1726 = vpop.f32.mrf.mxu0
        %v1727 = vadd.f32 0.0, %v1726
        %1728 = vmatmul.bf16.gmra.mxu0 %v1627
        %v1729 = vpop.f32.mrf.mxu0
        %v1730 = vadd.f32 0.0, %v1729
        %v1731 = vpop.f32.mrf.mxu0
        %v1732 = vadd.f32 0.0, %v1731
        %1733 = vmatmul.bf16.gmra.mxu0 %v1628
        %v1734 = vpop.f32.mrf.mxu0
        %v1735 = vadd.f32 0.0, %v1734
        %v1736 = vpop.f32.mrf.mxu0
        %v1737 = vadd.f32 0.0, %v1736
        %1738 = vmatmul.bf16.gmra.mxu0 %v1629
        %v1739 = vpop.f32.mrf.mxu0
        %v1740 = vadd.f32 0.0, %v1739
        %v1741 = vpop.f32.mrf.mxu0
        %v1742 = vadd.f32 0.0, %v1741
        %1743 = vmatmul.bf16.gmra.mxu0 %v1630
        %v1744 = vpop.f32.mrf.mxu0
        %v1745 = vadd.f32 0.0, %v1744
        %v1746 = vpop.f32.mrf.mxu0
        %v1747 = vadd.f32 0.0, %v1746
        %1748 = vmatmul.bf16.gmra.mxu0 %v1631
        %v1749 = vpop.f32.mrf.mxu0
        %v1750 = vadd.f32 0.0, %v1749
        %v1751 = vpop.f32.mrf.mxu0
        %v1752 = vadd.f32 0.0, %v1751
        %1753 = vmatmul.bf16.gmra.mxu0 %v1632
        %v1754 = vpop.f32.mrf.mxu0
        %v1755 = vadd.f32 0.0, %v1754
        %v1756 = vpop.f32.mrf.mxu0
        %v1757 = vadd.f32 0.0, %v1756
        %1758 = vmatmul.bf16.gmra.mxu0 %v1633
        %v1759 = vpop.f32.mrf.mxu0
        %v1760 = vadd.f32 0.0, %v1759
        %v1761 = vpop.f32.mrf.mxu0
        %v1762 = vadd.f32 0.0, %v1761
        %1763 = vmatmul.bf16.gmra.mxu0 %v1634
        %v1764 = vpop.f32.mrf.mxu0
        %v1765 = vadd.f32 0.0, %v1764
        %v1766 = vpop.f32.mrf.mxu0
        %v1767 = vadd.f32 0.0, %v1766
        %1768 = vmatmul.bf16.gmra.mxu0 %v1635
        %v1769 = vpop.f32.mrf.mxu0
        %v1770 = vadd.f32 0.0, %v1769
        %v1771 = vpop.f32.mrf.mxu0
        %v1772 = vadd.f32 0.0, %v1771
        %1773 = vmatmul.bf16.gmra.mxu0 %v1636
        %v1774 = vpop.f32.mrf.mxu0
        %v1775 = vadd.f32 0.0, %v1774
        %v1776 = vpop.f32.mrf.mxu0
        %v1777 = vadd.f32 0.0, %v1776
        %1778 = vmatmul.bf16.gmra.mxu0 %v1637
        %v1779 = vpop.f32.mrf.mxu0
        %v1780 = vadd.f32 0.0, %v1779
        %v1781 = vpop.f32.mrf.mxu0
        %v1782 = vadd.f32 0.0, %v1781
        %1783 = vmatmul.bf16.gmra.mxu0 %v1638
        %v1784 = vpop.f32.mrf.mxu0
        %v1785 = vadd.f32 0.0, %v1784
        %v1786 = vpop.f32.mrf.mxu0
        %v1787 = vadd.f32 0.0, %v1786
        %1788 = vmatmul.bf16.gmra.mxu0 %v1639
        %v1789 = vpop.f32.mrf.mxu0
        %v1790 = vadd.f32 0.0, %v1789
        %v1791 = vpop.f32.mrf.mxu0
        %v1792 = vadd.f32 0.0, %v1791
        %1793 = vdwg.mxu0
        %v1794 = vadd.f32 %v1560, %v1715
        %v1795 = vadd.f32 %v1561, %v1717
        %v1796 = vadd.f32 %v1562, %v1720
        %v1797 = vadd.f32 %v1563, %v1722
        %v1798 = vadd.f32 %v1564, %v1725
        %v1799 = vadd.f32 %v1565, %v1727
        %v1800 = vadd.f32 %v1566, %v1730
        %v1801 = vadd.f32 %v1567, %v1732
        %v1802 = vadd.f32 %v1568, %v1735
        %v1803 = vadd.f32 %v1569, %v1737
        %v1804 = vadd.f32 %v1570, %v1740
        %v1805 = vadd.f32 %v1571, %v1742
        %v1806 = vadd.f32 %v1572, %v1745
        %v1807 = vadd.f32 %v1573, %v1747
        %v1808 = vadd.f32 %v1574, %v1750
        %v1809 = vadd.f32 %v1575, %v1752
        %v1810 = vadd.f32 %v1576, %v1755
        %v1811 = vadd.f32 %v1577, %v1757
        %v1812 = vadd.f32 %v1578, %v1760
        %v1813 = vadd.f32 %v1579, %v1762
        %v1814 = vadd.f32 %v1580, %v1765
        %v1815 = vadd.f32 %v1581, %v1767
        %v1816 = vadd.f32 %v1582, %v1770
        %v1817 = vadd.f32 %v1583, %v1772
        %v1818 = vadd.f32 %v1584, %v1775
        %v1819 = vadd.f32 %v1585, %v1777
        %v1820 = vadd.f32 %v1586, %v1780
        %v1821 = vadd.f32 %v1587, %v1782
        %v1822 = vadd.f32 %v1588, %v1785
        %v1823 = vadd.f32 %v1589, %v1787
        %v1824 = vadd.f32 %v1590, %v1790
        %v1825 = vadd.f32 %v1591, %v1792
        %v1826 = vld [vmem:[%s688 + $0x2] sm:$0xff]
        %v1827 = vld [vmem:[%s688 + $0xa] sm:$0xff]
        %v1828 = vld [vmem:[%s688 + $0x1a] sm:$0xff]
        %v1829 = vld [vmem:[%s688 + $0x22] sm:$0xff]
        %v1830 = vld [vmem:[%s688 + $0x32] sm:$0xff]
        %v1831 = vld [vmem:[%s688 + $0x3a] sm:$0xff]
        %v1832 = vld [vmem:[%s688 + $0x4a] sm:$0xff]
        %v1833 = vld [vmem:[%s688 + $0x52] sm:$0xff]
        %v1834 = vld [vmem:[%s688 + $0x62] sm:$0xff]
        %v1835 = vld [vmem:[%s688 + $0x6a] sm:$0xff]
        %v1836 = vld [vmem:[%s688 + $0x7a] sm:$0xff]
        %v1837 = vld [vmem:[%s688 + $0x82] sm:$0xff]
        %v1838 = vld [vmem:[%s688 + $0x92] sm:$0xff]
        %v1839 = vld [vmem:[%s688 + $0x9a] sm:$0xff]
        %v1840 = vld [vmem:[%s688 + $0xaa] sm:$0xff]
        %v1841 = vld [vmem:[%s688 + $0xb2] sm:$0xff]
        %v1842 = vld [vmem:[%s688 + $0xc2] sm:$0xff]
        %v1843 = vld [vmem:[%s688 + $0xca] sm:$0xff]
        %v1844 = vld [vmem:[%s688 + $0xda] sm:$0xff]
        %v1845 = vld [vmem:[%s688 + $0xe2] sm:$0xff]
        %v1846 = vld [vmem:[%s688 + $0xf2] sm:$0xff]
        %v1847 = vld [vmem:[%s688 + $0xfa] sm:$0xff]
        %v1848 = vld [vmem:[%s688 + $0x10a] sm:$0xff]
        %v1849 = vld [vmem:[%s688 + $0x112] sm:$0xff]
        %v1850 = vld [vmem:[%s688 + $0x122] sm:$0xff]
        %v1851 = vld [vmem:[%s688 + $0x12a] sm:$0xff]
        %v1852 = vld [vmem:[%s688 + $0x13a] sm:$0xff]
        %v1853 = vld [vmem:[%s688 + $0x142] sm:$0xff]
        %v1854 = vld [vmem:[%s688 + $0x152] sm:$0xff]
        %v1855 = vld [vmem:[%s688 + $0x15a] sm:$0xff]
        %v1856 = vld [vmem:[%s688 + $0x16a] sm:$0xff]
        %v1857 = vld [vmem:[%s688 + $0x172] sm:$0xff]
        %v1858 = vpack.c.bf16 %v1827, %v1826
        %v1859 = vpack.c.bf16 %v1829, %v1828
        %v1860 = vpack.c.bf16 %v1831, %v1830
        %v1861 = vpack.c.bf16 %v1833, %v1832
        %v1862 = vpack.c.bf16 %v1835, %v1834
        %v1863 = vpack.c.bf16 %v1837, %v1836
        %v1864 = vpack.c.bf16 %v1839, %v1838
        %v1865 = vpack.c.bf16 %v1841, %v1840
        %v1866 = vpack.c.bf16 %v1843, %v1842
        %v1867 = vpack.c.bf16 %v1845, %v1844
        %v1868 = vpack.c.bf16 %v1847, %v1846
        %v1869 = vpack.c.bf16 %v1849, %v1848
        %v1870 = vpack.c.bf16 %v1851, %v1850
        %v1871 = vpack.c.bf16 %v1853, %v1852
        %v1872 = vpack.c.bf16 %v1855, %v1854
        %v1873 = vpack.c.bf16 %v1857, %v1856
        %s1874 = scalar_lea.vmem [#allocation7], 320
        %v1875 = vld [vmem:[%s1874] sm:$0xf]
        %v1876 = vld [vmem:[%s1874 + $0x4] sm:$0xf]
        %v1877 = vld [vmem:[%s1874 + $0x8] sm:$0xf]
        %v1878 = vld [vmem:[%s1874 + $0xc] sm:$0xf]
        %v1879 = vld [vmem:[%s1874 + $0x10] sm:$0xf]
        %v1880 = vld [vmem:[%s1874 + $0x14] sm:$0xf]
        %v1881 = vld [vmem:[%s1874 + $0x18] sm:$0xf]
        %v1882 = vld [vmem:[%s1874 + $0x1c] sm:$0xf]
        %v1883 = vld [vmem:[%s1874 + $0x20] sm:$0xf]
        %v1884 = vld [vmem:[%s1874 + $0x24] sm:$0xf]
        %v1885 = vld [vmem:[%s1874 + $0x28] sm:$0xf]
        %v1886 = vld [vmem:[%s1874 + $0x2c] sm:$0xf]
        %v1887 = vld [vmem:[%s1874 + $0x30] sm:$0xf]
        %v1888 = vld [vmem:[%s1874 + $0x34] sm:$0xf]
        %v1889 = vld [vmem:[%s1874 + $0x38] sm:$0xf]
        %v1890 = vld [vmem:[%s1874 + $0x3c] sm:$0xf]
        %v1907 = vunpack.c.l.b16 %v1875
        %v1908 = vunpack.c.l.b16 %v1876
        %v1909 = vunpack.c.l.b16 %v1877
        %v1910 = vunpack.c.l.b16 %v1878
        %v1911 = vunpack.c.l.b16 %v1879
        %v1912 = vunpack.c.l.b16 %v1880
        %v1913 = vunpack.c.l.b16 %v1881
        %v1914 = vunpack.c.l.b16 %v1882
        %v1915 = vunpack.c.l.b16 %v1883
        %v1916 = vunpack.c.l.b16 %v1884
        %v1917 = vunpack.c.l.b16 %v1885
        %v1918 = vunpack.c.l.b16 %v1886
        %v1919 = vunpack.c.l.b16 %v1887
        %v1920 = vunpack.c.l.b16 %v1888
        %v1921 = vunpack.c.l.b16 %v1889
        %v1922 = vunpack.c.l.b16 %v1890
        %v1923 = vpack.c.b16 %v1908, %v1907
        %v1924 = vpack.c.b16 %v1910, %v1909
        %v1925 = vpack.c.b16 %v1912, %v1911
        %v1926 = vpack.c.b16 %v1914, %v1913
        %v1927 = vpack.c.b16 %v1916, %v1915
        %v1928 = vpack.c.b16 %v1918, %v1917
        %v1929 = vpack.c.b16 %v1920, %v1919
        %v1930 = vpack.c.b16 %v1922, %v1921
        %1939 = vmatpush.bf16.msra.mxu0 %v1930
        %1940 = vmatpush.bf16.msra.mxu0 %v1929
        %1941 = vmatpush.bf16.msra.mxu0 %v1928
        %1942 = vmatpush.bf16.msra.mxu0 %v1927
        %1943 = vmatpush.bf16.msra.mxu0 %v1926
        %1944 = vmatpush.bf16.msra.mxu0 %v1925
        %1945 = vmatpush.bf16.msra.mxu0 %v1924
        %1946 = vmatpush.bf16.msra.mxu0 %v1923
        %1947 = vmatmul.bf16.gmra.mxu0 %v1858
        %v1948 = vpop.f32.mrf.mxu0
        %v1949 = vadd.f32 0.0, %v1948
        %v1950 = vpop.f32.mrf.mxu0
        %v1951 = vadd.f32 0.0, %v1950
        %1952 = vmatmul.bf16.gmra.mxu0 %v1859
        %v1953 = vpop.f32.mrf.mxu0
        %v1954 = vadd.f32 0.0, %v1953
        %v1955 = vpop.f32.mrf.mxu0
        %v1956 = vadd.f32 0.0, %v1955
        %1957 = vmatmul.bf16.gmra.mxu0 %v1860
        %v1958 = vpop.f32.mrf.mxu0
        %v1959 = vadd.f32 0.0, %v1958
        %v1960 = vpop.f32.mrf.mxu0
        %v1961 = vadd.f32 0.0, %v1960
        %1962 = vmatmul.bf16.gmra.mxu0 %v1861
        %v1963 = vpop.f32.mrf.mxu0
        %v1964 = vadd.f32 0.0, %v1963
        %v1965 = vpop.f32.mrf.mxu0
        %v1966 = vadd.f32 0.0, %v1965
        %1967 = vmatmul.bf16.gmra.mxu0 %v1862
        %v1968 = vpop.f32.mrf.mxu0
        %v1969 = vadd.f32 0.0, %v1968
        %v1970 = vpop.f32.mrf.mxu0
        %v1971 = vadd.f32 0.0, %v1970
        %1972 = vmatmul.bf16.gmra.mxu0 %v1863
        %v1973 = vpop.f32.mrf.mxu0
        %v1974 = vadd.f32 0.0, %v1973
        %v1975 = vpop.f32.mrf.mxu0
        %v1976 = vadd.f32 0.0, %v1975
        %1977 = vmatmul.bf16.gmra.mxu0 %v1864
        %v1978 = vpop.f32.mrf.mxu0
        %v1979 = vadd.f32 0.0, %v1978
        %v1980 = vpop.f32.mrf.mxu0
        %v1981 = vadd.f32 0.0, %v1980
        %1982 = vmatmul.bf16.gmra.mxu0 %v1865
        %v1983 = vpop.f32.mrf.mxu0
        %v1984 = vadd.f32 0.0, %v1983
        %v1985 = vpop.f32.mrf.mxu0
        %v1986 = vadd.f32 0.0, %v1985
        %1987 = vmatmul.bf16.gmra.mxu0 %v1866
        %v1988 = vpop.f32.mrf.mxu0
        %v1989 = vadd.f32 0.0, %v1988
        %v1990 = vpop.f32.mrf.mxu0
        %v1991 = vadd.f32 0.0, %v1990
        %1992 = vmatmul.bf16.gmra.mxu0 %v1867
        %v1993 = vpop.f32.mrf.mxu0
        %v1994 = vadd.f32 0.0, %v1993
        %v1995 = vpop.f32.mrf.mxu0
        %v1996 = vadd.f32 0.0, %v1995
        %1997 = vmatmul.bf16.gmra.mxu0 %v1868
        %v1998 = vpop.f32.mrf.mxu0
        %v1999 = vadd.f32 0.0, %v1998
        %v2000 = vpop.f32.mrf.mxu0
        %v2001 = vadd.f32 0.0, %v2000
        %2002 = vmatmul.bf16.gmra.mxu0 %v1869
        %v2003 = vpop.f32.mrf.mxu0
        %v2004 = vadd.f32 0.0, %v2003
        %v2005 = vpop.f32.mrf.mxu0
        %v2006 = vadd.f32 0.0, %v2005
        %2007 = vmatmul.bf16.gmra.mxu0 %v1870
        %v2008 = vpop.f32.mrf.mxu0
        %v2009 = vadd.f32 0.0, %v2008
        %v2010 = vpop.f32.mrf.mxu0
        %v2011 = vadd.f32 0.0, %v2010
        %2012 = vmatmul.bf16.gmra.mxu0 %v1871
        %v2013 = vpop.f32.mrf.mxu0
        %v2014 = vadd.f32 0.0, %v2013
        %v2015 = vpop.f32.mrf.mxu0
        %v2016 = vadd.f32 0.0, %v2015
        %2017 = vmatmul.bf16.gmra.mxu0 %v1872
        %v2018 = vpop.f32.mrf.mxu0
        %v2019 = vadd.f32 0.0, %v2018
        %v2020 = vpop.f32.mrf.mxu0
        %v2021 = vadd.f32 0.0, %v2020
        %2022 = vmatmul.bf16.gmra.mxu0 %v1873
        %v2023 = vpop.f32.mrf.mxu0
        %v2024 = vadd.f32 0.0, %v2023
        %v2025 = vpop.f32.mrf.mxu0
        %v2026 = vadd.f32 0.0, %v2025
        %2027 = vdwg.mxu0
        %v2028 = vadd.f32 %v1794, %v1949
        %v2029 = vadd.f32 %v1795, %v1951
        %v2030 = vadd.f32 %v1796, %v1954
        %v2031 = vadd.f32 %v1797, %v1956
        %v2032 = vadd.f32 %v1798, %v1959
        %v2033 = vadd.f32 %v1799, %v1961
        %v2034 = vadd.f32 %v1800, %v1964
        %v2035 = vadd.f32 %v1801, %v1966
        %v2036 = vadd.f32 %v1802, %v1969
        %v2037 = vadd.f32 %v1803, %v1971
        %v2038 = vadd.f32 %v1804, %v1974
        %v2039 = vadd.f32 %v1805, %v1976
        %v2040 = vadd.f32 %v1806, %v1979
        %v2041 = vadd.f32 %v1807, %v1981
        %v2042 = vadd.f32 %v1808, %v1984
        %v2043 = vadd.f32 %v1809, %v1986
        %v2044 = vadd.f32 %v1810, %v1989
        %v2045 = vadd.f32 %v1811, %v1991
        %v2046 = vadd.f32 %v1812, %v1994
        %v2047 = vadd.f32 %v1813, %v1996
        %v2048 = vadd.f32 %v1814, %v1999
        %v2049 = vadd.f32 %v1815, %v2001
        %v2050 = vadd.f32 %v1816, %v2004
        %v2051 = vadd.f32 %v1817, %v2006
        %v2052 = vadd.f32 %v1818, %v2009
        %v2053 = vadd.f32 %v1819, %v2011
        %v2054 = vadd.f32 %v1820, %v2014
        %v2055 = vadd.f32 %v1821, %v2016
        %v2056 = vadd.f32 %v1822, %v2019
        %v2057 = vadd.f32 %v1823, %v2021
        %v2058 = vadd.f32 %v1824, %v2024
        %v2059 = vadd.f32 %v1825, %v2026
        %s2060 = scalar_lea.vmem [#allocation2], 48
        %v2061 = vld [vmem:[%s2060] sm:$0xff]
        %v2062 = vld [vmem:[%s2060 + $0x8] sm:$0xff]
        %v2063 = vld [vmem:[%s2060 + $0x18] sm:$0xff]
        %v2064 = vld [vmem:[%s2060 + $0x20] sm:$0xff]
        %v2065 = vld [vmem:[%s2060 + $0x30] sm:$0xff]
        %v2066 = vld [vmem:[%s2060 + $0x38] sm:$0xff]
        %v2067 = vld [vmem:[%s2060 + $0x48] sm:$0xff]
        %v2068 = vld [vmem:[%s2060 + $0x50] sm:$0xff]
        %v2069 = vld [vmem:[%s2060 + $0x60] sm:$0xff]
        %v2070 = vld [vmem:[%s2060 + $0x68] sm:$0xff]
        %v2071 = vld [vmem:[%s2060 + $0x78] sm:$0xff]
        %v2072 = vld [vmem:[%s2060 + $0x80] sm:$0xff]
        %v2073 = vld [vmem:[%s2060 + $0x90] sm:$0xff]
        %v2074 = vld [vmem:[%s2060 + $0x98] sm:$0xff]
        %v2075 = vld [vmem:[%s2060 + $0xa8] sm:$0xff]
        %v2076 = vld [vmem:[%s2060 + $0xb0] sm:$0xff]
        %v2077 = vld [vmem:[%s2060 + $0xc0] sm:$0xff]
        %v2078 = vld [vmem:[%s2060 + $0xc8] sm:$0xff]
        %v2079 = vld [vmem:[%s2060 + $0xd8] sm:$0xff]
        %v2080 = vld [vmem:[%s2060 + $0xe0] sm:$0xff]
        %v2081 = vld [vmem:[%s2060 + $0xf0] sm:$0xff]
        %v2082 = vld [vmem:[%s2060 + $0xf8] sm:$0xff]
        %v2083 = vld [vmem:[%s2060 + $0x108] sm:$0xff]
        %v2084 = vld [vmem:[%s2060 + $0x110] sm:$0xff]
        %v2085 = vld [vmem:[%s2060 + $0x120] sm:$0xff]
        %v2086 = vld [vmem:[%s2060 + $0x128] sm:$0xff]
        %v2087 = vld [vmem:[%s2060 + $0x138] sm:$0xff]
        %v2088 = vld [vmem:[%s2060 + $0x140] sm:$0xff]
        %v2089 = vld [vmem:[%s2060 + $0x150] sm:$0xff]
        %v2090 = vld [vmem:[%s2060 + $0x158] sm:$0xff]
        %v2091 = vld [vmem:[%s2060 + $0x168] sm:$0xff]
        %v2092 = vld [vmem:[%s2060 + $0x170] sm:$0xff]
        %v2093 = vpack.c.bf16 %v2062, %v2061
        %v2094 = vpack.c.bf16 %v2064, %v2063
        %v2095 = vpack.c.bf16 %v2066, %v2065
        %v2096 = vpack.c.bf16 %v2068, %v2067
        %v2097 = vpack.c.bf16 %v2070, %v2069
        %v2098 = vpack.c.bf16 %v2072, %v2071
        %v2099 = vpack.c.bf16 %v2074, %v2073
        %v2100 = vpack.c.bf16 %v2076, %v2075
        %v2101 = vpack.c.bf16 %v2078, %v2077
        %v2102 = vpack.c.bf16 %v2080, %v2079
        %v2103 = vpack.c.bf16 %v2082, %v2081
        %v2104 = vpack.c.bf16 %v2084, %v2083
        %v2105 = vpack.c.bf16 %v2086, %v2085
        %v2106 = vpack.c.bf16 %v2088, %v2087
        %v2107 = vpack.c.bf16 %v2090, %v2089
        %v2108 = vpack.c.bf16 %v2092, %v2091
        %s2109 = scalar_lea.vmem [#allocation7], 384
        %v2110 = vld [vmem:[%s2109] sm:$0xf]
        %v2111 = vld [vmem:[%s2109 + $0x4] sm:$0xf]
        %v2112 = vld [vmem:[%s2109 + $0x8] sm:$0xf]
        %v2113 = vld [vmem:[%s2109 + $0xc] sm:$0xf]
        %v2114 = vld [vmem:[%s2109 + $0x10] sm:$0xf]
        %v2115 = vld [vmem:[%s2109 + $0x14] sm:$0xf]
        %v2116 = vld [vmem:[%s2109 + $0x18] sm:$0xf]
        %v2117 = vld [vmem:[%s2109 + $0x1c] sm:$0xf]
        %v2118 = vld [vmem:[%s2109 + $0x20] sm:$0xf]
        %v2119 = vld [vmem:[%s2109 + $0x24] sm:$0xf]
        %v2120 = vld [vmem:[%s2109 + $0x28] sm:$0xf]
        %v2121 = vld [vmem:[%s2109 + $0x2c] sm:$0xf]
        %v2122 = vld [vmem:[%s2109 + $0x30] sm:$0xf]
        %v2123 = vld [vmem:[%s2109 + $0x34] sm:$0xf]
        %v2124 = vld [vmem:[%s2109 + $0x38] sm:$0xf]
        %v2125 = vld [vmem:[%s2109 + $0x3c] sm:$0xf]
        %v2142 = vunpack.c.l.b16 %v2110
        %v2143 = vunpack.c.l.b16 %v2111
        %v2144 = vunpack.c.l.b16 %v2112
        %v2145 = vunpack.c.l.b16 %v2113
        %v2146 = vunpack.c.l.b16 %v2114
        %v2147 = vunpack.c.l.b16 %v2115
        %v2148 = vunpack.c.l.b16 %v2116
        %v2149 = vunpack.c.l.b16 %v2117
        %v2150 = vunpack.c.l.b16 %v2118
        %v2151 = vunpack.c.l.b16 %v2119
        %v2152 = vunpack.c.l.b16 %v2120
        %v2153 = vunpack.c.l.b16 %v2121
        %v2154 = vunpack.c.l.b16 %v2122
        %v2155 = vunpack.c.l.b16 %v2123
        %v2156 = vunpack.c.l.b16 %v2124
        %v2157 = vunpack.c.l.b16 %v2125
        %v2158 = vpack.c.b16 %v2143, %v2142
        %v2159 = vpack.c.b16 %v2145, %v2144
        %v2160 = vpack.c.b16 %v2147, %v2146
        %v2161 = vpack.c.b16 %v2149, %v2148
        %v2162 = vpack.c.b16 %v2151, %v2150
        %v2163 = vpack.c.b16 %v2153, %v2152
        %v2164 = vpack.c.b16 %v2155, %v2154
        %v2165 = vpack.c.b16 %v2157, %v2156
        %2174 = vmatpush.bf16.msra.mxu0 %v2165
        %2175 = vmatpush.bf16.msra.mxu0 %v2164
        %2176 = vmatpush.bf16.msra.mxu0 %v2163
        %2177 = vmatpush.bf16.msra.mxu0 %v2162
        %2178 = vmatpush.bf16.msra.mxu0 %v2161
        %2179 = vmatpush.bf16.msra.mxu0 %v2160
        %2180 = vmatpush.bf16.msra.mxu0 %v2159
        %2181 = vmatpush.bf16.msra.mxu0 %v2158
        %2182 = vmatmul.bf16.gmra.mxu0 %v2093
        %v2183 = vpop.f32.mrf.mxu0
        %v2184 = vadd.f32 0.0, %v2183
        %v2185 = vpop.f32.mrf.mxu0
        %v2186 = vadd.f32 0.0, %v2185
        %2187 = vmatmul.bf16.gmra.mxu0 %v2094
        %v2188 = vpop.f32.mrf.mxu0
        %v2189 = vadd.f32 0.0, %v2188
        %v2190 = vpop.f32.mrf.mxu0
        %v2191 = vadd.f32 0.0, %v2190
        %2192 = vmatmul.bf16.gmra.mxu0 %v2095
        %v2193 = vpop.f32.mrf.mxu0
        %v2194 = vadd.f32 0.0, %v2193
        %v2195 = vpop.f32.mrf.mxu0
        %v2196 = vadd.f32 0.0, %v2195
        %2197 = vmatmul.bf16.gmra.mxu0 %v2096
        %v2198 = vpop.f32.mrf.mxu0
        %v2199 = vadd.f32 0.0, %v2198
        %v2200 = vpop.f32.mrf.mxu0
        %v2201 = vadd.f32 0.0, %v2200
        %2202 = vmatmul.bf16.gmra.mxu0 %v2097
        %v2203 = vpop.f32.mrf.mxu0
        %v2204 = vadd.f32 0.0, %v2203
        %v2205 = vpop.f32.mrf.mxu0
        %v2206 = vadd.f32 0.0, %v2205
        %2207 = vmatmul.bf16.gmra.mxu0 %v2098
        %v2208 = vpop.f32.mrf.mxu0
        %v2209 = vadd.f32 0.0, %v2208
        %v2210 = vpop.f32.mrf.mxu0
        %v2211 = vadd.f32 0.0, %v2210
        %2212 = vmatmul.bf16.gmra.mxu0 %v2099
        %v2213 = vpop.f32.mrf.mxu0
        %v2214 = vadd.f32 0.0, %v2213
        %v2215 = vpop.f32.mrf.mxu0
        %v2216 = vadd.f32 0.0, %v2215
        %2217 = vmatmul.bf16.gmra.mxu0 %v2100
        %v2218 = vpop.f32.mrf.mxu0
        %v2219 = vadd.f32 0.0, %v2218
        %v2220 = vpop.f32.mrf.mxu0
        %v2221 = vadd.f32 0.0, %v2220
        %2222 = vmatmul.bf16.gmra.mxu0 %v2101
        %v2223 = vpop.f32.mrf.mxu0
        %v2224 = vadd.f32 0.0, %v2223
        %v2225 = vpop.f32.mrf.mxu0
        %v2226 = vadd.f32 0.0, %v2225
        %2227 = vmatmul.bf16.gmra.mxu0 %v2102
        %v2228 = vpop.f32.mrf.mxu0
        %v2229 = vadd.f32 0.0, %v2228
        %v2230 = vpop.f32.mrf.mxu0
        %v2231 = vadd.f32 0.0, %v2230
        %2232 = vmatmul.bf16.gmra.mxu0 %v2103
        %v2233 = vpop.f32.mrf.mxu0
        %v2234 = vadd.f32 0.0, %v2233
        %v2235 = vpop.f32.mrf.mxu0
        %v2236 = vadd.f32 0.0, %v2235
        %2237 = vmatmul.bf16.gmra.mxu0 %v2104
        %v2238 = vpop.f32.mrf.mxu0
        %v2239 = vadd.f32 0.0, %v2238
        %v2240 = vpop.f32.mrf.mxu0
        %v2241 = vadd.f32 0.0, %v2240
        %2242 = vmatmul.bf16.gmra.mxu0 %v2105
        %v2243 = vpop.f32.mrf.mxu0
        %v2244 = vadd.f32 0.0, %v2243
        %v2245 = vpop.f32.mrf.mxu0
        %v2246 = vadd.f32 0.0, %v2245
        %2247 = vmatmul.bf16.gmra.mxu0 %v2106
        %v2248 = vpop.f32.mrf.mxu0
        %v2249 = vadd.f32 0.0, %v2248
        %v2250 = vpop.f32.mrf.mxu0
        %v2251 = vadd.f32 0.0, %v2250
        %2252 = vmatmul.bf16.gmra.mxu0 %v2107
        %v2253 = vpop.f32.mrf.mxu0
        %v2254 = vadd.f32 0.0, %v2253
        %v2255 = vpop.f32.mrf.mxu0
        %v2256 = vadd.f32 0.0, %v2255
        %2257 = vmatmul.bf16.gmra.mxu0 %v2108
        %v2258 = vpop.f32.mrf.mxu0
        %v2259 = vadd.f32 0.0, %v2258
        %v2260 = vpop.f32.mrf.mxu0
        %v2261 = vadd.f32 0.0, %v2260
        %2262 = vdwg.mxu0
        %v2263 = vadd.f32 %v2028, %v2184
        %v2264 = vadd.f32 %v2029, %v2186
        %v2265 = vadd.f32 %v2030, %v2189
        %v2266 = vadd.f32 %v2031, %v2191
        %v2267 = vadd.f32 %v2032, %v2194
        %v2268 = vadd.f32 %v2033, %v2196
        %v2269 = vadd.f32 %v2034, %v2199
        %v2270 = vadd.f32 %v2035, %v2201
        %v2271 = vadd.f32 %v2036, %v2204
        %v2272 = vadd.f32 %v2037, %v2206
        %v2273 = vadd.f32 %v2038, %v2209
        %v2274 = vadd.f32 %v2039, %v2211
        %v2275 = vadd.f32 %v2040, %v2214
        %v2276 = vadd.f32 %v2041, %v2216
        %v2277 = vadd.f32 %v2042, %v2219
        %v2278 = vadd.f32 %v2043, %v2221
        %v2279 = vadd.f32 %v2044, %v2224
        %v2280 = vadd.f32 %v2045, %v2226
        %v2281 = vadd.f32 %v2046, %v2229
        %v2282 = vadd.f32 %v2047, %v2231
        %v2283 = vadd.f32 %v2048, %v2234
        %v2284 = vadd.f32 %v2049, %v2236
        %v2285 = vadd.f32 %v2050, %v2239
        %v2286 = vadd.f32 %v2051, %v2241
        %v2287 = vadd.f32 %v2052, %v2244
        %v2288 = vadd.f32 %v2053, %v2246
        %v2289 = vadd.f32 %v2054, %v2249
        %v2290 = vadd.f32 %v2055, %v2251
        %v2291 = vadd.f32 %v2056, %v2254
        %v2292 = vadd.f32 %v2057, %v2256
        %v2293 = vadd.f32 %v2058, %v2259
        %v2294 = vadd.f32 %v2059, %v2261
        %v2295 = vld [vmem:[%s2060 + $0x1] sm:$0xff]
        %v2296 = vld [vmem:[%s2060 + $0x9] sm:$0xff]
        %v2297 = vld [vmem:[%s2060 + $0x19] sm:$0xff]
        %v2298 = vld [vmem:[%s2060 + $0x21] sm:$0xff]
        %v2299 = vld [vmem:[%s2060 + $0x31] sm:$0xff]
        %v2300 = vld [vmem:[%s2060 + $0x39] sm:$0xff]
        %v2301 = vld [vmem:[%s2060 + $0x49] sm:$0xff]
        %v2302 = vld [vmem:[%s2060 + $0x51] sm:$0xff]
        %v2303 = vld [vmem:[%s2060 + $0x61] sm:$0xff]
        %v2304 = vld [vmem:[%s2060 + $0x69] sm:$0xff]
        %v2305 = vld [vmem:[%s2060 + $0x79] sm:$0xff]
        %v2306 = vld [vmem:[%s2060 + $0x81] sm:$0xff]
        %v2307 = vld [vmem:[%s2060 + $0x91] sm:$0xff]
        %v2308 = vld [vmem:[%s2060 + $0x99] sm:$0xff]
        %v2309 = vld [vmem:[%s2060 + $0xa9] sm:$0xff]
        %v2310 = vld [vmem:[%s2060 + $0xb1] sm:$0xff]
        %v2311 = vld [vmem:[%s2060 + $0xc1] sm:$0xff]
        %v2312 = vld [vmem:[%s2060 + $0xc9] sm:$0xff]
        %v2313 = vld [vmem:[%s2060 + $0xd9] sm:$0xff]
        %v2314 = vld [vmem:[%s2060 + $0xe1] sm:$0xff]
        %v2315 = vld [vmem:[%s2060 + $0xf1] sm:$0xff]
        %v2316 = vld [vmem:[%s2060 + $0xf9] sm:$0xff]
        %v2317 = vld [vmem:[%s2060 + $0x109] sm:$0xff]
        %v2318 = vld [vmem:[%s2060 + $0x111] sm:$0xff]
        %v2319 = vld [vmem:[%s2060 + $0x121] sm:$0xff]
        %v2320 = vld [vmem:[%s2060 + $0x129] sm:$0xff]
        %v2321 = vld [vmem:[%s2060 + $0x139] sm:$0xff]
        %v2322 = vld [vmem:[%s2060 + $0x141] sm:$0xff]
        %v2323 = vld [vmem:[%s2060 + $0x151] sm:$0xff]
        %v2324 = vld [vmem:[%s2060 + $0x159] sm:$0xff]
        %v2325 = vld [vmem:[%s2060 + $0x169] sm:$0xff]
        %v2326 = vld [vmem:[%s2060 + $0x171] sm:$0xff]
        %v2327 = vpack.c.bf16 %v2296, %v2295
        %v2328 = vpack.c.bf16 %v2298, %v2297
        %v2329 = vpack.c.bf16 %v2300, %v2299
        %v2330 = vpack.c.bf16 %v2302, %v2301
        %v2331 = vpack.c.bf16 %v2304, %v2303
        %v2332 = vpack.c.bf16 %v2306, %v2305
        %v2333 = vpack.c.bf16 %v2308, %v2307
        %v2334 = vpack.c.bf16 %v2310, %v2309
        %v2335 = vpack.c.bf16 %v2312, %v2311
        %v2336 = vpack.c.bf16 %v2314, %v2313
        %v2337 = vpack.c.bf16 %v2316, %v2315
        %v2338 = vpack.c.bf16 %v2318, %v2317
        %v2339 = vpack.c.bf16 %v2320, %v2319
        %v2340 = vpack.c.bf16 %v2322, %v2321
        %v2341 = vpack.c.bf16 %v2324, %v2323
        %v2342 = vpack.c.bf16 %v2326, %v2325
        %s2343 = scalar_lea.vmem [#allocation7], 448
        %v2344 = vld [vmem:[%s2343] sm:$0xf]
        %v2345 = vld [vmem:[%s2343 + $0x4] sm:$0xf]
        %v2346 = vld [vmem:[%s2343 + $0x8] sm:$0xf]
        %v2347 = vld [vmem:[%s2343 + $0xc] sm:$0xf]
        %v2348 = vld [vmem:[%s2343 + $0x10] sm:$0xf]
        %v2349 = vld [vmem:[%s2343 + $0x14] sm:$0xf]
        %v2350 = vld [vmem:[%s2343 + $0x18] sm:$0xf]
        %v2351 = vld [vmem:[%s2343 + $0x1c] sm:$0xf]
        %v2352 = vld [vmem:[%s2343 + $0x20] sm:$0xf]
        %v2353 = vld [vmem:[%s2343 + $0x24] sm:$0xf]
        %v2354 = vld [vmem:[%s2343 + $0x28] sm:$0xf]
        %v2355 = vld [vmem:[%s2343 + $0x2c] sm:$0xf]
        %v2356 = vld [vmem:[%s2343 + $0x30] sm:$0xf]
        %v2357 = vld [vmem:[%s2343 + $0x34] sm:$0xf]
        %v2358 = vld [vmem:[%s2343 + $0x38] sm:$0xf]
        %v2359 = vld [vmem:[%s2343 + $0x3c] sm:$0xf]
        %v2376 = vunpack.c.l.b16 %v2344
        %v2377 = vunpack.c.l.b16 %v2345
        %v2378 = vunpack.c.l.b16 %v2346
        %v2379 = vunpack.c.l.b16 %v2347
        %v2380 = vunpack.c.l.b16 %v2348
        %v2381 = vunpack.c.l.b16 %v2349
        %v2382 = vunpack.c.l.b16 %v2350
        %v2383 = vunpack.c.l.b16 %v2351
        %v2384 = vunpack.c.l.b16 %v2352
        %v2385 = vunpack.c.l.b16 %v2353
        %v2386 = vunpack.c.l.b16 %v2354
        %v2387 = vunpack.c.l.b16 %v2355
        %v2388 = vunpack.c.l.b16 %v2356
        %v2389 = vunpack.c.l.b16 %v2357
        %v2390 = vunpack.c.l.b16 %v2358
        %v2391 = vunpack.c.l.b16 %v2359
        %v2392 = vpack.c.b16 %v2377, %v2376
        %v2393 = vpack.c.b16 %v2379, %v2378
        %v2394 = vpack.c.b16 %v2381, %v2380
        %v2395 = vpack.c.b16 %v2383, %v2382
        %v2396 = vpack.c.b16 %v2385, %v2384
        %v2397 = vpack.c.b16 %v2387, %v2386
        %v2398 = vpack.c.b16 %v2389, %v2388
        %v2399 = vpack.c.b16 %v2391, %v2390
        %2408 = vmatpush.bf16.msra.mxu0 %v2399
        %2409 = vmatpush.bf16.msra.mxu0 %v2398
        %2410 = vmatpush.bf16.msra.mxu0 %v2397
        %2411 = vmatpush.bf16.msra.mxu0 %v2396
        %2412 = vmatpush.bf16.msra.mxu0 %v2395
        %2413 = vmatpush.bf16.msra.mxu0 %v2394
        %2414 = vmatpush.bf16.msra.mxu0 %v2393
        %2415 = vmatpush.bf16.msra.mxu0 %v2392
        %2416 = vmatmul.bf16.gmra.mxu0 %v2327
        %v2417 = vpop.f32.mrf.mxu0
        %v2418 = vadd.f32 0.0, %v2417
        %v2419 = vpop.f32.mrf.mxu0
        %v2420 = vadd.f32 0.0, %v2419
        %2421 = vmatmul.bf16.gmra.mxu0 %v2328
        %v2422 = vpop.f32.mrf.mxu0
        %v2423 = vadd.f32 0.0, %v2422
        %v2424 = vpop.f32.mrf.mxu0
        %v2425 = vadd.f32 0.0, %v2424
        %2426 = vmatmul.bf16.gmra.mxu0 %v2329
        %v2427 = vpop.f32.mrf.mxu0
        %v2428 = vadd.f32 0.0, %v2427
        %v2429 = vpop.f32.mrf.mxu0
        %v2430 = vadd.f32 0.0, %v2429
        %2431 = vmatmul.bf16.gmra.mxu0 %v2330
        %v2432 = vpop.f32.mrf.mxu0
        %v2433 = vadd.f32 0.0, %v2432
        %v2434 = vpop.f32.mrf.mxu0
        %v2435 = vadd.f32 0.0, %v2434
        %2436 = vmatmul.bf16.gmra.mxu0 %v2331
        %v2437 = vpop.f32.mrf.mxu0
        %v2438 = vadd.f32 0.0, %v2437
        %v2439 = vpop.f32.mrf.mxu0
        %v2440 = vadd.f32 0.0, %v2439
        %2441 = vmatmul.bf16.gmra.mxu0 %v2332
        %v2442 = vpop.f32.mrf.mxu0
        %v2443 = vadd.f32 0.0, %v2442
        %v2444 = vpop.f32.mrf.mxu0
        %v2445 = vadd.f32 0.0, %v2444
        %2446 = vmatmul.bf16.gmra.mxu0 %v2333
        %v2447 = vpop.f32.mrf.mxu0
        %v2448 = vadd.f32 0.0, %v2447
        %v2449 = vpop.f32.mrf.mxu0
        %v2450 = vadd.f32 0.0, %v2449
        %2451 = vmatmul.bf16.gmra.mxu0 %v2334
        %v2452 = vpop.f32.mrf.mxu0
        %v2453 = vadd.f32 0.0, %v2452
        %v2454 = vpop.f32.mrf.mxu0
        %v2455 = vadd.f32 0.0, %v2454
        %2456 = vmatmul.bf16.gmra.mxu0 %v2335
        %v2457 = vpop.f32.mrf.mxu0
        %v2458 = vadd.f32 0.0, %v2457
        %v2459 = vpop.f32.mrf.mxu0
        %v2460 = vadd.f32 0.0, %v2459
        %2461 = vmatmul.bf16.gmra.mxu0 %v2336
        %v2462 = vpop.f32.mrf.mxu0
        %v2463 = vadd.f32 0.0, %v2462
        %v2464 = vpop.f32.mrf.mxu0
        %v2465 = vadd.f32 0.0, %v2464
        %2466 = vmatmul.bf16.gmra.mxu0 %v2337
        %v2467 = vpop.f32.mrf.mxu0
        %v2468 = vadd.f32 0.0, %v2467
        %v2469 = vpop.f32.mrf.mxu0
        %v2470 = vadd.f32 0.0, %v2469
        %2471 = vmatmul.bf16.gmra.mxu0 %v2338
        %v2472 = vpop.f32.mrf.mxu0
        %v2473 = vadd.f32 0.0, %v2472
        %v2474 = vpop.f32.mrf.mxu0
        %v2475 = vadd.f32 0.0, %v2474
        %2476 = vmatmul.bf16.gmra.mxu0 %v2339
        %v2477 = vpop.f32.mrf.mxu0
        %v2478 = vadd.f32 0.0, %v2477
        %v2479 = vpop.f32.mrf.mxu0
        %v2480 = vadd.f32 0.0, %v2479
        %2481 = vmatmul.bf16.gmra.mxu0 %v2340
        %v2482 = vpop.f32.mrf.mxu0
        %v2483 = vadd.f32 0.0, %v2482
        %v2484 = vpop.f32.mrf.mxu0
        %v2485 = vadd.f32 0.0, %v2484
        %2486 = vmatmul.bf16.gmra.mxu0 %v2341
        %v2487 = vpop.f32.mrf.mxu0
        %v2488 = vadd.f32 0.0, %v2487
        %v2489 = vpop.f32.mrf.mxu0
        %v2490 = vadd.f32 0.0, %v2489
        %2491 = vmatmul.bf16.gmra.mxu0 %v2342
        %v2492 = vpop.f32.mrf.mxu0
        %v2493 = vadd.f32 0.0, %v2492
        %v2494 = vpop.f32.mrf.mxu0
        %v2495 = vadd.f32 0.0, %v2494
        %2496 = vdwg.mxu0
        %v2497 = vadd.f32 %v2263, %v2418
        %v2498 = vadd.f32 %v2264, %v2420
        %v2499 = vadd.f32 %v2265, %v2423
        %v2500 = vadd.f32 %v2266, %v2425
        %v2501 = vadd.f32 %v2267, %v2428
        %v2502 = vadd.f32 %v2268, %v2430
        %v2503 = vadd.f32 %v2269, %v2433
        %v2504 = vadd.f32 %v2270, %v2435
        %v2505 = vadd.f32 %v2271, %v2438
        %v2506 = vadd.f32 %v2272, %v2440
        %v2507 = vadd.f32 %v2273, %v2443
        %v2508 = vadd.f32 %v2274, %v2445
        %v2509 = vadd.f32 %v2275, %v2448
        %v2510 = vadd.f32 %v2276, %v2450
        %v2511 = vadd.f32 %v2277, %v2453
        %v2512 = vadd.f32 %v2278, %v2455
        %v2513 = vadd.f32 %v2279, %v2458
        %v2514 = vadd.f32 %v2280, %v2460
        %v2515 = vadd.f32 %v2281, %v2463
        %v2516 = vadd.f32 %v2282, %v2465
        %v2517 = vadd.f32 %v2283, %v2468
        %v2518 = vadd.f32 %v2284, %v2470
        %v2519 = vadd.f32 %v2285, %v2473
        %v2520 = vadd.f32 %v2286, %v2475
        %v2521 = vadd.f32 %v2287, %v2478
        %v2522 = vadd.f32 %v2288, %v2480
        %v2523 = vadd.f32 %v2289, %v2483
        %v2524 = vadd.f32 %v2290, %v2485
        %v2525 = vadd.f32 %v2291, %v2488
        %v2526 = vadd.f32 %v2292, %v2490
        %v2527 = vadd.f32 %v2293, %v2493
        %v2528 = vadd.f32 %v2294, %v2495
        %v2529 = vld [vmem:[%s2060 + $0x2] sm:$0xff]
        %v2530 = vld [vmem:[%s2060 + $0xa] sm:$0xff]
        %v2531 = vld [vmem:[%s2060 + $0x1a] sm:$0xff]
        %v2532 = vld [vmem:[%s2060 + $0x22] sm:$0xff]
        %v2533 = vld [vmem:[%s2060 + $0x32] sm:$0xff]
        %v2534 = vld [vmem:[%s2060 + $0x3a] sm:$0xff]
        %v2535 = vld [vmem:[%s2060 + $0x4a] sm:$0xff]
        %v2536 = vld [vmem:[%s2060 + $0x52] sm:$0xff]
        %v2537 = vld [vmem:[%s2060 + $0x62] sm:$0xff]
        %v2538 = vld [vmem:[%s2060 + $0x6a] sm:$0xff]
        %v2539 = vld [vmem:[%s2060 + $0x7a] sm:$0xff]
        %v2540 = vld [vmem:[%s2060 + $0x82] sm:$0xff]
        %v2541 = vld [vmem:[%s2060 + $0x92] sm:$0xff]
        %v2542 = vld [vmem:[%s2060 + $0x9a] sm:$0xff]
        %v2543 = vld [vmem:[%s2060 + $0xaa] sm:$0xff]
        %v2544 = vld [vmem:[%s2060 + $0xb2] sm:$0xff]
        %v2545 = vld [vmem:[%s2060 + $0xc2] sm:$0xff]
        %v2546 = vld [vmem:[%s2060 + $0xca] sm:$0xff]
        %v2547 = vld [vmem:[%s2060 + $0xda] sm:$0xff]
        %v2548 = vld [vmem:[%s2060 + $0xe2] sm:$0xff]
        %v2549 = vld [vmem:[%s2060 + $0xf2] sm:$0xff]
        %v2550 = vld [vmem:[%s2060 + $0xfa] sm:$0xff]
        %v2551 = vld [vmem:[%s2060 + $0x10a] sm:$0xff]
        %v2552 = vld [vmem:[%s2060 + $0x112] sm:$0xff]
        %v2553 = vld [vmem:[%s2060 + $0x122] sm:$0xff]
        %v2554 = vld [vmem:[%s2060 + $0x12a] sm:$0xff]
        %v2555 = vld [vmem:[%s2060 + $0x13a] sm:$0xff]
        %v2556 = vld [vmem:[%s2060 + $0x142] sm:$0xff]
        %v2557 = vld [vmem:[%s2060 + $0x152] sm:$0xff]
        %v2558 = vld [vmem:[%s2060 + $0x15a] sm:$0xff]
        %v2559 = vld [vmem:[%s2060 + $0x16a] sm:$0xff]
        %v2560 = vld [vmem:[%s2060 + $0x172] sm:$0xff]
        %v2561 = vpack.c.bf16 %v2530, %v2529
        %v2562 = vpack.c.bf16 %v2532, %v2531
        %v2563 = vpack.c.bf16 %v2534, %v2533
        %v2564 = vpack.c.bf16 %v2536, %v2535
        %v2565 = vpack.c.bf16 %v2538, %v2537
        %v2566 = vpack.c.bf16 %v2540, %v2539
        %v2567 = vpack.c.bf16 %v2542, %v2541
        %v2568 = vpack.c.bf16 %v2544, %v2543
        %v2569 = vpack.c.bf16 %v2546, %v2545
        %v2570 = vpack.c.bf16 %v2548, %v2547
        %v2571 = vpack.c.bf16 %v2550, %v2549
        %v2572 = vpack.c.bf16 %v2552, %v2551
        %v2573 = vpack.c.bf16 %v2554, %v2553
        %v2574 = vpack.c.bf16 %v2556, %v2555
        %v2575 = vpack.c.bf16 %v2558, %v2557
        %v2576 = vpack.c.bf16 %v2560, %v2559
        %s2577 = scalar_lea.vmem [#allocation7], 512
        %v2578 = vld [vmem:[%s2577] sm:$0xf]
        %v2579 = vld [vmem:[%s2577 + $0x4] sm:$0xf]
        %v2580 = vld [vmem:[%s2577 + $0x8] sm:$0xf]
        %v2581 = vld [vmem:[%s2577 + $0xc] sm:$0xf]
        %v2582 = vld [vmem:[%s2577 + $0x10] sm:$0xf]
        %v2583 = vld [vmem:[%s2577 + $0x14] sm:$0xf]
        %v2584 = vld [vmem:[%s2577 + $0x18] sm:$0xf]
        %v2585 = vld [vmem:[%s2577 + $0x1c] sm:$0xf]
        %v2586 = vld [vmem:[%s2577 + $0x20] sm:$0xf]
        %v2587 = vld [vmem:[%s2577 + $0x24] sm:$0xf]
        %v2588 = vld [vmem:[%s2577 + $0x28] sm:$0xf]
        %v2589 = vld [vmem:[%s2577 + $0x2c] sm:$0xf]
        %v2590 = vld [vmem:[%s2577 + $0x30] sm:$0xf]
        %v2591 = vld [vmem:[%s2577 + $0x34] sm:$0xf]
        %v2592 = vld [vmem:[%s2577 + $0x38] sm:$0xf]
        %v2593 = vld [vmem:[%s2577 + $0x3c] sm:$0xf]
        %v2610 = vunpack.c.l.b16 %v2578
        %v2611 = vunpack.c.l.b16 %v2579
        %v2612 = vunpack.c.l.b16 %v2580
        %v2613 = vunpack.c.l.b16 %v2581
        %v2614 = vunpack.c.l.b16 %v2582
        %v2615 = vunpack.c.l.b16 %v2583
        %v2616 = vunpack.c.l.b16 %v2584
        %v2617 = vunpack.c.l.b16 %v2585
        %v2618 = vunpack.c.l.b16 %v2586
        %v2619 = vunpack.c.l.b16 %v2587
        %v2620 = vunpack.c.l.b16 %v2588
        %v2621 = vunpack.c.l.b16 %v2589
        %v2622 = vunpack.c.l.b16 %v2590
        %v2623 = vunpack.c.l.b16 %v2591
        %v2624 = vunpack.c.l.b16 %v2592
        %v2625 = vunpack.c.l.b16 %v2593
        %v2626 = vpack.c.b16 %v2611, %v2610
        %v2627 = vpack.c.b16 %v2613, %v2612
        %v2628 = vpack.c.b16 %v2615, %v2614
        %v2629 = vpack.c.b16 %v2617, %v2616
        %v2630 = vpack.c.b16 %v2619, %v2618
        %v2631 = vpack.c.b16 %v2621, %v2620
        %v2632 = vpack.c.b16 %v2623, %v2622
        %v2633 = vpack.c.b16 %v2625, %v2624
        %2642 = vmatpush.bf16.msra.mxu0 %v2633
        %2643 = vmatpush.bf16.msra.mxu0 %v2632
        %2644 = vmatpush.bf16.msra.mxu0 %v2631
        %2645 = vmatpush.bf16.msra.mxu0 %v2630
        %2646 = vmatpush.bf16.msra.mxu0 %v2629
        %2647 = vmatpush.bf16.msra.mxu0 %v2628
        %2648 = vmatpush.bf16.msra.mxu0 %v2627
        %2649 = vmatpush.bf16.msra.mxu0 %v2626
        %2650 = vmatmul.bf16.gmra.mxu0 %v2561
        %v2651 = vpop.f32.mrf.mxu0
        %v2652 = vadd.f32 0.0, %v2651
        %v2653 = vpop.f32.mrf.mxu0
        %v2654 = vadd.f32 0.0, %v2653
        %2655 = vmatmul.bf16.gmra.mxu0 %v2562
        %v2656 = vpop.f32.mrf.mxu0
        %v2657 = vadd.f32 0.0, %v2656
        %v2658 = vpop.f32.mrf.mxu0
        %v2659 = vadd.f32 0.0, %v2658
        %2660 = vmatmul.bf16.gmra.mxu0 %v2563
        %v2661 = vpop.f32.mrf.mxu0
        %v2662 = vadd.f32 0.0, %v2661
        %v2663 = vpop.f32.mrf.mxu0
        %v2664 = vadd.f32 0.0, %v2663
        %2665 = vmatmul.bf16.gmra.mxu0 %v2564
        %v2666 = vpop.f32.mrf.mxu0
        %v2667 = vadd.f32 0.0, %v2666
        %v2668 = vpop.f32.mrf.mxu0
        %v2669 = vadd.f32 0.0, %v2668
        %2670 = vmatmul.bf16.gmra.mxu0 %v2565
        %v2671 = vpop.f32.mrf.mxu0
        %v2672 = vadd.f32 0.0, %v2671
        %v2673 = vpop.f32.mrf.mxu0
        %v2674 = vadd.f32 0.0, %v2673
        %2675 = vmatmul.bf16.gmra.mxu0 %v2566
        %v2676 = vpop.f32.mrf.mxu0
        %v2677 = vadd.f32 0.0, %v2676
        %v2678 = vpop.f32.mrf.mxu0
        %v2679 = vadd.f32 0.0, %v2678
        %2680 = vmatmul.bf16.gmra.mxu0 %v2567
        %v2681 = vpop.f32.mrf.mxu0
        %v2682 = vadd.f32 0.0, %v2681
        %v2683 = vpop.f32.mrf.mxu0
        %v2684 = vadd.f32 0.0, %v2683
        %2685 = vmatmul.bf16.gmra.mxu0 %v2568
        %v2686 = vpop.f32.mrf.mxu0
        %v2687 = vadd.f32 0.0, %v2686
        %v2688 = vpop.f32.mrf.mxu0
        %v2689 = vadd.f32 0.0, %v2688
        %2690 = vmatmul.bf16.gmra.mxu0 %v2569
        %v2691 = vpop.f32.mrf.mxu0
        %v2692 = vadd.f32 0.0, %v2691
        %v2693 = vpop.f32.mrf.mxu0
        %v2694 = vadd.f32 0.0, %v2693
        %2695 = vmatmul.bf16.gmra.mxu0 %v2570
        %v2696 = vpop.f32.mrf.mxu0
        %v2697 = vadd.f32 0.0, %v2696
        %v2698 = vpop.f32.mrf.mxu0
        %v2699 = vadd.f32 0.0, %v2698
        %2700 = vmatmul.bf16.gmra.mxu0 %v2571
        %v2701 = vpop.f32.mrf.mxu0
        %v2702 = vadd.f32 0.0, %v2701
        %v2703 = vpop.f32.mrf.mxu0
        %v2704 = vadd.f32 0.0, %v2703
        %2705 = vmatmul.bf16.gmra.mxu0 %v2572
        %v2706 = vpop.f32.mrf.mxu0
        %v2707 = vadd.f32 0.0, %v2706
        %v2708 = vpop.f32.mrf.mxu0
        %v2709 = vadd.f32 0.0, %v2708
        %2710 = vmatmul.bf16.gmra.mxu0 %v2573
        %v2711 = vpop.f32.mrf.mxu0
        %v2712 = vadd.f32 0.0, %v2711
        %v2713 = vpop.f32.mrf.mxu0
        %v2714 = vadd.f32 0.0, %v2713
        %2715 = vmatmul.bf16.gmra.mxu0 %v2574
        %v2716 = vpop.f32.mrf.mxu0
        %v2717 = vadd.f32 0.0, %v2716
        %v2718 = vpop.f32.mrf.mxu0
        %v2719 = vadd.f32 0.0, %v2718
        %2720 = vmatmul.bf16.gmra.mxu0 %v2575
        %v2721 = vpop.f32.mrf.mxu0
        %v2722 = vadd.f32 0.0, %v2721
        %v2723 = vpop.f32.mrf.mxu0
        %v2724 = vadd.f32 0.0, %v2723
        %2725 = vmatmul.bf16.gmra.mxu0 %v2576
        %v2726 = vpop.f32.mrf.mxu0
        %v2727 = vadd.f32 0.0, %v2726
        %v2728 = vpop.f32.mrf.mxu0
        %v2729 = vadd.f32 0.0, %v2728
        %2730 = vdwg.mxu0
        %v2731 = vadd.f32 %v2497, %v2652
        %v2732 = vadd.f32 %v2498, %v2654
        %v2733 = vadd.f32 %v2499, %v2657
        %v2734 = vadd.f32 %v2500, %v2659
        %v2735 = vadd.f32 %v2501, %v2662
        %v2736 = vadd.f32 %v2502, %v2664
        %v2737 = vadd.f32 %v2503, %v2667
        %v2738 = vadd.f32 %v2504, %v2669
        %v2739 = vadd.f32 %v2505, %v2672
        %v2740 = vadd.f32 %v2506, %v2674
        %v2741 = vadd.f32 %v2507, %v2677
        %v2742 = vadd.f32 %v2508, %v2679
        %v2743 = vadd.f32 %v2509, %v2682
        %v2744 = vadd.f32 %v2510, %v2684
        %v2745 = vadd.f32 %v2511, %v2687
        %v2746 = vadd.f32 %v2512, %v2689
        %v2747 = vadd.f32 %v2513, %v2692
        %v2748 = vadd.f32 %v2514, %v2694
        %v2749 = vadd.f32 %v2515, %v2697
        %v2750 = vadd.f32 %v2516, %v2699
        %v2751 = vadd.f32 %v2517, %v2702
        %v2752 = vadd.f32 %v2518, %v2704
        %v2753 = vadd.f32 %v2519, %v2707
        %v2754 = vadd.f32 %v2520, %v2709
        %v2755 = vadd.f32 %v2521, %v2712
        %v2756 = vadd.f32 %v2522, %v2714
        %v2757 = vadd.f32 %v2523, %v2717
        %v2758 = vadd.f32 %v2524, %v2719
        %v2759 = vadd.f32 %v2525, %v2722
        %v2760 = vadd.f32 %v2526, %v2724
        %v2761 = vadd.f32 %v2527, %v2727
        %v2762 = vadd.f32 %v2528, %v2729
        %v2763 = vld [vmem:[#allocation9] sm:$0x1]
        %v2764 = vperm.slane %v2763, 0
        %v2765 = vmul.f32 %v2731, %v2764
        %v2766 = vmul.f32 %v2732, %v2764
        %v2767 = vmul.f32 %v2733, %v2764
        %v2768 = vmul.f32 %v2734, %v2764
        %v2769 = vmul.f32 %v2735, %v2764
        %v2770 = vmul.f32 %v2736, %v2764
        %v2771 = vmul.f32 %v2737, %v2764
        %v2772 = vmul.f32 %v2738, %v2764
        %v2773 = vmul.f32 %v2739, %v2764
        %v2774 = vmul.f32 %v2740, %v2764
        %v2775 = vmul.f32 %v2741, %v2764
        %v2776 = vmul.f32 %v2742, %v2764
        %v2777 = vmul.f32 %v2743, %v2764
        %v2778 = vmul.f32 %v2744, %v2764
        %v2779 = vmul.f32 %v2745, %v2764
        %v2780 = vmul.f32 %v2746, %v2764
        %v2781 = vmul.f32 %v2747, %v2764
        %v2782 = vmul.f32 %v2748, %v2764
        %v2783 = vmul.f32 %v2749, %v2764
        %v2784 = vmul.f32 %v2750, %v2764
        %v2785 = vmul.f32 %v2751, %v2764
        %v2786 = vmul.f32 %v2752, %v2764
        %v2787 = vmul.f32 %v2753, %v2764
        %v2788 = vmul.f32 %v2754, %v2764
        %v2789 = vmul.f32 %v2755, %v2764
        %v2790 = vmul.f32 %v2756, %v2764
        %v2791 = vmul.f32 %v2757, %v2764
        %v2792 = vmul.f32 %v2758, %v2764
        %v2793 = vmul.f32 %v2759, %v2764
        %v2794 = vmul.f32 %v2760, %v2764
        %v2795 = vmul.f32 %v2761, %v2764
        %v2796 = vmul.f32 %v2762, %v2764
        %v2797 = vld [vmem:[#allocation10] sm:$0x1]
        %v2798 = vperm.slane %v2797, 0
        %v2799 = vadd.f32 %v2765, %v2798
        %v2800 = vadd.f32 %v2766, %v2798
        %v2801 = vadd.f32 %v2767, %v2798
        %v2802 = vadd.f32 %v2768, %v2798
        %v2803 = vadd.f32 %v2769, %v2798
        %v2804 = vadd.f32 %v2770, %v2798
        %v2805 = vadd.f32 %v2771, %v2798
        %v2806 = vadd.f32 %v2772, %v2798
        %v2807 = vadd.f32 %v2773, %v2798
        %v2808 = vadd.f32 %v2774, %v2798
        %v2809 = vadd.f32 %v2775, %v2798
        %v2810 = vadd.f32 %v2776, %v2798
        %v2811 = vadd.f32 %v2777, %v2798
        %v2812 = vadd.f32 %v2778, %v2798
        %v2813 = vadd.f32 %v2779, %v2798
        %v2814 = vadd.f32 %v2780, %v2798
        %v2815 = vadd.f32 %v2781, %v2798
        %v2816 = vadd.f32 %v2782, %v2798
        %v2817 = vadd.f32 %v2783, %v2798
        %v2818 = vadd.f32 %v2784, %v2798
        %v2819 = vadd.f32 %v2785, %v2798
        %v2820 = vadd.f32 %v2786, %v2798
        %v2821 = vadd.f32 %v2787, %v2798
        %v2822 = vadd.f32 %v2788, %v2798
        %v2823 = vadd.f32 %v2789, %v2798
        %v2824 = vadd.f32 %v2790, %v2798
        %v2825 = vadd.f32 %v2791, %v2798
        %v2826 = vadd.f32 %v2792, %v2798
        %v2827 = vadd.f32 %v2793, %v2798
        %v2828 = vadd.f32 %v2794, %v2798
        %v2829 = vadd.f32 %v2795, %v2798
        %v2830 = vadd.f32 %v2796, %v2798
        %v2831 = vmax.f32 %v2799, 0.0
        %v2832 = vmax.f32 %v2800, 0.0
        %v2833 = vmax.f32 %v2801, 0.0
        %v2834 = vmax.f32 %v2802, 0.0
        %v2835 = vmax.f32 %v2803, 0.0
        %v2836 = vmax.f32 %v2804, 0.0
        %v2837 = vmax.f32 %v2805, 0.0
        %v2838 = vmax.f32 %v2806, 0.0
        %v2839 = vmax.f32 %v2807, 0.0
        %v2840 = vmax.f32 %v2808, 0.0
        %v2841 = vmax.f32 %v2809, 0.0
        %v2842 = vmax.f32 %v2810, 0.0
        %v2843 = vmax.f32 %v2811, 0.0
        %v2844 = vmax.f32 %v2812, 0.0
        %v2845 = vmax.f32 %v2813, 0.0
        %v2846 = vmax.f32 %v2814, 0.0
        %v2847 = vmax.f32 %v2815, 0.0
        %v2848 = vmax.f32 %v2816, 0.0
        %v2849 = vmax.f32 %v2817, 0.0
        %v2850 = vmax.f32 %v2818, 0.0
        %v2851 = vmax.f32 %v2819, 0.0
        %v2852 = vmax.f32 %v2820, 0.0
        %v2853 = vmax.f32 %v2821, 0.0
        %v2854 = vmax.f32 %v2822, 0.0
        %v2855 = vmax.f32 %v2823, 0.0
        %v2856 = vmax.f32 %v2824, 0.0
        %v2857 = vmax.f32 %v2825, 0.0
        %v2858 = vmax.f32 %v2826, 0.0
        %v2859 = vmax.f32 %v2827, 0.0
        %v2860 = vmax.f32 %v2828, 0.0
        %v2861 = vmax.f32 %v2829, 0.0
        %v2862 = vmax.f32 %v2830, 0.0
        %v2863 = vmax.f32 %v2831, %v2833
        %v2864 = vmax.f32 %v2832, %v2834
        %v2865 = vmax.f32 %v2835, %v2837
        %v2866 = vmax.f32 %v2836, %v2838
        %v2867 = vmax.f32 %v2839, %v2841
        %v2868 = vmax.f32 %v2840, %v2842
        %v2869 = vmax.f32 %v2843, %v2845
        %v2870 = vmax.f32 %v2844, %v2846
        %v2871 = vmax.f32 %v2847, %v2849
        %v2872 = vmax.f32 %v2848, %v2850
        %v2873 = vmax.f32 %v2851, %v2853
        %v2874 = vmax.f32 %v2852, %v2854
        %v2875 = vmax.f32 %v2855, %v2857
        %v2876 = vmax.f32 %v2856, %v2858
        %v2877 = vmax.f32 %v2859, %v2861
        %v2878 = vmax.f32 %v2860, %v2862
        %2879 = vst [vmem:[#allocation2] sm:$0xff] %v2863
        %2880 = vst [vmem:[#allocation2 + $0x8] sm:$0xff] %v2864
        %2881 = vst [vmem:[#allocation2 + $0x18] sm:$0xff] %v2865
        %2882 = vst [vmem:[#allocation2 + $0x20] sm:$0xff] %v2866
        %2883 = vst [vmem:[#allocation2 + $0x30] sm:$0xff] %v2867
        %2884 = vst [vmem:[#allocation2 + $0x38] sm:$0xff] %v2868
        %2885 = vst [vmem:[#allocation2 + $0x48] sm:$0xff] %v2869
        %2886 = vst [vmem:[#allocation2 + $0x50] sm:$0xff] %v2870
        %2887 = vst [vmem:[#allocation2 + $0x60] sm:$0xff] %v2871
        %2888 = vst [vmem:[#allocation2 + $0x68] sm:$0xff] %v2872
        %2889 = vst [vmem:[#allocation2 + $0x78] sm:$0xff] %v2873
        %2890 = vst [vmem:[#allocation2 + $0x80] sm:$0xff] %v2874
        %2891 = vst [vmem:[#allocation2 + $0x90] sm:$0xff] %v2875
        %2892 = vst [vmem:[#allocation2 + $0x98] sm:$0xff] %v2876
        %2893 = vst [vmem:[#allocation2 + $0xa8] sm:$0xff] %v2877
        %2894 = vst [vmem:[#allocation2 + $0xb0] sm:$0xff] %v2878
        %v2895 = vld [vmem:[#allocation2] ss:$2 sm:$0xff]
        %s2896 = scalar_lea.vmem [#allocation2], 24
        %v2897 = vld [vmem:[%s2896] ss:$2 sm:$0xff]
        %s2898 = scalar_lea.vmem [#allocation2], 48
        %v2899 = vld [vmem:[%s2898] ss:$2 sm:$0xff]
        %s2900 = scalar_lea.vmem [#allocation2], 72
        %v2901 = vld [vmem:[%s2900] ss:$2 sm:$0xff]
        %s2902 = scalar_lea.vmem [#allocation2], 96
        %v2903 = vld [vmem:[%s2902] ss:$2 sm:$0xff]
        %s2904 = scalar_lea.vmem [#allocation2], 120
        %v2905 = vld [vmem:[%s2904] ss:$2 sm:$0xff]
        %s2906 = scalar_lea.vmem [#allocation2], 144
        %v2907 = vld [vmem:[%s2906] ss:$2 sm:$0xff]
        %s2908 = scalar_lea.vmem [#allocation2], 168
        %v2909 = vld [vmem:[%s2908] ss:$2 sm:$0xff]
        %s2910 = scalar_lea.vmem [#allocation2], 1
        %v2911 = vld [vmem:[%s2910] ss:$2 sm:$0xff]
        %s2912 = scalar_lea.vmem [#allocation2], 25
        %v2913 = vld [vmem:[%s2912] ss:$2 sm:$0xff]
        %s2914 = scalar_lea.vmem [#allocation2], 49
        %v2915 = vld [vmem:[%s2914] ss:$2 sm:$0xff]
        %s2916 = scalar_lea.vmem [#allocation2], 73
        %v2917 = vld [vmem:[%s2916] ss:$2 sm:$0xff]
        %s2918 = scalar_lea.vmem [#allocation2], 97
        %v2919 = vld [vmem:[%s2918] ss:$2 sm:$0xff]
        %s2920 = scalar_lea.vmem [#allocation2], 121
        %v2921 = vld [vmem:[%s2920] ss:$2 sm:$0xff]
        %s2922 = scalar_lea.vmem [#allocation2], 145
        %v2923 = vld [vmem:[%s2922] ss:$2 sm:$0xff]
        %s2924 = scalar_lea.vmem [#allocation2], 169
        %v2925 = vld [vmem:[%s2924] ss:$2 sm:$0xff]
        %v2926 = vmax.f32 %v2895, %v2911
        %v2927 = vmax.f32 %v2897, %v2913
        %v2928 = vmax.f32 %v2899, %v2915
        %v2929 = vmax.f32 %v2901, %v2917
        %v2930 = vmax.f32 %v2903, %v2919
        %v2931 = vmax.f32 %v2905, %v2921
        %v2932 = vmax.f32 %v2907, %v2923
        %v2933 = vmax.f32 %v2909, %v2925
        %s2934 = scalar_lea.vmem [#allocation3], 16
        %2935 = vst [vmem:[%s2934 + $0x1] sm:$0xff] %v2926
        %2936 = vst [vmem:[%s2934 + $0x11] sm:$0xff] %v2927
        %2937 = vst [vmem:[%s2934 + $0x21] sm:$0xff] %v2928
        %2938 = vst [vmem:[%s2934 + $0x31] sm:$0xff] %v2929
        %2939 = vst [vmem:[%s2934 + $0x41] sm:$0xff] %v2930
        %2940 = vst [vmem:[%s2934 + $0x51] sm:$0xff] %v2931
        %2941 = vst [vmem:[%s2934 + $0x61] sm:$0xff] %v2932
        %2942 = vst [vmem:[%s2934 + $0x71] sm:$0xff] %v2933
        %v2943 = vld [vmem:[#allocation3] sm:$0xff]
        %v2944 = vld [vmem:[#allocation3 + $0x10] sm:$0xff]
        %v2945 = vld [vmem:[#allocation3 + $0x20] sm:$0xff]
        %v2946 = vld [vmem:[#allocation3 + $0x30] sm:$0xff]
        %v2947 = vld [vmem:[#allocation3 + $0x40] sm:$0xff]
        %v2948 = vld [vmem:[#allocation3 + $0x50] sm:$0xff]
        %v2949 = vld [vmem:[#allocation3 + $0x60] sm:$0xff]
        %v2950 = vld [vmem:[#allocation3 + $0x70] sm:$0xff]
        %v2951 = vpack.c.bf16 %v2944, %v2943
        %v2952 = vpack.c.bf16 %v2946, %v2945
        %v2953 = vpack.c.bf16 %v2948, %v2947
        %v2954 = vpack.c.bf16 %v2950, %v2949
        %s2955 = scalar_lea.vmem [#allocation7], 576
        %v2956 = vld [vmem:[%s2955] sm:$0xf]
        %v2957 = vld [vmem:[%s2955 + $0x4] sm:$0xf]
        %v2958 = vld [vmem:[%s2955 + $0x8] sm:$0xf]
        %v2959 = vld [vmem:[%s2955 + $0xc] sm:$0xf]
        %v2960 = vld [vmem:[%s2955 + $0x10] sm:$0xf]
        %v2961 = vld [vmem:[%s2955 + $0x14] sm:$0xf]
        %v2962 = vld [vmem:[%s2955 + $0x18] sm:$0xf]
        %v2963 = vld [vmem:[%s2955 + $0x1c] sm:$0xf]
        %v2964 = vld [vmem:[%s2955 + $0x20] sm:$0xf]
        %v2965 = vld [vmem:[%s2955 + $0x24] sm:$0xf]
        %v2966 = vld [vmem:[%s2955 + $0x28] sm:$0xf]
        %v2967 = vld [vmem:[%s2955 + $0x2c] sm:$0xf]
        %v2968 = vld [vmem:[%s2955 + $0x30] sm:$0xf]
        %v2969 = vld [vmem:[%s2955 + $0x34] sm:$0xf]
        %v2970 = vld [vmem:[%s2955 + $0x38] sm:$0xf]
        %v2971 = vld [vmem:[%s2955 + $0x3c] sm:$0xf]
        %v2972 = vld [vmem:[#allocation3 + $0x1] sm:$0xff]
        %v2973 = vld [vmem:[#allocation3 + $0x11] sm:$0xff]
        %v2974 = vld [vmem:[#allocation3 + $0x21] sm:$0xff]
        %v2975 = vld [vmem:[#allocation3 + $0x31] sm:$0xff]
        %v2976 = vld [vmem:[#allocation3 + $0x41] sm:$0xff]
        %v2977 = vld [vmem:[#allocation3 + $0x51] sm:$0xff]
        %v2978 = vld [vmem:[#allocation3 + $0x61] sm:$0xff]
        %v2979 = vld [vmem:[#allocation3 + $0x71] sm:$0xff]
        %v2980 = vpack.c.bf16 %v2973, %v2972
        %v2981 = vpack.c.bf16 %v2975, %v2974
        %v2982 = vpack.c.bf16 %v2977, %v2976
        %v2983 = vpack.c.bf16 %v2979, %v2978
        %s2984 = scalar_lea.vmem [#allocation7], 640
        %v2985 = vld [vmem:[%s2984] sm:$0xf]
        %v2986 = vld [vmem:[%s2984 + $0x4] sm:$0xf]
        %v2987 = vld [vmem:[%s2984 + $0x8] sm:$0xf]
        %v2988 = vld [vmem:[%s2984 + $0xc] sm:$0xf]
        %v2989 = vld [vmem:[%s2984 + $0x10] sm:$0xf]
        %v2990 = vld [vmem:[%s2984 + $0x14] sm:$0xf]
        %v2991 = vld [vmem:[%s2984 + $0x18] sm:$0xf]
        %v2992 = vld [vmem:[%s2984 + $0x1c] sm:$0xf]
        %v2993 = vld [vmem:[%s2984 + $0x20] sm:$0xf]
        %v2994 = vld [vmem:[%s2984 + $0x24] sm:$0xf]
        %v2995 = vld [vmem:[%s2984 + $0x28] sm:$0xf]
        %v2996 = vld [vmem:[%s2984 + $0x2c] sm:$0xf]
        %v2997 = vld [vmem:[%s2984 + $0x30] sm:$0xf]
        %v2998 = vld [vmem:[%s2984 + $0x34] sm:$0xf]
        %v2999 = vld [vmem:[%s2984 + $0x38] sm:$0xf]
        %v3000 = vld [vmem:[%s2984 + $0x3c] sm:$0xf]
        %v3017 = vunpack.c.l.b16 %v2985
        %v3018 = vunpack.c.l.b16 %v2986
        %v3019 = vunpack.c.l.b16 %v2987
        %v3020 = vunpack.c.l.b16 %v2988
        %v3021 = vunpack.c.l.b16 %v2989
        %v3022 = vunpack.c.l.b16 %v2990
        %v3023 = vunpack.c.l.b16 %v2991
        %v3024 = vunpack.c.l.b16 %v2992
        %v3025 = vunpack.c.l.b16 %v2993
        %v3026 = vunpack.c.l.b16 %v2994
        %v3027 = vunpack.c.l.b16 %v2995
        %v3028 = vunpack.c.l.b16 %v2996
        %v3029 = vunpack.c.l.b16 %v2997
        %v3030 = vunpack.c.l.b16 %v2998
        %v3031 = vunpack.c.l.b16 %v2999
        %v3032 = vunpack.c.l.b16 %v3000
        %v3033 = vpack.c.b16 %v3018, %v3017
        %v3034 = vpack.c.b16 %v3020, %v3019
        %v3035 = vpack.c.b16 %v3022, %v3021
        %v3036 = vpack.c.b16 %v3024, %v3023
        %v3037 = vpack.c.b16 %v3026, %v3025
        %v3038 = vpack.c.b16 %v3028, %v3027
        %v3039 = vpack.c.b16 %v3030, %v3029
        %v3040 = vpack.c.b16 %v3032, %v3031
        %3049 = vmatpush.bf16.msra.mxu0 %v3040
        %3050 = vmatpush.bf16.msra.mxu0 %v3039
        %3051 = vmatpush.bf16.msra.mxu0 %v3038
        %3052 = vmatpush.bf16.msra.mxu0 %v3037
        %3053 = vmatpush.bf16.msra.mxu0 %v3036
        %3054 = vmatpush.bf16.msra.mxu0 %v3035
        %3055 = vmatpush.bf16.msra.mxu0 %v3034
        %3056 = vmatpush.bf16.msra.mxu0 %v3033
        %3057 = vmatmul.bf16.gmra.mxu0 %v2980
        %v3058 = vpop.f32.mrf.mxu0
        %v3059 = vadd.f32 0.0, %v3058
        %v3060 = vpop.f32.mrf.mxu0
        %v3061 = vadd.f32 0.0, %v3060
        %3062 = vmatmul.bf16.gmra.mxu0 %v2981
        %v3063 = vpop.f32.mrf.mxu0
        %v3064 = vadd.f32 0.0, %v3063
        %v3065 = vpop.f32.mrf.mxu0
        %v3066 = vadd.f32 0.0, %v3065
        %3067 = vmatmul.bf16.gmra.mxu0 %v2982
        %v3068 = vpop.f32.mrf.mxu0
        %v3069 = vadd.f32 0.0, %v3068
        %v3070 = vpop.f32.mrf.mxu0
        %v3071 = vadd.f32 0.0, %v3070
        %3072 = vmatmul.bf16.gmra.mxu0 %v2983
        %v3073 = vpop.f32.mrf.mxu0
        %v3074 = vadd.f32 0.0, %v3073
        %v3075 = vpop.f32.mrf.mxu0
        %v3076 = vadd.f32 0.0, %v3075
        %3077 = vdwg.mxu0
        %v3094 = vunpack.c.l.b16 %v2956
        %v3095 = vunpack.c.l.b16 %v2957
        %v3096 = vunpack.c.l.b16 %v2958
        %v3097 = vunpack.c.l.b16 %v2959
        %v3098 = vunpack.c.l.b16 %v2960
        %v3099 = vunpack.c.l.b16 %v2961
        %v3100 = vunpack.c.l.b16 %v2962
        %v3101 = vunpack.c.l.b16 %v2963
        %v3102 = vunpack.c.l.b16 %v2964
        %v3103 = vunpack.c.l.b16 %v2965
        %v3104 = vunpack.c.l.b16 %v2966
        %v3105 = vunpack.c.l.b16 %v2967
        %v3106 = vunpack.c.l.b16 %v2968
        %v3107 = vunpack.c.l.b16 %v2969
        %v3108 = vunpack.c.l.b16 %v2970
        %v3109 = vunpack.c.l.b16 %v2971
        %v3110 = vpack.c.b16 %v3095, %v3094
        %v3111 = vpack.c.b16 %v3097, %v3096
        %v3112 = vpack.c.b16 %v3099, %v3098
        %v3113 = vpack.c.b16 %v3101, %v3100
        %v3114 = vpack.c.b16 %v3103, %v3102
        %v3115 = vpack.c.b16 %v3105, %v3104
        %v3116 = vpack.c.b16 %v3107, %v3106
        %v3117 = vpack.c.b16 %v3109, %v3108
        %3126 = vmatpush.bf16.msra.mxu0 %v3117
        %3127 = vmatpush.bf16.msra.mxu0 %v3116
        %3128 = vmatpush.bf16.msra.mxu0 %v3115
        %3129 = vmatpush.bf16.msra.mxu0 %v3114
        %3130 = vmatpush.bf16.msra.mxu0 %v3113
        %3131 = vmatpush.bf16.msra.mxu0 %v3112
        %3132 = vmatpush.bf16.msra.mxu0 %v3111
        %3133 = vmatpush.bf16.msra.mxu0 %v3110
        %3134 = vmatmul.bf16.gmra.mxu0 %v2951
        %v3135 = vpop.f32.mrf.mxu0
        %v3136 = vadd.f32 %v3059, %v3135
        %v3137 = vpop.f32.mrf.mxu0
        %v3138 = vadd.f32 %v3061, %v3137
        %3139 = vmatmul.bf16.gmra.mxu0 %v2952
        %v3140 = vpop.f32.mrf.mxu0
        %v3141 = vadd.f32 %v3064, %v3140
        %v3142 = vpop.f32.mrf.mxu0
        %v3143 = vadd.f32 %v3066, %v3142
        %3144 = vmatmul.bf16.gmra.mxu0 %v2953
        %v3145 = vpop.f32.mrf.mxu0
        %v3146 = vadd.f32 %v3069, %v3145
        %v3147 = vpop.f32.mrf.mxu0
        %v3148 = vadd.f32 %v3071, %v3147
        %3149 = vmatmul.bf16.gmra.mxu0 %v2954
        %v3150 = vpop.f32.mrf.mxu0
        %v3151 = vadd.f32 %v3074, %v3150
        %v3152 = vpop.f32.mrf.mxu0
        %v3153 = vadd.f32 %v3076, %v3152
        %3154 = vdwg.mxu0
        %v3155 = vld [vmem:[#allocation3 + $0x2] sm:$0xff]
        %v3156 = vld [vmem:[#allocation3 + $0x12] sm:$0xff]
        %v3157 = vld [vmem:[#allocation3 + $0x22] sm:$0xff]
        %v3158 = vld [vmem:[#allocation3 + $0x32] sm:$0xff]
        %v3159 = vld [vmem:[#allocation3 + $0x42] sm:$0xff]
        %v3160 = vld [vmem:[#allocation3 + $0x52] sm:$0xff]
        %v3161 = vld [vmem:[#allocation3 + $0x62] sm:$0xff]
        %v3162 = vld [vmem:[#allocation3 + $0x72] sm:$0xff]
        %v3163 = vpack.c.bf16 %v3156, %v3155
        %v3164 = vpack.c.bf16 %v3158, %v3157
        %v3165 = vpack.c.bf16 %v3160, %v3159
        %v3166 = vpack.c.bf16 %v3162, %v3161
        %s3167 = scalar_lea.vmem [#allocation7], 704
        %v3168 = vld [vmem:[%s3167] sm:$0xf]
        %v3169 = vld [vmem:[%s3167 + $0x4] sm:$0xf]
        %v3170 = vld [vmem:[%s3167 + $0x8] sm:$0xf]
        %v3171 = vld [vmem:[%s3167 + $0xc] sm:$0xf]
        %v3172 = vld [vmem:[%s3167 + $0x10] sm:$0xf]
        %v3173 = vld [vmem:[%s3167 + $0x14] sm:$0xf]
        %v3174 = vld [vmem:[%s3167 + $0x18] sm:$0xf]
        %v3175 = vld [vmem:[%s3167 + $0x1c] sm:$0xf]
        %v3176 = vld [vmem:[%s3167 + $0x20] sm:$0xf]
        %v3177 = vld [vmem:[%s3167 + $0x24] sm:$0xf]
        %v3178 = vld [vmem:[%s3167 + $0x28] sm:$0xf]
        %v3179 = vld [vmem:[%s3167 + $0x2c] sm:$0xf]
        %v3180 = vld [vmem:[%s3167 + $0x30] sm:$0xf]
        %v3181 = vld [vmem:[%s3167 + $0x34] sm:$0xf]
        %v3182 = vld [vmem:[%s3167 + $0x38] sm:$0xf]
        %v3183 = vld [vmem:[%s3167 + $0x3c] sm:$0xf]
        %v3200 = vunpack.c.l.b16 %v3168
        %v3201 = vunpack.c.l.b16 %v3169
        %v3202 = vunpack.c.l.b16 %v3170
        %v3203 = vunpack.c.l.b16 %v3171
        %v3204 = vunpack.c.l.b16 %v3172
        %v3205 = vunpack.c.l.b16 %v3173
        %v3206 = vunpack.c.l.b16 %v3174
        %v3207 = vunpack.c.l.b16 %v3175
        %v3208 = vunpack.c.l.b16 %v3176
        %v3209 = vunpack.c.l.b16 %v3177
        %v3210 = vunpack.c.l.b16 %v3178
        %v3211 = vunpack.c.l.b16 %v3179
        %v3212 = vunpack.c.l.b16 %v3180
        %v3213 = vunpack.c.l.b16 %v3181
        %v3214 = vunpack.c.l.b16 %v3182
        %v3215 = vunpack.c.l.b16 %v3183
        %v3216 = vpack.c.b16 %v3201, %v3200
        %v3217 = vpack.c.b16 %v3203, %v3202
        %v3218 = vpack.c.b16 %v3205, %v3204
        %v3219 = vpack.c.b16 %v3207, %v3206
        %v3220 = vpack.c.b16 %v3209, %v3208
        %v3221 = vpack.c.b16 %v3211, %v3210
        %v3222 = vpack.c.b16 %v3213, %v3212
        %v3223 = vpack.c.b16 %v3215, %v3214
        %3232 = vmatpush.bf16.msra.mxu0 %v3223
        %3233 = vmatpush.bf16.msra.mxu0 %v3222
        %3234 = vmatpush.bf16.msra.mxu0 %v3221
        %3235 = vmatpush.bf16.msra.mxu0 %v3220
        %3236 = vmatpush.bf16.msra.mxu0 %v3219
        %3237 = vmatpush.bf16.msra.mxu0 %v3218
        %3238 = vmatpush.bf16.msra.mxu0 %v3217
        %3239 = vmatpush.bf16.msra.mxu0 %v3216
        %3240 = vmatmul.bf16.gmra.mxu0 %v3163
        %v3241 = vpop.f32.mrf.mxu0
        %v3242 = vadd.f32 0.0, %v3241
        %v3243 = vpop.f32.mrf.mxu0
        %v3244 = vadd.f32 0.0, %v3243
        %3245 = vmatmul.bf16.gmra.mxu0 %v3164
        %v3246 = vpop.f32.mrf.mxu0
        %v3247 = vadd.f32 0.0, %v3246
        %v3248 = vpop.f32.mrf.mxu0
        %v3249 = vadd.f32 0.0, %v3248
        %3250 = vmatmul.bf16.gmra.mxu0 %v3165
        %v3251 = vpop.f32.mrf.mxu0
        %v3252 = vadd.f32 0.0, %v3251
        %v3253 = vpop.f32.mrf.mxu0
        %v3254 = vadd.f32 0.0, %v3253
        %3255 = vmatmul.bf16.gmra.mxu0 %v3166
        %v3256 = vpop.f32.mrf.mxu0
        %v3257 = vadd.f32 0.0, %v3256
        %v3258 = vpop.f32.mrf.mxu0
        %v3259 = vadd.f32 0.0, %v3258
        %3260 = vdwg.mxu0
        %v3261 = vadd.f32 %v3136, %v3242
        %v3262 = vadd.f32 %v3138, %v3244
        %v3263 = vadd.f32 %v3141, %v3247
        %v3264 = vadd.f32 %v3143, %v3249
        %v3265 = vadd.f32 %v3146, %v3252
        %v3266 = vadd.f32 %v3148, %v3254
        %v3267 = vadd.f32 %v3151, %v3257
        %v3268 = vadd.f32 %v3153, %v3259
        %v3269 = vld [vmem:[%s2934] sm:$0xff]
        %v3270 = vld [vmem:[%s2934 + $0x10] sm:$0xff]
        %v3271 = vld [vmem:[%s2934 + $0x20] sm:$0xff]
        %v3272 = vld [vmem:[%s2934 + $0x30] sm:$0xff]
        %v3273 = vld [vmem:[%s2934 + $0x40] sm:$0xff]
        %v3274 = vld [vmem:[%s2934 + $0x50] sm:$0xff]
        %v3275 = vld [vmem:[%s2934 + $0x60] sm:$0xff]
        %v3276 = vld [vmem:[%s2934 + $0x70] sm:$0xff]
        %v3277 = vpack.c.bf16 %v3270, %v3269
        %v3278 = vpack.c.bf16 %v3272, %v3271
        %v3279 = vpack.c.bf16 %v3274, %v3273
        %v3280 = vpack.c.bf16 %v3276, %v3275
        %s3281 = scalar_lea.vmem [#allocation7], 768
        %v3282 = vld [vmem:[%s3281] sm:$0xf]
        %v3283 = vld [vmem:[%s3281 + $0x4] sm:$0xf]
        %v3284 = vld [vmem:[%s3281 + $0x8] sm:$0xf]
        %v3285 = vld [vmem:[%s3281 + $0xc] sm:$0xf]
        %v3286 = vld [vmem:[%s3281 + $0x10] sm:$0xf]
        %v3287 = vld [vmem:[%s3281 + $0x14] sm:$0xf]
        %v3288 = vld [vmem:[%s3281 + $0x18] sm:$0xf]
        %v3289 = vld [vmem:[%s3281 + $0x1c] sm:$0xf]
        %v3290 = vld [vmem:[%s3281 + $0x20] sm:$0xf]
        %v3291 = vld [vmem:[%s3281 + $0x24] sm:$0xf]
        %v3292 = vld [vmem:[%s3281 + $0x28] sm:$0xf]
        %v3293 = vld [vmem:[%s3281 + $0x2c] sm:$0xf]
        %v3294 = vld [vmem:[%s3281 + $0x30] sm:$0xf]
        %v3295 = vld [vmem:[%s3281 + $0x34] sm:$0xf]
        %v3296 = vld [vmem:[%s3281 + $0x38] sm:$0xf]
        %v3297 = vld [vmem:[%s3281 + $0x3c] sm:$0xf]
        %v3314 = vunpack.c.l.b16 %v3282
        %v3315 = vunpack.c.l.b16 %v3283
        %v3316 = vunpack.c.l.b16 %v3284
        %v3317 = vunpack.c.l.b16 %v3285
        %v3318 = vunpack.c.l.b16 %v3286
        %v3319 = vunpack.c.l.b16 %v3287
        %v3320 = vunpack.c.l.b16 %v3288
        %v3321 = vunpack.c.l.b16 %v3289
        %v3322 = vunpack.c.l.b16 %v3290
        %v3323 = vunpack.c.l.b16 %v3291
        %v3324 = vunpack.c.l.b16 %v3292
        %v3325 = vunpack.c.l.b16 %v3293
        %v3326 = vunpack.c.l.b16 %v3294
        %v3327 = vunpack.c.l.b16 %v3295
        %v3328 = vunpack.c.l.b16 %v3296
        %v3329 = vunpack.c.l.b16 %v3297
        %v3330 = vpack.c.b16 %v3315, %v3314
        %v3331 = vpack.c.b16 %v3317, %v3316
        %v3332 = vpack.c.b16 %v3319, %v3318
        %v3333 = vpack.c.b16 %v3321, %v3320
        %v3334 = vpack.c.b16 %v3323, %v3322
        %v3335 = vpack.c.b16 %v3325, %v3324
        %v3336 = vpack.c.b16 %v3327, %v3326
        %v3337 = vpack.c.b16 %v3329, %v3328
        %3346 = vmatpush.bf16.msra.mxu0 %v3337
        %3347 = vmatpush.bf16.msra.mxu0 %v3336
        %3348 = vmatpush.bf16.msra.mxu0 %v3335
        %3349 = vmatpush.bf16.msra.mxu0 %v3334
        %3350 = vmatpush.bf16.msra.mxu0 %v3333
        %3351 = vmatpush.bf16.msra.mxu0 %v3332
        %3352 = vmatpush.bf16.msra.mxu0 %v3331
        %3353 = vmatpush.bf16.msra.mxu0 %v3330
        %3354 = vmatmul.bf16.gmra.mxu0 %v3277
        %v3355 = vpop.f32.mrf.mxu0
        %v3356 = vadd.f32 0.0, %v3355
        %v3357 = vpop.f32.mrf.mxu0
        %v3358 = vadd.f32 0.0, %v3357
        %3359 = vmatmul.bf16.gmra.mxu0 %v3278
        %v3360 = vpop.f32.mrf.mxu0
        %v3361 = vadd.f32 0.0, %v3360
        %v3362 = vpop.f32.mrf.mxu0
        %v3363 = vadd.f32 0.0, %v3362
        %3364 = vmatmul.bf16.gmra.mxu0 %v3279
        %v3365 = vpop.f32.mrf.mxu0
        %v3366 = vadd.f32 0.0, %v3365
        %v3367 = vpop.f32.mrf.mxu0
        %v3368 = vadd.f32 0.0, %v3367
        %3369 = vmatmul.bf16.gmra.mxu0 %v3280
        %v3370 = vpop.f32.mrf.mxu0
        %v3371 = vadd.f32 0.0, %v3370
        %v3372 = vpop.f32.mrf.mxu0
        %v3373 = vadd.f32 0.0, %v3372
        %3374 = vdwg.mxu0
        %v3375 = vadd.f32 %v3261, %v3356
        %v3376 = vadd.f32 %v3262, %v3358
        %v3377 = vadd.f32 %v3263, %v3361
        %v3378 = vadd.f32 %v3264, %v3363
        %v3379 = vadd.f32 %v3265, %v3366
        %v3380 = vadd.f32 %v3266, %v3368
        %v3381 = vadd.f32 %v3267, %v3371
        %v3382 = vadd.f32 %v3268, %v3373
        %v3383 = vld [vmem:[%s2934 + $0x1] sm:$0xff]
        %v3384 = vld [vmem:[%s2934 + $0x11] sm:$0xff]
        %v3385 = vld [vmem:[%s2934 + $0x21] sm:$0xff]
        %v3386 = vld [vmem:[%s2934 + $0x31] sm:$0xff]
        %v3387 = vld [vmem:[%s2934 + $0x41] sm:$0xff]
        %v3388 = vld [vmem:[%s2934 + $0x51] sm:$0xff]
        %v3389 = vld [vmem:[%s2934 + $0x61] sm:$0xff]
        %v3390 = vld [vmem:[%s2934 + $0x71] sm:$0xff]
        %v3391 = vpack.c.bf16 %v3384, %v3383
        %v3392 = vpack.c.bf16 %v3386, %v3385
        %v3393 = vpack.c.bf16 %v3388, %v3387
        %v3394 = vpack.c.bf16 %v3390, %v3389
        %s3395 = scalar_lea.vmem [#allocation7], 832
        %v3396 = vld [vmem:[%s3395] sm:$0xf]
        %v3397 = vld [vmem:[%s3395 + $0x4] sm:$0xf]
        %v3398 = vld [vmem:[%s3395 + $0x8] sm:$0xf]
        %v3399 = vld [vmem:[%s3395 + $0xc] sm:$0xf]
        %v3400 = vld [vmem:[%s3395 + $0x10] sm:$0xf]
        %v3401 = vld [vmem:[%s3395 + $0x14] sm:$0xf]
        %v3402 = vld [vmem:[%s3395 + $0x18] sm:$0xf]
        %v3403 = vld [vmem:[%s3395 + $0x1c] sm:$0xf]
        %v3404 = vld [vmem:[%s3395 + $0x20] sm:$0xf]
        %v3405 = vld [vmem:[%s3395 + $0x24] sm:$0xf]
        %v3406 = vld [vmem:[%s3395 + $0x28] sm:$0xf]
        %v3407 = vld [vmem:[%s3395 + $0x2c] sm:$0xf]
        %v3408 = vld [vmem:[%s3395 + $0x30] sm:$0xf]
        %v3409 = vld [vmem:[%s3395 + $0x34] sm:$0xf]
        %v3410 = vld [vmem:[%s3395 + $0x38] sm:$0xf]
        %v3411 = vld [vmem:[%s3395 + $0x3c] sm:$0xf]
        %v3428 = vunpack.c.l.b16 %v3396
        %v3429 = vunpack.c.l.b16 %v3397
        %v3430 = vunpack.c.l.b16 %v3398
        %v3431 = vunpack.c.l.b16 %v3399
        %v3432 = vunpack.c.l.b16 %v3400
        %v3433 = vunpack.c.l.b16 %v3401
        %v3434 = vunpack.c.l.b16 %v3402
        %v3435 = vunpack.c.l.b16 %v3403
        %v3436 = vunpack.c.l.b16 %v3404
        %v3437 = vunpack.c.l.b16 %v3405
        %v3438 = vunpack.c.l.b16 %v3406
        %v3439 = vunpack.c.l.b16 %v3407
        %v3440 = vunpack.c.l.b16 %v3408
        %v3441 = vunpack.c.l.b16 %v3409
        %v3442 = vunpack.c.l.b16 %v3410
        %v3443 = vunpack.c.l.b16 %v3411
        %v3444 = vpack.c.b16 %v3429, %v3428
        %v3445 = vpack.c.b16 %v3431, %v3430
        %v3446 = vpack.c.b16 %v3433, %v3432
        %v3447 = vpack.c.b16 %v3435, %v3434
        %v3448 = vpack.c.b16 %v3437, %v3436
        %v3449 = vpack.c.b16 %v3439, %v3438
        %v3450 = vpack.c.b16 %v3441, %v3440
        %v3451 = vpack.c.b16 %v3443, %v3442
        %3460 = vmatpush.bf16.msra.mxu0 %v3451
        %3461 = vmatpush.bf16.msra.mxu0 %v3450
        %3462 = vmatpush.bf16.msra.mxu0 %v3449
        %3463 = vmatpush.bf16.msra.mxu0 %v3448
        %3464 = vmatpush.bf16.msra.mxu0 %v3447
        %3465 = vmatpush.bf16.msra.mxu0 %v3446
        %3466 = vmatpush.bf16.msra.mxu0 %v3445
        %3467 = vmatpush.bf16.msra.mxu0 %v3444
        %3468 = vmatmul.bf16.gmra.mxu0 %v3391
        %v3469 = vpop.f32.mrf.mxu0
        %v3470 = vadd.f32 0.0, %v3469
        %v3471 = vpop.f32.mrf.mxu0
        %v3472 = vadd.f32 0.0, %v3471
        %3473 = vmatmul.bf16.gmra.mxu0 %v3392
        %v3474 = vpop.f32.mrf.mxu0
        %v3475 = vadd.f32 0.0, %v3474
        %v3476 = vpop.f32.mrf.mxu0
        %v3477 = vadd.f32 0.0, %v3476
        %3478 = vmatmul.bf16.gmra.mxu0 %v3393
        %v3479 = vpop.f32.mrf.mxu0
        %v3480 = vadd.f32 0.0, %v3479
        %v3481 = vpop.f32.mrf.mxu0
        %v3482 = vadd.f32 0.0, %v3481
        %3483 = vmatmul.bf16.gmra.mxu0 %v3394
        %v3484 = vpop.f32.mrf.mxu0
        %v3485 = vadd.f32 0.0, %v3484
        %v3486 = vpop.f32.mrf.mxu0
        %v3487 = vadd.f32 0.0, %v3486
        %3488 = vdwg.mxu0
        %v3489 = vadd.f32 %v3375, %v3470
        %v3490 = vadd.f32 %v3376, %v3472
        %v3491 = vadd.f32 %v3377, %v3475
        %v3492 = vadd.f32 %v3378, %v3477
        %v3493 = vadd.f32 %v3379, %v3480
        %v3494 = vadd.f32 %v3380, %v3482
        %v3495 = vadd.f32 %v3381, %v3485
        %v3496 = vadd.f32 %v3382, %v3487
        %v3497 = vld [vmem:[%s2934 + $0x2] sm:$0xff]
        %v3498 = vld [vmem:[%s2934 + $0x12] sm:$0xff]
        %v3499 = vld [vmem:[%s2934 + $0x22] sm:$0xff]
        %v3500 = vld [vmem:[%s2934 + $0x32] sm:$0xff]
        %v3501 = vld [vmem:[%s2934 + $0x42] sm:$0xff]
        %v3502 = vld [vmem:[%s2934 + $0x52] sm:$0xff]
        %v3503 = vld [vmem:[%s2934 + $0x62] sm:$0xff]
        %v3504 = vld [vmem:[%s2934 + $0x72] sm:$0xff]
        %v3505 = vpack.c.bf16 %v3498, %v3497
        %v3506 = vpack.c.bf16 %v3500, %v3499
        %v3507 = vpack.c.bf16 %v3502, %v3501
        %v3508 = vpack.c.bf16 %v3504, %v3503
        %s3509 = scalar_lea.vmem [#allocation7], 896
        %v3510 = vld [vmem:[%s3509] sm:$0xf]
        %v3511 = vld [vmem:[%s3509 + $0x4] sm:$0xf]
        %v3512 = vld [vmem:[%s3509 + $0x8] sm:$0xf]
        %v3513 = vld [vmem:[%s3509 + $0xc] sm:$0xf]
        %v3514 = vld [vmem:[%s3509 + $0x10] sm:$0xf]
        %v3515 = vld [vmem:[%s3509 + $0x14] sm:$0xf]
        %v3516 = vld [vmem:[%s3509 + $0x18] sm:$0xf]
        %v3517 = vld [vmem:[%s3509 + $0x1c] sm:$0xf]
        %v3518 = vld [vmem:[%s3509 + $0x20] sm:$0xf]
        %v3519 = vld [vmem:[%s3509 + $0x24] sm:$0xf]
        %v3520 = vld [vmem:[%s3509 + $0x28] sm:$0xf]
        %v3521 = vld [vmem:[%s3509 + $0x2c] sm:$0xf]
        %v3522 = vld [vmem:[%s3509 + $0x30] sm:$0xf]
        %v3523 = vld [vmem:[%s3509 + $0x34] sm:$0xf]
        %v3524 = vld [vmem:[%s3509 + $0x38] sm:$0xf]
        %v3525 = vld [vmem:[%s3509 + $0x3c] sm:$0xf]
        %v3542 = vunpack.c.l.b16 %v3510
        %v3543 = vunpack.c.l.b16 %v3511
        %v3544 = vunpack.c.l.b16 %v3512
        %v3545 = vunpack.c.l.b16 %v3513
        %v3546 = vunpack.c.l.b16 %v3514
        %v3547 = vunpack.c.l.b16 %v3515
        %v3548 = vunpack.c.l.b16 %v3516
        %v3549 = vunpack.c.l.b16 %v3517
        %v3550 = vunpack.c.l.b16 %v3518
        %v3551 = vunpack.c.l.b16 %v3519
        %v3552 = vunpack.c.l.b16 %v3520
        %v3553 = vunpack.c.l.b16 %v3521
        %v3554 = vunpack.c.l.b16 %v3522
        %v3555 = vunpack.c.l.b16 %v3523
        %v3556 = vunpack.c.l.b16 %v3524
        %v3557 = vunpack.c.l.b16 %v3525
        %v3558 = vpack.c.b16 %v3543, %v3542
        %v3559 = vpack.c.b16 %v3545, %v3544
        %v3560 = vpack.c.b16 %v3547, %v3546
        %v3561 = vpack.c.b16 %v3549, %v3548
        %v3562 = vpack.c.b16 %v3551, %v3550
        %v3563 = vpack.c.b16 %v3553, %v3552
        %v3564 = vpack.c.b16 %v3555, %v3554
        %v3565 = vpack.c.b16 %v3557, %v3556
        %3574 = vmatpush.bf16.msra.mxu0 %v3565
        %3575 = vmatpush.bf16.msra.mxu0 %v3564
        %3576 = vmatpush.bf16.msra.mxu0 %v3563
        %3577 = vmatpush.bf16.msra.mxu0 %v3562
        %3578 = vmatpush.bf16.msra.mxu0 %v3561
        %3579 = vmatpush.bf16.msra.mxu0 %v3560
        %3580 = vmatpush.bf16.msra.mxu0 %v3559
        %3581 = vmatpush.bf16.msra.mxu0 %v3558
        %3582 = vmatmul.bf16.gmra.mxu0 %v3505
        %v3583 = vpop.f32.mrf.mxu0
        %v3584 = vadd.f32 0.0, %v3583
        %v3585 = vpop.f32.mrf.mxu0
        %v3586 = vadd.f32 0.0, %v3585
        %3587 = vmatmul.bf16.gmra.mxu0 %v3506
        %v3588 = vpop.f32.mrf.mxu0
        %v3589 = vadd.f32 0.0, %v3588
        %v3590 = vpop.f32.mrf.mxu0
        %v3591 = vadd.f32 0.0, %v3590
        %3592 = vmatmul.bf16.gmra.mxu0 %v3507
        %v3593 = vpop.f32.mrf.mxu0
        %v3594 = vadd.f32 0.0, %v3593
        %v3595 = vpop.f32.mrf.mxu0
        %v3596 = vadd.f32 0.0, %v3595
        %3597 = vmatmul.bf16.gmra.mxu0 %v3508
        %v3598 = vpop.f32.mrf.mxu0
        %v3599 = vadd.f32 0.0, %v3598
        %v3600 = vpop.f32.mrf.mxu0
        %v3601 = vadd.f32 0.0, %v3600
        %3602 = vdwg.mxu0
        %v3603 = vadd.f32 %v3489, %v3584
        %v3604 = vadd.f32 %v3490, %v3586
        %v3605 = vadd.f32 %v3491, %v3589
        %v3606 = vadd.f32 %v3492, %v3591
        %v3607 = vadd.f32 %v3493, %v3594
        %v3608 = vadd.f32 %v3494, %v3596
        %v3609 = vadd.f32 %v3495, %v3599
        %v3610 = vadd.f32 %v3496, %v3601
        %s3611 = scalar_lea.vmem [#allocation3], 32
        %v3612 = vld [vmem:[%s3611] sm:$0xff]
        %v3613 = vld [vmem:[%s3611 + $0x10] sm:$0xff]
        %v3614 = vld [vmem:[%s3611 + $0x20] sm:$0xff]
        %v3615 = vld [vmem:[%s3611 + $0x30] sm:$0xff]
        %v3616 = vld [vmem:[%s3611 + $0x40] sm:$0xff]
        %v3617 = vld [vmem:[%s3611 + $0x50] sm:$0xff]
        %v3618 = vld [vmem:[%s3611 + $0x60] sm:$0xff]
        %v3619 = vld [vmem:[%s3611 + $0x70] sm:$0xff]
        %v3620 = vpack.c.bf16 %v3613, %v3612
        %v3621 = vpack.c.bf16 %v3615, %v3614
        %v3622 = vpack.c.bf16 %v3617, %v3616
        %v3623 = vpack.c.bf16 %v3619, %v3618
        %s3624 = scalar_lea.vmem [#allocation7], 960
        %v3625 = vld [vmem:[%s3624] sm:$0xf]
        %v3626 = vld [vmem:[%s3624 + $0x4] sm:$0xf]
        %v3627 = vld [vmem:[%s3624 + $0x8] sm:$0xf]
        %v3628 = vld [vmem:[%s3624 + $0xc] sm:$0xf]
        %v3629 = vld [vmem:[%s3624 + $0x10] sm:$0xf]
        %v3630 = vld [vmem:[%s3624 + $0x14] sm:$0xf]
        %v3631 = vld [vmem:[%s3624 + $0x18] sm:$0xf]
        %v3632 = vld [vmem:[%s3624 + $0x1c] sm:$0xf]
        %v3633 = vld [vmem:[%s3624 + $0x20] sm:$0xf]
        %v3634 = vld [vmem:[%s3624 + $0x24] sm:$0xf]
        %v3635 = vld [vmem:[%s3624 + $0x28] sm:$0xf]
        %v3636 = vld [vmem:[%s3624 + $0x2c] sm:$0xf]
        %v3637 = vld [vmem:[%s3624 + $0x30] sm:$0xf]
        %v3638 = vld [vmem:[%s3624 + $0x34] sm:$0xf]
        %v3639 = vld [vmem:[%s3624 + $0x38] sm:$0xf]
        %v3640 = vld [vmem:[%s3624 + $0x3c] sm:$0xf]
        %v3657 = vunpack.c.l.b16 %v3625
        %v3658 = vunpack.c.l.b16 %v3626
        %v3659 = vunpack.c.l.b16 %v3627
        %v3660 = vunpack.c.l.b16 %v3628
        %v3661 = vunpack.c.l.b16 %v3629
        %v3662 = vunpack.c.l.b16 %v3630
        %v3663 = vunpack.c.l.b16 %v3631
        %v3664 = vunpack.c.l.b16 %v3632
        %v3665 = vunpack.c.l.b16 %v3633
        %v3666 = vunpack.c.l.b16 %v3634
        %v3667 = vunpack.c.l.b16 %v3635
        %v3668 = vunpack.c.l.b16 %v3636
        %v3669 = vunpack.c.l.b16 %v3637
        %v3670 = vunpack.c.l.b16 %v3638
        %v3671 = vunpack.c.l.b16 %v3639
        %v3672 = vunpack.c.l.b16 %v3640
        %v3673 = vpack.c.b16 %v3658, %v3657
        %v3674 = vpack.c.b16 %v3660, %v3659
        %v3675 = vpack.c.b16 %v3662, %v3661
        %v3676 = vpack.c.b16 %v3664, %v3663
        %v3677 = vpack.c.b16 %v3666, %v3665
        %v3678 = vpack.c.b16 %v3668, %v3667
        %v3679 = vpack.c.b16 %v3670, %v3669
        %v3680 = vpack.c.b16 %v3672, %v3671
        %3689 = vmatpush.bf16.msra.mxu0 %v3680
        %3690 = vmatpush.bf16.msra.mxu0 %v3679
        %3691 = vmatpush.bf16.msra.mxu0 %v3678
        %3692 = vmatpush.bf16.msra.mxu0 %v3677
        %3693 = vmatpush.bf16.msra.mxu0 %v3676
        %3694 = vmatpush.bf16.msra.mxu0 %v3675
        %3695 = vmatpush.bf16.msra.mxu0 %v3674
        %3696 = vmatpush.bf16.msra.mxu0 %v3673
        %3697 = vmatmul.bf16.gmra.mxu0 %v3620
        %v3698 = vpop.f32.mrf.mxu0
        %v3699 = vadd.f32 0.0, %v3698
        %v3700 = vpop.f32.mrf.mxu0
        %v3701 = vadd.f32 0.0, %v3700
        %3702 = vmatmul.bf16.gmra.mxu0 %v3621
        %v3703 = vpop.f32.mrf.mxu0
        %v3704 = vadd.f32 0.0, %v3703
        %v3705 = vpop.f32.mrf.mxu0
        %v3706 = vadd.f32 0.0, %v3705
        %3707 = vmatmul.bf16.gmra.mxu0 %v3622
        %v3708 = vpop.f32.mrf.mxu0
        %v3709 = vadd.f32 0.0, %v3708
        %v3710 = vpop.f32.mrf.mxu0
        %v3711 = vadd.f32 0.0, %v3710
        %3712 = vmatmul.bf16.gmra.mxu0 %v3623
        %v3713 = vpop.f32.mrf.mxu0
        %v3714 = vadd.f32 0.0, %v3713
        %v3715 = vpop.f32.mrf.mxu0
        %v3716 = vadd.f32 0.0, %v3715
        %3717 = vdwg.mxu0
        %v3718 = vadd.f32 %v3603, %v3699
        %v3719 = vadd.f32 %v3604, %v3701
        %v3720 = vadd.f32 %v3605, %v3704
        %v3721 = vadd.f32 %v3606, %v3706
        %v3722 = vadd.f32 %v3607, %v3709
        %v3723 = vadd.f32 %v3608, %v3711
        %v3724 = vadd.f32 %v3609, %v3714
        %v3725 = vadd.f32 %v3610, %v3716
        %v3726 = vld [vmem:[%s3611 + $0x1] sm:$0xff]
        %v3727 = vld [vmem:[%s3611 + $0x11] sm:$0xff]
        %v3728 = vld [vmem:[%s3611 + $0x21] sm:$0xff]
        %v3729 = vld [vmem:[%s3611 + $0x31] sm:$0xff]
        %v3730 = vld [vmem:[%s3611 + $0x41] sm:$0xff]
        %v3731 = vld [vmem:[%s3611 + $0x51] sm:$0xff]
        %v3732 = vld [vmem:[%s3611 + $0x61] sm:$0xff]
        %v3733 = vld [vmem:[%s3611 + $0x71] sm:$0xff]
        %v3734 = vpack.c.bf16 %v3727, %v3726
        %v3735 = vpack.c.bf16 %v3729, %v3728
        %v3736 = vpack.c.bf16 %v3731, %v3730
        %v3737 = vpack.c.bf16 %v3733, %v3732
        %s3738 = scalar_lea.vmem [#allocation7], 1024
        %v3739 = vld [vmem:[%s3738] sm:$0xf]
        %v3740 = vld [vmem:[%s3738 + $0x4] sm:$0xf]
        %v3741 = vld [vmem:[%s3738 + $0x8] sm:$0xf]
        %v3742 = vld [vmem:[%s3738 + $0xc] sm:$0xf]
        %v3743 = vld [vmem:[%s3738 + $0x10] sm:$0xf]
        %v3744 = vld [vmem:[%s3738 + $0x14] sm:$0xf]
        %v3745 = vld [vmem:[%s3738 + $0x18] sm:$0xf]
        %v3746 = vld [vmem:[%s3738 + $0x1c] sm:$0xf]
        %v3747 = vld [vmem:[%s3738 + $0x20] sm:$0xf]
        %v3748 = vld [vmem:[%s3738 + $0x24] sm:$0xf]
        %v3749 = vld [vmem:[%s3738 + $0x28] sm:$0xf]
        %v3750 = vld [vmem:[%s3738 + $0x2c] sm:$0xf]
        %v3751 = vld [vmem:[%s3738 + $0x30] sm:$0xf]
        %v3752 = vld [vmem:[%s3738 + $0x34] sm:$0xf]
        %v3753 = vld [vmem:[%s3738 + $0x38] sm:$0xf]
        %v3754 = vld [vmem:[%s3738 + $0x3c] sm:$0xf]
        %v3771 = vunpack.c.l.b16 %v3739
        %v3772 = vunpack.c.l.b16 %v3740
        %v3773 = vunpack.c.l.b16 %v3741
        %v3774 = vunpack.c.l.b16 %v3742
        %v3775 = vunpack.c.l.b16 %v3743
        %v3776 = vunpack.c.l.b16 %v3744
        %v3777 = vunpack.c.l.b16 %v3745
        %v3778 = vunpack.c.l.b16 %v3746
        %v3779 = vunpack.c.l.b16 %v3747
        %v3780 = vunpack.c.l.b16 %v3748
        %v3781 = vunpack.c.l.b16 %v3749
        %v3782 = vunpack.c.l.b16 %v3750
        %v3783 = vunpack.c.l.b16 %v3751
        %v3784 = vunpack.c.l.b16 %v3752
        %v3785 = vunpack.c.l.b16 %v3753
        %v3786 = vunpack.c.l.b16 %v3754
        %v3787 = vpack.c.b16 %v3772, %v3771
        %v3788 = vpack.c.b16 %v3774, %v3773
        %v3789 = vpack.c.b16 %v3776, %v3775
        %v3790 = vpack.c.b16 %v3778, %v3777
        %v3791 = vpack.c.b16 %v3780, %v3779
        %v3792 = vpack.c.b16 %v3782, %v3781
        %v3793 = vpack.c.b16 %v3784, %v3783
        %v3794 = vpack.c.b16 %v3786, %v3785
        %3803 = vmatpush.bf16.msra.mxu0 %v3794
        %3804 = vmatpush.bf16.msra.mxu0 %v3793
        %3805 = vmatpush.bf16.msra.mxu0 %v3792
        %3806 = vmatpush.bf16.msra.mxu0 %v3791
        %3807 = vmatpush.bf16.msra.mxu0 %v3790
        %3808 = vmatpush.bf16.msra.mxu0 %v3789
        %3809 = vmatpush.bf16.msra.mxu0 %v3788
        %3810 = vmatpush.bf16.msra.mxu0 %v3787
        %3811 = vmatmul.bf16.gmra.mxu0 %v3734
        %v3812 = vpop.f32.mrf.mxu0
        %v3813 = vadd.f32 0.0, %v3812
        %v3814 = vpop.f32.mrf.mxu0
        %v3815 = vadd.f32 0.0, %v3814
        %3816 = vmatmul.bf16.gmra.mxu0 %v3735
        %v3817 = vpop.f32.mrf.mxu0
        %v3818 = vadd.f32 0.0, %v3817
        %v3819 = vpop.f32.mrf.mxu0
        %v3820 = vadd.f32 0.0, %v3819
        %3821 = vmatmul.bf16.gmra.mxu0 %v3736
        %v3822 = vpop.f32.mrf.mxu0
        %v3823 = vadd.f32 0.0, %v3822
        %v3824 = vpop.f32.mrf.mxu0
        %v3825 = vadd.f32 0.0, %v3824
        %3826 = vmatmul.bf16.gmra.mxu0 %v3737
        %v3827 = vpop.f32.mrf.mxu0
        %v3828 = vadd.f32 0.0, %v3827
        %v3829 = vpop.f32.mrf.mxu0
        %v3830 = vadd.f32 0.0, %v3829
        %3831 = vdwg.mxu0
        %v3832 = vadd.f32 %v3718, %v3813
        %v3833 = vadd.f32 %v3719, %v3815
        %v3834 = vadd.f32 %v3720, %v3818
        %v3835 = vadd.f32 %v3721, %v3820
        %v3836 = vadd.f32 %v3722, %v3823
        %v3837 = vadd.f32 %v3723, %v3825
        %v3838 = vadd.f32 %v3724, %v3828
        %v3839 = vadd.f32 %v3725, %v3830
        %v3840 = vld [vmem:[%s3611 + $0x2] sm:$0xff]
        %v3841 = vld [vmem:[%s3611 + $0x12] sm:$0xff]
        %v3842 = vld [vmem:[%s3611 + $0x22] sm:$0xff]
        %v3843 = vld [vmem:[%s3611 + $0x32] sm:$0xff]
        %v3844 = vld [vmem:[%s3611 + $0x42] sm:$0xff]
        %v3845 = vld [vmem:[%s3611 + $0x52] sm:$0xff]
        %v3846 = vld [vmem:[%s3611 + $0x62] sm:$0xff]
        %v3847 = vld [vmem:[%s3611 + $0x72] sm:$0xff]
        %v3848 = vpack.c.bf16 %v3841, %v3840
        %v3849 = vpack.c.bf16 %v3843, %v3842
        %v3850 = vpack.c.bf16 %v3845, %v3844
        %v3851 = vpack.c.bf16 %v3847, %v3846
        %s3852 = scalar_lea.vmem [#allocation7], 1088
        %v3853 = vld [vmem:[%s3852] sm:$0xf]
        %v3854 = vld [vmem:[%s3852 + $0x4] sm:$0xf]
        %v3855 = vld [vmem:[%s3852 + $0x8] sm:$0xf]
        %v3856 = vld [vmem:[%s3852 + $0xc] sm:$0xf]
        %v3857 = vld [vmem:[%s3852 + $0x10] sm:$0xf]
        %v3858 = vld [vmem:[%s3852 + $0x14] sm:$0xf]
        %v3859 = vld [vmem:[%s3852 + $0x18] sm:$0xf]
        %v3860 = vld [vmem:[%s3852 + $0x1c] sm:$0xf]
        %v3861 = vld [vmem:[%s3852 + $0x20] sm:$0xf]
        %v3862 = vld [vmem:[%s3852 + $0x24] sm:$0xf]
        %v3863 = vld [vmem:[%s3852 + $0x28] sm:$0xf]
        %v3864 = vld [vmem:[%s3852 + $0x2c] sm:$0xf]
        %v3865 = vld [vmem:[%s3852 + $0x30] sm:$0xf]
        %v3866 = vld [vmem:[%s3852 + $0x34] sm:$0xf]
        %v3867 = vld [vmem:[%s3852 + $0x38] sm:$0xf]
        %v3868 = vld [vmem:[%s3852 + $0x3c] sm:$0xf]
        %v3885 = vunpack.c.l.b16 %v3853
        %v3886 = vunpack.c.l.b16 %v3854
        %v3887 = vunpack.c.l.b16 %v3855
        %v3888 = vunpack.c.l.b16 %v3856
        %v3889 = vunpack.c.l.b16 %v3857
        %v3890 = vunpack.c.l.b16 %v3858
        %v3891 = vunpack.c.l.b16 %v3859
        %v3892 = vunpack.c.l.b16 %v3860
        %v3893 = vunpack.c.l.b16 %v3861
        %v3894 = vunpack.c.l.b16 %v3862
        %v3895 = vunpack.c.l.b16 %v3863
        %v3896 = vunpack.c.l.b16 %v3864
        %v3897 = vunpack.c.l.b16 %v3865
        %v3898 = vunpack.c.l.b16 %v3866
        %v3899 = vunpack.c.l.b16 %v3867
        %v3900 = vunpack.c.l.b16 %v3868
        %v3901 = vpack.c.b16 %v3886, %v3885
        %v3902 = vpack.c.b16 %v3888, %v3887
        %v3903 = vpack.c.b16 %v3890, %v3889
        %v3904 = vpack.c.b16 %v3892, %v3891
        %v3905 = vpack.c.b16 %v3894, %v3893
        %v3906 = vpack.c.b16 %v3896, %v3895
        %v3907 = vpack.c.b16 %v3898, %v3897
        %v3908 = vpack.c.b16 %v3900, %v3899
        %3917 = vmatpush.bf16.msra.mxu0 %v3908
        %3918 = vmatpush.bf16.msra.mxu0 %v3907
        %3919 = vmatpush.bf16.msra.mxu0 %v3906
        %3920 = vmatpush.bf16.msra.mxu0 %v3905
        %3921 = vmatpush.bf16.msra.mxu0 %v3904
        %3922 = vmatpush.bf16.msra.mxu0 %v3903
        %3923 = vmatpush.bf16.msra.mxu0 %v3902
        %3924 = vmatpush.bf16.msra.mxu0 %v3901
        %3925 = vmatmul.bf16.gmra.mxu0 %v3848
        %v3926 = vpop.f32.mrf.mxu0
        %v3927 = vadd.f32 0.0, %v3926
        %v3928 = vpop.f32.mrf.mxu0
        %v3929 = vadd.f32 0.0, %v3928
        %3930 = vmatmul.bf16.gmra.mxu0 %v3849
        %v3931 = vpop.f32.mrf.mxu0
        %v3932 = vadd.f32 0.0, %v3931
        %v3933 = vpop.f32.mrf.mxu0
        %v3934 = vadd.f32 0.0, %v3933
        %3935 = vmatmul.bf16.gmra.mxu0 %v3850
        %v3936 = vpop.f32.mrf.mxu0
        %v3937 = vadd.f32 0.0, %v3936
        %v3938 = vpop.f32.mrf.mxu0
        %v3939 = vadd.f32 0.0, %v3938
        %3940 = vmatmul.bf16.gmra.mxu0 %v3851
        %v3941 = vpop.f32.mrf.mxu0
        %v3942 = vadd.f32 0.0, %v3941
        %v3943 = vpop.f32.mrf.mxu0
        %v3944 = vadd.f32 0.0, %v3943
        %3945 = vdwg.mxu0
        %v3946 = vadd.f32 %v3832, %v3927
        %v3947 = vadd.f32 %v3833, %v3929
        %v3948 = vadd.f32 %v3834, %v3932
        %v3949 = vadd.f32 %v3835, %v3934
        %v3950 = vadd.f32 %v3836, %v3937
        %v3951 = vadd.f32 %v3837, %v3939
        %v3952 = vadd.f32 %v3838, %v3942
        %v3953 = vadd.f32 %v3839, %v3944
        %v3954 = vld [vmem:[#allocation9 + $0x1] sm:$0x1]
        %v3955 = vperm.slane %v3954, 0
        %v3956 = vmul.f32 %v3946, %v3955
        %v3957 = vmul.f32 %v3947, %v3955
        %v3958 = vmul.f32 %v3948, %v3955
        %v3959 = vmul.f32 %v3949, %v3955
        %v3960 = vmul.f32 %v3950, %v3955
        %v3961 = vmul.f32 %v3951, %v3955
        %v3962 = vmul.f32 %v3952, %v3955
        %v3963 = vmul.f32 %v3953, %v3955
        %v3964 = vld [vmem:[#allocation10 + $0x1] sm:$0x1]
        %v3965 = vperm.slane %v3964, 0
        %v3966 = vadd.f32 %v3956, %v3965
        %v3967 = vadd.f32 %v3957, %v3965
        %v3968 = vadd.f32 %v3958, %v3965
        %v3969 = vadd.f32 %v3959, %v3965
        %v3970 = vadd.f32 %v3960, %v3965
        %v3971 = vadd.f32 %v3961, %v3965
        %v3972 = vadd.f32 %v3962, %v3965
        %v3973 = vadd.f32 %v3963, %v3965
        %v3974 = vmax.f32 %v3966, 0.0
        %v3975 = vmax.f32 %v3967, 0.0
        %v3976 = vmax.f32 %v3968, 0.0
        %v3977 = vmax.f32 %v3969, 0.0
        %v3978 = vmax.f32 %v3970, 0.0
        %v3979 = vmax.f32 %v3971, 0.0
        %v3980 = vmax.f32 %v3972, 0.0
        %v3981 = vmax.f32 %v3973, 0.0
        %3982 = vst [vmem:[%s2934 + $0x1] sm:$0xff] %v3974
        %3983 = vst [vmem:[%s2934 + $0x11] sm:$0xff] %v3975
        %3984 = vst [vmem:[%s2934 + $0x21] sm:$0xff] %v3976
        %3985 = vst [vmem:[%s2934 + $0x31] sm:$0xff] %v3977
        %3986 = vst [vmem:[%s2934 + $0x41] sm:$0xff] %v3978
        %3987 = vst [vmem:[%s2934 + $0x51] sm:$0xff] %v3979
        %3988 = vst [vmem:[%s2934 + $0x61] sm:$0xff] %v3980
        %3989 = vst [vmem:[%s2934 + $0x71] sm:$0xff] %v3981
        %v3990 = vld [vmem:[#allocation3] sm:$0xff]
        %v3991 = vld [vmem:[#allocation3 + $0x10] sm:$0xff]
        %v3992 = vld [vmem:[#allocation3 + $0x20] sm:$0xff]
        %v3993 = vld [vmem:[#allocation3 + $0x30] sm:$0xff]
        %v3994 = vld [vmem:[#allocation3 + $0x40] sm:$0xff]
        %v3995 = vld [vmem:[#allocation3 + $0x50] sm:$0xff]
        %v3996 = vld [vmem:[#allocation3 + $0x60] sm:$0xff]
        %v3997 = vld [vmem:[#allocation3 + $0x70] sm:$0xff]
        %v3998 = vpack.c.bf16 %v3991, %v3990
        %v3999 = vpack.c.bf16 %v3993, %v3992
        %v4000 = vpack.c.bf16 %v3995, %v3994
        %v4001 = vpack.c.bf16 %v3997, %v3996
        %s4002 = scalar_lea.vmem [#allocation7], 1152
        %v4003 = vld [vmem:[%s4002] sm:$0xf]
        %v4004 = vld [vmem:[%s4002 + $0x4] sm:$0xf]
        %v4005 = vld [vmem:[%s4002 + $0x8] sm:$0xf]
        %v4006 = vld [vmem:[%s4002 + $0xc] sm:$0xf]
        %v4007 = vld [vmem:[%s4002 + $0x10] sm:$0xf]
        %v4008 = vld [vmem:[%s4002 + $0x14] sm:$0xf]
        %v4009 = vld [vmem:[%s4002 + $0x18] sm:$0xf]
        %v4010 = vld [vmem:[%s4002 + $0x1c] sm:$0xf]
        %v4011 = vld [vmem:[%s4002 + $0x20] sm:$0xf]
        %v4012 = vld [vmem:[%s4002 + $0x24] sm:$0xf]
        %v4013 = vld [vmem:[%s4002 + $0x28] sm:$0xf]
        %v4014 = vld [vmem:[%s4002 + $0x2c] sm:$0xf]
        %v4015 = vld [vmem:[%s4002 + $0x30] sm:$0xf]
        %v4016 = vld [vmem:[%s4002 + $0x34] sm:$0xf]
        %v4017 = vld [vmem:[%s4002 + $0x38] sm:$0xf]
        %v4018 = vld [vmem:[%s4002 + $0x3c] sm:$0xf]
        %v4019 = vld [vmem:[#allocation3 + $0x1] sm:$0xff]
        %v4020 = vld [vmem:[#allocation3 + $0x11] sm:$0xff]
        %v4021 = vld [vmem:[#allocation3 + $0x21] sm:$0xff]
        %v4022 = vld [vmem:[#allocation3 + $0x31] sm:$0xff]
        %v4023 = vld [vmem:[#allocation3 + $0x41] sm:$0xff]
        %v4024 = vld [vmem:[#allocation3 + $0x51] sm:$0xff]
        %v4025 = vld [vmem:[#allocation3 + $0x61] sm:$0xff]
        %v4026 = vld [vmem:[#allocation3 + $0x71] sm:$0xff]
        %v4027 = vpack.c.bf16 %v4020, %v4019
        %v4028 = vpack.c.bf16 %v4022, %v4021
        %v4029 = vpack.c.bf16 %v4024, %v4023
        %v4030 = vpack.c.bf16 %v4026, %v4025
        %s4031 = scalar_lea.vmem [#allocation7], 1216
        %v4032 = vld [vmem:[%s4031] sm:$0xf]
        %v4033 = vld [vmem:[%s4031 + $0x4] sm:$0xf]
        %v4034 = vld [vmem:[%s4031 + $0x8] sm:$0xf]
        %v4035 = vld [vmem:[%s4031 + $0xc] sm:$0xf]
        %v4036 = vld [vmem:[%s4031 + $0x10] sm:$0xf]
        %v4037 = vld [vmem:[%s4031 + $0x14] sm:$0xf]
        %v4038 = vld [vmem:[%s4031 + $0x18] sm:$0xf]
        %v4039 = vld [vmem:[%s4031 + $0x1c] sm:$0xf]
        %v4040 = vld [vmem:[%s4031 + $0x20] sm:$0xf]
        %v4041 = vld [vmem:[%s4031 + $0x24] sm:$0xf]
        %v4042 = vld [vmem:[%s4031 + $0x28] sm:$0xf]
        %v4043 = vld [vmem:[%s4031 + $0x2c] sm:$0xf]
        %v4044 = vld [vmem:[%s4031 + $0x30] sm:$0xf]
        %v4045 = vld [vmem:[%s4031 + $0x34] sm:$0xf]
        %v4046 = vld [vmem:[%s4031 + $0x38] sm:$0xf]
        %v4047 = vld [vmem:[%s4031 + $0x3c] sm:$0xf]
        %v4064 = vunpack.c.l.b16 %v4032
        %v4065 = vunpack.c.l.b16 %v4033
        %v4066 = vunpack.c.l.b16 %v4034
        %v4067 = vunpack.c.l.b16 %v4035
        %v4068 = vunpack.c.l.b16 %v4036
        %v4069 = vunpack.c.l.b16 %v4037
        %v4070 = vunpack.c.l.b16 %v4038
        %v4071 = vunpack.c.l.b16 %v4039
        %v4072 = vunpack.c.l.b16 %v4040
        %v4073 = vunpack.c.l.b16 %v4041
        %v4074 = vunpack.c.l.b16 %v4042
        %v4075 = vunpack.c.l.b16 %v4043
        %v4076 = vunpack.c.l.b16 %v4044
        %v4077 = vunpack.c.l.b16 %v4045
        %v4078 = vunpack.c.l.b16 %v4046
        %v4079 = vunpack.c.l.b16 %v4047
        %v4080 = vpack.c.b16 %v4065, %v4064
        %v4081 = vpack.c.b16 %v4067, %v4066
        %v4082 = vpack.c.b16 %v4069, %v4068
        %v4083 = vpack.c.b16 %v4071, %v4070
        %v4084 = vpack.c.b16 %v4073, %v4072
        %v4085 = vpack.c.b16 %v4075, %v4074
        %v4086 = vpack.c.b16 %v4077, %v4076
        %v4087 = vpack.c.b16 %v4079, %v4078
        %4096 = vmatpush.bf16.msra.mxu0 %v4087
        %4097 = vmatpush.bf16.msra.mxu0 %v4086
        %4098 = vmatpush.bf16.msra.mxu0 %v4085
        %4099 = vmatpush.bf16.msra.mxu0 %v4084
        %4100 = vmatpush.bf16.msra.mxu0 %v4083
        %4101 = vmatpush.bf16.msra.mxu0 %v4082
        %4102 = vmatpush.bf16.msra.mxu0 %v4081
        %4103 = vmatpush.bf16.msra.mxu0 %v4080
        %4104 = vmatmul.bf16.gmra.mxu0 %v4027
        %v4105 = vpop.f32.mrf.mxu0
        %v4106 = vadd.f32 0.0, %v4105
        %v4107 = vpop.f32.mrf.mxu0
        %v4108 = vadd.f32 0.0, %v4107
        %4109 = vmatmul.bf16.gmra.mxu0 %v4028
        %v4110 = vpop.f32.mrf.mxu0
        %v4111 = vadd.f32 0.0, %v4110
        %v4112 = vpop.f32.mrf.mxu0
        %v4113 = vadd.f32 0.0, %v4112
        %4114 = vmatmul.bf16.gmra.mxu0 %v4029
        %v4115 = vpop.f32.mrf.mxu0
        %v4116 = vadd.f32 0.0, %v4115
        %v4117 = vpop.f32.mrf.mxu0
        %v4118 = vadd.f32 0.0, %v4117
        %4119 = vmatmul.bf16.gmra.mxu0 %v4030
        %v4120 = vpop.f32.mrf.mxu0
        %v4121 = vadd.f32 0.0, %v4120
        %v4122 = vpop.f32.mrf.mxu0
        %v4123 = vadd.f32 0.0, %v4122
        %4124 = vdwg.mxu0
        %v4141 = vunpack.c.l.b16 %v4003
        %v4142 = vunpack.c.l.b16 %v4004
        %v4143 = vunpack.c.l.b16 %v4005
        %v4144 = vunpack.c.l.b16 %v4006
        %v4145 = vunpack.c.l.b16 %v4007
        %v4146 = vunpack.c.l.b16 %v4008
        %v4147 = vunpack.c.l.b16 %v4009
        %v4148 = vunpack.c.l.b16 %v4010
        %v4149 = vunpack.c.l.b16 %v4011
        %v4150 = vunpack.c.l.b16 %v4012
        %v4151 = vunpack.c.l.b16 %v4013
        %v4152 = vunpack.c.l.b16 %v4014
        %v4153 = vunpack.c.l.b16 %v4015
        %v4154 = vunpack.c.l.b16 %v4016
        %v4155 = vunpack.c.l.b16 %v4017
        %v4156 = vunpack.c.l.b16 %v4018
        %v4157 = vpack.c.b16 %v4142, %v4141
        %v4158 = vpack.c.b16 %v4144, %v4143
        %v4159 = vpack.c.b16 %v4146, %v4145
        %v4160 = vpack.c.b16 %v4148, %v4147
        %v4161 = vpack.c.b16 %v4150, %v4149
        %v4162 = vpack.c.b16 %v4152, %v4151
        %v4163 = vpack.c.b16 %v4154, %v4153
        %v4164 = vpack.c.b16 %v4156, %v4155
        %4173 = vmatpush.bf16.msra.mxu0 %v4164
        %4174 = vmatpush.bf16.msra.mxu0 %v4163
        %4175 = vmatpush.bf16.msra.mxu0 %v4162
        %4176 = vmatpush.bf16.msra.mxu0 %v4161
        %4177 = vmatpush.bf16.msra.mxu0 %v4160
        %4178 = vmatpush.bf16.msra.mxu0 %v4159
        %4179 = vmatpush.bf16.msra.mxu0 %v4158
        %4180 = vmatpush.bf16.msra.mxu0 %v4157
        %4181 = vmatmul.bf16.gmra.mxu0 %v3998
        %v4182 = vpop.f32.mrf.mxu0
        %v4183 = vadd.f32 %v4106, %v4182
        %v4184 = vpop.f32.mrf.mxu0
        %v4185 = vadd.f32 %v4108, %v4184
        %4186 = vmatmul.bf16.gmra.mxu0 %v3999
        %v4187 = vpop.f32.mrf.mxu0
        %v4188 = vadd.f32 %v4111, %v4187
        %v4189 = vpop.f32.mrf.mxu0
        %v4190 = vadd.f32 %v4113, %v4189
        %4191 = vmatmul.bf16.gmra.mxu0 %v4000
        %v4192 = vpop.f32.mrf.mxu0
        %v4193 = vadd.f32 %v4116, %v4192
        %v4194 = vpop.f32.mrf.mxu0
        %v4195 = vadd.f32 %v4118, %v4194
        %4196 = vmatmul.bf16.gmra.mxu0 %v4001
        %v4197 = vpop.f32.mrf.mxu0
        %v4198 = vadd.f32 %v4121, %v4197
        %v4199 = vpop.f32.mrf.mxu0
        %v4200 = vadd.f32 %v4123, %v4199
        %4201 = vdwg.mxu0
        %v4202 = vld [vmem:[#allocation3 + $0x2] sm:$0xff]
        %v4203 = vld [vmem:[#allocation3 + $0x12] sm:$0xff]
        %v4204 = vld [vmem:[#allocation3 + $0x22] sm:$0xff]
        %v4205 = vld [vmem:[#allocation3 + $0x32] sm:$0xff]
        %v4206 = vld [vmem:[#allocation3 + $0x42] sm:$0xff]
        %v4207 = vld [vmem:[#allocation3 + $0x52] sm:$0xff]
        %v4208 = vld [vmem:[#allocation3 + $0x62] sm:$0xff]
        %v4209 = vld [vmem:[#allocation3 + $0x72] sm:$0xff]
        %v4210 = vpack.c.bf16 %v4203, %v4202
        %v4211 = vpack.c.bf16 %v4205, %v4204
        %v4212 = vpack.c.bf16 %v4207, %v4206
        %v4213 = vpack.c.bf16 %v4209, %v4208
        %s4214 = scalar_lea.vmem [#allocation7], 1280
        %v4215 = vld [vmem:[%s4214] sm:$0xf]
        %v4216 = vld [vmem:[%s4214 + $0x4] sm:$0xf]
        %v4217 = vld [vmem:[%s4214 + $0x8] sm:$0xf]
        %v4218 = vld [vmem:[%s4214 + $0xc] sm:$0xf]
        %v4219 = vld [vmem:[%s4214 + $0x10] sm:$0xf]
        %v4220 = vld [vmem:[%s4214 + $0x14] sm:$0xf]
        %v4221 = vld [vmem:[%s4214 + $0x18] sm:$0xf]
        %v4222 = vld [vmem:[%s4214 + $0x1c] sm:$0xf]
        %v4223 = vld [vmem:[%s4214 + $0x20] sm:$0xf]
        %v4224 = vld [vmem:[%s4214 + $0x24] sm:$0xf]
        %v4225 = vld [vmem:[%s4214 + $0x28] sm:$0xf]
        %v4226 = vld [vmem:[%s4214 + $0x2c] sm:$0xf]
        %v4227 = vld [vmem:[%s4214 + $0x30] sm:$0xf]
        %v4228 = vld [vmem:[%s4214 + $0x34] sm:$0xf]
        %v4229 = vld [vmem:[%s4214 + $0x38] sm:$0xf]
        %v4230 = vld [vmem:[%s4214 + $0x3c] sm:$0xf]
        %v4247 = vunpack.c.l.b16 %v4215
        %v4248 = vunpack.c.l.b16 %v4216
        %v4249 = vunpack.c.l.b16 %v4217
        %v4250 = vunpack.c.l.b16 %v4218
        %v4251 = vunpack.c.l.b16 %v4219
        %v4252 = vunpack.c.l.b16 %v4220
        %v4253 = vunpack.c.l.b16 %v4221
        %v4254 = vunpack.c.l.b16 %v4222
        %v4255 = vunpack.c.l.b16 %v4223
        %v4256 = vunpack.c.l.b16 %v4224
        %v4257 = vunpack.c.l.b16 %v4225
        %v4258 = vunpack.c.l.b16 %v4226
        %v4259 = vunpack.c.l.b16 %v4227
        %v4260 = vunpack.c.l.b16 %v4228
        %v4261 = vunpack.c.l.b16 %v4229
        %v4262 = vunpack.c.l.b16 %v4230
        %v4263 = vpack.c.b16 %v4248, %v4247
        %v4264 = vpack.c.b16 %v4250, %v4249
        %v4265 = vpack.c.b16 %v4252, %v4251
        %v4266 = vpack.c.b16 %v4254, %v4253
        %v4267 = vpack.c.b16 %v4256, %v4255
        %v4268 = vpack.c.b16 %v4258, %v4257
        %v4269 = vpack.c.b16 %v4260, %v4259
        %v4270 = vpack.c.b16 %v4262, %v4261
        %4279 = vmatpush.bf16.msra.mxu0 %v4270
        %4280 = vmatpush.bf16.msra.mxu0 %v4269
        %4281 = vmatpush.bf16.msra.mxu0 %v4268
        %4282 = vmatpush.bf16.msra.mxu0 %v4267
        %4283 = vmatpush.bf16.msra.mxu0 %v4266
        %4284 = vmatpush.bf16.msra.mxu0 %v4265
        %4285 = vmatpush.bf16.msra.mxu0 %v4264
        %4286 = vmatpush.bf16.msra.mxu0 %v4263
        %4287 = vmatmul.bf16.gmra.mxu0 %v4210
        %v4288 = vpop.f32.mrf.mxu0
        %v4289 = vadd.f32 0.0, %v4288
        %v4290 = vpop.f32.mrf.mxu0
        %v4291 = vadd.f32 0.0, %v4290
        %4292 = vmatmul.bf16.gmra.mxu0 %v4211
        %v4293 = vpop.f32.mrf.mxu0
        %v4294 = vadd.f32 0.0, %v4293
        %v4295 = vpop.f32.mrf.mxu0
        %v4296 = vadd.f32 0.0, %v4295
        %4297 = vmatmul.bf16.gmra.mxu0 %v4212
        %v4298 = vpop.f32.mrf.mxu0
        %v4299 = vadd.f32 0.0, %v4298
        %v4300 = vpop.f32.mrf.mxu0
        %v4301 = vadd.f32 0.0, %v4300
        %4302 = vmatmul.bf16.gmra.mxu0 %v4213
        %v4303 = vpop.f32.mrf.mxu0
        %v4304 = vadd.f32 0.0, %v4303
        %v4305 = vpop.f32.mrf.mxu0
        %v4306 = vadd.f32 0.0, %v4305
        %4307 = vdwg.mxu0
        %v4308 = vadd.f32 %v4183, %v4289
        %v4309 = vadd.f32 %v4185, %v4291
        %v4310 = vadd.f32 %v4188, %v4294
        %v4311 = vadd.f32 %v4190, %v4296
        %v4312 = vadd.f32 %v4193, %v4299
        %v4313 = vadd.f32 %v4195, %v4301
        %v4314 = vadd.f32 %v4198, %v4304
        %v4315 = vadd.f32 %v4200, %v4306
        %v4316 = vld [vmem:[%s2934] sm:$0xff]
        %v4317 = vld [vmem:[%s2934 + $0x10] sm:$0xff]
        %v4318 = vld [vmem:[%s2934 + $0x20] sm:$0xff]
        %v4319 = vld [vmem:[%s2934 + $0x30] sm:$0xff]
        %v4320 = vld [vmem:[%s2934 + $0x40] sm:$0xff]
        %v4321 = vld [vmem:[%s2934 + $0x50] sm:$0xff]
        %v4322 = vld [vmem:[%s2934 + $0x60] sm:$0xff]
        %v4323 = vld [vmem:[%s2934 + $0x70] sm:$0xff]
        %v4324 = vpack.c.bf16 %v4317, %v4316
        %v4325 = vpack.c.bf16 %v4319, %v4318
        %v4326 = vpack.c.bf16 %v4321, %v4320
        %v4327 = vpack.c.bf16 %v4323, %v4322
        %s4328 = scalar_lea.vmem [#allocation7], 1344
        %v4329 = vld [vmem:[%s4328] sm:$0xf]
        %v4330 = vld [vmem:[%s4328 + $0x4] sm:$0xf]
        %v4331 = vld [vmem:[%s4328 + $0x8] sm:$0xf]
        %v4332 = vld [vmem:[%s4328 + $0xc] sm:$0xf]
        %v4333 = vld [vmem:[%s4328 + $0x10] sm:$0xf]
        %v4334 = vld [vmem:[%s4328 + $0x14] sm:$0xf]
        %v4335 = vld [vmem:[%s4328 + $0x18] sm:$0xf]
        %v4336 = vld [vmem:[%s4328 + $0x1c] sm:$0xf]
        %v4337 = vld [vmem:[%s4328 + $0x20] sm:$0xf]
        %v4338 = vld [vmem:[%s4328 + $0x24] sm:$0xf]
        %v4339 = vld [vmem:[%s4328 + $0x28] sm:$0xf]
        %v4340 = vld [vmem:[%s4328 + $0x2c] sm:$0xf]
        %v4341 = vld [vmem:[%s4328 + $0x30] sm:$0xf]
        %v4342 = vld [vmem:[%s4328 + $0x34] sm:$0xf]
        %v4343 = vld [vmem:[%s4328 + $0x38] sm:$0xf]
        %v4344 = vld [vmem:[%s4328 + $0x3c] sm:$0xf]
        %v4361 = vunpack.c.l.b16 %v4329
        %v4362 = vunpack.c.l.b16 %v4330
        %v4363 = vunpack.c.l.b16 %v4331
        %v4364 = vunpack.c.l.b16 %v4332
        %v4365 = vunpack.c.l.b16 %v4333
        %v4366 = vunpack.c.l.b16 %v4334
        %v4367 = vunpack.c.l.b16 %v4335
        %v4368 = vunpack.c.l.b16 %v4336
        %v4369 = vunpack.c.l.b16 %v4337
        %v4370 = vunpack.c.l.b16 %v4338
        %v4371 = vunpack.c.l.b16 %v4339
        %v4372 = vunpack.c.l.b16 %v4340
        %v4373 = vunpack.c.l.b16 %v4341
        %v4374 = vunpack.c.l.b16 %v4342
        %v4375 = vunpack.c.l.b16 %v4343
        %v4376 = vunpack.c.l.b16 %v4344
        %v4377 = vpack.c.b16 %v4362, %v4361
        %v4378 = vpack.c.b16 %v4364, %v4363
        %v4379 = vpack.c.b16 %v4366, %v4365
        %v4380 = vpack.c.b16 %v4368, %v4367
        %v4381 = vpack.c.b16 %v4370, %v4369
        %v4382 = vpack.c.b16 %v4372, %v4371
        %v4383 = vpack.c.b16 %v4374, %v4373
        %v4384 = vpack.c.b16 %v4376, %v4375
        %4393 = vmatpush.bf16.msra.mxu0 %v4384
        %4394 = vmatpush.bf16.msra.mxu0 %v4383
        %4395 = vmatpush.bf16.msra.mxu0 %v4382
        %4396 = vmatpush.bf16.msra.mxu0 %v4381
        %4397 = vmatpush.bf16.msra.mxu0 %v4380
        %4398 = vmatpush.bf16.msra.mxu0 %v4379
        %4399 = vmatpush.bf16.msra.mxu0 %v4378
        %4400 = vmatpush.bf16.msra.mxu0 %v4377
        %4401 = vmatmul.bf16.gmra.mxu0 %v4324
        %v4402 = vpop.f32.mrf.mxu0
        %v4403 = vadd.f32 0.0, %v4402
        %v4404 = vpop.f32.mrf.mxu0
        %v4405 = vadd.f32 0.0, %v4404
        %4406 = vmatmul.bf16.gmra.mxu0 %v4325
        %v4407 = vpop.f32.mrf.mxu0
        %v4408 = vadd.f32 0.0, %v4407
        %v4409 = vpop.f32.mrf.mxu0
        %v4410 = vadd.f32 0.0, %v4409
        %4411 = vmatmul.bf16.gmra.mxu0 %v4326
        %v4412 = vpop.f32.mrf.mxu0
        %v4413 = vadd.f32 0.0, %v4412
        %v4414 = vpop.f32.mrf.mxu0
        %v4415 = vadd.f32 0.0, %v4414
        %4416 = vmatmul.bf16.gmra.mxu0 %v4327
        %v4417 = vpop.f32.mrf.mxu0
        %v4418 = vadd.f32 0.0, %v4417
        %v4419 = vpop.f32.mrf.mxu0
        %v4420 = vadd.f32 0.0, %v4419
        %4421 = vdwg.mxu0
        %v4422 = vadd.f32 %v4308, %v4403
        %v4423 = vadd.f32 %v4309, %v4405
        %v4424 = vadd.f32 %v4310, %v4408
        %v4425 = vadd.f32 %v4311, %v4410
        %v4426 = vadd.f32 %v4312, %v4413
        %v4427 = vadd.f32 %v4313, %v4415
        %v4428 = vadd.f32 %v4314, %v4418
        %v4429 = vadd.f32 %v4315, %v4420
        %v4430 = vld [vmem:[%s2934 + $0x1] sm:$0xff]
        %v4431 = vld [vmem:[%s2934 + $0x11] sm:$0xff]
        %v4432 = vld [vmem:[%s2934 + $0x21] sm:$0xff]
        %v4433 = vld [vmem:[%s2934 + $0x31] sm:$0xff]
        %v4434 = vld [vmem:[%s2934 + $0x41] sm:$0xff]
        %v4435 = vld [vmem:[%s2934 + $0x51] sm:$0xff]
        %v4436 = vld [vmem:[%s2934 + $0x61] sm:$0xff]
        %v4437 = vld [vmem:[%s2934 + $0x71] sm:$0xff]
        %v4438 = vpack.c.bf16 %v4431, %v4430
        %v4439 = vpack.c.bf16 %v4433, %v4432
        %v4440 = vpack.c.bf16 %v4435, %v4434
        %v4441 = vpack.c.bf16 %v4437, %v4436
        %s4442 = scalar_lea.vmem [#allocation7], 1408
        %v4443 = vld [vmem:[%s4442] sm:$0xf]
        %v4444 = vld [vmem:[%s4442 + $0x4] sm:$0xf]
        %v4445 = vld [vmem:[%s4442 + $0x8] sm:$0xf]
        %v4446 = vld [vmem:[%s4442 + $0xc] sm:$0xf]
        %v4447 = vld [vmem:[%s4442 + $0x10] sm:$0xf]
        %v4448 = vld [vmem:[%s4442 + $0x14] sm:$0xf]
        %v4449 = vld [vmem:[%s4442 + $0x18] sm:$0xf]
        %v4450 = vld [vmem:[%s4442 + $0x1c] sm:$0xf]
        %v4451 = vld [vmem:[%s4442 + $0x20] sm:$0xf]
        %v4452 = vld [vmem:[%s4442 + $0x24] sm:$0xf]
        %v4453 = vld [vmem:[%s4442 + $0x28] sm:$0xf]
        %v4454 = vld [vmem:[%s4442 + $0x2c] sm:$0xf]
        %v4455 = vld [vmem:[%s4442 + $0x30] sm:$0xf]
        %v4456 = vld [vmem:[%s4442 + $0x34] sm:$0xf]
        %v4457 = vld [vmem:[%s4442 + $0x38] sm:$0xf]
        %v4458 = vld [vmem:[%s4442 + $0x3c] sm:$0xf]
        %v4475 = vunpack.c.l.b16 %v4443
        %v4476 = vunpack.c.l.b16 %v4444
        %v4477 = vunpack.c.l.b16 %v4445
        %v4478 = vunpack.c.l.b16 %v4446
        %v4479 = vunpack.c.l.b16 %v4447
        %v4480 = vunpack.c.l.b16 %v4448
        %v4481 = vunpack.c.l.b16 %v4449
        %v4482 = vunpack.c.l.b16 %v4450
        %v4483 = vunpack.c.l.b16 %v4451
        %v4484 = vunpack.c.l.b16 %v4452
        %v4485 = vunpack.c.l.b16 %v4453
        %v4486 = vunpack.c.l.b16 %v4454
        %v4487 = vunpack.c.l.b16 %v4455
        %v4488 = vunpack.c.l.b16 %v4456
        %v4489 = vunpack.c.l.b16 %v4457
        %v4490 = vunpack.c.l.b16 %v4458
        %v4491 = vpack.c.b16 %v4476, %v4475
        %v4492 = vpack.c.b16 %v4478, %v4477
        %v4493 = vpack.c.b16 %v4480, %v4479
        %v4494 = vpack.c.b16 %v4482, %v4481
        %v4495 = vpack.c.b16 %v4484, %v4483
        %v4496 = vpack.c.b16 %v4486, %v4485
        %v4497 = vpack.c.b16 %v4488, %v4487
        %v4498 = vpack.c.b16 %v4490, %v4489
        %4507 = vmatpush.bf16.msra.mxu0 %v4498
        %4508 = vmatpush.bf16.msra.mxu0 %v4497
        %4509 = vmatpush.bf16.msra.mxu0 %v4496
        %4510 = vmatpush.bf16.msra.mxu0 %v4495
        %4511 = vmatpush.bf16.msra.mxu0 %v4494
        %4512 = vmatpush.bf16.msra.mxu0 %v4493
        %4513 = vmatpush.bf16.msra.mxu0 %v4492
        %4514 = vmatpush.bf16.msra.mxu0 %v4491
        %4515 = vmatmul.bf16.gmra.mxu0 %v4438
        %v4516 = vpop.f32.mrf.mxu0
        %v4517 = vadd.f32 0.0, %v4516
        %v4518 = vpop.f32.mrf.mxu0
        %v4519 = vadd.f32 0.0, %v4518
        %4520 = vmatmul.bf16.gmra.mxu0 %v4439
        %v4521 = vpop.f32.mrf.mxu0
        %v4522 = vadd.f32 0.0, %v4521
        %v4523 = vpop.f32.mrf.mxu0
        %v4524 = vadd.f32 0.0, %v4523
        %4525 = vmatmul.bf16.gmra.mxu0 %v4440
        %v4526 = vpop.f32.mrf.mxu0
        %v4527 = vadd.f32 0.0, %v4526
        %v4528 = vpop.f32.mrf.mxu0
        %v4529 = vadd.f32 0.0, %v4528
        %4530 = vmatmul.bf16.gmra.mxu0 %v4441
        %v4531 = vpop.f32.mrf.mxu0
        %v4532 = vadd.f32 0.0, %v4531
        %v4533 = vpop.f32.mrf.mxu0
        %v4534 = vadd.f32 0.0, %v4533
        %4535 = vdwg.mxu0
        %v4536 = vadd.f32 %v4422, %v4517
        %v4537 = vadd.f32 %v4423, %v4519
        %v4538 = vadd.f32 %v4424, %v4522
        %v4539 = vadd.f32 %v4425, %v4524
        %v4540 = vadd.f32 %v4426, %v4527
        %v4541 = vadd.f32 %v4427, %v4529
        %v4542 = vadd.f32 %v4428, %v4532
        %v4543 = vadd.f32 %v4429, %v4534
        %v4544 = vld [vmem:[%s2934 + $0x2] sm:$0xff]
        %v4545 = vld [vmem:[%s2934 + $0x12] sm:$0xff]
        %v4546 = vld [vmem:[%s2934 + $0x22] sm:$0xff]
        %v4547 = vld [vmem:[%s2934 + $0x32] sm:$0xff]
        %v4548 = vld [vmem:[%s2934 + $0x42] sm:$0xff]
        %v4549 = vld [vmem:[%s2934 + $0x52] sm:$0xff]
        %v4550 = vld [vmem:[%s2934 + $0x62] sm:$0xff]
        %v4551 = vld [vmem:[%s2934 + $0x72] sm:$0xff]
        %v4552 = vpack.c.bf16 %v4545, %v4544
        %v4553 = vpack.c.bf16 %v4547, %v4546
        %v4554 = vpack.c.bf16 %v4549, %v4548
        %v4555 = vpack.c.bf16 %v4551, %v4550
        %s4556 = scalar_lea.vmem [#allocation7], 1472
        %v4557 = vld [vmem:[%s4556] sm:$0xf]
        %v4558 = vld [vmem:[%s4556 + $0x4] sm:$0xf]
        %v4559 = vld [vmem:[%s4556 + $0x8] sm:$0xf]
        %v4560 = vld [vmem:[%s4556 + $0xc] sm:$0xf]
        %v4561 = vld [vmem:[%s4556 + $0x10] sm:$0xf]
        %v4562 = vld [vmem:[%s4556 + $0x14] sm:$0xf]
        %v4563 = vld [vmem:[%s4556 + $0x18] sm:$0xf]
        %v4564 = vld [vmem:[%s4556 + $0x1c] sm:$0xf]
        %v4565 = vld [vmem:[%s4556 + $0x20] sm:$0xf]
        %v4566 = vld [vmem:[%s4556 + $0x24] sm:$0xf]
        %v4567 = vld [vmem:[%s4556 + $0x28] sm:$0xf]
        %v4568 = vld [vmem:[%s4556 + $0x2c] sm:$0xf]
        %v4569 = vld [vmem:[%s4556 + $0x30] sm:$0xf]
        %v4570 = vld [vmem:[%s4556 + $0x34] sm:$0xf]
        %v4571 = vld [vmem:[%s4556 + $0x38] sm:$0xf]
        %v4572 = vld [vmem:[%s4556 + $0x3c] sm:$0xf]
        %v4589 = vunpack.c.l.b16 %v4557
        %v4590 = vunpack.c.l.b16 %v4558
        %v4591 = vunpack.c.l.b16 %v4559
        %v4592 = vunpack.c.l.b16 %v4560
        %v4593 = vunpack.c.l.b16 %v4561
        %v4594 = vunpack.c.l.b16 %v4562
        %v4595 = vunpack.c.l.b16 %v4563
        %v4596 = vunpack.c.l.b16 %v4564
        %v4597 = vunpack.c.l.b16 %v4565
        %v4598 = vunpack.c.l.b16 %v4566
        %v4599 = vunpack.c.l.b16 %v4567
        %v4600 = vunpack.c.l.b16 %v4568
        %v4601 = vunpack.c.l.b16 %v4569
        %v4602 = vunpack.c.l.b16 %v4570
        %v4603 = vunpack.c.l.b16 %v4571
        %v4604 = vunpack.c.l.b16 %v4572
        %v4605 = vpack.c.b16 %v4590, %v4589
        %v4606 = vpack.c.b16 %v4592, %v4591
        %v4607 = vpack.c.b16 %v4594, %v4593
        %v4608 = vpack.c.b16 %v4596, %v4595
        %v4609 = vpack.c.b16 %v4598, %v4597
        %v4610 = vpack.c.b16 %v4600, %v4599
        %v4611 = vpack.c.b16 %v4602, %v4601
        %v4612 = vpack.c.b16 %v4604, %v4603
        %4621 = vmatpush.bf16.msra.mxu0 %v4612
        %4622 = vmatpush.bf16.msra.mxu0 %v4611
        %4623 = vmatpush.bf16.msra.mxu0 %v4610
        %4624 = vmatpush.bf16.msra.mxu0 %v4609
        %4625 = vmatpush.bf16.msra.mxu0 %v4608
        %4626 = vmatpush.bf16.msra.mxu0 %v4607
        %4627 = vmatpush.bf16.msra.mxu0 %v4606
        %4628 = vmatpush.bf16.msra.mxu0 %v4605
        %4629 = vmatmul.bf16.gmra.mxu0 %v4552
        %v4630 = vpop.f32.mrf.mxu0
        %v4631 = vadd.f32 0.0, %v4630
        %v4632 = vpop.f32.mrf.mxu0
        %v4633 = vadd.f32 0.0, %v4632
        %4634 = vmatmul.bf16.gmra.mxu0 %v4553
        %v4635 = vpop.f32.mrf.mxu0
        %v4636 = vadd.f32 0.0, %v4635
        %v4637 = vpop.f32.mrf.mxu0
        %v4638 = vadd.f32 0.0, %v4637
        %4639 = vmatmul.bf16.gmra.mxu0 %v4554
        %v4640 = vpop.f32.mrf.mxu0
        %v4641 = vadd.f32 0.0, %v4640
        %v4642 = vpop.f32.mrf.mxu0
        %v4643 = vadd.f32 0.0, %v4642
        %4644 = vmatmul.bf16.gmra.mxu0 %v4555
        %v4645 = vpop.f32.mrf.mxu0
        %v4646 = vadd.f32 0.0, %v4645
        %v4647 = vpop.f32.mrf.mxu0
        %v4648 = vadd.f32 0.0, %v4647
        %4649 = vdwg.mxu0
        %v4650 = vadd.f32 %v4536, %v4631
        %v4651 = vadd.f32 %v4537, %v4633
        %v4652 = vadd.f32 %v4538, %v4636
        %v4653 = vadd.f32 %v4539, %v4638
        %v4654 = vadd.f32 %v4540, %v4641
        %v4655 = vadd.f32 %v4541, %v4643
        %v4656 = vadd.f32 %v4542, %v4646
        %v4657 = vadd.f32 %v4543, %v4648
        %v4658 = vld [vmem:[%s3611] sm:$0xff]
        %v4659 = vld [vmem:[%s3611 + $0x10] sm:$0xff]
        %v4660 = vld [vmem:[%s3611 + $0x20] sm:$0xff]
        %v4661 = vld [vmem:[%s3611 + $0x30] sm:$0xff]
        %v4662 = vld [vmem:[%s3611 + $0x40] sm:$0xff]
        %v4663 = vld [vmem:[%s3611 + $0x50] sm:$0xff]
        %v4664 = vld [vmem:[%s3611 + $0x60] sm:$0xff]
        %v4665 = vld [vmem:[%s3611 + $0x70] sm:$0xff]
        %v4666 = vpack.c.bf16 %v4659, %v4658
        %v4667 = vpack.c.bf16 %v4661, %v4660
        %v4668 = vpack.c.bf16 %v4663, %v4662
        %v4669 = vpack.c.bf16 %v4665, %v4664
        %s4670 = scalar_lea.vmem [#allocation7], 1536
        %v4671 = vld [vmem:[%s4670] sm:$0xf]
        %v4672 = vld [vmem:[%s4670 + $0x4] sm:$0xf]
        %v4673 = vld [vmem:[%s4670 + $0x8] sm:$0xf]
        %v4674 = vld [vmem:[%s4670 + $0xc] sm:$0xf]
        %v4675 = vld [vmem:[%s4670 + $0x10] sm:$0xf]
        %v4676 = vld [vmem:[%s4670 + $0x14] sm:$0xf]
        %v4677 = vld [vmem:[%s4670 + $0x18] sm:$0xf]
        %v4678 = vld [vmem:[%s4670 + $0x1c] sm:$0xf]
        %v4679 = vld [vmem:[%s4670 + $0x20] sm:$0xf]
        %v4680 = vld [vmem:[%s4670 + $0x24] sm:$0xf]
        %v4681 = vld [vmem:[%s4670 + $0x28] sm:$0xf]
        %v4682 = vld [vmem:[%s4670 + $0x2c] sm:$0xf]
        %v4683 = vld [vmem:[%s4670 + $0x30] sm:$0xf]
        %v4684 = vld [vmem:[%s4670 + $0x34] sm:$0xf]
        %v4685 = vld [vmem:[%s4670 + $0x38] sm:$0xf]
        %v4686 = vld [vmem:[%s4670 + $0x3c] sm:$0xf]
        %v4703 = vunpack.c.l.b16 %v4671
        %v4704 = vunpack.c.l.b16 %v4672
        %v4705 = vunpack.c.l.b16 %v4673
        %v4706 = vunpack.c.l.b16 %v4674
        %v4707 = vunpack.c.l.b16 %v4675
        %v4708 = vunpack.c.l.b16 %v4676
        %v4709 = vunpack.c.l.b16 %v4677
        %v4710 = vunpack.c.l.b16 %v4678
        %v4711 = vunpack.c.l.b16 %v4679
        %v4712 = vunpack.c.l.b16 %v4680
        %v4713 = vunpack.c.l.b16 %v4681
        %v4714 = vunpack.c.l.b16 %v4682
        %v4715 = vunpack.c.l.b16 %v4683
        %v4716 = vunpack.c.l.b16 %v4684
        %v4717 = vunpack.c.l.b16 %v4685
        %v4718 = vunpack.c.l.b16 %v4686
        %v4719 = vpack.c.b16 %v4704, %v4703
        %v4720 = vpack.c.b16 %v4706, %v4705
        %v4721 = vpack.c.b16 %v4708, %v4707
        %v4722 = vpack.c.b16 %v4710, %v4709
        %v4723 = vpack.c.b16 %v4712, %v4711
        %v4724 = vpack.c.b16 %v4714, %v4713
        %v4725 = vpack.c.b16 %v4716, %v4715
        %v4726 = vpack.c.b16 %v4718, %v4717
        %4735 = vmatpush.bf16.msra.mxu0 %v4726
        %4736 = vmatpush.bf16.msra.mxu0 %v4725
        %4737 = vmatpush.bf16.msra.mxu0 %v4724
        %4738 = vmatpush.bf16.msra.mxu0 %v4723
        %4739 = vmatpush.bf16.msra.mxu0 %v4722
        %4740 = vmatpush.bf16.msra.mxu0 %v4721
        %4741 = vmatpush.bf16.msra.mxu0 %v4720
        %4742 = vmatpush.bf16.msra.mxu0 %v4719
        %4743 = vmatmul.bf16.gmra.mxu0 %v4666
        %v4744 = vpop.f32.mrf.mxu0
        %v4745 = vadd.f32 0.0, %v4744
        %v4746 = vpop.f32.mrf.mxu0
        %v4747 = vadd.f32 0.0, %v4746
        %4748 = vmatmul.bf16.gmra.mxu0 %v4667
        %v4749 = vpop.f32.mrf.mxu0
        %v4750 = vadd.f32 0.0, %v4749
        %v4751 = vpop.f32.mrf.mxu0
        %v4752 = vadd.f32 0.0, %v4751
        %4753 = vmatmul.bf16.gmra.mxu0 %v4668
        %v4754 = vpop.f32.mrf.mxu0
        %v4755 = vadd.f32 0.0, %v4754
        %v4756 = vpop.f32.mrf.mxu0
        %v4757 = vadd.f32 0.0, %v4756
        %4758 = vmatmul.bf16.gmra.mxu0 %v4669
        %v4759 = vpop.f32.mrf.mxu0
        %v4760 = vadd.f32 0.0, %v4759
        %v4761 = vpop.f32.mrf.mxu0
        %v4762 = vadd.f32 0.0, %v4761
        %4763 = vdwg.mxu0
        %v4764 = vadd.f32 %v4650, %v4745
        %v4765 = vadd.f32 %v4651, %v4747
        %v4766 = vadd.f32 %v4652, %v4750
        %v4767 = vadd.f32 %v4653, %v4752
        %v4768 = vadd.f32 %v4654, %v4755
        %v4769 = vadd.f32 %v4655, %v4757
        %v4770 = vadd.f32 %v4656, %v4760
        %v4771 = vadd.f32 %v4657, %v4762
        %v4772 = vld [vmem:[%s3611 + $0x1] sm:$0xff]
        %v4773 = vld [vmem:[%s3611 + $0x11] sm:$0xff]
        %v4774 = vld [vmem:[%s3611 + $0x21] sm:$0xff]
        %v4775 = vld [vmem:[%s3611 + $0x31] sm:$0xff]
        %v4776 = vld [vmem:[%s3611 + $0x41] sm:$0xff]
        %v4777 = vld [vmem:[%s3611 + $0x51] sm:$0xff]
        %v4778 = vld [vmem:[%s3611 + $0x61] sm:$0xff]
        %v4779 = vld [vmem:[%s3611 + $0x71] sm:$0xff]
        %v4780 = vpack.c.bf16 %v4773, %v4772
        %v4781 = vpack.c.bf16 %v4775, %v4774
        %v4782 = vpack.c.bf16 %v4777, %v4776
        %v4783 = vpack.c.bf16 %v4779, %v4778
        %s4784 = scalar_lea.vmem [#allocation7], 1600
        %v4785 = vld [vmem:[%s4784] sm:$0xf]
        %v4786 = vld [vmem:[%s4784 + $0x4] sm:$0xf]
        %v4787 = vld [vmem:[%s4784 + $0x8] sm:$0xf]
        %v4788 = vld [vmem:[%s4784 + $0xc] sm:$0xf]
        %v4789 = vld [vmem:[%s4784 + $0x10] sm:$0xf]
        %v4790 = vld [vmem:[%s4784 + $0x14] sm:$0xf]
        %v4791 = vld [vmem:[%s4784 + $0x18] sm:$0xf]
        %v4792 = vld [vmem:[%s4784 + $0x1c] sm:$0xf]
        %v4793 = vld [vmem:[%s4784 + $0x20] sm:$0xf]
        %v4794 = vld [vmem:[%s4784 + $0x24] sm:$0xf]
        %v4795 = vld [vmem:[%s4784 + $0x28] sm:$0xf]
        %v4796 = vld [vmem:[%s4784 + $0x2c] sm:$0xf]
        %v4797 = vld [vmem:[%s4784 + $0x30] sm:$0xf]
        %v4798 = vld [vmem:[%s4784 + $0x34] sm:$0xf]
        %v4799 = vld [vmem:[%s4784 + $0x38] sm:$0xf]
        %v4800 = vld [vmem:[%s4784 + $0x3c] sm:$0xf]
        %v4817 = vunpack.c.l.b16 %v4785
        %v4818 = vunpack.c.l.b16 %v4786
        %v4819 = vunpack.c.l.b16 %v4787
        %v4820 = vunpack.c.l.b16 %v4788
        %v4821 = vunpack.c.l.b16 %v4789
        %v4822 = vunpack.c.l.b16 %v4790
        %v4823 = vunpack.c.l.b16 %v4791
        %v4824 = vunpack.c.l.b16 %v4792
        %v4825 = vunpack.c.l.b16 %v4793
        %v4826 = vunpack.c.l.b16 %v4794
        %v4827 = vunpack.c.l.b16 %v4795
        %v4828 = vunpack.c.l.b16 %v4796
        %v4829 = vunpack.c.l.b16 %v4797
        %v4830 = vunpack.c.l.b16 %v4798
        %v4831 = vunpack.c.l.b16 %v4799
        %v4832 = vunpack.c.l.b16 %v4800
        %v4833 = vpack.c.b16 %v4818, %v4817
        %v4834 = vpack.c.b16 %v4820, %v4819
        %v4835 = vpack.c.b16 %v4822, %v4821
        %v4836 = vpack.c.b16 %v4824, %v4823
        %v4837 = vpack.c.b16 %v4826, %v4825
        %v4838 = vpack.c.b16 %v4828, %v4827
        %v4839 = vpack.c.b16 %v4830, %v4829
        %v4840 = vpack.c.b16 %v4832, %v4831
        %4849 = vmatpush.bf16.msra.mxu0 %v4840
        %4850 = vmatpush.bf16.msra.mxu0 %v4839
        %4851 = vmatpush.bf16.msra.mxu0 %v4838
        %4852 = vmatpush.bf16.msra.mxu0 %v4837
        %4853 = vmatpush.bf16.msra.mxu0 %v4836
        %4854 = vmatpush.bf16.msra.mxu0 %v4835
        %4855 = vmatpush.bf16.msra.mxu0 %v4834
        %4856 = vmatpush.bf16.msra.mxu0 %v4833
        %4857 = vmatmul.bf16.gmra.mxu0 %v4780
        %v4858 = vpop.f32.mrf.mxu0
        %v4859 = vadd.f32 0.0, %v4858
        %v4860 = vpop.f32.mrf.mxu0
        %v4861 = vadd.f32 0.0, %v4860
        %4862 = vmatmul.bf16.gmra.mxu0 %v4781
        %v4863 = vpop.f32.mrf.mxu0
        %v4864 = vadd.f32 0.0, %v4863
        %v4865 = vpop.f32.mrf.mxu0
        %v4866 = vadd.f32 0.0, %v4865
        %4867 = vmatmul.bf16.gmra.mxu0 %v4782
        %v4868 = vpop.f32.mrf.mxu0
        %v4869 = vadd.f32 0.0, %v4868
        %v4870 = vpop.f32.mrf.mxu0
        %v4871 = vadd.f32 0.0, %v4870
        %4872 = vmatmul.bf16.gmra.mxu0 %v4783
        %v4873 = vpop.f32.mrf.mxu0
        %v4874 = vadd.f32 0.0, %v4873
        %v4875 = vpop.f32.mrf.mxu0
        %v4876 = vadd.f32 0.0, %v4875
        %4877 = vdwg.mxu0
        %v4878 = vadd.f32 %v4764, %v4859
        %v4879 = vadd.f32 %v4765, %v4861
        %v4880 = vadd.f32 %v4766, %v4864
        %v4881 = vadd.f32 %v4767, %v4866
        %v4882 = vadd.f32 %v4768, %v4869
        %v4883 = vadd.f32 %v4769, %v4871
        %v4884 = vadd.f32 %v4770, %v4874
        %v4885 = vadd.f32 %v4771, %v4876
        %v4886 = vld [vmem:[%s3611 + $0x2] sm:$0xff]
        %v4887 = vld [vmem:[%s3611 + $0x12] sm:$0xff]
        %v4888 = vld [vmem:[%s3611 + $0x22] sm:$0xff]
        %v4889 = vld [vmem:[%s3611 + $0x32] sm:$0xff]
        %v4890 = vld [vmem:[%s3611 + $0x42] sm:$0xff]
        %v4891 = vld [vmem:[%s3611 + $0x52] sm:$0xff]
        %v4892 = vld [vmem:[%s3611 + $0x62] sm:$0xff]
        %v4893 = vld [vmem:[%s3611 + $0x72] sm:$0xff]
        %v4894 = vpack.c.bf16 %v4887, %v4886
        %v4895 = vpack.c.bf16 %v4889, %v4888
        %v4896 = vpack.c.bf16 %v4891, %v4890
        %v4897 = vpack.c.bf16 %v4893, %v4892
        %s4898 = scalar_lea.vmem [#allocation7], 1664
        %v4899 = vld [vmem:[%s4898] sm:$0xf]
        %v4900 = vld [vmem:[%s4898 + $0x4] sm:$0xf]
        %v4901 = vld [vmem:[%s4898 + $0x8] sm:$0xf]
        %v4902 = vld [vmem:[%s4898 + $0xc] sm:$0xf]
        %v4903 = vld [vmem:[%s4898 + $0x10] sm:$0xf]
        %v4904 = vld [vmem:[%s4898 + $0x14] sm:$0xf]
        %v4905 = vld [vmem:[%s4898 + $0x18] sm:$0xf]
        %v4906 = vld [vmem:[%s4898 + $0x1c] sm:$0xf]
        %v4907 = vld [vmem:[%s4898 + $0x20] sm:$0xf]
        %v4908 = vld [vmem:[%s4898 + $0x24] sm:$0xf]
        %v4909 = vld [vmem:[%s4898 + $0x28] sm:$0xf]
        %v4910 = vld [vmem:[%s4898 + $0x2c] sm:$0xf]
        %v4911 = vld [vmem:[%s4898 + $0x30] sm:$0xf]
        %v4912 = vld [vmem:[%s4898 + $0x34] sm:$0xf]
        %v4913 = vld [vmem:[%s4898 + $0x38] sm:$0xf]
        %v4914 = vld [vmem:[%s4898 + $0x3c] sm:$0xf]
        %v4931 = vunpack.c.l.b16 %v4899
        %v4932 = vunpack.c.l.b16 %v4900
        %v4933 = vunpack.c.l.b16 %v4901
        %v4934 = vunpack.c.l.b16 %v4902
        %v4935 = vunpack.c.l.b16 %v4903
        %v4936 = vunpack.c.l.b16 %v4904
        %v4937 = vunpack.c.l.b16 %v4905
        %v4938 = vunpack.c.l.b16 %v4906
        %v4939 = vunpack.c.l.b16 %v4907
        %v4940 = vunpack.c.l.b16 %v4908
        %v4941 = vunpack.c.l.b16 %v4909
        %v4942 = vunpack.c.l.b16 %v4910
        %v4943 = vunpack.c.l.b16 %v4911
        %v4944 = vunpack.c.l.b16 %v4912
        %v4945 = vunpack.c.l.b16 %v4913
        %v4946 = vunpack.c.l.b16 %v4914
        %v4947 = vpack.c.b16 %v4932, %v4931
        %v4948 = vpack.c.b16 %v4934, %v4933
        %v4949 = vpack.c.b16 %v4936, %v4935
        %v4950 = vpack.c.b16 %v4938, %v4937
        %v4951 = vpack.c.b16 %v4940, %v4939
        %v4952 = vpack.c.b16 %v4942, %v4941
        %v4953 = vpack.c.b16 %v4944, %v4943
        %v4954 = vpack.c.b16 %v4946, %v4945
        %4963 = vmatpush.bf16.msra.mxu0 %v4954
        %4964 = vmatpush.bf16.msra.mxu0 %v4953
        %4965 = vmatpush.bf16.msra.mxu0 %v4952
        %4966 = vmatpush.bf16.msra.mxu0 %v4951
        %4967 = vmatpush.bf16.msra.mxu0 %v4950
        %4968 = vmatpush.bf16.msra.mxu0 %v4949
        %4969 = vmatpush.bf16.msra.mxu0 %v4948
        %4970 = vmatpush.bf16.msra.mxu0 %v4947
        %4971 = vmatmul.bf16.gmra.mxu0 %v4894
        %v4972 = vpop.f32.mrf.mxu0
        %v4973 = vadd.f32 0.0, %v4972
        %v4974 = vpop.f32.mrf.mxu0
        %v4975 = vadd.f32 0.0, %v4974
        %4976 = vmatmul.bf16.gmra.mxu0 %v4895
        %v4977 = vpop.f32.mrf.mxu0
        %v4978 = vadd.f32 0.0, %v4977
        %v4979 = vpop.f32.mrf.mxu0
        %v4980 = vadd.f32 0.0, %v4979
        %4981 = vmatmul.bf16.gmra.mxu0 %v4896
        %v4982 = vpop.f32.mrf.mxu0
        %v4983 = vadd.f32 0.0, %v4982
        %v4984 = vpop.f32.mrf.mxu0
        %v4985 = vadd.f32 0.0, %v4984
        %4986 = vmatmul.bf16.gmra.mxu0 %v4897
        %v4987 = vpop.f32.mrf.mxu0
        %v4988 = vadd.f32 0.0, %v4987
        %v4989 = vpop.f32.mrf.mxu0
        %v4990 = vadd.f32 0.0, %v4989
        %4991 = vdwg.mxu0
        %v4992 = vadd.f32 %v4878, %v4973
        %v4993 = vadd.f32 %v4879, %v4975
        %v4994 = vadd.f32 %v4880, %v4978
        %v4995 = vadd.f32 %v4881, %v4980
        %v4996 = vadd.f32 %v4882, %v4983
        %v4997 = vadd.f32 %v4883, %v4985
        %v4998 = vadd.f32 %v4884, %v4988
        %v4999 = vadd.f32 %v4885, %v4990
        %v5000 = vld [vmem:[#allocation9 + $0x2] sm:$0x1]
        %v5001 = vperm.slane %v5000, 0
        %v5002 = vmul.f32 %v4992, %v5001
        %v5003 = vmul.f32 %v4993, %v5001
        %v5004 = vmul.f32 %v4994, %v5001
        %v5005 = vmul.f32 %v4995, %v5001
        %v5006 = vmul.f32 %v4996, %v5001
        %v5007 = vmul.f32 %v4997, %v5001
        %v5008 = vmul.f32 %v4998, %v5001
        %v5009 = vmul.f32 %v4999, %v5001
        %v5010 = vld [vmem:[#allocation10 + $0x2] sm:$0x1]
        %v5011 = vperm.slane %v5010, 0
        %v5012 = vadd.f32 %v5002, %v5011
        %v5013 = vadd.f32 %v5003, %v5011
        %v5014 = vadd.f32 %v5004, %v5011
        %v5015 = vadd.f32 %v5005, %v5011
        %v5016 = vadd.f32 %v5006, %v5011
        %v5017 = vadd.f32 %v5007, %v5011
        %v5018 = vadd.f32 %v5008, %v5011
        %v5019 = vadd.f32 %v5009, %v5011
        %v5020 = vmax.f32 %v5012, 0.0
        %v5021 = vmax.f32 %v5013, 0.0
        %v5022 = vmax.f32 %v5014, 0.0
        %v5023 = vmax.f32 %v5015, 0.0
        %v5024 = vmax.f32 %v5016, 0.0
        %v5025 = vmax.f32 %v5017, 0.0
        %v5026 = vmax.f32 %v5018, 0.0
        %v5027 = vmax.f32 %v5019, 0.0
        %v5028 = vmax.f32 %v5020, %v5021
        %v5029 = vmax.f32 %v5022, %v5023
        %v5030 = vmax.f32 %v5024, %v5025
        %v5031 = vmax.f32 %v5026, %v5027
        %5032 = vst [vmem:[#allocation3] sm:$0xff] %v5028
        %5033 = vst [vmem:[#allocation3 + $0x10] sm:$0xff] %v5029
        %5034 = vst [vmem:[#allocation3 + $0x20] sm:$0xff] %v5030
        %5035 = vst [vmem:[#allocation3 + $0x30] sm:$0xff] %v5031
        %v5036 = vld [vmem:[#allocation3] ss:$2 sm:$0xf]
        %s5037 = scalar_lea.vmem [#allocation3], 16
        %v5038 = vld [vmem:[%s5037] ss:$2 sm:$0xf]
        %s5039 = scalar_lea.vmem [#allocation3], 32
        %v5040 = vld [vmem:[%s5039] ss:$2 sm:$0xf]
        %s5041 = scalar_lea.vmem [#allocation3], 48
        %v5042 = vld [vmem:[%s5041] ss:$2 sm:$0xf]
        %s5043 = scalar_lea.vmem [#allocation3], 1
        %v5044 = vld [vmem:[%s5043] ss:$2 sm:$0xf]
        %s5045 = scalar_lea.vmem [#allocation3], 17
        %v5046 = vld [vmem:[%s5045] ss:$2 sm:$0xf]
        %s5047 = scalar_lea.vmem [#allocation3], 33
        %v5048 = vld [vmem:[%s5047] ss:$2 sm:$0xf]
        %s5049 = scalar_lea.vmem [#allocation3], 49
        %v5050 = vld [vmem:[%s5049] ss:$2 sm:$0xf]
        %v5051 = vmax.f32 %v5036, %v5044
        %v5052 = vmax.f32 %v5038, %v5046
        %v5053 = vmax.f32 %v5040, %v5048
        %v5054 = vmax.f32 %v5042, %v5050
        %v5055 = vpack.c.bf16 %v5051, %v5051
        %v5056 = vld [vmem:[#allocation12] sm:$0xff]
        %v5057 = vld [vmem:[#allocation12 + $0x8] sm:$0xff]
        %v5058 = vld [vmem:[#allocation12 + $0x10] sm:$0xff]
        %v5059 = vld [vmem:[#allocation12 + $0x18] sm:$0xff]
        %v5060 = vld [vmem:[#allocation12 + $0x20] sm:$0xff]
        %v5061 = vld [vmem:[#allocation12 + $0x28] sm:$0xff]
        %v5062 = vld [vmem:[#allocation12 + $0x30] sm:$0xff]
        %v5063 = vld [vmem:[#allocation12 + $0x38] sm:$0xff]
        %v5064 = vld [vmem:[#allocation12 + $0x40] sm:$0xff]
        %v5065 = vld [vmem:[#allocation12 + $0x48] sm:$0xff]
        %v5066 = vld [vmem:[#allocation12 + $0x50] sm:$0xff]
        %v5067 = vld [vmem:[#allocation12 + $0x58] sm:$0xff]
        %v5068 = vld [vmem:[#allocation12 + $0x60] sm:$0xff]
        %v5069 = vld [vmem:[#allocation12 + $0x68] sm:$0xff]
        %v5070 = vld [vmem:[#allocation12 + $0x70] sm:$0xff]
        %v5071 = vld [vmem:[#allocation12 + $0x78] sm:$0xff]
        %s5072 = scalar_lea.vmem [#allocation12], 128
        %v5073 = vld [vmem:[%s5072] sm:$0xff]
        %v5074 = vld [vmem:[%s5072 + $0x8] sm:$0xff]
        %v5075 = vld [vmem:[%s5072 + $0x10] sm:$0xff]
        %v5076 = vld [vmem:[%s5072 + $0x18] sm:$0xff]
        %v5077 = vld [vmem:[%s5072 + $0x20] sm:$0xff]
        %v5078 = vld [vmem:[%s5072 + $0x28] sm:$0xff]
        %v5079 = vld [vmem:[%s5072 + $0x30] sm:$0xff]
        %v5080 = vld [vmem:[%s5072 + $0x38] sm:$0xff]
        %v5081 = vld [vmem:[%s5072 + $0x40] sm:$0xff]
        %v5082 = vld [vmem:[%s5072 + $0x48] sm:$0xff]
        %v5083 = vld [vmem:[%s5072 + $0x50] sm:$0xff]
        %v5084 = vld [vmem:[%s5072 + $0x58] sm:$0xff]
        %v5085 = vld [vmem:[%s5072 + $0x60] sm:$0xff]
        %v5086 = vld [vmem:[%s5072 + $0x68] sm:$0xff]
        %v5087 = vld [vmem:[%s5072 + $0x70] sm:$0xff]
        %v5088 = vld [vmem:[%s5072 + $0x78] sm:$0xff]
        %v5090 = vshrl.u32 %v5055, 16
        %v5109 = vunpack.c.l.b16 %v5073
        %v5110 = vunpack.c.h.b16 %v5073
        %v5111 = vunpack.c.l.b16 %v5074
        %v5112 = vunpack.c.h.b16 %v5074
        %v5113 = vunpack.c.l.b16 %v5075
        %v5114 = vunpack.c.h.b16 %v5075
        %v5115 = vunpack.c.l.b16 %v5076
        %v5116 = vunpack.c.h.b16 %v5076
        %v5117 = vunpack.c.l.b16 %v5077
        %v5118 = vunpack.c.h.b16 %v5077
        %v5119 = vunpack.c.l.b16 %v5078
        %v5120 = vunpack.c.h.b16 %v5078
        %v5121 = vunpack.c.l.b16 %v5079
        %v5122 = vunpack.c.h.b16 %v5079
        %v5123 = vunpack.c.l.b16 %v5080
        %v5124 = vunpack.c.h.b16 %v5080
        %v5125 = vunpack.c.l.b16 %v5081
        %v5126 = vunpack.c.h.b16 %v5081
        %v5127 = vunpack.c.l.b16 %v5082
        %v5128 = vunpack.c.h.b16 %v5082
        %v5129 = vunpack.c.l.b16 %v5083
        %v5130 = vunpack.c.h.b16 %v5083
        %v5131 = vunpack.c.l.b16 %v5084
        %v5132 = vunpack.c.h.b16 %v5084
        %v5133 = vunpack.c.l.b16 %v5085
        %v5134 = vunpack.c.h.b16 %v5085
        %v5135 = vunpack.c.l.b16 %v5086
        %v5136 = vunpack.c.h.b16 %v5086
        %v5137 = vunpack.c.l.b16 %v5087
        %v5138 = vunpack.c.h.b16 %v5087
        %v5139 = vunpack.c.l.b16 %v5088
        %v5140 = vunpack.c.h.b16 %v5088
        %v5141 = vpack.c.b16 %v5111, %v5109
        %v5142 = vpack.c.b16 %v5112, %v5110
        %v5143 = vpack.c.b16 %v5115, %v5113
        %v5144 = vpack.c.b16 %v5116, %v5114
        %v5145 = vpack.c.b16 %v5119, %v5117
        %v5146 = vpack.c.b16 %v5120, %v5118
        %v5147 = vpack.c.b16 %v5123, %v5121
        %v5148 = vpack.c.b16 %v5124, %v5122
        %v5149 = vpack.c.b16 %v5127, %v5125
        %v5150 = vpack.c.b16 %v5128, %v5126
        %v5151 = vpack.c.b16 %v5131, %v5129
        %v5152 = vpack.c.b16 %v5132, %v5130
        %v5153 = vpack.c.b16 %v5135, %v5133
        %v5154 = vpack.c.b16 %v5136, %v5134
        %v5155 = vpack.c.b16 %v5139, %v5137
        %v5156 = vpack.c.b16 %v5140, %v5138
        %5173 = vmatpush.bf16.msra.mxu0 %v5155
        %5174 = vmatpush.bf16.msra.mxu0 %v5153
        %5175 = vmatpush.bf16.msra.mxu0 %v5151
        %5176 = vmatpush.bf16.msra.mxu0 %v5149
        %5177 = vmatpush.bf16.msra.mxu0 %v5147
        %5178 = vmatpush.bf16.msra.mxu0 %v5145
        %5179 = vmatpush.bf16.msra.mxu0 %v5143
        %5180 = vmatpush.bf16.msra.mxu0 %v5141
        %5181 = vmatmul.bf16.gmra.mxu0 %v5090
        %v5182 = vpop.f32.mrf.mxu0
        %v5183 = vadd.f32 0.0, %v5182
        %v5184 = vpop.f32.mrf.mxu0
        %5185 = vdwg.mxu0
        %5186 = vmatpush.bf16.msra.mxu0 %v5156
        %5187 = vmatpush.bf16.msra.mxu0 %v5154
        %5188 = vmatpush.bf16.msra.mxu0 %v5152
        %5189 = vmatpush.bf16.msra.mxu0 %v5150
        %5190 = vmatpush.bf16.msra.mxu0 %v5148
        %5191 = vmatpush.bf16.msra.mxu0 %v5146
        %5192 = vmatpush.bf16.msra.mxu0 %v5144
        %5193 = vmatpush.bf16.msra.mxu0 %v5142
        %5194 = vmatmul.bf16.gmra.mxu0 %v5090
        %v5195 = vpop.f32.mrf.mxu0
        %v5196 = vadd.f32 0.0, %v5195
        %v5197 = vpop.f32.mrf.mxu0
        %5198 = vdwg.mxu0
        %v5215 = vunpack.c.l.b16 %v5056
        %v5216 = vunpack.c.h.b16 %v5056
        %v5217 = vunpack.c.l.b16 %v5057
        %v5218 = vunpack.c.h.b16 %v5057
        %v5219 = vunpack.c.l.b16 %v5058
        %v5220 = vunpack.c.h.b16 %v5058
        %v5221 = vunpack.c.l.b16 %v5059
        %v5222 = vunpack.c.h.b16 %v5059
        %v5223 = vunpack.c.l.b16 %v5060
        %v5224 = vunpack.c.h.b16 %v5060
        %v5225 = vunpack.c.l.b16 %v5061
        %v5226 = vunpack.c.h.b16 %v5061
        %v5227 = vunpack.c.l.b16 %v5062
        %v5228 = vunpack.c.h.b16 %v5062
        %v5229 = vunpack.c.l.b16 %v5063
        %v5230 = vunpack.c.h.b16 %v5063
        %v5231 = vunpack.c.l.b16 %v5064
        %v5232 = vunpack.c.h.b16 %v5064
        %v5233 = vunpack.c.l.b16 %v5065
        %v5234 = vunpack.c.h.b16 %v5065
        %v5235 = vunpack.c.l.b16 %v5066
        %v5236 = vunpack.c.h.b16 %v5066
        %v5237 = vunpack.c.l.b16 %v5067
        %v5238 = vunpack.c.h.b16 %v5067
        %v5239 = vunpack.c.l.b16 %v5068
        %v5240 = vunpack.c.h.b16 %v5068
        %v5241 = vunpack.c.l.b16 %v5069
        %v5242 = vunpack.c.h.b16 %v5069
        %v5243 = vunpack.c.l.b16 %v5070
        %v5244 = vunpack.c.h.b16 %v5070
        %v5245 = vunpack.c.l.b16 %v5071
        %v5246 = vunpack.c.h.b16 %v5071
        %v5247 = vpack.c.b16 %v5217, %v5215
        %v5248 = vpack.c.b16 %v5218, %v5216
        %v5249 = vpack.c.b16 %v5221, %v5219
        %v5250 = vpack.c.b16 %v5222, %v5220
        %v5251 = vpack.c.b16 %v5225, %v5223
        %v5252 = vpack.c.b16 %v5226, %v5224
        %v5253 = vpack.c.b16 %v5229, %v5227
        %v5254 = vpack.c.b16 %v5230, %v5228
        %v5255 = vpack.c.b16 %v5233, %v5231
        %v5256 = vpack.c.b16 %v5234, %v5232
        %v5257 = vpack.c.b16 %v5237, %v5235
        %v5258 = vpack.c.b16 %v5238, %v5236
        %v5259 = vpack.c.b16 %v5241, %v5239
        %v5260 = vpack.c.b16 %v5242, %v5240
        %v5261 = vpack.c.b16 %v5245, %v5243
        %v5262 = vpack.c.b16 %v5246, %v5244
        %5279 = vmatpush.bf16.msra.mxu0 %v5261
        %5280 = vmatpush.bf16.msra.mxu0 %v5259
        %5281 = vmatpush.bf16.msra.mxu0 %v5257
        %5282 = vmatpush.bf16.msra.mxu0 %v5255
        %5283 = vmatpush.bf16.msra.mxu0 %v5253
        %5284 = vmatpush.bf16.msra.mxu0 %v5251
        %5285 = vmatpush.bf16.msra.mxu0 %v5249
        %5286 = vmatpush.bf16.msra.mxu0 %v5247
        %5287 = vmatmul.bf16.gmra.mxu0 %v5055
        %v5288 = vpop.f32.mrf.mxu0
        %v5289 = vadd.f32 %v5183, %v5288
        %v5290 = vpop.f32.mrf.mxu0
        %5291 = vdwg.mxu0
        %5292 = vmatpush.bf16.msra.mxu0 %v5262
        %5293 = vmatpush.bf16.msra.mxu0 %v5260
        %5294 = vmatpush.bf16.msra.mxu0 %v5258
        %5295 = vmatpush.bf16.msra.mxu0 %v5256
        %5296 = vmatpush.bf16.msra.mxu0 %v5254
        %5297 = vmatpush.bf16.msra.mxu0 %v5252
        %5298 = vmatpush.bf16.msra.mxu0 %v5250
        %5299 = vmatpush.bf16.msra.mxu0 %v5248
        %5300 = vmatmul.bf16.gmra.mxu0 %v5055
        %v5301 = vpop.f32.mrf.mxu0
        %v5302 = vadd.f32 %v5196, %v5301
        %v5303 = vpop.f32.mrf.mxu0
        %5304 = vdwg.mxu0
        %s5305 = scalar_lea.vmem [#allocation12], 256
        %v5306 = vld [vmem:[%s5305] sm:$0xff]
        %v5307 = vld [vmem:[%s5305 + $0x8] sm:$0xff]
        %v5308 = vld [vmem:[%s5305 + $0x10] sm:$0xff]
        %v5309 = vld [vmem:[%s5305 + $0x18] sm:$0xff]
        %v5310 = vld [vmem:[%s5305 + $0x20] sm:$0xff]
        %v5311 = vld [vmem:[%s5305 + $0x28] sm:$0xff]
        %v5312 = vld [vmem:[%s5305 + $0x30] sm:$0xff]
        %v5313 = vld [vmem:[%s5305 + $0x38] sm:$0xff]
        %v5314 = vld [vmem:[%s5305 + $0x40] sm:$0xff]
        %v5315 = vld [vmem:[%s5305 + $0x48] sm:$0xff]
        %v5316 = vld [vmem:[%s5305 + $0x50] sm:$0xff]
        %v5317 = vld [vmem:[%s5305 + $0x58] sm:$0xff]
        %v5318 = vld [vmem:[%s5305 + $0x60] sm:$0xff]
        %v5319 = vld [vmem:[%s5305 + $0x68] sm:$0xff]
        %v5320 = vld [vmem:[%s5305 + $0x70] sm:$0xff]
        %v5321 = vld [vmem:[%s5305 + $0x78] sm:$0xff]
        %v5323 = vrot.slane %v5055, 1
        %v5341 = vunpack.c.l.b16 %v5306
        %v5342 = vunpack.c.h.b16 %v5306
        %v5343 = vunpack.c.l.b16 %v5307
        %v5344 = vunpack.c.h.b16 %v5307
        %v5345 = vunpack.c.l.b16 %v5308
        %v5346 = vunpack.c.h.b16 %v5308
        %v5347 = vunpack.c.l.b16 %v5309
        %v5348 = vunpack.c.h.b16 %v5309
        %v5349 = vunpack.c.l.b16 %v5310
        %v5350 = vunpack.c.h.b16 %v5310
        %v5351 = vunpack.c.l.b16 %v5311
        %v5352 = vunpack.c.h.b16 %v5311
        %v5353 = vunpack.c.l.b16 %v5312
        %v5354 = vunpack.c.h.b16 %v5312
        %v5355 = vunpack.c.l.b16 %v5313
        %v5356 = vunpack.c.h.b16 %v5313
        %v5357 = vunpack.c.l.b16 %v5314
        %v5358 = vunpack.c.h.b16 %v5314
        %v5359 = vunpack.c.l.b16 %v5315
        %v5360 = vunpack.c.h.b16 %v5315
        %v5361 = vunpack.c.l.b16 %v5316
        %v5362 = vunpack.c.h.b16 %v5316
        %v5363 = vunpack.c.l.b16 %v5317
        %v5364 = vunpack.c.h.b16 %v5317
        %v5365 = vunpack.c.l.b16 %v5318
        %v5366 = vunpack.c.h.b16 %v5318
        %v5367 = vunpack.c.l.b16 %v5319
        %v5368 = vunpack.c.h.b16 %v5319
        %v5369 = vunpack.c.l.b16 %v5320
        %v5370 = vunpack.c.h.b16 %v5320
        %v5371 = vunpack.c.l.b16 %v5321
        %v5372 = vunpack.c.h.b16 %v5321
        %v5373 = vpack.c.b16 %v5343, %v5341
        %v5374 = vpack.c.b16 %v5344, %v5342
        %v5375 = vpack.c.b16 %v5347, %v5345
        %v5376 = vpack.c.b16 %v5348, %v5346
        %v5377 = vpack.c.b16 %v5351, %v5349
        %v5378 = vpack.c.b16 %v5352, %v5350
        %v5379 = vpack.c.b16 %v5355, %v5353
        %v5380 = vpack.c.b16 %v5356, %v5354
        %v5381 = vpack.c.b16 %v5359, %v5357
        %v5382 = vpack.c.b16 %v5360, %v5358
        %v5383 = vpack.c.b16 %v5363, %v5361
        %v5384 = vpack.c.b16 %v5364, %v5362
        %v5385 = vpack.c.b16 %v5367, %v5365
        %v5386 = vpack.c.b16 %v5368, %v5366
        %v5387 = vpack.c.b16 %v5371, %v5369
        %v5388 = vpack.c.b16 %v5372, %v5370
        %5405 = vmatpush.bf16.msra.mxu0 %v5387
        %5406 = vmatpush.bf16.msra.mxu0 %v5385
        %5407 = vmatpush.bf16.msra.mxu0 %v5383
        %5408 = vmatpush.bf16.msra.mxu0 %v5381
        %5409 = vmatpush.bf16.msra.mxu0 %v5379
        %5410 = vmatpush.bf16.msra.mxu0 %v5377
        %5411 = vmatpush.bf16.msra.mxu0 %v5375
        %5412 = vmatpush.bf16.msra.mxu0 %v5373
        %5413 = vmatmul.bf16.gmra.mxu0 %v5323
        %v5414 = vpop.f32.mrf.mxu0
        %v5415 = vadd.f32 0.0, %v5414
        %v5416 = vpop.f32.mrf.mxu0
        %5417 = vdwg.mxu0
        %5418 = vmatpush.bf16.msra.mxu0 %v5388
        %5419 = vmatpush.bf16.msra.mxu0 %v5386
        %5420 = vmatpush.bf16.msra.mxu0 %v5384
        %5421 = vmatpush.bf16.msra.mxu0 %v5382
        %5422 = vmatpush.bf16.msra.mxu0 %v5380
        %5423 = vmatpush.bf16.msra.mxu0 %v5378
        %5424 = vmatpush.bf16.msra.mxu0 %v5376
        %5425 = vmatpush.bf16.msra.mxu0 %v5374
        %5426 = vmatmul.bf16.gmra.mxu0 %v5323
        %v5427 = vpop.f32.mrf.mxu0
        %v5428 = vadd.f32 0.0, %v5427
        %v5429 = vpop.f32.mrf.mxu0
        %5430 = vdwg.mxu0
        %v5431 = vadd.f32 %v5289, %v5415
        %v5432 = vadd.f32 %v5302, %v5428
        %s5433 = scalar_lea.vmem [#allocation12], 384
        %v5434 = vld [vmem:[%s5433] sm:$0xff]
        %v5435 = vld [vmem:[%s5433 + $0x8] sm:$0xff]
        %v5436 = vld [vmem:[%s5433 + $0x10] sm:$0xff]
        %v5437 = vld [vmem:[%s5433 + $0x18] sm:$0xff]
        %v5438 = vld [vmem:[%s5433 + $0x20] sm:$0xff]
        %v5439 = vld [vmem:[%s5433 + $0x28] sm:$0xff]
        %v5440 = vld [vmem:[%s5433 + $0x30] sm:$0xff]
        %v5441 = vld [vmem:[%s5433 + $0x38] sm:$0xff]
        %v5442 = vld [vmem:[%s5433 + $0x40] sm:$0xff]
        %v5443 = vld [vmem:[%s5433 + $0x48] sm:$0xff]
        %v5444 = vld [vmem:[%s5433 + $0x50] sm:$0xff]
        %v5445 = vld [vmem:[%s5433 + $0x58] sm:$0xff]
        %v5446 = vld [vmem:[%s5433 + $0x60] sm:$0xff]
        %v5447 = vld [vmem:[%s5433 + $0x68] sm:$0xff]
        %v5448 = vld [vmem:[%s5433 + $0x70] sm:$0xff]
        %v5449 = vld [vmem:[%s5433 + $0x78] sm:$0xff]
        %v5450 = vrot.slane %v5090, 1
        %v5468 = vunpack.c.l.b16 %v5434
        %v5469 = vunpack.c.h.b16 %v5434
        %v5470 = vunpack.c.l.b16 %v5435
        %v5471 = vunpack.c.h.b16 %v5435
        %v5472 = vunpack.c.l.b16 %v5436
        %v5473 = vunpack.c.h.b16 %v5436
        %v5474 = vunpack.c.l.b16 %v5437
        %v5475 = vunpack.c.h.b16 %v5437
        %v5476 = vunpack.c.l.b16 %v5438
        %v5477 = vunpack.c.h.b16 %v5438
        %v5478 = vunpack.c.l.b16 %v5439
        %v5479 = vunpack.c.h.b16 %v5439
        %v5480 = vunpack.c.l.b16 %v5440
        %v5481 = vunpack.c.h.b16 %v5440
        %v5482 = vunpack.c.l.b16 %v5441
        %v5483 = vunpack.c.h.b16 %v5441
        %v5484 = vunpack.c.l.b16 %v5442
        %v5485 = vunpack.c.h.b16 %v5442
        %v5486 = vunpack.c.l.b16 %v5443
        %v5487 = vunpack.c.h.b16 %v5443
        %v5488 = vunpack.c.l.b16 %v5444
        %v5489 = vunpack.c.h.b16 %v5444
        %v5490 = vunpack.c.l.b16 %v5445
        %v5491 = vunpack.c.h.b16 %v5445
        %v5492 = vunpack.c.l.b16 %v5446
        %v5493 = vunpack.c.h.b16 %v5446
        %v5494 = vunpack.c.l.b16 %v5447
        %v5495 = vunpack.c.h.b16 %v5447
        %v5496 = vunpack.c.l.b16 %v5448
        %v5497 = vunpack.c.h.b16 %v5448
        %v5498 = vunpack.c.l.b16 %v5449
        %v5499 = vunpack.c.h.b16 %v5449
        %v5500 = vpack.c.b16 %v5470, %v5468
        %v5501 = vpack.c.b16 %v5471, %v5469
        %v5502 = vpack.c.b16 %v5474, %v5472
        %v5503 = vpack.c.b16 %v5475, %v5473
        %v5504 = vpack.c.b16 %v5478, %v5476
        %v5505 = vpack.c.b16 %v5479, %v5477
        %v5506 = vpack.c.b16 %v5482, %v5480
        %v5507 = vpack.c.b16 %v5483, %v5481
        %v5508 = vpack.c.b16 %v5486, %v5484
        %v5509 = vpack.c.b16 %v5487, %v5485
        %v5510 = vpack.c.b16 %v5490, %v5488
        %v5511 = vpack.c.b16 %v5491, %v5489
        %v5512 = vpack.c.b16 %v5494, %v5492
        %v5513 = vpack.c.b16 %v5495, %v5493
        %v5514 = vpack.c.b16 %v5498, %v5496
        %v5515 = vpack.c.b16 %v5499, %v5497
        %5532 = vmatpush.bf16.msra.mxu0 %v5514
        %5533 = vmatpush.bf16.msra.mxu0 %v5512
        %5534 = vmatpush.bf16.msra.mxu0 %v5510
        %5535 = vmatpush.bf16.msra.mxu0 %v5508
        %5536 = vmatpush.bf16.msra.mxu0 %v5506
        %5537 = vmatpush.bf16.msra.mxu0 %v5504
        %5538 = vmatpush.bf16.msra.mxu0 %v5502
        %5539 = vmatpush.bf16.msra.mxu0 %v5500
        %5540 = vmatmul.bf16.gmra.mxu0 %v5450
        %v5541 = vpop.f32.mrf.mxu0
        %v5542 = vadd.f32 0.0, %v5541
        %v5543 = vpop.f32.mrf.mxu0
        %5544 = vdwg.mxu0
        %5545 = vmatpush.bf16.msra.mxu0 %v5515
        %5546 = vmatpush.bf16.msra.mxu0 %v5513
        %5547 = vmatpush.bf16.msra.mxu0 %v5511
        %5548 = vmatpush.bf16.msra.mxu0 %v5509
        %5549 = vmatpush.bf16.msra.mxu0 %v5507
        %5550 = vmatpush.bf16.msra.mxu0 %v5505
        %5551 = vmatpush.bf16.msra.mxu0 %v5503
        %5552 = vmatpush.bf16.msra.mxu0 %v5501
        %5553 = vmatmul.bf16.gmra.mxu0 %v5450
        %v5554 = vpop.f32.mrf.mxu0
        %v5555 = vadd.f32 0.0, %v5554
        %v5556 = vpop.f32.mrf.mxu0
        %5557 = vdwg.mxu0
        %v5558 = vadd.f32 %v5431, %v5542
        %v5559 = vadd.f32 %v5432, %v5555
        %v5560 = vpack.c.bf16 %v5052, %v5052
        %s5561 = scalar_lea.vmem [#allocation12], 512
        %v5562 = vld [vmem:[%s5561] sm:$0xff]
        %v5563 = vld [vmem:[%s5561 + $0x8] sm:$0xff]
        %v5564 = vld [vmem:[%s5561 + $0x10] sm:$0xff]
        %v5565 = vld [vmem:[%s5561 + $0x18] sm:$0xff]
        %v5566 = vld [vmem:[%s5561 + $0x20] sm:$0xff]
        %v5567 = vld [vmem:[%s5561 + $0x28] sm:$0xff]
        %v5568 = vld [vmem:[%s5561 + $0x30] sm:$0xff]
        %v5569 = vld [vmem:[%s5561 + $0x38] sm:$0xff]
        %v5570 = vld [vmem:[%s5561 + $0x40] sm:$0xff]
        %v5571 = vld [vmem:[%s5561 + $0x48] sm:$0xff]
        %v5572 = vld [vmem:[%s5561 + $0x50] sm:$0xff]
        %v5573 = vld [vmem:[%s5561 + $0x58] sm:$0xff]
        %v5574 = vld [vmem:[%s5561 + $0x60] sm:$0xff]
        %v5575 = vld [vmem:[%s5561 + $0x68] sm:$0xff]
        %v5576 = vld [vmem:[%s5561 + $0x70] sm:$0xff]
        %v5577 = vld [vmem:[%s5561 + $0x78] sm:$0xff]
        %v5594 = vunpack.c.l.b16 %v5562
        %v5595 = vunpack.c.h.b16 %v5562
        %v5596 = vunpack.c.l.b16 %v5563
        %v5597 = vunpack.c.h.b16 %v5563
        %v5598 = vunpack.c.l.b16 %v5564
        %v5599 = vunpack.c.h.b16 %v5564
        %v5600 = vunpack.c.l.b16 %v5565
        %v5601 = vunpack.c.h.b16 %v5565
        %v5602 = vunpack.c.l.b16 %v5566
        %v5603 = vunpack.c.h.b16 %v5566
        %v5604 = vunpack.c.l.b16 %v5567
        %v5605 = vunpack.c.h.b16 %v5567
        %v5606 = vunpack.c.l.b16 %v5568
        %v5607 = vunpack.c.h.b16 %v5568
        %v5608 = vunpack.c.l.b16 %v5569
        %v5609 = vunpack.c.h.b16 %v5569
        %v5610 = vunpack.c.l.b16 %v5570
        %v5611 = vunpack.c.h.b16 %v5570
        %v5612 = vunpack.c.l.b16 %v5571
        %v5613 = vunpack.c.h.b16 %v5571
        %v5614 = vunpack.c.l.b16 %v5572
        %v5615 = vunpack.c.h.b16 %v5572
        %v5616 = vunpack.c.l.b16 %v5573
        %v5617 = vunpack.c.h.b16 %v5573
        %v5618 = vunpack.c.l.b16 %v5574
        %v5619 = vunpack.c.h.b16 %v5574
        %v5620 = vunpack.c.l.b16 %v5575
        %v5621 = vunpack.c.h.b16 %v5575
        %v5622 = vunpack.c.l.b16 %v5576
        %v5623 = vunpack.c.h.b16 %v5576
        %v5624 = vunpack.c.l.b16 %v5577
        %v5625 = vunpack.c.h.b16 %v5577
        %v5626 = vpack.c.b16 %v5596, %v5594
        %v5627 = vpack.c.b16 %v5597, %v5595
        %v5628 = vpack.c.b16 %v5600, %v5598
        %v5629 = vpack.c.b16 %v5601, %v5599
        %v5630 = vpack.c.b16 %v5604, %v5602
        %v5631 = vpack.c.b16 %v5605, %v5603
        %v5632 = vpack.c.b16 %v5608, %v5606
        %v5633 = vpack.c.b16 %v5609, %v5607
        %v5634 = vpack.c.b16 %v5612, %v5610
        %v5635 = vpack.c.b16 %v5613, %v5611
        %v5636 = vpack.c.b16 %v5616, %v5614
        %v5637 = vpack.c.b16 %v5617, %v5615
        %v5638 = vpack.c.b16 %v5620, %v5618
        %v5639 = vpack.c.b16 %v5621, %v5619
        %v5640 = vpack.c.b16 %v5624, %v5622
        %v5641 = vpack.c.b16 %v5625, %v5623
        %5658 = vmatpush.bf16.msra.mxu0 %v5640
        %5659 = vmatpush.bf16.msra.mxu0 %v5638
        %5660 = vmatpush.bf16.msra.mxu0 %v5636
        %5661 = vmatpush.bf16.msra.mxu0 %v5634
        %5662 = vmatpush.bf16.msra.mxu0 %v5632
        %5663 = vmatpush.bf16.msra.mxu0 %v5630
        %5664 = vmatpush.bf16.msra.mxu0 %v5628
        %5665 = vmatpush.bf16.msra.mxu0 %v5626
        %5666 = vmatmul.bf16.gmra.mxu0 %v5560
        %v5667 = vpop.f32.mrf.mxu0
        %v5668 = vadd.f32 0.0, %v5667
        %v5669 = vpop.f32.mrf.mxu0
        %5670 = vdwg.mxu0
        %5671 = vmatpush.bf16.msra.mxu0 %v5641
        %5672 = vmatpush.bf16.msra.mxu0 %v5639
        %5673 = vmatpush.bf16.msra.mxu0 %v5637
        %5674 = vmatpush.bf16.msra.mxu0 %v5635
        %5675 = vmatpush.bf16.msra.mxu0 %v5633
        %5676 = vmatpush.bf16.msra.mxu0 %v5631
        %5677 = vmatpush.bf16.msra.mxu0 %v5629
        %5678 = vmatpush.bf16.msra.mxu0 %v5627
        %5679 = vmatmul.bf16.gmra.mxu0 %v5560
        %v5680 = vpop.f32.mrf.mxu0
        %v5681 = vadd.f32 0.0, %v5680
        %v5682 = vpop.f32.mrf.mxu0
        %5683 = vdwg.mxu0
        %v5684 = vadd.f32 %v5558, %v5668
        %v5685 = vadd.f32 %v5559, %v5681
        %s5686 = scalar_lea.vmem [#allocation12], 640
        %v5687 = vld [vmem:[%s5686] sm:$0xff]
        %v5688 = vld [vmem:[%s5686 + $0x8] sm:$0xff]
        %v5689 = vld [vmem:[%s5686 + $0x10] sm:$0xff]
        %v5690 = vld [vmem:[%s5686 + $0x18] sm:$0xff]
        %v5691 = vld [vmem:[%s5686 + $0x20] sm:$0xff]
        %v5692 = vld [vmem:[%s5686 + $0x28] sm:$0xff]
        %v5693 = vld [vmem:[%s5686 + $0x30] sm:$0xff]
        %v5694 = vld [vmem:[%s5686 + $0x38] sm:$0xff]
        %v5695 = vld [vmem:[%s5686 + $0x40] sm:$0xff]
        %v5696 = vld [vmem:[%s5686 + $0x48] sm:$0xff]
        %v5697 = vld [vmem:[%s5686 + $0x50] sm:$0xff]
        %v5698 = vld [vmem:[%s5686 + $0x58] sm:$0xff]
        %v5699 = vld [vmem:[%s5686 + $0x60] sm:$0xff]
        %v5700 = vld [vmem:[%s5686 + $0x68] sm:$0xff]
        %v5701 = vld [vmem:[%s5686 + $0x70] sm:$0xff]
        %v5702 = vld [vmem:[%s5686 + $0x78] sm:$0xff]
        %v5704 = vshrl.u32 %v5560, 16
        %v5723 = vunpack.c.l.b16 %v5687
        %v5724 = vunpack.c.h.b16 %v5687
        %v5725 = vunpack.c.l.b16 %v5688
        %v5726 = vunpack.c.h.b16 %v5688
        %v5727 = vunpack.c.l.b16 %v5689
        %v5728 = vunpack.c.h.b16 %v5689
        %v5729 = vunpack.c.l.b16 %v5690
        %v5730 = vunpack.c.h.b16 %v5690
        %v5731 = vunpack.c.l.b16 %v5691
        %v5732 = vunpack.c.h.b16 %v5691
        %v5733 = vunpack.c.l.b16 %v5692
        %v5734 = vunpack.c.h.b16 %v5692
        %v5735 = vunpack.c.l.b16 %v5693
        %v5736 = vunpack.c.h.b16 %v5693
        %v5737 = vunpack.c.l.b16 %v5694
        %v5738 = vunpack.c.h.b16 %v5694
        %v5739 = vunpack.c.l.b16 %v5695
        %v5740 = vunpack.c.h.b16 %v5695
        %v5741 = vunpack.c.l.b16 %v5696
        %v5742 = vunpack.c.h.b16 %v5696
        %v5743 = vunpack.c.l.b16 %v5697
        %v5744 = vunpack.c.h.b16 %v5697
        %v5745 = vunpack.c.l.b16 %v5698
        %v5746 = vunpack.c.h.b16 %v5698
        %v5747 = vunpack.c.l.b16 %v5699
        %v5748 = vunpack.c.h.b16 %v5699
        %v5749 = vunpack.c.l.b16 %v5700
        %v5750 = vunpack.c.h.b16 %v5700
        %v5751 = vunpack.c.l.b16 %v5701
        %v5752 = vunpack.c.h.b16 %v5701
        %v5753 = vunpack.c.l.b16 %v5702
        %v5754 = vunpack.c.h.b16 %v5702
        %v5755 = vpack.c.b16 %v5725, %v5723
        %v5756 = vpack.c.b16 %v5726, %v5724
        %v5757 = vpack.c.b16 %v5729, %v5727
        %v5758 = vpack.c.b16 %v5730, %v5728
        %v5759 = vpack.c.b16 %v5733, %v5731
        %v5760 = vpack.c.b16 %v5734, %v5732
        %v5761 = vpack.c.b16 %v5737, %v5735
        %v5762 = vpack.c.b16 %v5738, %v5736
        %v5763 = vpack.c.b16 %v5741, %v5739
        %v5764 = vpack.c.b16 %v5742, %v5740
        %v5765 = vpack.c.b16 %v5745, %v5743
        %v5766 = vpack.c.b16 %v5746, %v5744
        %v5767 = vpack.c.b16 %v5749, %v5747
        %v5768 = vpack.c.b16 %v5750, %v5748
        %v5769 = vpack.c.b16 %v5753, %v5751
        %v5770 = vpack.c.b16 %v5754, %v5752
        %5787 = vmatpush.bf16.msra.mxu0 %v5769
        %5788 = vmatpush.bf16.msra.mxu0 %v5767
        %5789 = vmatpush.bf16.msra.mxu0 %v5765
        %5790 = vmatpush.bf16.msra.mxu0 %v5763
        %5791 = vmatpush.bf16.msra.mxu0 %v5761
        %5792 = vmatpush.bf16.msra.mxu0 %v5759
        %5793 = vmatpush.bf16.msra.mxu0 %v5757
        %5794 = vmatpush.bf16.msra.mxu0 %v5755
        %5795 = vmatmul.bf16.gmra.mxu0 %v5704
        %v5796 = vpop.f32.mrf.mxu0
        %v5797 = vadd.f32 0.0, %v5796
        %v5798 = vpop.f32.mrf.mxu0
        %5799 = vdwg.mxu0
        %5800 = vmatpush.bf16.msra.mxu0 %v5770
        %5801 = vmatpush.bf16.msra.mxu0 %v5768
        %5802 = vmatpush.bf16.msra.mxu0 %v5766
        %5803 = vmatpush.bf16.msra.mxu0 %v5764
        %5804 = vmatpush.bf16.msra.mxu0 %v5762
        %5805 = vmatpush.bf16.msra.mxu0 %v5760
        %5806 = vmatpush.bf16.msra.mxu0 %v5758
        %5807 = vmatpush.bf16.msra.mxu0 %v5756
        %5808 = vmatmul.bf16.gmra.mxu0 %v5704
        %v5809 = vpop.f32.mrf.mxu0
        %v5810 = vadd.f32 0.0, %v5809
        %v5811 = vpop.f32.mrf.mxu0
        %5812 = vdwg.mxu0
        %v5813 = vadd.f32 %v5684, %v5797
        %v5814 = vadd.f32 %v5685, %v5810
        %s5815 = scalar_lea.vmem [#allocation12], 768
        %v5816 = vld [vmem:[%s5815] sm:$0xff]
        %v5817 = vld [vmem:[%s5815 + $0x8] sm:$0xff]
        %v5818 = vld [vmem:[%s5815 + $0x10] sm:$0xff]
        %v5819 = vld [vmem:[%s5815 + $0x18] sm:$0xff]
        %v5820 = vld [vmem:[%s5815 + $0x20] sm:$0xff]
        %v5821 = vld [vmem:[%s5815 + $0x28] sm:$0xff]
        %v5822 = vld [vmem:[%s5815 + $0x30] sm:$0xff]
        %v5823 = vld [vmem:[%s5815 + $0x38] sm:$0xff]
        %v5824 = vld [vmem:[%s5815 + $0x40] sm:$0xff]
        %v5825 = vld [vmem:[%s5815 + $0x48] sm:$0xff]
        %v5826 = vld [vmem:[%s5815 + $0x50] sm:$0xff]
        %v5827 = vld [vmem:[%s5815 + $0x58] sm:$0xff]
        %v5828 = vld [vmem:[%s5815 + $0x60] sm:$0xff]
        %v5829 = vld [vmem:[%s5815 + $0x68] sm:$0xff]
        %v5830 = vld [vmem:[%s5815 + $0x70] sm:$0xff]
        %v5831 = vld [vmem:[%s5815 + $0x78] sm:$0xff]
        %v5833 = vrot.slane %v5560, 1
        %v5851 = vunpack.c.l.b16 %v5816
        %v5852 = vunpack.c.h.b16 %v5816
        %v5853 = vunpack.c.l.b16 %v5817
        %v5854 = vunpack.c.h.b16 %v5817
        %v5855 = vunpack.c.l.b16 %v5818
        %v5856 = vunpack.c.h.b16 %v5818
        %v5857 = vunpack.c.l.b16 %v5819
        %v5858 = vunpack.c.h.b16 %v5819
        %v5859 = vunpack.c.l.b16 %v5820
        %v5860 = vunpack.c.h.b16 %v5820
        %v5861 = vunpack.c.l.b16 %v5821
        %v5862 = vunpack.c.h.b16 %v5821
        %v5863 = vunpack.c.l.b16 %v5822
        %v5864 = vunpack.c.h.b16 %v5822
        %v5865 = vunpack.c.l.b16 %v5823
        %v5866 = vunpack.c.h.b16 %v5823
        %v5867 = vunpack.c.l.b16 %v5824
        %v5868 = vunpack.c.h.b16 %v5824
        %v5869 = vunpack.c.l.b16 %v5825
        %v5870 = vunpack.c.h.b16 %v5825
        %v5871 = vunpack.c.l.b16 %v5826
        %v5872 = vunpack.c.h.b16 %v5826
        %v5873 = vunpack.c.l.b16 %v5827
        %v5874 = vunpack.c.h.b16 %v5827
        %v5875 = vunpack.c.l.b16 %v5828
        %v5876 = vunpack.c.h.b16 %v5828
        %v5877 = vunpack.c.l.b16 %v5829
        %v5878 = vunpack.c.h.b16 %v5829
        %v5879 = vunpack.c.l.b16 %v5830
        %v5880 = vunpack.c.h.b16 %v5830
        %v5881 = vunpack.c.l.b16 %v5831
        %v5882 = vunpack.c.h.b16 %v5831
        %v5883 = vpack.c.b16 %v5853, %v5851
        %v5884 = vpack.c.b16 %v5854, %v5852
        %v5885 = vpack.c.b16 %v5857, %v5855
        %v5886 = vpack.c.b16 %v5858, %v5856
        %v5887 = vpack.c.b16 %v5861, %v5859
        %v5888 = vpack.c.b16 %v5862, %v5860
        %v5889 = vpack.c.b16 %v5865, %v5863
        %v5890 = vpack.c.b16 %v5866, %v5864
        %v5891 = vpack.c.b16 %v5869, %v5867
        %v5892 = vpack.c.b16 %v5870, %v5868
        %v5893 = vpack.c.b16 %v5873, %v5871
        %v5894 = vpack.c.b16 %v5874, %v5872
        %v5895 = vpack.c.b16 %v5877, %v5875
        %v5896 = vpack.c.b16 %v5878, %v5876
        %v5897 = vpack.c.b16 %v5881, %v5879
        %v5898 = vpack.c.b16 %v5882, %v5880
        %5915 = vmatpush.bf16.msra.mxu0 %v5897
        %5916 = vmatpush.bf16.msra.mxu0 %v5895
        %5917 = vmatpush.bf16.msra.mxu0 %v5893
        %5918 = vmatpush.bf16.msra.mxu0 %v5891
        %5919 = vmatpush.bf16.msra.mxu0 %v5889
        %5920 = vmatpush.bf16.msra.mxu0 %v5887
        %5921 = vmatpush.bf16.msra.mxu0 %v5885
        %5922 = vmatpush.bf16.msra.mxu0 %v5883
        %5923 = vmatmul.bf16.gmra.mxu0 %v5833
        %v5924 = vpop.f32.mrf.mxu0
        %v5925 = vadd.f32 0.0, %v5924
        %v5926 = vpop.f32.mrf.mxu0
        %5927 = vdwg.mxu0
        %5928 = vmatpush.bf16.msra.mxu0 %v5898
        %5929 = vmatpush.bf16.msra.mxu0 %v5896
        %5930 = vmatpush.bf16.msra.mxu0 %v5894
        %5931 = vmatpush.bf16.msra.mxu0 %v5892
        %5932 = vmatpush.bf16.msra.mxu0 %v5890
        %5933 = vmatpush.bf16.msra.mxu0 %v5888
        %5934 = vmatpush.bf16.msra.mxu0 %v5886
        %5935 = vmatpush.bf16.msra.mxu0 %v5884
        %5936 = vmatmul.bf16.gmra.mxu0 %v5833
        %v5937 = vpop.f32.mrf.mxu0
        %v5938 = vadd.f32 0.0, %v5937
        %v5939 = vpop.f32.mrf.mxu0
        %5940 = vdwg.mxu0
        %v5941 = vadd.f32 %v5813, %v5925
        %v5942 = vadd.f32 %v5814, %v5938
        %s5943 = scalar_lea.vmem [#allocation12], 896
        %v5944 = vld [vmem:[%s5943] sm:$0xff]
        %v5945 = vld [vmem:[%s5943 + $0x8] sm:$0xff]
        %v5946 = vld [vmem:[%s5943 + $0x10] sm:$0xff]
        %v5947 = vld [vmem:[%s5943 + $0x18] sm:$0xff]
        %v5948 = vld [vmem:[%s5943 + $0x20] sm:$0xff]
        %v5949 = vld [vmem:[%s5943 + $0x28] sm:$0xff]
        %v5950 = vld [vmem:[%s5943 + $0x30] sm:$0xff]
        %v5951 = vld [vmem:[%s5943 + $0x38] sm:$0xff]
        %v5952 = vld [vmem:[%s5943 + $0x40] sm:$0xff]
        %v5953 = vld [vmem:[%s5943 + $0x48] sm:$0xff]
        %v5954 = vld [vmem:[%s5943 + $0x50] sm:$0xff]
        %v5955 = vld [vmem:[%s5943 + $0x58] sm:$0xff]
        %v5956 = vld [vmem:[%s5943 + $0x60] sm:$0xff]
        %v5957 = vld [vmem:[%s5943 + $0x68] sm:$0xff]
        %v5958 = vld [vmem:[%s5943 + $0x70] sm:$0xff]
        %v5959 = vld [vmem:[%s5943 + $0x78] sm:$0xff]
        %v5960 = vrot.slane %v5704, 1
        %v5978 = vunpack.c.l.b16 %v5944
        %v5979 = vunpack.c.h.b16 %v5944
        %v5980 = vunpack.c.l.b16 %v5945
        %v5981 = vunpack.c.h.b16 %v5945
        %v5982 = vunpack.c.l.b16 %v5946
        %v5983 = vunpack.c.h.b16 %v5946
        %v5984 = vunpack.c.l.b16 %v5947
        %v5985 = vunpack.c.h.b16 %v5947
        %v5986 = vunpack.c.l.b16 %v5948
        %v5987 = vunpack.c.h.b16 %v5948
        %v5988 = vunpack.c.l.b16 %v5949
        %v5989 = vunpack.c.h.b16 %v5949
        %v5990 = vunpack.c.l.b16 %v5950
        %v5991 = vunpack.c.h.b16 %v5950
        %v5992 = vunpack.c.l.b16 %v5951
        %v5993 = vunpack.c.h.b16 %v5951
        %v5994 = vunpack.c.l.b16 %v5952
        %v5995 = vunpack.c.h.b16 %v5952
        %v5996 = vunpack.c.l.b16 %v5953
        %v5997 = vunpack.c.h.b16 %v5953
        %v5998 = vunpack.c.l.b16 %v5954
        %v5999 = vunpack.c.h.b16 %v5954
        %v6000 = vunpack.c.l.b16 %v5955
        %v6001 = vunpack.c.h.b16 %v5955
        %v6002 = vunpack.c.l.b16 %v5956
        %v6003 = vunpack.c.h.b16 %v5956
        %v6004 = vunpack.c.l.b16 %v5957
        %v6005 = vunpack.c.h.b16 %v5957
        %v6006 = vunpack.c.l.b16 %v5958
        %v6007 = vunpack.c.h.b16 %v5958
        %v6008 = vunpack.c.l.b16 %v5959
        %v6009 = vunpack.c.h.b16 %v5959
        %v6010 = vpack.c.b16 %v5980, %v5978
        %v6011 = vpack.c.b16 %v5981, %v5979
        %v6012 = vpack.c.b16 %v5984, %v5982
        %v6013 = vpack.c.b16 %v5985, %v5983
        %v6014 = vpack.c.b16 %v5988, %v5986
        %v6015 = vpack.c.b16 %v5989, %v5987
        %v6016 = vpack.c.b16 %v5992, %v5990
        %v6017 = vpack.c.b16 %v5993, %v5991
        %v6018 = vpack.c.b16 %v5996, %v5994
        %v6019 = vpack.c.b16 %v5997, %v5995
        %v6020 = vpack.c.b16 %v6000, %v5998
        %v6021 = vpack.c.b16 %v6001, %v5999
        %v6022 = vpack.c.b16 %v6004, %v6002
        %v6023 = vpack.c.b16 %v6005, %v6003
        %v6024 = vpack.c.b16 %v6008, %v6006
        %v6025 = vpack.c.b16 %v6009, %v6007
        %6042 = vmatpush.bf16.msra.mxu0 %v6024
        %6043 = vmatpush.bf16.msra.mxu0 %v6022
        %6044 = vmatpush.bf16.msra.mxu0 %v6020
        %6045 = vmatpush.bf16.msra.mxu0 %v6018
        %6046 = vmatpush.bf16.msra.mxu0 %v6016
        %6047 = vmatpush.bf16.msra.mxu0 %v6014
        %6048 = vmatpush.bf16.msra.mxu0 %v6012
        %6049 = vmatpush.bf16.msra.mxu0 %v6010
        %6050 = vmatmul.bf16.gmra.mxu0 %v5960
        %v6051 = vpop.f32.mrf.mxu0
        %v6052 = vadd.f32 0.0, %v6051
        %v6053 = vpop.f32.mrf.mxu0
        %6054 = vdwg.mxu0
        %6055 = vmatpush.bf16.msra.mxu0 %v6025
        %6056 = vmatpush.bf16.msra.mxu0 %v6023
        %6057 = vmatpush.bf16.msra.mxu0 %v6021
        %6058 = vmatpush.bf16.msra.mxu0 %v6019
        %6059 = vmatpush.bf16.msra.mxu0 %v6017
        %6060 = vmatpush.bf16.msra.mxu0 %v6015
        %6061 = vmatpush.bf16.msra.mxu0 %v6013
        %6062 = vmatpush.bf16.msra.mxu0 %v6011
        %6063 = vmatmul.bf16.gmra.mxu0 %v5960
        %v6064 = vpop.f32.mrf.mxu0
        %v6065 = vadd.f32 0.0, %v6064
        %v6066 = vpop.f32.mrf.mxu0
        %6067 = vdwg.mxu0
        %v6068 = vadd.f32 %v5941, %v6052
        %v6069 = vadd.f32 %v5942, %v6065
        %v6070 = vpack.c.bf16 %v5053, %v5053
        %s6071 = scalar_lea.vmem [#allocation12], 1024
        %v6072 = vld [vmem:[%s6071] sm:$0xff]
        %v6073 = vld [vmem:[%s6071 + $0x8] sm:$0xff]
        %v6074 = vld [vmem:[%s6071 + $0x10] sm:$0xff]
        %v6075 = vld [vmem:[%s6071 + $0x18] sm:$0xff]
        %v6076 = vld [vmem:[%s6071 + $0x20] sm:$0xff]
        %v6077 = vld [vmem:[%s6071 + $0x28] sm:$0xff]
        %v6078 = vld [vmem:[%s6071 + $0x30] sm:$0xff]
        %v6079 = vld [vmem:[%s6071 + $0x38] sm:$0xff]
        %v6080 = vld [vmem:[%s6071 + $0x40] sm:$0xff]
        %v6081 = vld [vmem:[%s6071 + $0x48] sm:$0xff]
        %v6082 = vld [vmem:[%s6071 + $0x50] sm:$0xff]
        %v6083 = vld [vmem:[%s6071 + $0x58] sm:$0xff]
        %v6084 = vld [vmem:[%s6071 + $0x60] sm:$0xff]
        %v6085 = vld [vmem:[%s6071 + $0x68] sm:$0xff]
        %v6086 = vld [vmem:[%s6071 + $0x70] sm:$0xff]
        %v6087 = vld [vmem:[%s6071 + $0x78] sm:$0xff]
        %v6104 = vunpack.c.l.b16 %v6072
        %v6105 = vunpack.c.h.b16 %v6072
        %v6106 = vunpack.c.l.b16 %v6073
        %v6107 = vunpack.c.h.b16 %v6073
        %v6108 = vunpack.c.l.b16 %v6074
        %v6109 = vunpack.c.h.b16 %v6074
        %v6110 = vunpack.c.l.b16 %v6075
        %v6111 = vunpack.c.h.b16 %v6075
        %v6112 = vunpack.c.l.b16 %v6076
        %v6113 = vunpack.c.h.b16 %v6076
        %v6114 = vunpack.c.l.b16 %v6077
        %v6115 = vunpack.c.h.b16 %v6077
        %v6116 = vunpack.c.l.b16 %v6078
        %v6117 = vunpack.c.h.b16 %v6078
        %v6118 = vunpack.c.l.b16 %v6079
        %v6119 = vunpack.c.h.b16 %v6079
        %v6120 = vunpack.c.l.b16 %v6080
        %v6121 = vunpack.c.h.b16 %v6080
        %v6122 = vunpack.c.l.b16 %v6081
        %v6123 = vunpack.c.h.b16 %v6081
        %v6124 = vunpack.c.l.b16 %v6082
        %v6125 = vunpack.c.h.b16 %v6082
        %v6126 = vunpack.c.l.b16 %v6083
        %v6127 = vunpack.c.h.b16 %v6083
        %v6128 = vunpack.c.l.b16 %v6084
        %v6129 = vunpack.c.h.b16 %v6084
        %v6130 = vunpack.c.l.b16 %v6085
        %v6131 = vunpack.c.h.b16 %v6085
        %v6132 = vunpack.c.l.b16 %v6086
        %v6133 = vunpack.c.h.b16 %v6086
        %v6134 = vunpack.c.l.b16 %v6087
        %v6135 = vunpack.c.h.b16 %v6087
        %v6136 = vpack.c.b16 %v6106, %v6104
        %v6137 = vpack.c.b16 %v6107, %v6105
        %v6138 = vpack.c.b16 %v6110, %v6108
        %v6139 = vpack.c.b16 %v6111, %v6109
        %v6140 = vpack.c.b16 %v6114, %v6112
        %v6141 = vpack.c.b16 %v6115, %v6113
        %v6142 = vpack.c.b16 %v6118, %v6116
        %v6143 = vpack.c.b16 %v6119, %v6117
        %v6144 = vpack.c.b16 %v6122, %v6120
        %v6145 = vpack.c.b16 %v6123, %v6121
        %v6146 = vpack.c.b16 %v6126, %v6124
        %v6147 = vpack.c.b16 %v6127, %v6125
        %v6148 = vpack.c.b16 %v6130, %v6128
        %v6149 = vpack.c.b16 %v6131, %v6129
        %v6150 = vpack.c.b16 %v6134, %v6132
        %v6151 = vpack.c.b16 %v6135, %v6133
        %6168 = vmatpush.bf16.msra.mxu0 %v6150
        %6169 = vmatpush.bf16.msra.mxu0 %v6148
        %6170 = vmatpush.bf16.msra.mxu0 %v6146
        %6171 = vmatpush.bf16.msra.mxu0 %v6144
        %6172 = vmatpush.bf16.msra.mxu0 %v6142
        %6173 = vmatpush.bf16.msra.mxu0 %v6140
        %6174 = vmatpush.bf16.msra.mxu0 %v6138
        %6175 = vmatpush.bf16.msra.mxu0 %v6136
        %6176 = vmatmul.bf16.gmra.mxu0 %v6070
        %v6177 = vpop.f32.mrf.mxu0
        %v6178 = vadd.f32 0.0, %v6177
        %v6179 = vpop.f32.mrf.mxu0
        %6180 = vdwg.mxu0
        %6181 = vmatpush.bf16.msra.mxu0 %v6151
        %6182 = vmatpush.bf16.msra.mxu0 %v6149
        %6183 = vmatpush.bf16.msra.mxu0 %v6147
        %6184 = vmatpush.bf16.msra.mxu0 %v6145
        %6185 = vmatpush.bf16.msra.mxu0 %v6143
        %6186 = vmatpush.bf16.msra.mxu0 %v6141
        %6187 = vmatpush.bf16.msra.mxu0 %v6139
        %6188 = vmatpush.bf16.msra.mxu0 %v6137
        %6189 = vmatmul.bf16.gmra.mxu0 %v6070
        %v6190 = vpop.f32.mrf.mxu0
        %v6191 = vadd.f32 0.0, %v6190
        %v6192 = vpop.f32.mrf.mxu0
        %6193 = vdwg.mxu0
        %v6194 = vadd.f32 %v6068, %v6178
        %v6195 = vadd.f32 %v6069, %v6191
        %s6196 = scalar_lea.vmem [#allocation12], 1152
        %v6197 = vld [vmem:[%s6196] sm:$0xff]
        %v6198 = vld [vmem:[%s6196 + $0x8] sm:$0xff]
        %v6199 = vld [vmem:[%s6196 + $0x10] sm:$0xff]
        %v6200 = vld [vmem:[%s6196 + $0x18] sm:$0xff]
        %v6201 = vld [vmem:[%s6196 + $0x20] sm:$0xff]
        %v6202 = vld [vmem:[%s6196 + $0x28] sm:$0xff]
        %v6203 = vld [vmem:[%s6196 + $0x30] sm:$0xff]
        %v6204 = vld [vmem:[%s6196 + $0x38] sm:$0xff]
        %v6205 = vld [vmem:[%s6196 + $0x40] sm:$0xff]
        %v6206 = vld [vmem:[%s6196 + $0x48] sm:$0xff]
        %v6207 = vld [vmem:[%s6196 + $0x50] sm:$0xff]
        %v6208 = vld [vmem:[%s6196 + $0x58] sm:$0xff]
        %v6209 = vld [vmem:[%s6196 + $0x60] sm:$0xff]
        %v6210 = vld [vmem:[%s6196 + $0x68] sm:$0xff]
        %v6211 = vld [vmem:[%s6196 + $0x70] sm:$0xff]
        %v6212 = vld [vmem:[%s6196 + $0x78] sm:$0xff]
        %v6214 = vshrl.u32 %v6070, 16
        %v6233 = vunpack.c.l.b16 %v6197
        %v6234 = vunpack.c.h.b16 %v6197
        %v6235 = vunpack.c.l.b16 %v6198
        %v6236 = vunpack.c.h.b16 %v6198
        %v6237 = vunpack.c.l.b16 %v6199
        %v6238 = vunpack.c.h.b16 %v6199
        %v6239 = vunpack.c.l.b16 %v6200
        %v6240 = vunpack.c.h.b16 %v6200
        %v6241 = vunpack.c.l.b16 %v6201
        %v6242 = vunpack.c.h.b16 %v6201
        %v6243 = vunpack.c.l.b16 %v6202
        %v6244 = vunpack.c.h.b16 %v6202
        %v6245 = vunpack.c.l.b16 %v6203
        %v6246 = vunpack.c.h.b16 %v6203
        %v6247 = vunpack.c.l.b16 %v6204
        %v6248 = vunpack.c.h.b16 %v6204
        %v6249 = vunpack.c.l.b16 %v6205
        %v6250 = vunpack.c.h.b16 %v6205
        %v6251 = vunpack.c.l.b16 %v6206
        %v6252 = vunpack.c.h.b16 %v6206
        %v6253 = vunpack.c.l.b16 %v6207
        %v6254 = vunpack.c.h.b16 %v6207
        %v6255 = vunpack.c.l.b16 %v6208
        %v6256 = vunpack.c.h.b16 %v6208
        %v6257 = vunpack.c.l.b16 %v6209
        %v6258 = vunpack.c.h.b16 %v6209
        %v6259 = vunpack.c.l.b16 %v6210
        %v6260 = vunpack.c.h.b16 %v6210
        %v6261 = vunpack.c.l.b16 %v6211
        %v6262 = vunpack.c.h.b16 %v6211
        %v6263 = vunpack.c.l.b16 %v6212
        %v6264 = vunpack.c.h.b16 %v6212
        %v6265 = vpack.c.b16 %v6235, %v6233
        %v6266 = vpack.c.b16 %v6236, %v6234
        %v6267 = vpack.c.b16 %v6239, %v6237
        %v6268 = vpack.c.b16 %v6240, %v6238
        %v6269 = vpack.c.b16 %v6243, %v6241
        %v6270 = vpack.c.b16 %v6244, %v6242
        %v6271 = vpack.c.b16 %v6247, %v6245
        %v6272 = vpack.c.b16 %v6248, %v6246
        %v6273 = vpack.c.b16 %v6251, %v6249
        %v6274 = vpack.c.b16 %v6252, %v6250
        %v6275 = vpack.c.b16 %v6255, %v6253
        %v6276 = vpack.c.b16 %v6256, %v6254
        %v6277 = vpack.c.b16 %v6259, %v6257
        %v6278 = vpack.c.b16 %v6260, %v6258
        %v6279 = vpack.c.b16 %v6263, %v6261
        %v6280 = vpack.c.b16 %v6264, %v6262
        %6297 = vmatpush.bf16.msra.mxu0 %v6279
        %6298 = vmatpush.bf16.msra.mxu0 %v6277
        %6299 = vmatpush.bf16.msra.mxu0 %v6275
        %6300 = vmatpush.bf16.msra.mxu0 %v6273
        %6301 = vmatpush.bf16.msra.mxu0 %v6271
        %6302 = vmatpush.bf16.msra.mxu0 %v6269
        %6303 = vmatpush.bf16.msra.mxu0 %v6267
        %6304 = vmatpush.bf16.msra.mxu0 %v6265
        %6305 = vmatmul.bf16.gmra.mxu0 %v6214
        %v6306 = vpop.f32.mrf.mxu0
        %v6307 = vadd.f32 0.0, %v6306
        %v6308 = vpop.f32.mrf.mxu0
        %6309 = vdwg.mxu0
        %6310 = vmatpush.bf16.msra.mxu0 %v6280
        %6311 = vmatpush.bf16.msra.mxu0 %v6278
        %6312 = vmatpush.bf16.msra.mxu0 %v6276
        %6313 = vmatpush.bf16.msra.mxu0 %v6274
        %6314 = vmatpush.bf16.msra.mxu0 %v6272
        %6315 = vmatpush.bf16.msra.mxu0 %v6270
        %6316 = vmatpush.bf16.msra.mxu0 %v6268
        %6317 = vmatpush.bf16.msra.mxu0 %v6266
        %6318 = vmatmul.bf16.gmra.mxu0 %v6214
        %v6319 = vpop.f32.mrf.mxu0
        %v6320 = vadd.f32 0.0, %v6319
        %v6321 = vpop.f32.mrf.mxu0
        %6322 = vdwg.mxu0
        %v6323 = vadd.f32 %v6194, %v6307
        %v6324 = vadd.f32 %v6195, %v6320
        %s6325 = scalar_lea.vmem [#allocation12], 1280
        %v6326 = vld [vmem:[%s6325] sm:$0xff]
        %v6327 = vld [vmem:[%s6325 + $0x8] sm:$0xff]
        %v6328 = vld [vmem:[%s6325 + $0x10] sm:$0xff]
        %v6329 = vld [vmem:[%s6325 + $0x18] sm:$0xff]
        %v6330 = vld [vmem:[%s6325 + $0x20] sm:$0xff]
        %v6331 = vld [vmem:[%s6325 + $0x28] sm:$0xff]
        %v6332 = vld [vmem:[%s6325 + $0x30] sm:$0xff]
        %v6333 = vld [vmem:[%s6325 + $0x38] sm:$0xff]
        %v6334 = vld [vmem:[%s6325 + $0x40] sm:$0xff]
        %v6335 = vld [vmem:[%s6325 + $0x48] sm:$0xff]
        %v6336 = vld [vmem:[%s6325 + $0x50] sm:$0xff]
        %v6337 = vld [vmem:[%s6325 + $0x58] sm:$0xff]
        %v6338 = vld [vmem:[%s6325 + $0x60] sm:$0xff]
        %v6339 = vld [vmem:[%s6325 + $0x68] sm:$0xff]
        %v6340 = vld [vmem:[%s6325 + $0x70] sm:$0xff]
        %v6341 = vld [vmem:[%s6325 + $0x78] sm:$0xff]
        %v6343 = vrot.slane %v6070, 1
        %v6361 = vunpack.c.l.b16 %v6326
        %v6362 = vunpack.c.h.b16 %v6326
        %v6363 = vunpack.c.l.b16 %v6327
        %v6364 = vunpack.c.h.b16 %v6327
        %v6365 = vunpack.c.l.b16 %v6328
        %v6366 = vunpack.c.h.b16 %v6328
        %v6367 = vunpack.c.l.b16 %v6329
        %v6368 = vunpack.c.h.b16 %v6329
        %v6369 = vunpack.c.l.b16 %v6330
        %v6370 = vunpack.c.h.b16 %v6330
        %v6371 = vunpack.c.l.b16 %v6331
        %v6372 = vunpack.c.h.b16 %v6331
        %v6373 = vunpack.c.l.b16 %v6332
        %v6374 = vunpack.c.h.b16 %v6332
        %v6375 = vunpack.c.l.b16 %v6333
        %v6376 = vunpack.c.h.b16 %v6333
        %v6377 = vunpack.c.l.b16 %v6334
        %v6378 = vunpack.c.h.b16 %v6334
        %v6379 = vunpack.c.l.b16 %v6335
        %v6380 = vunpack.c.h.b16 %v6335
        %v6381 = vunpack.c.l.b16 %v6336
        %v6382 = vunpack.c.h.b16 %v6336
        %v6383 = vunpack.c.l.b16 %v6337
        %v6384 = vunpack.c.h.b16 %v6337
        %v6385 = vunpack.c.l.b16 %v6338
        %v6386 = vunpack.c.h.b16 %v6338
        %v6387 = vunpack.c.l.b16 %v6339
        %v6388 = vunpack.c.h.b16 %v6339
        %v6389 = vunpack.c.l.b16 %v6340
        %v6390 = vunpack.c.h.b16 %v6340
        %v6391 = vunpack.c.l.b16 %v6341
        %v6392 = vunpack.c.h.b16 %v6341
        %v6393 = vpack.c.b16 %v6363, %v6361
        %v6394 = vpack.c.b16 %v6364, %v6362
        %v6395 = vpack.c.b16 %v6367, %v6365
        %v6396 = vpack.c.b16 %v6368, %v6366
        %v6397 = vpack.c.b16 %v6371, %v6369
        %v6398 = vpack.c.b16 %v6372, %v6370
        %v6399 = vpack.c.b16 %v6375, %v6373
        %v6400 = vpack.c.b16 %v6376, %v6374
        %v6401 = vpack.c.b16 %v6379, %v6377
        %v6402 = vpack.c.b16 %v6380, %v6378
        %v6403 = vpack.c.b16 %v6383, %v6381
        %v6404 = vpack.c.b16 %v6384, %v6382
        %v6405 = vpack.c.b16 %v6387, %v6385
        %v6406 = vpack.c.b16 %v6388, %v6386
        %v6407 = vpack.c.b16 %v6391, %v6389
        %v6408 = vpack.c.b16 %v6392, %v6390
        %6425 = vmatpush.bf16.msra.mxu0 %v6407
        %6426 = vmatpush.bf16.msra.mxu0 %v6405
        %6427 = vmatpush.bf16.msra.mxu0 %v6403
        %6428 = vmatpush.bf16.msra.mxu0 %v6401
        %6429 = vmatpush.bf16.msra.mxu0 %v6399
        %6430 = vmatpush.bf16.msra.mxu0 %v6397
        %6431 = vmatpush.bf16.msra.mxu0 %v6395
        %6432 = vmatpush.bf16.msra.mxu0 %v6393
        %6433 = vmatmul.bf16.gmra.mxu0 %v6343
        %v6434 = vpop.f32.mrf.mxu0
        %v6435 = vadd.f32 0.0, %v6434
        %v6436 = vpop.f32.mrf.mxu0
        %6437 = vdwg.mxu0
        %6438 = vmatpush.bf16.msra.mxu0 %v6408
        %6439 = vmatpush.bf16.msra.mxu0 %v6406
        %6440 = vmatpush.bf16.msra.mxu0 %v6404
        %6441 = vmatpush.bf16.msra.mxu0 %v6402
        %6442 = vmatpush.bf16.msra.mxu0 %v6400
        %6443 = vmatpush.bf16.msra.mxu0 %v6398
        %6444 = vmatpush.bf16.msra.mxu0 %v6396
        %6445 = vmatpush.bf16.msra.mxu0 %v6394
        %6446 = vmatmul.bf16.gmra.mxu0 %v6343
        %v6447 = vpop.f32.mrf.mxu0
        %v6448 = vadd.f32 0.0, %v6447
        %v6449 = vpop.f32.mrf.mxu0
        %6450 = vdwg.mxu0
        %v6451 = vadd.f32 %v6323, %v6435
        %v6452 = vadd.f32 %v6324, %v6448
        %s6453 = scalar_lea.vmem [#allocation12], 1408
        %v6454 = vld [vmem:[%s6453] sm:$0xff]
        %v6455 = vld [vmem:[%s6453 + $0x8] sm:$0xff]
        %v6456 = vld [vmem:[%s6453 + $0x10] sm:$0xff]
        %v6457 = vld [vmem:[%s6453 + $0x18] sm:$0xff]
        %v6458 = vld [vmem:[%s6453 + $0x20] sm:$0xff]
        %v6459 = vld [vmem:[%s6453 + $0x28] sm:$0xff]
        %v6460 = vld [vmem:[%s6453 + $0x30] sm:$0xff]
        %v6461 = vld [vmem:[%s6453 + $0x38] sm:$0xff]
        %v6462 = vld [vmem:[%s6453 + $0x40] sm:$0xff]
        %v6463 = vld [vmem:[%s6453 + $0x48] sm:$0xff]
        %v6464 = vld [vmem:[%s6453 + $0x50] sm:$0xff]
        %v6465 = vld [vmem:[%s6453 + $0x58] sm:$0xff]
        %v6466 = vld [vmem:[%s6453 + $0x60] sm:$0xff]
        %v6467 = vld [vmem:[%s6453 + $0x68] sm:$0xff]
        %v6468 = vld [vmem:[%s6453 + $0x70] sm:$0xff]
        %v6469 = vld [vmem:[%s6453 + $0x78] sm:$0xff]
        %v6470 = vrot.slane %v6214, 1
        %v6488 = vunpack.c.l.b16 %v6454
        %v6489 = vunpack.c.h.b16 %v6454
        %v6490 = vunpack.c.l.b16 %v6455
        %v6491 = vunpack.c.h.b16 %v6455
        %v6492 = vunpack.c.l.b16 %v6456
        %v6493 = vunpack.c.h.b16 %v6456
        %v6494 = vunpack.c.l.b16 %v6457
        %v6495 = vunpack.c.h.b16 %v6457
        %v6496 = vunpack.c.l.b16 %v6458
        %v6497 = vunpack.c.h.b16 %v6458
        %v6498 = vunpack.c.l.b16 %v6459
        %v6499 = vunpack.c.h.b16 %v6459
        %v6500 = vunpack.c.l.b16 %v6460
        %v6501 = vunpack.c.h.b16 %v6460
        %v6502 = vunpack.c.l.b16 %v6461
        %v6503 = vunpack.c.h.b16 %v6461
        %v6504 = vunpack.c.l.b16 %v6462
        %v6505 = vunpack.c.h.b16 %v6462
        %v6506 = vunpack.c.l.b16 %v6463
        %v6507 = vunpack.c.h.b16 %v6463
        %v6508 = vunpack.c.l.b16 %v6464
        %v6509 = vunpack.c.h.b16 %v6464
        %v6510 = vunpack.c.l.b16 %v6465
        %v6511 = vunpack.c.h.b16 %v6465
        %v6512 = vunpack.c.l.b16 %v6466
        %v6513 = vunpack.c.h.b16 %v6466
        %v6514 = vunpack.c.l.b16 %v6467
        %v6515 = vunpack.c.h.b16 %v6467
        %v6516 = vunpack.c.l.b16 %v6468
        %v6517 = vunpack.c.h.b16 %v6468
        %v6518 = vunpack.c.l.b16 %v6469
        %v6519 = vunpack.c.h.b16 %v6469
        %v6520 = vpack.c.b16 %v6490, %v6488
        %v6521 = vpack.c.b16 %v6491, %v6489
        %v6522 = vpack.c.b16 %v6494, %v6492
        %v6523 = vpack.c.b16 %v6495, %v6493
        %v6524 = vpack.c.b16 %v6498, %v6496
        %v6525 = vpack.c.b16 %v6499, %v6497
        %v6526 = vpack.c.b16 %v6502, %v6500
        %v6527 = vpack.c.b16 %v6503, %v6501
        %v6528 = vpack.c.b16 %v6506, %v6504
        %v6529 = vpack.c.b16 %v6507, %v6505
        %v6530 = vpack.c.b16 %v6510, %v6508
        %v6531 = vpack.c.b16 %v6511, %v6509
        %v6532 = vpack.c.b16 %v6514, %v6512
        %v6533 = vpack.c.b16 %v6515, %v6513
        %v6534 = vpack.c.b16 %v6518, %v6516
        %v6535 = vpack.c.b16 %v6519, %v6517
        %6552 = vmatpush.bf16.msra.mxu0 %v6534
        %6553 = vmatpush.bf16.msra.mxu0 %v6532
        %6554 = vmatpush.bf16.msra.mxu0 %v6530
        %6555 = vmatpush.bf16.msra.mxu0 %v6528
        %6556 = vmatpush.bf16.msra.mxu0 %v6526
        %6557 = vmatpush.bf16.msra.mxu0 %v6524
        %6558 = vmatpush.bf16.msra.mxu0 %v6522
        %6559 = vmatpush.bf16.msra.mxu0 %v6520
        %6560 = vmatmul.bf16.gmra.mxu0 %v6470
        %v6561 = vpop.f32.mrf.mxu0
        %v6562 = vadd.f32 0.0, %v6561
        %v6563 = vpop.f32.mrf.mxu0
        %6564 = vdwg.mxu0
        %6565 = vmatpush.bf16.msra.mxu0 %v6535
        %6566 = vmatpush.bf16.msra.mxu0 %v6533
        %6567 = vmatpush.bf16.msra.mxu0 %v6531
        %6568 = vmatpush.bf16.msra.mxu0 %v6529
        %6569 = vmatpush.bf16.msra.mxu0 %v6527
        %6570 = vmatpush.bf16.msra.mxu0 %v6525
        %6571 = vmatpush.bf16.msra.mxu0 %v6523
        %6572 = vmatpush.bf16.msra.mxu0 %v6521
        %6573 = vmatmul.bf16.gmra.mxu0 %v6470
        %v6574 = vpop.f32.mrf.mxu0
        %v6575 = vadd.f32 0.0, %v6574
        %v6576 = vpop.f32.mrf.mxu0
        %6577 = vdwg.mxu0
        %v6578 = vadd.f32 %v6451, %v6562
        %v6579 = vadd.f32 %v6452, %v6575
        %v6580 = vpack.c.bf16 %v5054, %v5054
        %s6581 = scalar_lea.vmem [#allocation12], 1536
        %v6582 = vld [vmem:[%s6581] sm:$0xff]
        %v6583 = vld [vmem:[%s6581 + $0x8] sm:$0xff]
        %v6584 = vld [vmem:[%s6581 + $0x10] sm:$0xff]
        %v6585 = vld [vmem:[%s6581 + $0x18] sm:$0xff]
        %v6586 = vld [vmem:[%s6581 + $0x20] sm:$0xff]
        %v6587 = vld [vmem:[%s6581 + $0x28] sm:$0xff]
        %v6588 = vld [vmem:[%s6581 + $0x30] sm:$0xff]
        %v6589 = vld [vmem:[%s6581 + $0x38] sm:$0xff]
        %v6590 = vld [vmem:[%s6581 + $0x40] sm:$0xff]
        %v6591 = vld [vmem:[%s6581 + $0x48] sm:$0xff]
        %v6592 = vld [vmem:[%s6581 + $0x50] sm:$0xff]
        %v6593 = vld [vmem:[%s6581 + $0x58] sm:$0xff]
        %v6594 = vld [vmem:[%s6581 + $0x60] sm:$0xff]
        %v6595 = vld [vmem:[%s6581 + $0x68] sm:$0xff]
        %v6596 = vld [vmem:[%s6581 + $0x70] sm:$0xff]
        %v6597 = vld [vmem:[%s6581 + $0x78] sm:$0xff]
        %v6614 = vunpack.c.l.b16 %v6582
        %v6615 = vunpack.c.h.b16 %v6582
        %v6616 = vunpack.c.l.b16 %v6583
        %v6617 = vunpack.c.h.b16 %v6583
        %v6618 = vunpack.c.l.b16 %v6584
        %v6619 = vunpack.c.h.b16 %v6584
        %v6620 = vunpack.c.l.b16 %v6585
        %v6621 = vunpack.c.h.b16 %v6585
        %v6622 = vunpack.c.l.b16 %v6586
        %v6623 = vunpack.c.h.b16 %v6586
        %v6624 = vunpack.c.l.b16 %v6587
        %v6625 = vunpack.c.h.b16 %v6587
        %v6626 = vunpack.c.l.b16 %v6588
        %v6627 = vunpack.c.h.b16 %v6588
        %v6628 = vunpack.c.l.b16 %v6589
        %v6629 = vunpack.c.h.b16 %v6589
        %v6630 = vunpack.c.l.b16 %v6590
        %v6631 = vunpack.c.h.b16 %v6590
        %v6632 = vunpack.c.l.b16 %v6591
        %v6633 = vunpack.c.h.b16 %v6591
        %v6634 = vunpack.c.l.b16 %v6592
        %v6635 = vunpack.c.h.b16 %v6592
        %v6636 = vunpack.c.l.b16 %v6593
        %v6637 = vunpack.c.h.b16 %v6593
        %v6638 = vunpack.c.l.b16 %v6594
        %v6639 = vunpack.c.h.b16 %v6594
        %v6640 = vunpack.c.l.b16 %v6595
        %v6641 = vunpack.c.h.b16 %v6595
        %v6642 = vunpack.c.l.b16 %v6596
        %v6643 = vunpack.c.h.b16 %v6596
        %v6644 = vunpack.c.l.b16 %v6597
        %v6645 = vunpack.c.h.b16 %v6597
        %v6646 = vpack.c.b16 %v6616, %v6614
        %v6647 = vpack.c.b16 %v6617, %v6615
        %v6648 = vpack.c.b16 %v6620, %v6618
        %v6649 = vpack.c.b16 %v6621, %v6619
        %v6650 = vpack.c.b16 %v6624, %v6622
        %v6651 = vpack.c.b16 %v6625, %v6623
        %v6652 = vpack.c.b16 %v6628, %v6626
        %v6653 = vpack.c.b16 %v6629, %v6627
        %v6654 = vpack.c.b16 %v6632, %v6630
        %v6655 = vpack.c.b16 %v6633, %v6631
        %v6656 = vpack.c.b16 %v6636, %v6634
        %v6657 = vpack.c.b16 %v6637, %v6635
        %v6658 = vpack.c.b16 %v6640, %v6638
        %v6659 = vpack.c.b16 %v6641, %v6639
        %v6660 = vpack.c.b16 %v6644, %v6642
        %v6661 = vpack.c.b16 %v6645, %v6643
        %6678 = vmatpush.bf16.msra.mxu0 %v6660
        %6679 = vmatpush.bf16.msra.mxu0 %v6658
        %6680 = vmatpush.bf16.msra.mxu0 %v6656
        %6681 = vmatpush.bf16.msra.mxu0 %v6654
        %6682 = vmatpush.bf16.msra.mxu0 %v6652
        %6683 = vmatpush.bf16.msra.mxu0 %v6650
        %6684 = vmatpush.bf16.msra.mxu0 %v6648
        %6685 = vmatpush.bf16.msra.mxu0 %v6646
        %6686 = vmatmul.bf16.gmra.mxu0 %v6580
        %v6687 = vpop.f32.mrf.mxu0
        %v6688 = vadd.f32 0.0, %v6687
        %v6689 = vpop.f32.mrf.mxu0
        %6690 = vdwg.mxu0
        %6691 = vmatpush.bf16.msra.mxu0 %v6661
        %6692 = vmatpush.bf16.msra.mxu0 %v6659
        %6693 = vmatpush.bf16.msra.mxu0 %v6657
        %6694 = vmatpush.bf16.msra.mxu0 %v6655
        %6695 = vmatpush.bf16.msra.mxu0 %v6653
        %6696 = vmatpush.bf16.msra.mxu0 %v6651
        %6697 = vmatpush.bf16.msra.mxu0 %v6649
        %6698 = vmatpush.bf16.msra.mxu0 %v6647
        %6699 = vmatmul.bf16.gmra.mxu0 %v6580
        %v6700 = vpop.f32.mrf.mxu0
        %v6701 = vadd.f32 0.0, %v6700
        %v6702 = vpop.f32.mrf.mxu0
        %6703 = vdwg.mxu0
        %v6704 = vadd.f32 %v6578, %v6688
        %v6705 = vadd.f32 %v6579, %v6701
        %s6706 = scalar_lea.vmem [#allocation12], 1664
        %v6707 = vld [vmem:[%s6706] sm:$0xff]
        %v6708 = vld [vmem:[%s6706 + $0x8] sm:$0xff]
        %v6709 = vld [vmem:[%s6706 + $0x10] sm:$0xff]
        %v6710 = vld [vmem:[%s6706 + $0x18] sm:$0xff]
        %v6711 = vld [vmem:[%s6706 + $0x20] sm:$0xff]
        %v6712 = vld [vmem:[%s6706 + $0x28] sm:$0xff]
        %v6713 = vld [vmem:[%s6706 + $0x30] sm:$0xff]
        %v6714 = vld [vmem:[%s6706 + $0x38] sm:$0xff]
        %v6715 = vld [vmem:[%s6706 + $0x40] sm:$0xff]
        %v6716 = vld [vmem:[%s6706 + $0x48] sm:$0xff]
        %v6717 = vld [vmem:[%s6706 + $0x50] sm:$0xff]
        %v6718 = vld [vmem:[%s6706 + $0x58] sm:$0xff]
        %v6719 = vld [vmem:[%s6706 + $0x60] sm:$0xff]
        %v6720 = vld [vmem:[%s6706 + $0x68] sm:$0xff]
        %v6721 = vld [vmem:[%s6706 + $0x70] sm:$0xff]
        %v6722 = vld [vmem:[%s6706 + $0x78] sm:$0xff]
        %v6724 = vshrl.u32 %v6580, 16
        %v6743 = vunpack.c.l.b16 %v6707
        %v6744 = vunpack.c.h.b16 %v6707
        %v6745 = vunpack.c.l.b16 %v6708
        %v6746 = vunpack.c.h.b16 %v6708
        %v6747 = vunpack.c.l.b16 %v6709
        %v6748 = vunpack.c.h.b16 %v6709
        %v6749 = vunpack.c.l.b16 %v6710
        %v6750 = vunpack.c.h.b16 %v6710
        %v6751 = vunpack.c.l.b16 %v6711
        %v6752 = vunpack.c.h.b16 %v6711
        %v6753 = vunpack.c.l.b16 %v6712
        %v6754 = vunpack.c.h.b16 %v6712
        %v6755 = vunpack.c.l.b16 %v6713
        %v6756 = vunpack.c.h.b16 %v6713
        %v6757 = vunpack.c.l.b16 %v6714
        %v6758 = vunpack.c.h.b16 %v6714
        %v6759 = vunpack.c.l.b16 %v6715
        %v6760 = vunpack.c.h.b16 %v6715
        %v6761 = vunpack.c.l.b16 %v6716
        %v6762 = vunpack.c.h.b16 %v6716
        %v6763 = vunpack.c.l.b16 %v6717
        %v6764 = vunpack.c.h.b16 %v6717
        %v6765 = vunpack.c.l.b16 %v6718
        %v6766 = vunpack.c.h.b16 %v6718
        %v6767 = vunpack.c.l.b16 %v6719
        %v6768 = vunpack.c.h.b16 %v6719
        %v6769 = vunpack.c.l.b16 %v6720
        %v6770 = vunpack.c.h.b16 %v6720
        %v6771 = vunpack.c.l.b16 %v6721
        %v6772 = vunpack.c.h.b16 %v6721
        %v6773 = vunpack.c.l.b16 %v6722
        %v6774 = vunpack.c.h.b16 %v6722
        %v6775 = vpack.c.b16 %v6745, %v6743
        %v6776 = vpack.c.b16 %v6746, %v6744
        %v6777 = vpack.c.b16 %v6749, %v6747
        %v6778 = vpack.c.b16 %v6750, %v6748
        %v6779 = vpack.c.b16 %v6753, %v6751
        %v6780 = vpack.c.b16 %v6754, %v6752
        %v6781 = vpack.c.b16 %v6757, %v6755
        %v6782 = vpack.c.b16 %v6758, %v6756
        %v6783 = vpack.c.b16 %v6761, %v6759
        %v6784 = vpack.c.b16 %v6762, %v6760
        %v6785 = vpack.c.b16 %v6765, %v6763
        %v6786 = vpack.c.b16 %v6766, %v6764
        %v6787 = vpack.c.b16 %v6769, %v6767
        %v6788 = vpack.c.b16 %v6770, %v6768
        %v6789 = vpack.c.b16 %v6773, %v6771
        %v6790 = vpack.c.b16 %v6774, %v6772
        %6807 = vmatpush.bf16.msra.mxu0 %v6789
        %6808 = vmatpush.bf16.msra.mxu0 %v6787
        %6809 = vmatpush.bf16.msra.mxu0 %v6785
        %6810 = vmatpush.bf16.msra.mxu0 %v6783
        %6811 = vmatpush.bf16.msra.mxu0 %v6781
        %6812 = vmatpush.bf16.msra.mxu0 %v6779
        %6813 = vmatpush.bf16.msra.mxu0 %v6777
        %6814 = vmatpush.bf16.msra.mxu0 %v6775
        %6815 = vmatmul.bf16.gmra.mxu0 %v6724
        %v6816 = vpop.f32.mrf.mxu0
        %v6817 = vadd.f32 0.0, %v6816
        %v6818 = vpop.f32.mrf.mxu0
        %6819 = vdwg.mxu0
        %6820 = vmatpush.bf16.msra.mxu0 %v6790
        %6821 = vmatpush.bf16.msra.mxu0 %v6788
        %6822 = vmatpush.bf16.msra.mxu0 %v6786
        %6823 = vmatpush.bf16.msra.mxu0 %v6784
        %6824 = vmatpush.bf16.msra.mxu0 %v6782
        %6825 = vmatpush.bf16.msra.mxu0 %v6780
        %6826 = vmatpush.bf16.msra.mxu0 %v6778
        %6827 = vmatpush.bf16.msra.mxu0 %v6776
        %6828 = vmatmul.bf16.gmra.mxu0 %v6724
        %v6829 = vpop.f32.mrf.mxu0
        %v6830 = vadd.f32 0.0, %v6829
        %v6831 = vpop.f32.mrf.mxu0
        %6832 = vdwg.mxu0
        %v6833 = vadd.f32 %v6704, %v6817
        %v6834 = vadd.f32 %v6705, %v6830
        %s6835 = scalar_lea.vmem [#allocation12], 1792
        %v6836 = vld [vmem:[%s6835] sm:$0xff]
        %v6837 = vld [vmem:[%s6835 + $0x8] sm:$0xff]
        %v6838 = vld [vmem:[%s6835 + $0x10] sm:$0xff]
        %v6839 = vld [vmem:[%s6835 + $0x18] sm:$0xff]
        %v6840 = vld [vmem:[%s6835 + $0x20] sm:$0xff]
        %v6841 = vld [vmem:[%s6835 + $0x28] sm:$0xff]
        %v6842 = vld [vmem:[%s6835 + $0x30] sm:$0xff]
        %v6843 = vld [vmem:[%s6835 + $0x38] sm:$0xff]
        %v6844 = vld [vmem:[%s6835 + $0x40] sm:$0xff]
        %v6845 = vld [vmem:[%s6835 + $0x48] sm:$0xff]
        %v6846 = vld [vmem:[%s6835 + $0x50] sm:$0xff]
        %v6847 = vld [vmem:[%s6835 + $0x58] sm:$0xff]
        %v6848 = vld [vmem:[%s6835 + $0x60] sm:$0xff]
        %v6849 = vld [vmem:[%s6835 + $0x68] sm:$0xff]
        %v6850 = vld [vmem:[%s6835 + $0x70] sm:$0xff]
        %v6851 = vld [vmem:[%s6835 + $0x78] sm:$0xff]
        %v6853 = vrot.slane %v6580, 1
        %v6871 = vunpack.c.l.b16 %v6836
        %v6872 = vunpack.c.h.b16 %v6836
        %v6873 = vunpack.c.l.b16 %v6837
        %v6874 = vunpack.c.h.b16 %v6837
        %v6875 = vunpack.c.l.b16 %v6838
        %v6876 = vunpack.c.h.b16 %v6838
        %v6877 = vunpack.c.l.b16 %v6839
        %v6878 = vunpack.c.h.b16 %v6839
        %v6879 = vunpack.c.l.b16 %v6840
        %v6880 = vunpack.c.h.b16 %v6840
        %v6881 = vunpack.c.l.b16 %v6841
        %v6882 = vunpack.c.h.b16 %v6841
        %v6883 = vunpack.c.l.b16 %v6842
        %v6884 = vunpack.c.h.b16 %v6842
        %v6885 = vunpack.c.l.b16 %v6843
        %v6886 = vunpack.c.h.b16 %v6843
        %v6887 = vunpack.c.l.b16 %v6844
        %v6888 = vunpack.c.h.b16 %v6844
        %v6889 = vunpack.c.l.b16 %v6845
        %v6890 = vunpack.c.h.b16 %v6845
        %v6891 = vunpack.c.l.b16 %v6846
        %v6892 = vunpack.c.h.b16 %v6846
        %v6893 = vunpack.c.l.b16 %v6847
        %v6894 = vunpack.c.h.b16 %v6847
        %v6895 = vunpack.c.l.b16 %v6848
        %v6896 = vunpack.c.h.b16 %v6848
        %v6897 = vunpack.c.l.b16 %v6849
        %v6898 = vunpack.c.h.b16 %v6849
        %v6899 = vunpack.c.l.b16 %v6850
        %v6900 = vunpack.c.h.b16 %v6850
        %v6901 = vunpack.c.l.b16 %v6851
        %v6902 = vunpack.c.h.b16 %v6851
        %v6903 = vpack.c.b16 %v6873, %v6871
        %v6904 = vpack.c.b16 %v6874, %v6872
        %v6905 = vpack.c.b16 %v6877, %v6875
        %v6906 = vpack.c.b16 %v6878, %v6876
        %v6907 = vpack.c.b16 %v6881, %v6879
        %v6908 = vpack.c.b16 %v6882, %v6880
        %v6909 = vpack.c.b16 %v6885, %v6883
        %v6910 = vpack.c.b16 %v6886, %v6884
        %v6911 = vpack.c.b16 %v6889, %v6887
        %v6912 = vpack.c.b16 %v6890, %v6888
        %v6913 = vpack.c.b16 %v6893, %v6891
        %v6914 = vpack.c.b16 %v6894, %v6892
        %v6915 = vpack.c.b16 %v6897, %v6895
        %v6916 = vpack.c.b16 %v6898, %v6896
        %v6917 = vpack.c.b16 %v6901, %v6899
        %v6918 = vpack.c.b16 %v6902, %v6900
        %6935 = vmatpush.bf16.msra.mxu0 %v6917
        %6936 = vmatpush.bf16.msra.mxu0 %v6915
        %6937 = vmatpush.bf16.msra.mxu0 %v6913
        %6938 = vmatpush.bf16.msra.mxu0 %v6911
        %6939 = vmatpush.bf16.msra.mxu0 %v6909
        %6940 = vmatpush.bf16.msra.mxu0 %v6907
        %6941 = vmatpush.bf16.msra.mxu0 %v6905
        %6942 = vmatpush.bf16.msra.mxu0 %v6903
        %6943 = vmatmul.bf16.gmra.mxu0 %v6853
        %v6944 = vpop.f32.mrf.mxu0
        %v6945 = vadd.f32 0.0, %v6944
        %v6946 = vpop.f32.mrf.mxu0
        %6947 = vdwg.mxu0
        %6948 = vmatpush.bf16.msra.mxu0 %v6918
        %6949 = vmatpush.bf16.msra.mxu0 %v6916
        %6950 = vmatpush.bf16.msra.mxu0 %v6914
        %6951 = vmatpush.bf16.msra.mxu0 %v6912
        %6952 = vmatpush.bf16.msra.mxu0 %v6910
        %6953 = vmatpush.bf16.msra.mxu0 %v6908
        %6954 = vmatpush.bf16.msra.mxu0 %v6906
        %6955 = vmatpush.bf16.msra.mxu0 %v6904
        %6956 = vmatmul.bf16.gmra.mxu0 %v6853
        %v6957 = vpop.f32.mrf.mxu0
        %v6958 = vadd.f32 0.0, %v6957
        %v6959 = vpop.f32.mrf.mxu0
        %6960 = vdwg.mxu0
        %v6961 = vadd.f32 %v6833, %v6945
        %v6962 = vadd.f32 %v6834, %v6958
        %s6963 = scalar_lea.vmem [#allocation12], 1920
        %v6964 = vld [vmem:[%s6963] sm:$0xff]
        %v6965 = vld [vmem:[%s6963 + $0x8] sm:$0xff]
        %v6966 = vld [vmem:[%s6963 + $0x10] sm:$0xff]
        %v6967 = vld [vmem:[%s6963 + $0x18] sm:$0xff]
        %v6968 = vld [vmem:[%s6963 + $0x20] sm:$0xff]
        %v6969 = vld [vmem:[%s6963 + $0x28] sm:$0xff]
        %v6970 = vld [vmem:[%s6963 + $0x30] sm:$0xff]
        %v6971 = vld [vmem:[%s6963 + $0x38] sm:$0xff]
        %v6972 = vld [vmem:[%s6963 + $0x40] sm:$0xff]
        %v6973 = vld [vmem:[%s6963 + $0x48] sm:$0xff]
        %v6974 = vld [vmem:[%s6963 + $0x50] sm:$0xff]
        %v6975 = vld [vmem:[%s6963 + $0x58] sm:$0xff]
        %v6976 = vld [vmem:[%s6963 + $0x60] sm:$0xff]
        %v6977 = vld [vmem:[%s6963 + $0x68] sm:$0xff]
        %v6978 = vld [vmem:[%s6963 + $0x70] sm:$0xff]
        %v6979 = vld [vmem:[%s6963 + $0x78] sm:$0xff]
        %v6980 = vrot.slane %v6724, 1
        %v6998 = vunpack.c.l.b16 %v6964
        %v6999 = vunpack.c.h.b16 %v6964
        %v7000 = vunpack.c.l.b16 %v6965
        %v7001 = vunpack.c.h.b16 %v6965
        %v7002 = vunpack.c.l.b16 %v6966
        %v7003 = vunpack.c.h.b16 %v6966
        %v7004 = vunpack.c.l.b16 %v6967
        %v7005 = vunpack.c.h.b16 %v6967
        %v7006 = vunpack.c.l.b16 %v6968
        %v7007 = vunpack.c.h.b16 %v6968
        %v7008 = vunpack.c.l.b16 %v6969
        %v7009 = vunpack.c.h.b16 %v6969
        %v7010 = vunpack.c.l.b16 %v6970
        %v7011 = vunpack.c.h.b16 %v6970
        %v7012 = vunpack.c.l.b16 %v6971
        %v7013 = vunpack.c.h.b16 %v6971
        %v7014 = vunpack.c.l.b16 %v6972
        %v7015 = vunpack.c.h.b16 %v6972
        %v7016 = vunpack.c.l.b16 %v6973
        %v7017 = vunpack.c.h.b16 %v6973
        %v7018 = vunpack.c.l.b16 %v6974
        %v7019 = vunpack.c.h.b16 %v6974
        %v7020 = vunpack.c.l.b16 %v6975
        %v7021 = vunpack.c.h.b16 %v6975
        %v7022 = vunpack.c.l.b16 %v6976
        %v7023 = vunpack.c.h.b16 %v6976
        %v7024 = vunpack.c.l.b16 %v6977
        %v7025 = vunpack.c.h.b16 %v6977
        %v7026 = vunpack.c.l.b16 %v6978
        %v7027 = vunpack.c.h.b16 %v6978
        %v7028 = vunpack.c.l.b16 %v6979
        %v7029 = vunpack.c.h.b16 %v6979
        %v7030 = vpack.c.b16 %v7000, %v6998
        %v7031 = vpack.c.b16 %v7001, %v6999
        %v7032 = vpack.c.b16 %v7004, %v7002
        %v7033 = vpack.c.b16 %v7005, %v7003
        %v7034 = vpack.c.b16 %v7008, %v7006
        %v7035 = vpack.c.b16 %v7009, %v7007
        %v7036 = vpack.c.b16 %v7012, %v7010
        %v7037 = vpack.c.b16 %v7013, %v7011
        %v7038 = vpack.c.b16 %v7016, %v7014
        %v7039 = vpack.c.b16 %v7017, %v7015
        %v7040 = vpack.c.b16 %v7020, %v7018
        %v7041 = vpack.c.b16 %v7021, %v7019
        %v7042 = vpack.c.b16 %v7024, %v7022
        %v7043 = vpack.c.b16 %v7025, %v7023
        %v7044 = vpack.c.b16 %v7028, %v7026
        %v7045 = vpack.c.b16 %v7029, %v7027
        %7062 = vmatpush.bf16.msra.mxu0 %v7044
        %7063 = vmatpush.bf16.msra.mxu0 %v7042
        %7064 = vmatpush.bf16.msra.mxu0 %v7040
        %7065 = vmatpush.bf16.msra.mxu0 %v7038
        %7066 = vmatpush.bf16.msra.mxu0 %v7036
        %7067 = vmatpush.bf16.msra.mxu0 %v7034
        %7068 = vmatpush.bf16.msra.mxu0 %v7032
        %7069 = vmatpush.bf16.msra.mxu0 %v7030
        %7070 = vmatmul.bf16.gmra.mxu0 %v6980
        %v7071 = vpop.f32.mrf.mxu0
        %v7072 = vadd.f32 0.0, %v7071
        %v7073 = vpop.f32.mrf.mxu0
        %7074 = vdwg.mxu0
        %7075 = vmatpush.bf16.msra.mxu0 %v7045
        %7076 = vmatpush.bf16.msra.mxu0 %v7043
        %7077 = vmatpush.bf16.msra.mxu0 %v7041
        %7078 = vmatpush.bf16.msra.mxu0 %v7039
        %7079 = vmatpush.bf16.msra.mxu0 %v7037
        %7080 = vmatpush.bf16.msra.mxu0 %v7035
        %7081 = vmatpush.bf16.msra.mxu0 %v7033
        %7082 = vmatpush.bf16.msra.mxu0 %v7031
        %7083 = vmatmul.bf16.gmra.mxu0 %v6980
        %v7084 = vpop.f32.mrf.mxu0
        %v7085 = vadd.f32 0.0, %v7084
        %v7086 = vpop.f32.mrf.mxu0
        %7087 = vdwg.mxu0
        %v7088 = vadd.f32 %v6961, %v7072
        %v7089 = vadd.f32 %v6962, %v7085
        %v7090 = vld [vmem:[%s5] sm:$0x3]
        %v7092 = vperm.slane %v7090, 0
        %v7093 = vperm.slane %v7090, 1
        %v7096 = vadd.f32 %v7088, %v7092
        %v7097 = vadd.f32 %v7089, %v7093
        %v7098 = vmax.f32 %v7096, 0.0
        %v7099 = vmax.f32 %v7097, 0.0
        %v7100 = vld [vmem:[%s6] sm:$0x3]
        %v7102 = vperm.slane %v7100, 0
        %v7103 = vperm.slane %v7100, 1
        %v7106 = vmul.f32 %v7098, %v7102
        %v7107 = vmul.f32 %v7099, %v7103
        %v7108 = vld [vmem:[%s7] sm:$0x3]
        %v7110 = vperm.slane %v7108, 0
        %v7111 = vperm.slane %v7108, 1
        %v7114 = vadd.f32 %v7106, %v7110
        %v7115 = vadd.f32 %v7107, %v7111
        %v7116 = vpack.c.bf16 %v7114, %v7114
        %v7117 = vpack.c.bf16 %v7115, %v7115
        %v7118 = vld [vmem:[#allocation13] sm:$0xf]
        %v7119 = vld [vmem:[#allocation13 + $0x4] sm:$0xf]
        %v7120 = vld [vmem:[#allocation13 + $0x8] sm:$0xf]
        %v7121 = vld [vmem:[#allocation13 + $0xc] sm:$0xf]
        %v7122 = vld [vmem:[#allocation13 + $0x10] sm:$0xf]
        %v7123 = vld [vmem:[#allocation13 + $0x14] sm:$0xf]
        %v7124 = vld [vmem:[#allocation13 + $0x18] sm:$0xf]
        %v7125 = vld [vmem:[#allocation13 + $0x1c] sm:$0xf]
        %v7126 = vld [vmem:[#allocation13 + $0x20] sm:$0xf]
        %v7127 = vld [vmem:[#allocation13 + $0x24] sm:$0xf]
        %v7128 = vld [vmem:[#allocation13 + $0x28] sm:$0xf]
        %v7129 = vld [vmem:[#allocation13 + $0x2c] sm:$0xf]
        %v7130 = vld [vmem:[#allocation13 + $0x30] sm:$0xf]
        %v7131 = vld [vmem:[#allocation13 + $0x34] sm:$0xf]
        %v7132 = vld [vmem:[#allocation13 + $0x38] sm:$0xf]
        %v7133 = vld [vmem:[#allocation13 + $0x3c] sm:$0xf]
        %v7134 = vld [vmem:[#allocation13 + $0x40] sm:$0xf]
        %v7135 = vld [vmem:[#allocation13 + $0x44] sm:$0xf]
        %v7136 = vld [vmem:[#allocation13 + $0x48] sm:$0xf]
        %v7137 = vld [vmem:[#allocation13 + $0x4c] sm:$0xf]
        %v7138 = vld [vmem:[#allocation13 + $0x50] sm:$0xf]
        %v7139 = vld [vmem:[#allocation13 + $0x54] sm:$0xf]
        %v7140 = vld [vmem:[#allocation13 + $0x58] sm:$0xf]
        %v7141 = vld [vmem:[#allocation13 + $0x5c] sm:$0xf]
        %v7142 = vld [vmem:[#allocation13 + $0x60] sm:$0xf]
        %v7143 = vld [vmem:[#allocation13 + $0x64] sm:$0xf]
        %v7144 = vld [vmem:[#allocation13 + $0x68] sm:$0xf]
        %v7145 = vld [vmem:[#allocation13 + $0x6c] sm:$0xf]
        %v7146 = vld [vmem:[#allocation13 + $0x70] sm:$0xf]
        %v7147 = vld [vmem:[#allocation13 + $0x74] sm:$0xf]
        %v7148 = vld [vmem:[#allocation13 + $0x78] sm:$0xf]
        %v7149 = vld [vmem:[#allocation13 + $0x7c] sm:$0xf]
        %v7150 = vld [vmem:[%s9] sm:$0x1]
        %v7183 = vunpack.c.l.b16 %v7118
        %v7184 = vunpack.c.l.b16 %v7119
        %v7185 = vunpack.c.l.b16 %v7120
        %v7186 = vunpack.c.l.b16 %v7121
        %v7187 = vunpack.c.l.b16 %v7122
        %v7188 = vunpack.c.l.b16 %v7123
        %v7189 = vunpack.c.l.b16 %v7124
        %v7190 = vunpack.c.l.b16 %v7125
        %v7191 = vunpack.c.l.b16 %v7126
        %v7192 = vunpack.c.l.b16 %v7127
        %v7193 = vunpack.c.l.b16 %v7128
        %v7194 = vunpack.c.l.b16 %v7129
        %v7195 = vunpack.c.l.b16 %v7130
        %v7196 = vunpack.c.l.b16 %v7131
        %v7197 = vunpack.c.l.b16 %v7132
        %v7198 = vunpack.c.l.b16 %v7133
        %v7199 = vunpack.c.l.b16 %v7134
        %v7200 = vunpack.c.l.b16 %v7135
        %v7201 = vunpack.c.l.b16 %v7136
        %v7202 = vunpack.c.l.b16 %v7137
        %v7203 = vunpack.c.l.b16 %v7138
        %v7204 = vunpack.c.l.b16 %v7139
        %v7205 = vunpack.c.l.b16 %v7140
        %v7206 = vunpack.c.l.b16 %v7141
        %v7207 = vunpack.c.l.b16 %v7142
        %v7208 = vunpack.c.l.b16 %v7143
        %v7209 = vunpack.c.l.b16 %v7144
        %v7210 = vunpack.c.l.b16 %v7145
        %v7211 = vunpack.c.l.b16 %v7146
        %v7212 = vunpack.c.l.b16 %v7147
        %v7213 = vunpack.c.l.b16 %v7148
        %v7214 = vunpack.c.l.b16 %v7149
        %v7215 = vpack.c.b16 %v7184, %v7183
        %v7216 = vpack.c.b16 %v7186, %v7185
        %v7217 = vpack.c.b16 %v7188, %v7187
        %v7218 = vpack.c.b16 %v7190, %v7189
        %v7219 = vpack.c.b16 %v7192, %v7191
        %v7220 = vpack.c.b16 %v7194, %v7193
        %v7221 = vpack.c.b16 %v7196, %v7195
        %v7222 = vpack.c.b16 %v7198, %v7197
        %v7223 = vpack.c.b16 %v7200, %v7199
        %v7224 = vpack.c.b16 %v7202, %v7201
        %v7225 = vpack.c.b16 %v7204, %v7203
        %v7226 = vpack.c.b16 %v7206, %v7205
        %v7227 = vpack.c.b16 %v7208, %v7207
        %v7228 = vpack.c.b16 %v7210, %v7209
        %v7229 = vpack.c.b16 %v7212, %v7211
        %v7230 = vpack.c.b16 %v7214, %v7213
        %7247 = vmatpush.bf16.msra.mxu0 %v7222
        %7248 = vmatpush.bf16.msra.mxu0 %v7221
        %7249 = vmatpush.bf16.msra.mxu0 %v7220
        %7250 = vmatpush.bf16.msra.mxu0 %v7219
        %7251 = vmatpush.bf16.msra.mxu0 %v7218
        %7252 = vmatpush.bf16.msra.mxu0 %v7217
        %7253 = vmatpush.bf16.msra.mxu0 %v7216
        %7254 = vmatpush.bf16.msra.mxu0 %v7215
        %7255 = vmatmul.bf16.gmra.mxu0 %v7116
        %v7256 = vpop.f32.mrf.mxu0
        %v7257 = vadd.f32 %v7150, %v7256
        %v7258 = vpop.f32.mrf.mxu0
        %7259 = vdwg.mxu0
        %7260 = vmatpush.bf16.msra.mxu0 %v7230
        %7261 = vmatpush.bf16.msra.mxu0 %v7229
        %7262 = vmatpush.bf16.msra.mxu0 %v7228
        %7263 = vmatpush.bf16.msra.mxu0 %v7227
        %7264 = vmatpush.bf16.msra.mxu0 %v7226
        %7265 = vmatpush.bf16.msra.mxu0 %v7225
        %7266 = vmatpush.bf16.msra.mxu0 %v7224
        %7267 = vmatpush.bf16.msra.mxu0 %v7223
        %7268 = vmatmul.bf16.gmra.mxu0 %v7117
        %v7269 = vpop.f32.mrf.mxu0
        %v7270 = vadd.f32 %v7257, %v7269
        %v7271 = vpop.f32.mrf.mxu0
        %7272 = vdwg.mxu0
        %v7273 = vmax.f32 %v7270, 0.0
        %v7274 = vld [vmem:[%s10] sm:$0x1]
        %v7275 = vmul.f32 %v7273, %v7274
        %v7276 = vld [vmem:[%s11] sm:$0x1]
        %v7277 = vadd.f32 %v7275, %v7276
        %v7278 = vpack.c.bf16 %v7277, %v7277
        %v7279 = vld [vmem:[#allocation15] sm:$0xf]
        %v7280 = vld [vmem:[#allocation15 + $0x4] sm:$0xf]
        %v7281 = vld [vmem:[#allocation15 + $0x8] sm:$0xf]
        %v7282 = vld [vmem:[#allocation15 + $0xc] sm:$0xf]
        %v7283 = vld [vmem:[#allocation15 + $0x10] sm:$0xf]
        %v7284 = vld [vmem:[#allocation15 + $0x14] sm:$0xf]
        %v7285 = vld [vmem:[#allocation15 + $0x18] sm:$0xf]
        %v7286 = vld [vmem:[#allocation15 + $0x1c] sm:$0xf]
        %v7287 = vld [vmem:[#allocation15 + $0x20] sm:$0xf]
        %v7288 = vld [vmem:[#allocation15 + $0x24] sm:$0xf]
        %v7289 = vld [vmem:[#allocation15 + $0x28] sm:$0xf]
        %v7290 = vld [vmem:[#allocation15 + $0x2c] sm:$0xf]
        %v7291 = vld [vmem:[#allocation15 + $0x30] sm:$0xf]
        %v7292 = vld [vmem:[#allocation15 + $0x34] sm:$0xf]
        %v7293 = vld [vmem:[#allocation15 + $0x38] sm:$0xf]
        %v7294 = vld [vmem:[#allocation15 + $0x3c] sm:$0xf]
        %v7295 = vld [vmem:[%s13] sm:$0x1]
        %v7312 = vunpack.c.l.b16 %v7279
        %v7313 = vunpack.c.l.b16 %v7280
        %v7314 = vunpack.c.l.b16 %v7281
        %v7315 = vunpack.c.l.b16 %v7282
        %v7316 = vunpack.c.l.b16 %v7283
        %v7317 = vunpack.c.l.b16 %v7284
        %v7318 = vunpack.c.l.b16 %v7285
        %v7319 = vunpack.c.l.b16 %v7286
        %v7320 = vunpack.c.l.b16 %v7287
        %v7321 = vunpack.c.l.b16 %v7288
        %v7322 = vunpack.c.l.b16 %v7289
        %v7323 = vunpack.c.l.b16 %v7290
        %v7324 = vunpack.c.l.b16 %v7291
        %v7325 = vunpack.c.l.b16 %v7292
        %v7326 = vunpack.c.l.b16 %v7293
        %v7327 = vunpack.c.l.b16 %v7294
        %v7328 = vpack.c.b16 %v7313, %v7312
        %v7329 = vpack.c.b16 %v7315, %v7314
        %v7330 = vpack.c.b16 %v7317, %v7316
        %v7331 = vpack.c.b16 %v7319, %v7318
        %v7332 = vpack.c.b16 %v7321, %v7320
        %v7333 = vpack.c.b16 %v7323, %v7322
        %v7334 = vpack.c.b16 %v7325, %v7324
        %v7335 = vpack.c.b16 %v7327, %v7326
        %7344 = vmatpush.bf16.msra.mxu0 %v7335
        %7345 = vmatpush.bf16.msra.mxu0 %v7334
        %7346 = vmatpush.bf16.msra.mxu0 %v7333
        %7347 = vmatpush.bf16.msra.mxu0 %v7332
        %7348 = vmatpush.bf16.msra.mxu0 %v7331
        %7349 = vmatpush.bf16.msra.mxu0 %v7330
        %7350 = vmatpush.bf16.msra.mxu0 %v7329
        %7351 = vmatpush.bf16.msra.mxu0 %v7328
        %7352 = vmatmul.bf16.gmra.mxu0 %v7278
        %v7353 = vpop.f32.mrf.mxu0
        %v7354 = vadd.f32 %v7295, %v7353
        %v7355 = vpop.f32.mrf.mxu0
        %7356 = vdwg.mxu0
        %7357 = vst [vmem:[%s581] sm:$0x1] %v7354
        %s7358 = sand.u32 %s341, 1
        %s7359 = scalar_lea.sflag [#allocation6], %s7358
        %s7360 = sand.u32 %s341, 1
        %s7361 = scalar_lea.vmem [#allocation16], %s7360
        // Predicated region
        $region105: #{tpu_custom_call.1} parent=75 // pred_check
          %p7362 = pneg %p351
        $region106: #{tpu_custom_call.1} parent=75 // pred_check_branch
          %7364 = sbr.rel (%p7362) target = $region108
        $region107: #{tpu_custom_call.1} parent=75 // pred_region
          %7366 = vsyncadd %s7359, 0
          %s7367 = scalar_lea.hbm %s14, %s34
          %s7369 = sshll.u32 %s7361, 4
          %s7370 = int_to_ptr.vmem [resolvable:$true] %s7369
          %s7371 = sshll.u32 %s7367, 4
          %s7372 = int_to_ptr.hbm [resolvable:$true] %s7371
          %7374 = dma.vmem_to_hbm [thread:$0]  %s7370, 16, %s7372, %s7359
        $region108: #{tpu_custom_call.1} parent=75 // pred_fallthru
          _
      $region76: #{tpu_custom_call.1} parent=5 // pred_fallthru
        _
      %p7375 = scmp.le.s32.totalorder 2, %s29
      // Predicated region
      $region109: #{tpu_custom_call.1} parent=5 // pred_check
        %p7376 = pneg %p7375
      $region110: #{tpu_custom_call.1} parent=5 // pred_check_branch
        %7378 = sbr.rel (%p7376) target = $region112
      $region111: #{tpu_custom_call.1} parent=5 // pred_region
        %s7379 = ssub.s32 %s29, 2
        // Predicated region
        $region113: #{tpu_custom_call.1} parent=111 // pred_check
          %p7380 = pneg %p357
        $region114: #{tpu_custom_call.1} parent=111 // pred_check_branch
          %7382 = sbr.rel (%p7380) target = $region116
        $region115: #{tpu_custom_call.1} parent=111 // pred_region
          %s7383 = sand.u32 %s342, 1
          %s7384 = scalar_lea.sflag [#allocation6], %s7383
          %s7385 = sand.u32 %s342, 1
          %s7386 = scalar_lea.vmem [#allocation16], %s7385
          %7388 = dma.done %s7384, 16
        $region116: #{tpu_custom_call.1} parent=111 // pred_fallthru
          _
      $region112: #{tpu_custom_call.1} parent=5 // pred_fallthru
        _
    $region6: #{tpu_custom_call.1} parent=1 // loop_footer
      %s33 = sadd.s32 1, %s29
    $region7: #{tpu_custom_call.1} parent=1 // loop_footer_branch
      %28 = sbr.rel target = $region3
    $region8: #{tpu_custom_call.1} parent=1 // loop_exit
      _
    %7389 = vsyncpa [#allocation5], 1
    %s7390 = scalar_lea.sflag [#allocation5], 1
    %7391 = vsyncpa %s7390, 1
    %7392 = vsyncpa [#allocation8], 1
    %7393 = vsyncpa [#allocation11], 1
    %7394 = vsyncpa [#allocation14], 1
    %7395 = vsyncpa [#allocation6], 1
    %s7396 = scalar_lea.sflag [#allocation6], 1
    %7397 = vsyncpa %s7396, 1

</llo_original>
